<compile_context>
chip_gen: v5e
topology: v5e:2x2
jax: 0.10.0
libtpu: 0.0.40
codegen_flags: <defaults>
</compile_context>

<pallas_src>
import functools

import numpy as np
import jax
import jax.numpy as jnp
from jax.experimental import pallas as pl
from jax.experimental.pallas import tpu as pltpu

# ----------------------------- scaled-down config -----------------------------
B = 2
IN_C, IN_H, IN_W = 3, 32, 32
C_UNET = [32, 32, 32, 32]      # stand-in for SD-UNet channels [320, 640, 1280, 1280]
LDM_PRIOR = [32, 32, 64]       # scaled from [320, 640, 1280 + 1280]
OUT_DIM = 64                   # scaled from 1536 (at 1536 the tail output is already lane-dense)
EMB_DIM = 32                   # scaled from 768
VIT_LOGITS = 128               # scaled from 1000
FC_HID = 64                    # scaled from 400
NUM_CLASSES = 32               # args.no_of_classes
CTX_H, CTX_W = 16, 20          # scaled from (128, 160)
MIN_DEPTH, MAX_DEPTH = 0.1, 10.0
NUM_GROUPS = 16
GN_EPS = 1e-5

_SINGLE = pltpu.CompilerParams(dimension_semantics=("arbitrary",))


# ----------------------- compile-time constant matrices (numpy) -----------------------
def _bilinear_matrix(out_size, in_size):
    """Row-interpolation matrix matching F.interpolate(..., bilinear, align_corners=False)."""
    dst = np.arange(out_size, dtype=np.float32)
    src = np.clip((dst + 0.5) * (in_size / out_size) - 0.5, 0.0, in_size - 1)
    lo = np.floor(src).astype(np.int32)
    hi = np.minimum(lo + 1, in_size - 1)
    frac = src - lo
    m = np.zeros((out_size, in_size), np.float32)
    m[np.arange(out_size), lo] += 1.0 - frac
    m[np.arange(out_size), hi] += frac
    return m


def _conv3x3s2_gather_mats(H, W, Bn):
    """9 gather matrices (tap t) mapping flattened (B*H*W) rows -> (B*Ho*Wo) conv-output
    rows for a 3x3/stride-2/pad-1 conv; zero rows encode the zero padding. Block-diagonal
    over batch so stride/padding never mix samples when the batch is folded into rows."""
    Ho, Wo = (H + 1) // 2, (W + 1) // 2
    mats = np.zeros((9, Bn * Ho * Wo, Bn * H * W), np.float32)
    for kh in range(3):
        for kw in range(3):
            t = kh * 3 + kw
            for i in range(Ho):
                for j in range(Wo):
                    r, c = 2 * i - 1 + kh, 2 * j - 1 + kw
                    if 0 <= r < H and 0 <= c < W:
                        for b in range(Bn):
                            mats[t, b * Ho * Wo + i * Wo + j, b * H * W + r * W + c] = 1.0
    return mats


def _nearest_up2_mat(h, w, Bn):
    """Row-duplication matrix for F.interpolate(scale_factor=2, mode='nearest')."""
    m = np.zeros((Bn * 4 * h * w, Bn * h * w), np.float32)
    for b in range(Bn):
        for i in range(2 * h):
            for j in range(2 * w):
                m[b * 4 * h * w + i * (2 * w) + j, b * h * w + (i // 2) * w + (j // 2)] = 1.0
    return m


def _sample_selector(hw, Bn):
    """(B, B*hw) 0/1 matrix: per-sample row pooling (keeps GroupNorm stats per-sample)."""
    m = np.zeros((Bn, Bn * hw), np.float32)
    for b in range(Bn):
        m[b, b * hw:(b + 1) * hw] = 1.0
    return m


def _scale_batch_selector(Bn, hw_list):
    """(total_rows, B) 0/1 matrix: row -> batch index, for the conditioning add."""
    total = Bn * sum(hw_list)
    m = np.zeros((total, Bn), np.float32)
    row = 0
    for hw in hw_list:
        for b in range(Bn):
            m[row:row + hw, b] = 1.0
            row += hw
    return m


def _group_mats(C, G):
    """Factorized GroupNorm pooling: (C,G) channel->group and (G,C) group->channel."""
    g = np.arange(C) // (C // G)
    mcg = (g[:, None] == np.arange(G)[None, :]).astype(np.float32)
    return mcg, np.ascontiguousarray(mcg.T)


# ------------------------------ wrapper-side helpers ---------------------------
def avg_pool(x_nhwc, k):
    Bn, H, W, C = x_nhwc.shape
    return x_nhwc.reshape(Bn, H // k, k, W // k, k, C).mean(axis=(2, 4))


def _full_specs(args):
    return [pl.BlockSpec(a.shape, lambda i, _r=a.ndim: (0,) * _r) for a in args]


# ------------------------------- Pallas kernels --------------------------------
def _features_kernel(pooled_ref, pall_ref, sel_ref,
                     vw_ref, vb_ref, w1_ref, b1_ref, w2_ref, b2_ref,
                     emb_ref, gamma_ref, cw_ref, cb_ref, uw_ref, ub_ref, o_ref):
    bf = jnp.bfloat16

    def mm(a, b):  # bf16 MXU operands, f32 accumulate
        return jnp.dot(a.astype(bf), b.astype(bf), preferred_element_type=jnp.float32)

    # folded input affine: mean(2x-1) == 2*mean(x) - 1
    p = pooled_ref[...] * 2.0 - 1.0
    # TODO(synk): frozen google/vit classifier replaced by a fixed projection.
    logits = mm(p, vw_ref[...]) + vb_ref[...]
    h = mm(logits, w1_ref[...]) + b1_ref[...]
    # nn.GELU() in the reference is erf-exact; tanh approximation used here.
    h = 0.5 * h * (1.0 + jnp.tanh(0.7978845608028654 * (h + 0.044715 * h * h * h)))
    z = mm(h, w2_ref[...]) + b2_ref[...]
    z = z - jnp.max(z, axis=-1, keepdims=True)                     # softmax(dim=1), f32
    e = jnp.exp(z)
    probs = e / jnp.sum(e, axis=-1, keepdims=True)
    # TODO(synk): EmbeddingAdapter undefined; gamma scaling applied directly.
    cond = mm(probs, emb_ref[...]) * gamma_ref[...]
    cond_proj = mm(cond, cw_ref[...]) + cb_ref[...]                # (B, 128): all 4 scales
    # UNet stand-in multi-scale projection with the x*2-1 affine folded in, plus the
    # per-sample conditioning add, emitted as one lane-dense (rows, 128) slab.
    f = mm(pall_ref[...], uw_ref[...]) + ub_ref[...]
    o_ref[...] = f + jnp.dot(sel_ref[...], cond_proj, preferred_element_type=jnp.float32)


def cide_unet_features(pooled, p_all, sel, params):
    w_all = jnp.concatenate([params[f"unet_proj_w{i}"] for i in range(4)], axis=1)
    b_all = jnp.concatenate([params[f"unet_proj_b{i}"] for i in range(4)], axis=0)
    uw2 = 2.0 * w_all                                     # affine fold: p@(2W) + (b - colsum(W))
    ubf = (b_all - jnp.sum(w_all, axis=0)).reshape(1, -1)
    cw = jnp.concatenate([params[f"unet_cond_w{i}"] for i in range(4)], axis=1)
    cb = jnp.concatenate([params[f"unet_cond_b{i}"] for i in range(4)], axis=0).reshape(1, -1)
    args = [pooled, p_all, sel,
            params["vit_proj_w"], params["vit_proj_b"].reshape(1, -1),
            params["fc1_w"], params["fc1_b"].reshape(1, -1),
            params["fc2_w"], params["fc2_b"].reshape(1, -1),
            params["cide_emb"], params["cide_gamma"].reshape(1, -1),
            cw, cb, uw2, ubf]
    n_rows, n_cols = p_all.shape[0], cw.shape[1]
    return pl.pallas_call(
        _features_kernel,
        out_shape=jax.ShapeDtypeStruct((n_rows, n_cols), jnp.float32),
        grid=(1,),
        in_specs=_full_specs(args),
        out_specs=pl.BlockSpec((n_rows, n_cols), lambda i: (0, 0)),
        compiler_params=_SINGLE,
    )(*args)


def _tail_kernel(z0_ref, z1_ref, z2_ref, z3_ref, a1_ref, a2_ref, up_ref,
                 w1_ref, b1_ref, g1_ref, be1_ref,
                 w2_ref, b2_ref, w3_ref, b3_ref,
                 woa_ref, wob_ref, woc1_ref, woc2_ref, bo_ref, go_ref, beo_ref,
                 ps64_ref, ps64t_ref, ps16_ref, ps16t_ref,
                 mcg1_ref, mgc1_ref, mcg2_ref, mgc2_ref,
                 o_ref, *, inv_n1, inv_n2):
    bf = jnp.bfloat16

    def mm(a, b):  # bf16 MXU operands, f32 accumulate
        return jnp.dot(a.astype(bf), b.astype(bf), preferred_element_type=jnp.float32)

    def mmf(a, b):  # f32 matmul (GroupNorm statistics / 0-1 pooling matrices)
        return jnp.dot(a, b, preferred_element_type=jnp.float32)

    def conv3x3s2(x, a_ref, w_ref, b_ref):
        # In-kernel im2col: 9-tap accumulation against precomputed 0/1 gather matrices
        # (block-diagonal over batch); no (HW, 9*C) patch tensor in HBM.
        y = b_ref[...]
        for t in range(9):
            y = y + mm(mm(a_ref[t], x), w_ref[t])
        return y

    def gn_relu(y, psel_ref, pselt_ref, mcg_ref, mgc_ref, g_ref, be_ref, inv_n):
        # Per-sample GroupNorm (two-pass, f32 stats); group pooling factorized as
        # (C,G)x(G,C) instead of a CxC matrix (VMEM-friendly at production C).
        psel, pselt = psel_ref[...], pselt_ref[...]
        mcg, mgc = mcg_ref[...], mgc_ref[...]
        s = mmf(psel, y)                                         # (B, C) per-sample sums
        mean_rows = mmf(pselt, mmf(mmf(s, mcg) * inv_n, mgc))    # broadcast back to rows
        yc = y - mean_rows
        v = mmf(psel, yc * yc)
        var_rows = mmf(pselt, mmf(mmf(v, mcg) * inv_n, mgc))
        return jnp.maximum(yc * jax.lax.rsqrt(var_rows + GN_EPS) * g_ref[...] + be_ref[...], 0.0)

    # layer1: conv1 (16x16 -> 8x8) + GN(16) + ReLU, then conv2 (8x8 -> 4x4)
    y1 = conv3x3s2(z0_ref[...], a1_ref, w1_ref, b1_ref)
    y1 = gn_relu(y1, ps64_ref, ps64t_ref, mcg1_ref, mgc1_ref, g1_ref, be1_ref, inv_n1)
    y2 = conv3x3s2(y1, a2_ref, w2_ref, b2_ref)
    # layer2: conv (8x8 -> 4x4) on outs[1] (same gather matrices as conv2)
    y3 = conv3x3s2(z1_ref[...], a2_ref, w3_ref, b3_ref)
    # out_layer 1x1 conv on concat([y2, y3, outs[2], up2(outs[3])]) as a sum of
    # sliced-weight matmuls; the nearest 2x upsample is commuted behind the 1x1 conv
    # (exact, since it is pointwise) and applied as a 0/1 row-duplication matrix.
    h = (mm(y2, woa_ref[...]) + mm(y3, wob_ref[...]) + mm(z2_ref[...], woc1_ref[...])
         + mm(up_ref[...], mm(z3_ref[...], woc2_ref[...])) + bo_ref[...])
    o_ref[...] = gn_relu(h, ps16_ref, ps16t_ref, mcg2_ref, mgc2_ref, go_ref, beo_ref, inv_n2)


def encoder_tail(z0, z1, z2, z3, params, a1, a2, up,
                 ps64, ps64t, ps16, ps16t, mcg1, mgc1, mcg2, mgc2):
    """Fused [layer1 conv1+GN+ReLU, layer1 conv2, layer2 conv, 1x1 out conv + GN + ReLU]."""
    C1, C2, Co = LDM_PRIOR[0], LDM_PRIOR[1], OUT_DIM
    hw1 = ps64.shape[1] // ps64.shape[0]
    hw2 = ps16.shape[1] // ps16.shape[0]
    inv_n1 = 1.0 / float(hw1 * (C1 // NUM_GROUPS))
    inv_n2 = 1.0 / float(hw2 * (Co // NUM_GROUPS))
    w_out = params["out_w"]
    woa = w_out[:C1]
    wob = w_out[C1:C1 + C2]
    woc1 = w_out[C1 + C2:C1 + C2 + C_UNET[2]]
    woc2 = w_out[C1 + C2 + C_UNET[2]:]
    args = [z0, z1, z2, z3, a1, a2, up,
            params["l1c1_w"].reshape(9, C1, C1), params["l1c1_b"].reshape(1, C1),
            params["l1gn_g"].reshape(1, C1), params["l1gn_b"].reshape(1, C1),
            params["l1c2_w"].reshape(9, C1, C1), params["l1c2_b"].reshape(1, C1),
            params["l2c_w"].reshape(9, C2, C2), params["l2c_b"].reshape(1, C2),
            woa, wob, woc1, woc2, params["out_b"].reshape(1, Co),
            params["outgn_g"].reshape(1, Co), params["outgn_b"].reshape(1, Co),
            ps64, ps64t, ps16, ps16t, mcg1, mgc1, mcg2, mgc2]
    n_rows = ps16.shape[1]
    # TODO(synk): at production Co=1536 the output is naturally lane-dense; add K/N
    # tiling + f32 accumulator scratch and vmem_limit_bytes for the 64 MiB v7x VMEM.
    return pl.pallas_call(
        functools.partial(_tail_kernel, inv_n1=inv_n1, inv_n2=inv_n2),
        out_shape=jax.ShapeDtypeStruct((n_rows, Co), jnp.float32),
        grid=(1,),
        in_specs=_full_specs(args),
        out_specs=pl.BlockSpec((n_rows, Co), lambda i: (0, 0)),
        compiler_params=_SINGLE,
    )(*args)


def _depth_kernel(ctx_ref, dw_ref, db_ref, ah1_ref, aw1t_ref, ah2_ref, aw2t_ref,
                  o_ref, *, min_depth, max_depth):
    bf = jnp.bfloat16
    x = ctx_ref[...]                                               # (B*H, W, C)
    # 1x1 depth head as a VPU multiply + lane reduction (no N=1 MXU matmul); being
    # linear it commutes exactly in front of the bilinear context resize.
    s = jnp.sum(x * dw_ref[...], axis=-1) + db_ref[...]            # (B*H, W)
    # F.interpolate(context, (CTX_H, CTX_W), bilinear): batch folded into rows via a
    # block-diagonal row matrix; bf16 MXU operands, f32 accumulate.
    s = jnp.dot(ah1_ref[...].astype(bf), s.astype(bf), preferred_element_type=jnp.float32)
    s = jnp.dot(s.astype(bf), aw1t_ref[...].astype(bf), preferred_element_type=jnp.float32)
    # TODO(synk): BasicUpdateBlockDepth GRU undefined; sigmoid depth head stands in.
    depth = min_depth + (max_depth - min_depth) * jax.nn.sigmoid(s)
    # nn.Upsample(scale_factor=4, bilinear, align_corners=False); kept in f32 so the
    # final depth values are not rounded to bf16; weight slab zero-padded to 128
    # lanes -> unmasked lane-dense store (wrapper slices back to 80 columns).
    p = jnp.dot(ah2_ref[...], depth, preferred_element_type=jnp.float32)
    o_ref[...] = jnp.dot(p, aw2t_ref[...], preferred_element_type=jnp.float32)


def depth_path(ctx, params, ah1_bd, aw1t, ah2_bd, aw2t_pad):
    rows_out, lanes_out = ah2_bd.shape[0], aw2t_pad.shape[1]
    args = [ctx, params["depth_w"].reshape(1, 1, -1), params["depth_b"].reshape(1, 1),
            ah1_bd, aw1t, ah2_bd, aw2t_pad]
    return pl.pallas_call(
        functools.partial(_depth_kernel, min_depth=MIN_DEPTH, max_depth=MAX_DEPTH),
        out_shape=jax.ShapeDtypeStruct((rows_out, lanes_out), jnp.float32),
        grid=(1,),
        in_specs=_full_specs(args),
        out_specs=pl.BlockSpec((rows_out, lanes_out), lambda i: (0, 0)),
        compiler_params=_SINGLE,
    )(*args)


# ------------------------------- parameter init --------------------------------
def init_params(key):
    ks = jax.random.split(key, 40)
    it = iter(ks)

    def nrm(shape, std=0.02):
        return std * jax.random.normal(next(it), shape, jnp.float32)

    p = {}
    # CIDE (ViT-logits stub projection + fc head + class embeddings + gamma)
    p["vit_proj_w"] = nrm((IN_C, VIT_LOGITS), 1.0)
    p["vit_proj_b"] = jnp.zeros((VIT_LOGITS,), jnp.float32)
    p["fc1_w"] = nrm((VIT_LOGITS, FC_HID)); p["fc1_b"] = jnp.zeros((FC_HID,), jnp.float32)
    p["fc2_w"] = nrm((FC_HID, NUM_CLASSES)); p["fc2_b"] = jnp.zeros((NUM_CLASSES,), jnp.float32)
    p["cide_emb"] = jax.random.normal(next(it), (NUM_CLASSES, EMB_DIM), jnp.float32)
    p["cide_gamma"] = jnp.full((EMB_DIM,), 1e-4, jnp.float32)
    # UNet stand-in projections (per scale) + conditioning projections
    for i in range(4):
        p[f"unet_proj_w{i}"] = nrm((IN_C, C_UNET[i]), 1.0)
        p[f"unet_proj_b{i}"] = jnp.zeros((C_UNET[i],), jnp.float32)
        p[f"unet_cond_w{i}"] = nrm((EMB_DIM, C_UNET[i]), 1.0)
        p[f"unet_cond_b{i}"] = jnp.zeros((C_UNET[i],), jnp.float32)
    # EcoDepthEncoder layer1 / layer2 / out_layer
    p["l1c1_w"] = nrm((3, 3, LDM_PRIOR[0], LDM_PRIOR[0])); p["l1c1_b"] = jnp.zeros((LDM_PRIOR[0],), jnp.float32)
    p["l1gn_g"] = jnp.ones((LDM_PRIOR[0],), jnp.float32);  p["l1gn_b"] = jnp.zeros((LDM_PRIOR[0],), jnp.float32)
    p["l1c2_w"] = nrm((3, 3, LDM_PRIOR[0], LDM_PRIOR[0])); p["l1c2_b"] = jnp.zeros((LDM_PRIOR[0],), jnp.float32)
    p["l2c_w"] = nrm((3, 3, LDM_PRIOR[1], LDM_PRIOR[1]));  p["l2c_b"] = jnp.zeros((LDM_PRIOR[1],), jnp.float32)
    p["out_w"] = nrm((sum(LDM_PRIOR), OUT_DIM));           p["out_b"] = jnp.zeros((OUT_DIM,), jnp.float32)
    p["outgn_g"] = jnp.ones((OUT_DIM,), jnp.float32);      p["outgn_b"] = jnp.zeros((OUT_DIM,), jnp.float32)
    # decoder stand-in depth head (1x1 conv over context channels)
    p["depth_w"] = nrm((C_UNET[0], 1), 1.0); p["depth_b"] = jnp.zeros((1,), jnp.float32)
    return p


# --------------------------------- forward -------------------------------------
def ecodepth_dar_a_forward(params, x_nchw):
    Bn = x_nchw.shape[0]
    x_nhwc = jnp.transpose(x_nchw, (0, 2, 3, 1))          # raw input; x*2-1 folded in-kernel

    # ---- compile-time constant index / pooling matrices (numpy -> HLO constants) ----
    factors = (2, 4, 8, 16)
    hw_list = [(IN_H // k) * (IN_W // k) for k in factors]          # [256, 64, 16, 4]
    sel_np = _scale_batch_selector(Bn, hw_list)
    a1_np = _conv3x3s2_gather_mats(IN_H // 2, IN_W // 2, Bn)        # 16x16 -> 8x8
    a2_np = _conv3x3s2_gather_mats(IN_H // 4, IN_W // 4, Bn)        # 8x8 -> 4x4
    up_np = _nearest_up2_mat(IN_H // 16, IN_W // 16, Bn)            # 2x2 -> 4x4 nearest
    ps64_np = _sample_selector((IN_H // 4) * (IN_W // 4), Bn)
    ps16_np = _sample_selector((IN_H // 8) * (IN_W // 8), Bn)
    mcg1_np, mgc1_np = _group_mats(LDM_PRIOR[0], NUM_GROUPS)
    mcg2_np, mgc2_np = _group_mats(OUT_DIM, NUM_GROUPS)
    ah1_np = np.kron(np.eye(Bn, dtype=np.float32), _bilinear_matrix(CTX_H, IN_H // 2))
    aw1t_np = np.ascontiguousarray(_bilinear_matrix(CTX_W, IN_W // 2).T)
    ah2_np = np.kron(np.eye(Bn, dtype=np.float32), _bilinear_matrix(4 * CTX_H, CTX_H))
    aw2t_np = np.zeros((CTX_W, 128), np.float32)
    aw2t_np[:, :4 * CTX_W] = _bilinear_matrix(4 * CTX_W, CTX_W).T

    # ----------------------------- CIDE + UNet stand-in -----------------------------
    # TODO(synk): encoder_vq (SD VAE), UNetWrapper and the frozen ViT are external
    # pretrained nets; multi-scale features are synthesized from pooled pixels.
    pooled = jnp.mean(x_nhwc, axis=(1, 2))                                    # (B, 3)
    pools = [avg_pool(x_nhwc, k) for k in factors]
    p_all = jnp.concatenate([p.reshape(-1, IN_C) for p in pools], axis=0)     # (680, 3)
    slab = cide_unet_features(pooled, p_all, jnp.asarray(sel_np), params)     # (680, 128)

    # per-scale feature blocks outs[i], flattened to (B*Hi*Wi, Ci)
    row_off, col_off, zs = 0, 0, []
    for s, hw in enumerate(hw_list):
        n_rows, n_cols = Bn * hw, C_UNET[s]
        zs.append(jax.lax.slice(slab, (row_off, col_off),
                                (row_off + n_rows, col_off + n_cols)))
        row_off += n_rows
        col_off += n_cols
    z0, z1, z2, z3 = zs

    # ------------------------ EcoDepthEncoder tail (one kernel) ----------------------
    conv_flat = encoder_tail(
        z0, z1, z2, z3, params,
        jnp.asarray(a1_np, jnp.bfloat16), jnp.asarray(a2_np, jnp.bfloat16),
        jnp.asarray(up_np, jnp.bfloat16),
        jnp.asarray(ps64_np), jnp.asarray(np.ascontiguousarray(ps64_np.T)),
        jnp.asarray(ps16_np), jnp.asarray(np.ascontiguousarray(ps16_np.T)),
        jnp.asarray(mcg1_np), jnp.asarray(mgc1_np),
        jnp.asarray(mcg2_np), jnp.asarray(mgc2_np))                 # (B*16, 64)
    Hc = IN_H // 8
    conv_feats = conv_flat.reshape(Bn, Hc, Hc, OUT_DIM).transpose(0, 3, 1, 2)

    # -------------------------------- AutoRegDecoder ---------------------------------
    # TODO(synk): SwinEncoder (encoder2) cond_feats loop omitted (external net).
    ctx = z0.reshape(Bn * (IN_H // 2), IN_W // 2, C_UNET[0])
    pred_pad = depth_path(ctx, params, jnp.asarray(ah1_np), jnp.asarray(aw1t_np),
                          jnp.asarray(ah2_np), jnp.asarray(aw2t_np))          # (B*64, 128)
    pred = pred_pad[:, :4 * CTX_W].reshape(Bn, 1, 4 * CTX_H, 4 * CTX_W)
    return {"pred_d": [pred], "conv_feats": conv_feats}


# ----------------------------------- main ---------------------------------------
if __name__ == "__main__":
    key = jax.random.PRNGKey(0)
    pkey, xkey = jax.random.split(key)
    params = init_params(pkey)
    x = jax.random.uniform(xkey, (B, IN_C, IN_H, IN_W), jnp.float32)  # image in [0,1]

    fwd = jax.jit(ecodepth_dar_a_forward)
    out = fwd(params, x)
    pred = jax.block_until_ready(out["pred_d"][0])
    assert pred.shape == (B, 1, 4 * CTX_H, 4 * CTX_W), pred.shape
    assert jnp.all(jnp.isfinite(pred))
    assert out["conv_feats"].shape == (B, OUT_DIM, IN_H // 8, IN_W // 8)
    print("KERNEL_OK")
</pallas_src>

<mosaic_0001>
module attributes {stable_mosaic.version = 11 : i64} {
  func.func @_features_kernel(%arg0: i32, %arg1: memref<2x3xf32, #tpu.memory_space<vmem>>, %arg2: memref<680x3xf32, #tpu.memory_space<vmem>>, %arg3: memref<680x2xf32, #tpu.memory_space<vmem>>, %arg4: memref<3x128xf32, #tpu.memory_space<vmem>>, %arg5: memref<1x128xf32, #tpu.memory_space<vmem>>, %arg6: memref<128x64xf32, #tpu.memory_space<vmem>>, %arg7: memref<1x64xf32, #tpu.memory_space<vmem>>, %arg8: memref<64x32xf32, #tpu.memory_space<vmem>>, %arg9: memref<1x32xf32, #tpu.memory_space<vmem>>, %arg10: memref<32x32xf32, #tpu.memory_space<vmem>>, %arg11: memref<1x32xf32, #tpu.memory_space<vmem>>, %arg12: memref<32x128xf32, #tpu.memory_space<vmem>>, %arg13: memref<1x128xf32, #tpu.memory_space<vmem>>, %arg14: memref<3x128xf32, #tpu.memory_space<vmem>>, %arg15: memref<1x128xf32, #tpu.memory_space<vmem>>, %arg16: memref<680x128xf32, #tpu.memory_space<vmem>>) attributes {dimension_semantics = [#tpu.dimension_semantics<arbitrary>], iteration_bounds = array<i64: 1>, scalar_prefetch = 0 : i64, scratch_operands = 0 : i64, tpu.core_type = #tpu.core_type<tc>, window_params = [{pipeline_mode = #tpu.pipeline_mode<synchronous>, transform_indices = @transform_0, window_bounds = array<i64: 2, 3>}, {pipeline_mode = #tpu.pipeline_mode<synchronous>, transform_indices = @transform_1, window_bounds = array<i64: 680, 3>}, {pipeline_mode = #tpu.pipeline_mode<synchronous>, transform_indices = @transform_2, window_bounds = array<i64: 680, 2>}, {pipeline_mode = #tpu.pipeline_mode<synchronous>, transform_indices = @transform_3, window_bounds = array<i64: 3, 128>}, {pipeline_mode = #tpu.pipeline_mode<synchronous>, transform_indices = @transform_4, window_bounds = array<i64: 1, 128>}, {pipeline_mode = #tpu.pipeline_mode<synchronous>, transform_indices = @transform_5, window_bounds = array<i64: 128, 64>}, {pipeline_mode = #tpu.pipeline_mode<synchronous>, transform_indices = @transform_6, window_bounds = array<i64: 1, 64>}, {pipeline_mode = #tpu.pipeline_mode<synchronous>, transform_indices = @transform_7, window_bounds = array<i64: 64, 32>}, {pipeline_mode = #tpu.pipeline_mode<synchronous>, transform_indices = @transform_8, window_bounds = array<i64: 1, 32>}, {pipeline_mode = #tpu.pipeline_mode<synchronous>, transform_indices = @transform_9, window_bounds = array<i64: 32, 32>}, {pipeline_mode = #tpu.pipeline_mode<synchronous>, transform_indices = @transform_10, window_bounds = array<i64: 1, 32>}, {pipeline_mode = #tpu.pipeline_mode<synchronous>, transform_indices = @transform_11, window_bounds = array<i64: 32, 128>}, {pipeline_mode = #tpu.pipeline_mode<synchronous>, transform_indices = @transform_12, window_bounds = array<i64: 1, 128>}, {pipeline_mode = #tpu.pipeline_mode<synchronous>, transform_indices = @transform_13, window_bounds = array<i64: 3, 128>}, {pipeline_mode = #tpu.pipeline_mode<synchronous>, transform_indices = @transform_14, window_bounds = array<i64: 1, 128>}, {pipeline_mode = #tpu.pipeline_mode<synchronous>, transform_indices = @transform_15, window_bounds = array<i64: 680, 128>}]} {
    %c0 = arith.constant 0 : index
    %c0_0 = arith.constant 0 : index
    %0 = vector.load %arg1[%c0, %c0_0] : memref<2x3xf32, #tpu.memory_space<vmem>>, vector<2x3xf32>
    %cst = arith.constant 2.000000e+00 : f32
    %1 = vector.broadcast %cst : f32 to vector<2x3xf32>
    %2 = arith.mulf %0, %1 : vector<2x3xf32>
    %cst_1 = arith.constant 1.000000e+00 : f32
    %3 = vector.broadcast %cst_1 : f32 to vector<2x3xf32>
    %4 = arith.subf %2, %3 : vector<2x3xf32>
    %c0_2 = arith.constant 0 : index
    %c0_3 = arith.constant 0 : index
    %5 = vector.load %arg4[%c0_2, %c0_3] : memref<3x128xf32, #tpu.memory_space<vmem>>, vector<3x128xf32>
    %6 = arith.truncf %4 : vector<2x3xf32> to vector<2x3xbf16>
    %7 = arith.truncf %5 : vector<3x128xf32> to vector<3x128xbf16>
    %cst_4 = arith.constant dense<0.000000e+00> : vector<2x128xf32>
    %8 = tpu.matmul %6, %7, %cst_4 {dimension_numbers = #tpu.dot_dimension_numbers<[1], [0], [0], [1], [0, 0, 1, 1], [], []>} : vector<2x3xbf16>, vector<3x128xbf16>, vector<2x128xf32> -> vector<2x128xf32>
    %c0_5 = arith.constant 0 : index
    %c0_6 = arith.constant 0 : index
    %9 = vector.load %arg5[%c0_5, %c0_6] : memref<1x128xf32, #tpu.memory_space<vmem>>, vector<1x128xf32>
    %10 = vector.broadcast %9 : vector<1x128xf32> to vector<2x128xf32>
    %11 = arith.addf %8, %10 : vector<2x128xf32>
    %c0_7 = arith.constant 0 : index
    %c0_8 = arith.constant 0 : index
    %12 = vector.load %arg6[%c0_7, %c0_8] : memref<128x64xf32, #tpu.memory_space<vmem>>, vector<128x64xf32>
    %13 = arith.truncf %11 : vector<2x128xf32> to vector<2x128xbf16>
    %14 = arith.truncf %12 : vector<128x64xf32> to vector<128x64xbf16>
    %cst_9 = arith.constant dense<0.000000e+00> : vector<2x64xf32>
    %15 = tpu.matmul %13, %14, %cst_9 {dimension_numbers = #tpu.dot_dimension_numbers<[1], [0], [0], [1], [0, 0, 1, 1], [], []>} : vector<2x128xbf16>, vector<128x64xbf16>, vector<2x64xf32> -> vector<2x64xf32>
    %c0_10 = arith.constant 0 : index
    %c0_11 = arith.constant 0 : index
    %16 = vector.load %arg7[%c0_10, %c0_11] : memref<1x64xf32, #tpu.memory_space<vmem>>, vector<1x64xf32>
    %17 = vector.broadcast %16 : vector<1x64xf32> to vector<2x64xf32>
    %18 = arith.addf %15, %17 : vector<2x64xf32>
    %cst_12 = arith.constant 5.000000e-01 : f32
    %19 = vector.broadcast %cst_12 : f32 to vector<2x64xf32>
    %20 = arith.mulf %19, %18 : vector<2x64xf32>
    %cst_13 = arith.constant 4.471500e-02 : f32
    %21 = vector.broadcast %cst_13 : f32 to vector<2x64xf32>
    %22 = arith.mulf %21, %18 : vector<2x64xf32>
    %23 = arith.mulf %22, %18 : vector<2x64xf32>
    %24 = arith.mulf %23, %18 : vector<2x64xf32>
    %25 = arith.addf %18, %24 : vector<2x64xf32>
    %cst_14 = arith.constant 0.797884583 : f32
    %26 = vector.broadcast %cst_14 : f32 to vector<2x64xf32>
    %27 = arith.mulf %26, %25 : vector<2x64xf32>
    %28 = math.tanh %27 : vector<2x64xf32>
    %cst_15 = arith.constant 1.000000e+00 : f32
    %29 = vector.broadcast %cst_15 : f32 to vector<2x64xf32>
    %30 = arith.addf %29, %28 : vector<2x64xf32>
    %31 = arith.mulf %20, %30 : vector<2x64xf32>
    %c0_16 = arith.constant 0 : index
    %c0_17 = arith.constant 0 : index
    %32 = vector.load %arg8[%c0_16, %c0_17] : memref<64x32xf32, #tpu.memory_space<vmem>>, vector<64x32xf32>
    %33 = arith.truncf %31 : vector<2x64xf32> to vector<2x64xbf16>
    %34 = arith.truncf %32 : vector<64x32xf32> to vector<64x32xbf16>
    %cst_18 = arith.constant dense<0.000000e+00> : vector<2x32xf32>
    %35 = tpu.matmul %33, %34, %cst_18 {dimension_numbers = #tpu.dot_dimension_numbers<[1], [0], [0], [1], [0, 0, 1, 1], [], []>} : vector<2x64xbf16>, vector<64x32xbf16>, vector<2x32xf32> -> vector<2x32xf32>
    %c0_19 = arith.constant 0 : index
    %c0_20 = arith.constant 0 : index
    %36 = vector.load %arg9[%c0_19, %c0_20] : memref<1x32xf32, #tpu.memory_space<vmem>>, vector<1x32xf32>
    %37 = vector.broadcast %36 : vector<1x32xf32> to vector<2x32xf32>
    %38 = arith.addf %35, %37 : vector<2x32xf32>
    %cst_21 = arith.constant dense<0xFF800000> : vector<2xf32>
    %39 = vector.multi_reduction <maximumf>, %38, %cst_21 [1] : vector<2x32xf32> to vector<2xf32>
    %40 = vector.shape_cast %39 : vector<2xf32> to vector<2x1xf32>
    %41 = vector.broadcast %40 : vector<2x1xf32> to vector<2x32xf32>
    %42 = arith.subf %38, %41 : vector<2x32xf32>
    %43 = math.exp %42 : vector<2x32xf32>
    %cst_22 = arith.constant dense<0.000000e+00> : vector<2xf32>
    %44 = vector.multi_reduction <add>, %43, %cst_22 [1] : vector<2x32xf32> to vector<2xf32>
    %45 = vector.shape_cast %44 : vector<2xf32> to vector<2x1xf32>
    %46 = vector.broadcast %45 : vector<2x1xf32> to vector<2x32xf32>
    %47 = arith.divf %43, %46 : vector<2x32xf32>
    %c0_23 = arith.constant 0 : index
    %c0_24 = arith.constant 0 : index
    %48 = vector.load %arg10[%c0_23, %c0_24] : memref<32x32xf32, #tpu.memory_space<vmem>>, vector<32x32xf32>
    %49 = arith.truncf %47 : vector<2x32xf32> to vector<2x32xbf16>
    %50 = arith.truncf %48 : vector<32x32xf32> to vector<32x32xbf16>
    %cst_25 = arith.constant dense<0.000000e+00> : vector<2x32xf32>
    %51 = tpu.matmul %49, %50, %cst_25 {dimension_numbers = #tpu.dot_dimension_numbers<[1], [0], [0], [1], [0, 0, 1, 1], [], []>} : vector<2x32xbf16>, vector<32x32xbf16>, vector<2x32xf32> -> vector<2x32xf32>
    %c0_26 = arith.constant 0 : index
    %c0_27 = arith.constant 0 : index
    %52 = vector.load %arg11[%c0_26, %c0_27] : memref<1x32xf32, #tpu.memory_space<vmem>>, vector<1x32xf32>
    %53 = vector.broadcast %52 : vector<1x32xf32> to vector<2x32xf32>
    %54 = arith.mulf %51, %53 : vector<2x32xf32>
    %c0_28 = arith.constant 0 : index
    %c0_29 = arith.constant 0 : index
    %55 = vector.load %arg12[%c0_28, %c0_29] : memref<32x128xf32, #tpu.memory_space<vmem>>, vector<32x128xf32>
    %56 = arith.truncf %54 : vector<2x32xf32> to vector<2x32xbf16>
    %57 = arith.truncf %55 : vector<32x128xf32> to vector<32x128xbf16>
    %cst_30 = arith.constant dense<0.000000e+00> : vector<2x128xf32>
    %58 = tpu.matmul %56, %57, %cst_30 {dimension_numbers = #tpu.dot_dimension_numbers<[1], [0], [0], [1], [0, 0, 1, 1], [], []>} : vector<2x32xbf16>, vector<32x128xbf16>, vector<2x128xf32> -> vector<2x128xf32>
    %c0_31 = arith.constant 0 : index
    %c0_32 = arith.constant 0 : index
    %59 = vector.load %arg13[%c0_31, %c0_32] : memref<1x128xf32, #tpu.memory_space<vmem>>, vector<1x128xf32>
    %60 = vector.broadcast %59 : vector<1x128xf32> to vector<2x128xf32>
    %61 = arith.addf %58, %60 : vector<2x128xf32>
    %c0_33 = arith.constant 0 : index
    %c0_34 = arith.constant 0 : index
    %62 = vector.load %arg2[%c0_33, %c0_34] : memref<680x3xf32, #tpu.memory_space<vmem>>, vector<680x3xf32>
    %c0_35 = arith.constant 0 : index
    %c0_36 = arith.constant 0 : index
    %63 = vector.load %arg14[%c0_35, %c0_36] : memref<3x128xf32, #tpu.memory_space<vmem>>, vector<3x128xf32>
    %64 = arith.truncf %62 : vector<680x3xf32> to vector<680x3xbf16>
    %65 = arith.truncf %63 : vector<3x128xf32> to vector<3x128xbf16>
    %cst_37 = arith.constant dense<0.000000e+00> : vector<680x128xf32>
    %66 = tpu.matmul %64, %65, %cst_37 {dimension_numbers = #tpu.dot_dimension_numbers<[1], [0], [0], [1], [0, 0, 1, 1], [], []>} : vector<680x3xbf16>, vector<3x128xbf16>, vector<680x128xf32> -> vector<680x128xf32>
    %c0_38 = arith.constant 0 : index
    %c0_39 = arith.constant 0 : index
    %67 = vector.load %arg15[%c0_38, %c0_39] : memref<1x128xf32, #tpu.memory_space<vmem>>, vector<1x128xf32>
    %68 = vector.broadcast %67 : vector<1x128xf32> to vector<680x128xf32>
    %69 = arith.addf %66, %68 : vector<680x128xf32>
    %c0_40 = arith.constant 0 : index
    %c0_41 = arith.constant 0 : index
    %70 = vector.load %arg3[%c0_40, %c0_41] : memref<680x2xf32, #tpu.memory_space<vmem>>, vector<680x2xf32>
    %cst_42 = arith.constant dense<0.000000e+00> : vector<680x128xf32>
    %71 = tpu.matmul %70, %61, %cst_42 {dimension_numbers = #tpu.dot_dimension_numbers<[1], [0], [0], [1], [0, 0, 1, 1], [], []>} : vector<680x2xf32>, vector<2x128xf32>, vector<680x128xf32> -> vector<680x128xf32>
    %72 = arith.addf %69, %71 : vector<680x128xf32>
    %c0_43 = arith.constant 0 : index
    %c0_44 = arith.constant 0 : index
    %73 = vector.load %arg16[%c0_43, %c0_44] : memref<680x128xf32, #tpu.memory_space<vmem>>, vector<680x128xf32>
    tpu.vector_store %arg16[%c0_43, %c0_44], %72 {strides = array<i32>} : memref<680x128xf32, #tpu.memory_space<vmem>>, vector<680x128xf32>,
    return
  }
  func.func @transform_0(%arg0: i32) -> (i32, i32) {
    %c0_i32 = arith.constant 0 : i32
    %c0_i32_0 = arith.constant 0 : i32
    %c0_i32_1 = arith.constant 0 : i32
    return %c0_i32, %c0_i32_0 : i32, i32
  }
  func.func @transform_1(%arg0: i32) -> (i32, i32) {
    %c0_i32 = arith.constant 0 : i32
    %c0_i32_0 = arith.constant 0 : i32
    %c0_i32_1 = arith.constant 0 : i32
    return %c0_i32, %c0_i32_0 : i32, i32
  }
  func.func @transform_2(%arg0: i32) -> (i32, i32) {
    %c0_i32 = arith.constant 0 : i32
    %c0_i32_0 = arith.constant 0 : i32
    %c0_i32_1 = arith.constant 0 : i32
    return %c0_i32, %c0_i32_0 : i32, i32
  }
  func.func @transform_3(%arg0: i32) -> (i32, i32) {
    %c0_i32 = arith.constant 0 : i32
    %c0_i32_0 = arith.constant 0 : i32
    %c0_i32_1 = arith.constant 0 : i32
    return %c0_i32, %c0_i32_0 : i32, i32
  }
  func.func @transform_4(%arg0: i32) -> (i32, i32) {
    %c0_i32 = arith.constant 0 : i32
    %c0_i32_0 = arith.constant 0 : i32
    %c0_i32_1 = arith.constant 0 : i32
    return %c0_i32, %c0_i32_0 : i32, i32
  }
  func.func @transform_5(%arg0: i32) -> (i32, i32) {
    %c0_i32 = arith.constant 0 : i32
    %c0_i32_0 = arith.constant 0 : i32
    %c0_i32_1 = arith.constant 0 : i32
    return %c0_i32, %c0_i32_0 : i32, i32
  }
  func.func @transform_6(%arg0: i32) -> (i32, i32) {
    %c0_i32 = arith.constant 0 : i32
    %c0_i32_0 = arith.constant 0 : i32
    %c0_i32_1 = arith.constant 0 : i32
    return %c0_i32, %c0_i32_0 : i32, i32
  }
  func.func @transform_7(%arg0: i32) -> (i32, i32) {
    %c0_i32 = arith.constant 0 : i32
    %c0_i32_0 = arith.constant 0 : i32
    %c0_i32_1 = arith.constant 0 : i32
    return %c0_i32, %c0_i32_0 : i32, i32
  }
  func.func @transform_8(%arg0: i32) -> (i32, i32) {
    %c0_i32 = arith.constant 0 : i32
    %c0_i32_0 = arith.constant 0 : i32
    %c0_i32_1 = arith.constant 0 : i32
    return %c0_i32, %c0_i32_0 : i32, i32
  }
  func.func @transform_9(%arg0: i32) -> (i32, i32) {
    %c0_i32 = arith.constant 0 : i32
    %c0_i32_0 = arith.constant 0 : i32
    %c0_i32_1 = arith.constant 0 : i32
    return %c0_i32, %c0_i32_0 : i32, i32
  }
  func.func @transform_10(%arg0: i32) -> (i32, i32) {
    %c0_i32 = arith.constant 0 : i32
    %c0_i32_0 = arith.constant 0 : i32
    %c0_i32_1 = arith.constant 0 : i32
    return %c0_i32, %c0_i32_0 : i32, i32
  }
  func.func @transform_11(%arg0: i32) -> (i32, i32) {
    %c0_i32 = arith.constant 0 : i32
    %c0_i32_0 = arith.constant 0 : i32
    %c0_i32_1 = arith.constant 0 : i32
    return %c0_i32, %c0_i32_0 : i32, i32
  }
  func.func @transform_12(%arg0: i32) -> (i32, i32) {
    %c0_i32 = arith.constant 0 : i32
    %c0_i32_0 = arith.constant 0 : i32
    %c0_i32_1 = arith.constant 0 : i32
    return %c0_i32, %c0_i32_0 : i32, i32
  }
  func.func @transform_13(%arg0: i32) -> (i32, i32) {
    %c0_i32 = arith.constant 0 : i32
    %c0_i32_0 = arith.constant 0 : i32
    %c0_i32_1 = arith.constant 0 : i32
    return %c0_i32, %c0_i32_0 : i32, i32
  }
  func.func @transform_14(%arg0: i32) -> (i32, i32) {
    %c0_i32 = arith.constant 0 : i32
    %c0_i32_0 = arith.constant 0 : i32
    %c0_i32_1 = arith.constant 0 : i32
    return %c0_i32, %c0_i32_0 : i32, i32
  }
  func.func @transform_15(%arg0: i32) -> (i32, i32) {
    %c0_i32 = arith.constant 0 : i32
    %c0_i32_0 = arith.constant 0 : i32
    %c0_i32_1 = arith.constant 0 : i32
    return %c0_i32, %c0_i32_0 : i32, i32
  }
}

module attributes {stable_mosaic.version = 11 : i64} {
  func.func @_depth_kernel(%arg0: i32, %arg1: memref<32x16x32xf32, #tpu.memory_space<vmem>>, %arg2: memref<1x1x32xf32, #tpu.memory_space<vmem>>, %arg3: memref<1x1xf32, #tpu.memory_space<vmem>>, %arg4: memref<32x32xf32, #tpu.memory_space<vmem>>, %arg5: memref<16x20xf32, #tpu.memory_space<vmem>>, %arg6: memref<128x32xf32, #tpu.memory_space<vmem>>, %arg7: memref<20x128xf32, #tpu.memory_space<vmem>>, %arg8: memref<128x128xf32, #tpu.memory_space<vmem>>) attributes {dimension_semantics = [#tpu.dimension_semantics<arbitrary>], iteration_bounds = array<i64: 1>, scalar_prefetch = 0 : i64, scratch_operands = 0 : i64, tpu.core_type = #tpu.core_type<tc>, window_params = [{pipeline_mode = #tpu.pipeline_mode<synchronous>, transform_indices = @transform_0, window_bounds = array<i64: 32, 16, 32>}, {pipeline_mode = #tpu.pipeline_mode<synchronous>, transform_indices = @transform_1, window_bounds = array<i64: 1, 1, 32>}, {pipeline_mode = #tpu.pipeline_mode<synchronous>, transform_indices = @transform_2, window_bounds = array<i64: 1, 1>}, {pipeline_mode = #tpu.pipeline_mode<synchronous>, transform_indices = @transform_3, window_bounds = array<i64: 32, 32>}, {pipeline_mode = #tpu.pipeline_mode<synchronous>, transform_indices = @transform_4, window_bounds = array<i64: 16, 20>}, {pipeline_mode = #tpu.pipeline_mode<synchronous>, transform_indices = @transform_5, window_bounds = array<i64: 128, 32>}, {pipeline_mode = #tpu.pipeline_mode<synchronous>, transform_indices = @transform_6, window_bounds = array<i64: 20, 128>}, {pipeline_mode = #tpu.pipeline_mode<synchronous>, transform_indices = @transform_7, window_bounds = array<i64: 128, 128>}]} {
    %c0 = arith.constant 0 : index
    %c0_0 = arith.constant 0 : index
    %c0_1 = arith.constant 0 : index
    %0 = vector.load %arg1[%c0, %c0_0, %c0_1] : memref<32x16x32xf32, #tpu.memory_space<vmem>>, vector<32x16x32xf32>
    %c0_2 = arith.constant 0 : index
    %c0_3 = arith.constant 0 : index
    %c0_4 = arith.constant 0 : index
    %1 = vector.load %arg2[%c0_2, %c0_3, %c0_4] : memref<1x1x32xf32, #tpu.memory_space<vmem>>, vector<1x1x32xf32>
    %2 = vector.broadcast %1 : vector<1x1x32xf32> to vector<32x16x32xf32>
    %3 = arith.mulf %0, %2 : vector<32x16x32xf32>
    %cst = arith.constant dense<0.000000e+00> : vector<32x16xf32>
    %4 = vector.multi_reduction <add>, %3, %cst [2] : vector<32x16x32xf32> to vector<32x16xf32>
    %c0_5 = arith.constant 0 : index
    %c0_6 = arith.constant 0 : index
    %5 = vector.load %arg3[%c0_5, %c0_6] : memref<1x1xf32, #tpu.memory_space<vmem>>, vector<1x1xf32>
    %6 = vector.broadcast %5 : vector<1x1xf32> to vector<32x16xf32>
    %7 = arith.addf %4, %6 : vector<32x16xf32>
    %c0_7 = arith.constant 0 : index
    %c0_8 = arith.constant 0 : index
    %8 = vector.load %arg4[%c0_7, %c0_8] : memref<32x32xf32, #tpu.memory_space<vmem>>, vector<32x32xf32>
    %9 = arith.truncf %8 : vector<32x32xf32> to vector<32x32xbf16>
    %10 = arith.truncf %7 : vector<32x16xf32> to vector<32x16xbf16>
    %cst_9 = arith.constant dense<0.000000e+00> : vector<32x16xf32>
    %11 = tpu.matmul %9, %10, %cst_9 {dimension_numbers = #tpu.dot_dimension_numbers<[1], [0], [0], [1], [0, 0, 1, 1], [], []>} : vector<32x32xbf16>, vector<32x16xbf16>, vector<32x16xf32> -> vector<32x16xf32>
    %12 = arith.truncf %11 : vector<32x16xf32> to vector<32x16xbf16>
    %c0_10 = arith.constant 0 : index
    %c0_11 = arith.constant 0 : index
    %13 = vector.load %arg5[%c0_10, %c0_11] : memref<16x20xf32, #tpu.memory_space<vmem>>, vector<16x20xf32>
    %14 = arith.truncf %13 : vector<16x20xf32> to vector<16x20xbf16>
    %cst_12 = arith.constant dense<0.000000e+00> : vector<32x20xf32>
    %15 = tpu.matmul %12, %14, %cst_12 {dimension_numbers = #tpu.dot_dimension_numbers<[1], [0], [0], [1], [0, 0, 1, 1], [], []>} : vector<32x16xbf16>, vector<16x20xbf16>, vector<32x20xf32> -> vector<32x20xf32>
    %16 = arith.negf %15 : vector<32x20xf32>
    %17 = math.exp %16 : vector<32x20xf32>
    %cst_13 = arith.constant 1.000000e+00 : f32
    %18 = vector.broadcast %cst_13 : f32 to vector<32x20xf32>
    %19 = arith.addf %18, %17 : vector<32x20xf32>
    %20 = arith.divf %18, %19 : vector<32x20xf32>
    %cst_14 = arith.constant 9.89999961 : f32
    %21 = vector.broadcast %cst_14 : f32 to vector<32x20xf32>
    %22 = arith.mulf %21, %20 : vector<32x20xf32>
    %cst_15 = arith.constant 1.000000e-01 : f32
    %23 = vector.broadcast %cst_15 : f32 to vector<32x20xf32>
    %24 = arith.addf %23, %22 : vector<32x20xf32>
    %c0_16 = arith.constant 0 : index
    %c0_17 = arith.constant 0 : index
    %25 = vector.load %arg6[%c0_16, %c0_17] : memref<128x32xf32, #tpu.memory_space<vmem>>, vector<128x32xf32>
    %cst_18 = arith.constant dense<0.000000e+00> : vector<128x20xf32>
    %26 = tpu.matmul %25, %24, %cst_18 {dimension_numbers = #tpu.dot_dimension_numbers<[1], [0], [0], [1], [0, 0, 1, 1], [], []>} : vector<128x32xf32>, vector<32x20xf32>, vector<128x20xf32> -> vector<128x20xf32>
    %c0_19 = arith.constant 0 : index
    %c0_20 = arith.constant 0 : index
    %27 = vector.load %arg7[%c0_19, %c0_20] : memref<20x128xf32, #tpu.memory_space<vmem>>, vector<20x128xf32>
    %cst_21 = arith.constant dense<0.000000e+00> : vector<128x128xf32>
    %28 = tpu.matmul %26, %27, %cst_21 {dimension_numbers = #tpu.dot_dimension_numbers<[1], [0], [0], [1], [0, 0, 1, 1], [], []>} : vector<128x20xf32>, vector<20x128xf32>, vector<128x128xf32> -> vector<128x128xf32>
    %c0_22 = arith.constant 0 : index
    %c0_23 = arith.constant 0 : index
    %29 = vector.load %arg8[%c0_22, %c0_23] : memref<128x128xf32, #tpu.memory_space<vmem>>, vector<128x128xf32>
    tpu.vector_store %arg8[%c0_22, %c0_23], %28 {strides = array<i32>} : memref<128x128xf32, #tpu.memory_space<vmem>>, vector<128x128xf32>,
    return
  }
  func.func @transform_0(%arg0: i32) -> (i32, i32, i32) {
    %c0_i32 = arith.constant 0 : i32
    %c0_i32_0 = arith.constant 0 : i32
    %c0_i32_1 = arith.constant 0 : i32
    %c0_i32_2 = arith.constant 0 : i32
    return %c0_i32, %c0_i32_0, %c0_i32_1 : i32, i32, i32
  }
  func.func @transform_1(%arg0: i32) -> (i32, i32, i32) {
    %c0_i32 = arith.constant 0 : i32
    %c0_i32_0 = arith.constant 0 : i32
    %c0_i32_1 = arith.constant 0 : i32
    %c0_i32_2 = arith.constant 0 : i32
    return %c0_i32, %c0_i32_0, %c0_i32_1 : i32, i32, i32
  }
  func.func @transform_2(%arg0: i32) -> (i32, i32) {
    %c0_i32 = arith.constant 0 : i32
    %c0_i32_0 = arith.constant 0 : i32
    %c0_i32_1 = arith.constant 0 : i32
    return %c0_i32, %c0_i32_0 : i32, i32
  }
  func.func @transform_3(%arg0: i32) -> (i32, i32) {
    %c0_i32 = arith.constant 0 : i32
    %c0_i32_0 = arith.constant 0 : i32
    %c0_i32_1 = arith.constant 0 : i32
    return %c0_i32, %c0_i32_0 : i32, i32
  }
  func.func @transform_4(%arg0: i32) -> (i32, i32) {
    %c0_i32 = arith.constant 0 : i32
    %c0_i32_0 = arith.constant 0 : i32
    %c0_i32_1 = arith.constant 0 : i32
    return %c0_i32, %c0_i32_0 : i32, i32
  }
  func.func @transform_5(%arg0: i32) -> (i32, i32) {
    %c0_i32 = arith.constant 0 : i32
    %c0_i32_0 = arith.constant 0 : i32
    %c0_i32_1 = arith.constant 0 : i32
    return %c0_i32, %c0_i32_0 : i32, i32
  }
  func.func @transform_6(%arg0: i32) -> (i32, i32) {
    %c0_i32 = arith.constant 0 : i32
    %c0_i32_0 = arith.constant 0 : i32
    %c0_i32_1 = arith.constant 0 : i32
    return %c0_i32, %c0_i32_0 : i32, i32
  }
  func.func @transform_7(%arg0: i32) -> (i32, i32) {
    %c0_i32 = arith.constant 0 : i32
    %c0_i32_0 = arith.constant 0 : i32
    %c0_i32_1 = arith.constant 0 : i32
    return %c0_i32, %c0_i32_0 : i32, i32
  }
}

module attributes {stable_mosaic.version = 11 : i64} {
  func.func @_tail_kernel(%arg0: i32, %arg1: memref<512x32xf32, #tpu.memory_space<vmem>>, %arg2: memref<128x32xf32, #tpu.memory_space<vmem>>, %arg3: memref<32x32xf32, #tpu.memory_space<vmem>>, %arg4: memref<8x32xf32, #tpu.memory_space<vmem>>, %arg5: memref<9x128x512xbf16, #tpu.memory_space<vmem>>, %arg6: memref<9x32x128xbf16, #tpu.memory_space<vmem>>, %arg7: memref<32x8xbf16, #tpu.memory_space<vmem>>, %arg8: memref<9x32x32xf32, #tpu.memory_space<vmem>>, %arg9: memref<1x32xf32, #tpu.memory_space<vmem>>, %arg10: memref<1x32xf32, #tpu.memory_space<vmem>>, %arg11: memref<1x32xf32, #tpu.memory_space<vmem>>, %arg12: memref<9x32x32xf32, #tpu.memory_space<vmem>>, %arg13: memref<1x32xf32, #tpu.memory_space<vmem>>, %arg14: memref<9x32x32xf32, #tpu.memory_space<vmem>>, %arg15: memref<1x32xf32, #tpu.memory_space<vmem>>, %arg16: memref<32x64xf32, #tpu.memory_space<vmem>>, %arg17: memref<32x64xf32, #tpu.memory_space<vmem>>, %arg18: memref<32x64xf32, #tpu.memory_space<vmem>>, %arg19: memref<32x64xf32, #tpu.memory_space<vmem>>, %arg20: memref<1x64xf32, #tpu.memory_space<vmem>>, %arg21: memref<1x64xf32, #tpu.memory_space<vmem>>, %arg22: memref<1x64xf32, #tpu.memory_space<vmem>>, %arg23: memref<2x128xf32, #tpu.memory_space<vmem>>, %arg24: memref<128x2xf32, #tpu.memory_space<vmem>>, %arg25: memref<2x32xf32, #tpu.memory_space<vmem>>, %arg26: memref<32x2xf32, #tpu.memory_space<vmem>>, %arg27: memref<32x16xf32, #tpu.memory_space<vmem>>, %arg28: memref<16x32xf32, #tpu.memory_space<vmem>>, %arg29: memref<64x16xf32, #tpu.memory_space<vmem>>, %arg30: memref<16x64xf32, #tpu.memory_space<vmem>>, %arg31: memref<32x64xf32, #tpu.memory_space<vmem>>) attributes {dimension_semantics = [#tpu.dimension_semantics<arbitrary>], iteration_bounds = array<i64: 1>, scalar_prefetch = 0 : i64, scratch_operands = 0 : i64, tpu.core_type = #tpu.core_type<tc>, window_params = [{pipeline_mode = #tpu.pipeline_mode<synchronous>, transform_indices = @transform_0, window_bounds = array<i64: 512, 32>}, {pipeline_mode = #tpu.pipeline_mode<synchronous>, transform_indices = @transform_1, window_bounds = array<i64: 128, 32>}, {pipeline_mode = #tpu.pipeline_mode<synchronous>, transform_indices = @transform_2, window_bounds = array<i64: 32, 32>}, {pipeline_mode = #tpu.pipeline_mode<synchronous>, transform_indices = @transform_3, window_bounds = array<i64: 8, 32>}, {pipeline_mode = #tpu.pipeline_mode<synchronous>, transform_indices = @transform_4, window_bounds = array<i64: 9, 128, 512>}, {pipeline_mode = #tpu.pipeline_mode<synchronous>, transform_indices = @transform_5, window_bounds = array<i64: 9, 32, 128>}, {pipeline_mode = #tpu.pipeline_mode<synchronous>, transform_indices = @transform_6, window_bounds = array<i64: 32, 8>}, {pipeline_mode = #tpu.pipeline_mode<synchronous>, transform_indices = @transform_7, window_bounds = array<i64: 9, 32, 32>}, {pipeline_mode = #tpu.pipeline_mode<synchronous>, transform_indices = @transform_8, window_bounds = array<i64: 1, 32>}, {pipeline_mode = #tpu.pipeline_mode<synchronous>, transform_indices = @transform_9, window_bounds = array<i64: 1, 32>}, {pipeline_mode = #tpu.pipeline_mode<synchronous>, transform_indices = @transform_10, window_bounds = array<i64: 1, 32>}, {pipeline_mode = #tpu.pipeline_mode<synchronous>, transform_indices = @transform_11, window_bounds = array<i64: 9, 32, 32>}, {pipeline_mode = #tpu.pipeline_mode<synchronous>, transform_indices = @transform_12, window_bounds = array<i64: 1, 32>}, {pipeline_mode = #tpu.pipeline_mode<synchronous>, transform_indices = @transform_13, window_bounds = array<i64: 9, 32, 32>}, {pipeline_mode = #tpu.pipeline_mode<synchronous>, transform_indices = @transform_14, window_bounds = array<i64: 1, 32>}, {pipeline_mode = #tpu.pipeline_mode<synchronous>, transform_indices = @transform_15, window_bounds = array<i64: 32, 64>}, {pipeline_mode = #tpu.pipeline_mode<synchronous>, transform_indices = @transform_16, window_bounds = array<i64: 32, 64>}, {pipeline_mode = #tpu.pipeline_mode<synchronous>, transform_indices = @transform_17, window_bounds = array<i64: 32, 64>}, {pipeline_mode = #tpu.pipeline_mode<synchronous>, transform_indices = @transform_18, window_bounds = array<i64: 32, 64>}, {pipeline_mode = #tpu.pipeline_mode<synchronous>, transform_indices = @transform_19, window_bounds = array<i64: 1, 64>}, {pipeline_mode = #tpu.pipeline_mode<synchronous>, transform_indices = @transform_20, window_bounds = array<i64: 1, 64>}, {pipeline_mode = #tpu.pipeline_mode<synchronous>, transform_indices = @transform_21, window_bounds = array<i64: 1, 64>}, {pipeline_mode = #tpu.pipeline_mode<synchronous>, transform_indices = @transform_22, window_bounds = array<i64: 2, 128>}, {pipeline_mode = #tpu.pipeline_mode<synchronous>, transform_indices = @transform_23, window_bounds = array<i64: 128, 2>}, {pipeline_mode = #tpu.pipeline_mode<synchronous>, transform_indices = @transform_24, window_bounds = array<i64: 2, 32>}, {pipeline_mode = #tpu.pipeline_mode<synchronous>, transform_indices = @transform_25, window_bounds = array<i64: 32, 2>}, {pipeline_mode = #tpu.pipeline_mode<synchronous>, transform_indices = @transform_26, window_bounds = array<i64: 32, 16>}, {pipeline_mode = #tpu.pipeline_mode<synchronous>, transform_indices = @transform_27, window_bounds = array<i64: 16, 32>}, {pipeline_mode = #tpu.pipeline_mode<synchronous>, transform_indices = @transform_28, window_bounds = array<i64: 64, 16>}, {pipeline_mode = #tpu.pipeline_mode<synchronous>, transform_indices = @transform_29, window_bounds = array<i64: 16, 64>}, {pipeline_mode = #tpu.pipeline_mode<synchronous>, transform_indices = @transform_30, window_bounds = array<i64: 32, 64>}]} {
    %c0 = arith.constant 0 : index
    %c0_0 = arith.constant 0 : index
    %0 = vector.load %arg1[%c0, %c0_0] : memref<512x32xf32, #tpu.memory_space<vmem>>, vector<512x32xf32>
    %c0_1 = arith.constant 0 : index
    %c0_2 = arith.constant 0 : index
    %1 = vector.load %arg9[%c0_1, %c0_2] : memref<1x32xf32, #tpu.memory_space<vmem>>, vector<1x32xf32>
    %c0_3 = arith.constant 0 : index
    %c0_4 = arith.constant 0 : index
    %c0_5 = arith.constant 0 : index
    %2 = vector.load %arg5[%c0_3, %c0_4, %c0_5] : memref<9x128x512xbf16, #tpu.memory_space<vmem>>, vector<1x128x512xbf16>
    %3 = vector.shape_cast %2 : vector<1x128x512xbf16> to vector<128x512xbf16>
    %4 = arith.truncf %0 : vector<512x32xf32> to vector<512x32xbf16>
    %cst = arith.constant dense<0.000000e+00> : vector<128x32xf32>
    %5 = tpu.matmul %3, %4, %cst {dimension_numbers = #tpu.dot_dimension_numbers<[1], [0], [0], [1], [0, 0, 1, 1], [], []>} : vector<128x512xbf16>, vector<512x32xbf16>, vector<128x32xf32> -> vector<128x32xf32>
    %c0_6 = arith.constant 0 : index
    %c0_7 = arith.constant 0 : index
    %c0_8 = arith.constant 0 : index
    %6 = vector.load %arg8[%c0_6, %c0_7, %c0_8] : memref<9x32x32xf32, #tpu.memory_space<vmem>>, vector<1x32x32xf32>
    %7 = vector.shape_cast %6 : vector<1x32x32xf32> to vector<32x32xf32>
    %8 = arith.truncf %5 : vector<128x32xf32> to vector<128x32xbf16>
    %9 = arith.truncf %7 : vector<32x32xf32> to vector<32x32xbf16>
    %cst_9 = arith.constant dense<0.000000e+00> : vector<128x32xf32>
    %10 = tpu.matmul %8, %9, %cst_9 {dimension_numbers = #tpu.dot_dimension_numbers<[1], [0], [0], [1], [0, 0, 1, 1], [], []>} : vector<128x32xbf16>, vector<32x32xbf16>, vector<128x32xf32> -> vector<128x32xf32>
    %11 = vector.broadcast %1 : vector<1x32xf32> to vector<128x32xf32>
    %12 = arith.addf %11, %10 : vector<128x32xf32>
    %c1 = arith.constant 1 : index
    %c0_10 = arith.constant 0 : index
    %c0_11 = arith.constant 0 : index
    %13 = vector.load %arg5[%c1, %c0_10, %c0_11] : memref<9x128x512xbf16, #tpu.memory_space<vmem>>, vector<1x128x512xbf16>
    %14 = vector.shape_cast %13 : vector<1x128x512xbf16> to vector<128x512xbf16>
    %15 = arith.truncf %0 : vector<512x32xf32> to vector<512x32xbf16>
    %cst_12 = arith.constant dense<0.000000e+00> : vector<128x32xf32>
    %16 = tpu.matmul %14, %15, %cst_12 {dimension_numbers = #tpu.dot_dimension_numbers<[1], [0], [0], [1], [0, 0, 1, 1], [], []>} : vector<128x512xbf16>, vector<512x32xbf16>, vector<128x32xf32> -> vector<128x32xf32>
    %c1_13 = arith.constant 1 : index
    %c0_14 = arith.constant 0 : index
    %c0_15 = arith.constant 0 : index
    %17 = vector.load %arg8[%c1_13, %c0_14, %c0_15] : memref<9x32x32xf32, #tpu.memory_space<vmem>>, vector<1x32x32xf32>
    %18 = vector.shape_cast %17 : vector<1x32x32xf32> to vector<32x32xf32>
    %19 = arith.truncf %16 : vector<128x32xf32> to vector<128x32xbf16>
    %20 = arith.truncf %18 : vector<32x32xf32> to vector<32x32xbf16>
    %cst_16 = arith.constant dense<0.000000e+00> : vector<128x32xf32>
    %21 = tpu.matmul %19, %20, %cst_16 {dimension_numbers = #tpu.dot_dimension_numbers<[1], [0], [0], [1], [0, 0, 1, 1], [], []>} : vector<128x32xbf16>, vector<32x32xbf16>, vector<128x32xf32> -> vector<128x32xf32>
    %22 = arith.addf %12, %21 : vector<128x32xf32>
    %c2 = arith.constant 2 : index
    %c0_17 = arith.constant 0 : index
    %c0_18 = arith.constant 0 : index
    %23 = vector.load %arg5[%c2, %c0_17, %c0_18] : memref<9x128x512xbf16, #tpu.memory_space<vmem>>, vector<1x128x512xbf16>
    %24 = vector.shape_cast %23 : vector<1x128x512xbf16> to vector<128x512xbf16>
    %25 = arith.truncf %0 : vector<512x32xf32> to vector<512x32xbf16>
    %cst_19 = arith.constant dense<0.000000e+00> : vector<128x32xf32>
    %26 = tpu.matmul %24, %25, %cst_19 {dimension_numbers = #tpu.dot_dimension_numbers<[1], [0], [0], [1], [0, 0, 1, 1], [], []>} : vector<128x512xbf16>, vector<512x32xbf16>, vector<128x32xf32> -> vector<128x32xf32>
    %c2_20 = arith.constant 2 : index
    %c0_21 = arith.constant 0 : index
    %c0_22 = arith.constant 0 : index
    %27 = vector.load %arg8[%c2_20, %c0_21, %c0_22] : memref<9x32x32xf32, #tpu.memory_space<vmem>>, vector<1x32x32xf32>
    %28 = vector.shape_cast %27 : vector<1x32x32xf32> to vector<32x32xf32>
    %29 = arith.truncf %26 : vector<128x32xf32> to vector<128x32xbf16>
    %30 = arith.truncf %28 : vector<32x32xf32> to vector<32x32xbf16>
    %cst_23 = arith.constant dense<0.000000e+00> : vector<128x32xf32>
    %31 = tpu.matmul %29, %30, %cst_23 {dimension_numbers = #tpu.dot_dimension_numbers<[1], [0], [0], [1], [0, 0, 1, 1], [], []>} : vector<128x32xbf16>, vector<32x32xbf16>, vector<128x32xf32> -> vector<128x32xf32>
    %32 = arith.addf %22, %31 : vector<128x32xf32>
    %c3 = arith.constant 3 : index
    %c0_24 = arith.constant 0 : index
    %c0_25 = arith.constant 0 : index
    %33 = vector.load %arg5[%c3, %c0_24, %c0_25] : memref<9x128x512xbf16, #tpu.memory_space<vmem>>, vector<1x128x512xbf16>
    %34 = vector.shape_cast %33 : vector<1x128x512xbf16> to vector<128x512xbf16>
    %35 = arith.truncf %0 : vector<512x32xf32> to vector<512x32xbf16>
    %cst_26 = arith.constant dense<0.000000e+00> : vector<128x32xf32>
    %36 = tpu.matmul %34, %35, %cst_26 {dimension_numbers = #tpu.dot_dimension_numbers<[1], [0], [0], [1], [0, 0, 1, 1], [], []>} : vector<128x512xbf16>, vector<512x32xbf16>, vector<128x32xf32> -> vector<128x32xf32>
    %c3_27 = arith.constant 3 : index
    %c0_28 = arith.constant 0 : index
    %c0_29 = arith.constant 0 : index
    %37 = vector.load %arg8[%c3_27, %c0_28, %c0_29] : memref<9x32x32xf32, #tpu.memory_space<vmem>>, vector<1x32x32xf32>
    %38 = vector.shape_cast %37 : vector<1x32x32xf32> to vector<32x32xf32>
    %39 = arith.truncf %36 : vector<128x32xf32> to vector<128x32xbf16>
    %40 = arith.truncf %38 : vector<32x32xf32> to vector<32x32xbf16>
    %cst_30 = arith.constant dense<0.000000e+00> : vector<128x32xf32>
    %41 = tpu.matmul %39, %40, %cst_30 {dimension_numbers = #tpu.dot_dimension_numbers<[1], [0], [0], [1], [0, 0, 1, 1], [], []>} : vector<128x32xbf16>, vector<32x32xbf16>, vector<128x32xf32> -> vector<128x32xf32>
    %42 = arith.addf %32, %41 : vector<128x32xf32>
    %c4 = arith.constant 4 : index
    %c0_31 = arith.constant 0 : index
    %c0_32 = arith.constant 0 : index
    %43 = vector.load %arg5[%c4, %c0_31, %c0_32] : memref<9x128x512xbf16, #tpu.memory_space<vmem>>, vector<1x128x512xbf16>
    %44 = vector.shape_cast %43 : vector<1x128x512xbf16> to vector<128x512xbf16>
    %45 = arith.truncf %0 : vector<512x32xf32> to vector<512x32xbf16>
    %cst_33 = arith.constant dense<0.000000e+00> : vector<128x32xf32>
    %46 = tpu.matmul %44, %45, %cst_33 {dimension_numbers = #tpu.dot_dimension_numbers<[1], [0], [0], [1], [0, 0, 1, 1], [], []>} : vector<128x512xbf16>, vector<512x32xbf16>, vector<128x32xf32> -> vector<128x32xf32>
    %c4_34 = arith.constant 4 : index
    %c0_35 = arith.constant 0 : index
    %c0_36 = arith.constant 0 : index
    %47 = vector.load %arg8[%c4_34, %c0_35, %c0_36] : memref<9x32x32xf32, #tpu.memory_space<vmem>>, vector<1x32x32xf32>
    %48 = vector.shape_cast %47 : vector<1x32x32xf32> to vector<32x32xf32>
    %49 = arith.truncf %46 : vector<128x32xf32> to vector<128x32xbf16>
    %50 = arith.truncf %48 : vector<32x32xf32> to vector<32x32xbf16>
    %cst_37 = arith.constant dense<0.000000e+00> : vector<128x32xf32>
    %51 = tpu.matmul %49, %50, %cst_37 {dimension_numbers = #tpu.dot_dimension_numbers<[1], [0], [0], [1], [0, 0, 1, 1], [], []>} : vector<128x32xbf16>, vector<32x32xbf16>, vector<128x32xf32> -> vector<128x32xf32>
    %52 = arith.addf %42, %51 : vector<128x32xf32>
    %c5 = arith.constant 5 : index
    %c0_38 = arith.constant 0 : index
    %c0_39 = arith.constant 0 : index
    %53 = vector.load %arg5[%c5, %c0_38, %c0_39] : memref<9x128x512xbf16, #tpu.memory_space<vmem>>, vector<1x128x512xbf16>
    %54 = vector.shape_cast %53 : vector<1x128x512xbf16> to vector<128x512xbf16>
    %55 = arith.truncf %0 : vector<512x32xf32> to vector<512x32xbf16>
    %cst_40 = arith.constant dense<0.000000e+00> : vector<128x32xf32>
    %56 = tpu.matmul %54, %55, %cst_40 {dimension_numbers = #tpu.dot_dimension_numbers<[1], [0], [0], [1], [0, 0, 1, 1], [], []>} : vector<128x512xbf16>, vector<512x32xbf16>, vector<128x32xf32> -> vector<128x32xf32>
    %c5_41 = arith.constant 5 : index
    %c0_42 = arith.constant 0 : index
    %c0_43 = arith.constant 0 : index
    %57 = vector.load %arg8[%c5_41, %c0_42, %c0_43] : memref<9x32x32xf32, #tpu.memory_space<vmem>>, vector<1x32x32xf32>
    %58 = vector.shape_cast %57 : vector<1x32x32xf32> to vector<32x32xf32>
    %59 = arith.truncf %56 : vector<128x32xf32> to vector<128x32xbf16>
    %60 = arith.truncf %58 : vector<32x32xf32> to vector<32x32xbf16>
    %cst_44 = arith.constant dense<0.000000e+00> : vector<128x32xf32>
    %61 = tpu.matmul %59, %60, %cst_44 {dimension_numbers = #tpu.dot_dimension_numbers<[1], [0], [0], [1], [0, 0, 1, 1], [], []>} : vector<128x32xbf16>, vector<32x32xbf16>, vector<128x32xf32> -> vector<128x32xf32>
    %62 = arith.addf %52, %61 : vector<128x32xf32>
    %c6 = arith.constant 6 : index
    %c0_45 = arith.constant 0 : index
    %c0_46 = arith.constant 0 : index
    %63 = vector.load %arg5[%c6, %c0_45, %c0_46] : memref<9x128x512xbf16, #tpu.memory_space<vmem>>, vector<1x128x512xbf16>
    %64 = vector.shape_cast %63 : vector<1x128x512xbf16> to vector<128x512xbf16>
    %65 = arith.truncf %0 : vector<512x32xf32> to vector<512x32xbf16>
    %cst_47 = arith.constant dense<0.000000e+00> : vector<128x32xf32>
    %66 = tpu.matmul %64, %65, %cst_47 {dimension_numbers = #tpu.dot_dimension_numbers<[1], [0], [0], [1], [0, 0, 1, 1], [], []>} : vector<128x512xbf16>, vector<512x32xbf16>, vector<128x32xf32> -> vector<128x32xf32>
    %c6_48 = arith.constant 6 : index
    %c0_49 = arith.constant 0 : index
    %c0_50 = arith.constant 0 : index
    %67 = vector.load %arg8[%c6_48, %c0_49, %c0_50] : memref<9x32x32xf32, #tpu.memory_space<vmem>>, vector<1x32x32xf32>
    %68 = vector.shape_cast %67 : vector<1x32x32xf32> to vector<32x32xf32>
    %69 = arith.truncf %66 : vector<128x32xf32> to vector<128x32xbf16>
    %70 = arith.truncf %68 : vector<32x32xf32> to vector<32x32xbf16>
    %cst_51 = arith.constant dense<0.000000e+00> : vector<128x32xf32>
    %71 = tpu.matmul %69, %70, %cst_51 {dimension_numbers = #tpu.dot_dimension_numbers<[1], [0], [0], [1], [0, 0, 1, 1], [], []>} : vector<128x32xbf16>, vector<32x32xbf16>, vector<128x32xf32> -> vector<128x32xf32>
    %72 = arith.addf %62, %71 : vector<128x32xf32>
    %c7 = arith.constant 7 : index
    %c0_52 = arith.constant 0 : index
    %c0_53 = arith.constant 0 : index
    %73 = vector.load %arg5[%c7, %c0_52, %c0_53] : memref<9x128x512xbf16, #tpu.memory_space<vmem>>, vector<1x128x512xbf16>
    %74 = vector.shape_cast %73 : vector<1x128x512xbf16> to vector<128x512xbf16>
    %75 = arith.truncf %0 : vector<512x32xf32> to vector<512x32xbf16>
    %cst_54 = arith.constant dense<0.000000e+00> : vector<128x32xf32>
    %76 = tpu.matmul %74, %75, %cst_54 {dimension_numbers = #tpu.dot_dimension_numbers<[1], [0], [0], [1], [0, 0, 1, 1], [], []>} : vector<128x512xbf16>, vector<512x32xbf16>, vector<128x32xf32> -> vector<128x32xf32>
    %c7_55 = arith.constant 7 : index
    %c0_56 = arith.constant 0 : index
    %c0_57 = arith.constant 0 : index
    %77 = vector.load %arg8[%c7_55, %c0_56, %c0_57] : memref<9x32x32xf32, #tpu.memory_space<vmem>>, vector<1x32x32xf32>
    %78 = vector.shape_cast %77 : vector<1x32x32xf32> to vector<32x32xf32>
    %79 = arith.truncf %76 : vector<128x32xf32> to vector<128x32xbf16>
    %80 = arith.truncf %78 : vector<32x32xf32> to vector<32x32xbf16>
    %cst_58 = arith.constant dense<0.000000e+00> : vector<128x32xf32>
    %81 = tpu.matmul %79, %80, %cst_58 {dimension_numbers = #tpu.dot_dimension_numbers<[1], [0], [0], [1], [0, 0, 1, 1], [], []>} : vector<128x32xbf16>, vector<32x32xbf16>, vector<128x32xf32> -> vector<128x32xf32>
    %82 = arith.addf %72, %81 : vector<128x32xf32>
    %c8 = arith.constant 8 : index
    %c0_59 = arith.constant 0 : index
    %c0_60 = arith.constant 0 : index
    %83 = vector.load %arg5[%c8, %c0_59, %c0_60] : memref<9x128x512xbf16, #tpu.memory_space<vmem>>, vector<1x128x512xbf16>
    %84 = vector.shape_cast %83 : vector<1x128x512xbf16> to vector<128x512xbf16>
    %85 = arith.truncf %0 : vector<512x32xf32> to vector<512x32xbf16>
    %cst_61 = arith.constant dense<0.000000e+00> : vector<128x32xf32>
    %86 = tpu.matmul %84, %85, %cst_61 {dimension_numbers = #tpu.dot_dimension_numbers<[1], [0], [0], [1], [0, 0, 1, 1], [], []>} : vector<128x512xbf16>, vector<512x32xbf16>, vector<128x32xf32> -> vector<128x32xf32>
    %c8_62 = arith.constant 8 : index
    %c0_63 = arith.constant 0 : index
    %c0_64 = arith.constant 0 : index
    %87 = vector.load %arg8[%c8_62, %c0_63, %c0_64] : memref<9x32x32xf32, #tpu.memory_space<vmem>>, vector<1x32x32xf32>
    %88 = vector.shape_cast %87 : vector<1x32x32xf32> to vector<32x32xf32>
    %89 = arith.truncf %86 : vector<128x32xf32> to vector<128x32xbf16>
    %90 = arith.truncf %88 : vector<32x32xf32> to vector<32x32xbf16>
    %cst_65 = arith.constant dense<0.000000e+00> : vector<128x32xf32>
    %91 = tpu.matmul %89, %90, %cst_65 {dimension_numbers = #tpu.dot_dimension_numbers<[1], [0], [0], [1], [0, 0, 1, 1], [], []>} : vector<128x32xbf16>, vector<32x32xbf16>, vector<128x32xf32> -> vector<128x32xf32>
    %92 = arith.addf %82, %91 : vector<128x32xf32>
    %c0_66 = arith.constant 0 : index
    %c0_67 = arith.constant 0 : index
    %93 = vector.load %arg23[%c0_66, %c0_67] : memref<2x128xf32, #tpu.memory_space<vmem>>, vector<2x128xf32>
    %c0_68 = arith.constant 0 : index
    %c0_69 = arith.constant 0 : index
    %94 = vector.load %arg24[%c0_68, %c0_69] : memref<128x2xf32, #tpu.memory_space<vmem>>, vector<128x2xf32>
    %c0_70 = arith.constant 0 : index
    %c0_71 = arith.constant 0 : index
    %95 = vector.load %arg27[%c0_70, %c0_71] : memref<32x16xf32, #tpu.memory_space<vmem>>, vector<32x16xf32>
    %c0_72 = arith.constant 0 : index
    %c0_73 = arith.constant 0 : index
    %96 = vector.load %arg28[%c0_72, %c0_73] : memref<16x32xf32, #tpu.memory_space<vmem>>, vector<16x32xf32>
    %cst_74 = arith.constant dense<0.000000e+00> : vector<2x32xf32>
    %97 = tpu.matmul %93, %92, %cst_74 {dimension_numbers = #tpu.dot_dimension_numbers<[1], [0], [0], [1], [0, 0, 1, 1], [], []>} : vector<2x128xf32>, vector<128x32xf32>, vector<2x32xf32> -> vector<2x32xf32>
    %cst_75 = arith.constant dense<0.000000e+00> : vector<2x16xf32>
    %98 = tpu.matmul %97, %95, %cst_75 {dimension_numbers = #tpu.dot_dimension_numbers<[1], [0], [0], [1], [0, 0, 1, 1], [], []>} : vector<2x32xf32>, vector<32x16xf32>, vector<2x16xf32> -> vector<2x16xf32>
    %cst_76 = arith.constant 7.812500e-03 : f32
    %99 = vector.broadcast %cst_76 : f32 to vector<2x16xf32>
    %100 = arith.mulf %98, %99 : vector<2x16xf32>
    %cst_77 = arith.constant dense<0.000000e+00> : vector<2x32xf32>
    %101 = tpu.matmul %100, %96, %cst_77 {dimension_numbers = #tpu.dot_dimension_numbers<[1], [0], [0], [1], [0, 0, 1, 1], [], []>} : vector<2x16xf32>, vector<16x32xf32>, vector<2x32xf32> -> vector<2x32xf32>
    %cst_78 = arith.constant dense<0.000000e+00> : vector<128x32xf32>
    %102 = tpu.matmul %94, %101, %cst_78 {dimension_numbers = #tpu.dot_dimension_numbers<[1], [0], [0], [1], [0, 0, 1, 1], [], []>} : vector<128x2xf32>, vector<2x32xf32>, vector<128x32xf32> -> vector<128x32xf32>
    %103 = arith.subf %92, %102 : vector<128x32xf32>
    %104 = arith.mulf %103, %103 : vector<128x32xf32>
    %cst_79 = arith.constant dense<0.000000e+00> : vector<2x32xf32>
    %105 = tpu.matmul %93, %104, %cst_79 {dimension_numbers = #tpu.dot_dimension_numbers<[1], [0], [0], [1], [0, 0, 1, 1], [], []>} : vector<2x128xf32>, vector<128x32xf32>, vector<2x32xf32> -> vector<2x32xf32>
    %cst_80 = arith.constant dense<0.000000e+00> : vector<2x16xf32>
    %106 = tpu.matmul %105, %95, %cst_80 {dimension_numbers = #tpu.dot_dimension_numbers<[1], [0], [0], [1], [0, 0, 1, 1], [], []>} : vector<2x32xf32>, vector<32x16xf32>, vector<2x16xf32> -> vector<2x16xf32>
    %cst_81 = arith.constant 7.812500e-03 : f32
    %107 = vector.broadcast %cst_81 : f32 to vector<2x16xf32>
    %108 = arith.mulf %106, %107 : vector<2x16xf32>
    %cst_82 = arith.constant dense<0.000000e+00> : vector<2x32xf32>
    %109 = tpu.matmul %108, %96, %cst_82 {dimension_numbers = #tpu.dot_dimension_numbers<[1], [0], [0], [1], [0, 0, 1, 1], [], []>} : vector<2x16xf32>, vector<16x32xf32>, vector<2x32xf32> -> vector<2x32xf32>
    %cst_83 = arith.constant dense<0.000000e+00> : vector<128x32xf32>
    %110 = tpu.matmul %94, %109, %cst_83 {dimension_numbers = #tpu.dot_dimension_numbers<[1], [0], [0], [1], [0, 0, 1, 1], [], []>} : vector<128x2xf32>, vector<2x32xf32>, vector<128x32xf32> -> vector<128x32xf32>
    %cst_84 = arith.constant 9.99999974E-6 : f32
    %111 = vector.broadcast %cst_84 : f32 to vector<128x32xf32>
    %112 = arith.addf %110, %111 : vector<128x32xf32>
    %113 = math.rsqrt %112 : vector<128x32xf32>
    %114 = arith.mulf %103, %113 : vector<128x32xf32>
    %c0_85 = arith.constant 0 : index
    %c0_86 = arith.constant 0 : index
    %115 = vector.load %arg10[%c0_85, %c0_86] : memref<1x32xf32, #tpu.memory_space<vmem>>, vector<1x32xf32>
    %116 = vector.broadcast %115 : vector<1x32xf32> to vector<128x32xf32>
    %117 = arith.mulf %114, %116 : vector<128x32xf32>
    %c0_87 = arith.constant 0 : index
    %c0_88 = arith.constant 0 : index
    %118 = vector.load %arg11[%c0_87, %c0_88] : memref<1x32xf32, #tpu.memory_space<vmem>>, vector<1x32xf32>
    %119 = vector.broadcast %118 : vector<1x32xf32> to vector<128x32xf32>
    %120 = arith.addf %117, %119 : vector<128x32xf32>
    %cst_89 = arith.constant 0.000000e+00 : f32
    %121 = vector.broadcast %cst_89 : f32 to vector<128x32xf32>
    %122 = arith.maximumf %120, %121 : vector<128x32xf32>
    %c0_90 = arith.constant 0 : index
    %c0_91 = arith.constant 0 : index
    %123 = vector.load %arg13[%c0_90, %c0_91] : memref<1x32xf32, #tpu.memory_space<vmem>>, vector<1x32xf32>
    %c0_92 = arith.constant 0 : index
    %c0_93 = arith.constant 0 : index
    %c0_94 = arith.constant 0 : index
    %124 = vector.load %arg6[%c0_92, %c0_93, %c0_94] : memref<9x32x128xbf16, #tpu.memory_space<vmem>>, vector<1x32x128xbf16>
    %125 = vector.shape_cast %124 : vector<1x32x128xbf16> to vector<32x128xbf16>
    %126 = arith.truncf %122 : vector<128x32xf32> to vector<128x32xbf16>
    %cst_95 = arith.constant dense<0.000000e+00> : vector<32x32xf32>
    %127 = tpu.matmul %125, %126, %cst_95 {dimension_numbers = #tpu.dot_dimension_numbers<[1], [0], [0], [1], [0, 0, 1, 1], [], []>} : vector<32x128xbf16>, vector<128x32xbf16>, vector<32x32xf32> -> vector<32x32xf32>
    %c0_96 = arith.constant 0 : index
    %c0_97 = arith.constant 0 : index
    %c0_98 = arith.constant 0 : index
    %128 = vector.load %arg12[%c0_96, %c0_97, %c0_98] : memref<9x32x32xf32, #tpu.memory_space<vmem>>, vector<1x32x32xf32>
    %129 = vector.shape_cast %128 : vector<1x32x32xf32> to vector<32x32xf32>
    %130 = arith.truncf %127 : vector<32x32xf32> to vector<32x32xbf16>
    %131 = arith.truncf %129 : vector<32x32xf32> to vector<32x32xbf16>
    %cst_99 = arith.constant dense<0.000000e+00> : vector<32x32xf32>
    %132 = tpu.matmul %130, %131, %cst_99 {dimension_numbers = #tpu.dot_dimension_numbers<[1], [0], [0], [1], [0, 0, 1, 1], [], []>} : vector<32x32xbf16>, vector<32x32xbf16>, vector<32x32xf32> -> vector<32x32xf32>
    %133 = vector.broadcast %123 : vector<1x32xf32> to vector<32x32xf32>
    %134 = arith.addf %133, %132 : vector<32x32xf32>
    %c1_100 = arith.constant 1 : index
    %c0_101 = arith.constant 0 : index
    %c0_102 = arith.constant 0 : index
    %135 = vector.load %arg6[%c1_100, %c0_101, %c0_102] : memref<9x32x128xbf16, #tpu.memory_space<vmem>>, vector<1x32x128xbf16>
    %136 = vector.shape_cast %135 : vector<1x32x128xbf16> to vector<32x128xbf16>
    %137 = arith.truncf %122 : vector<128x32xf32> to vector<128x32xbf16>
    %cst_103 = arith.constant dense<0.000000e+00> : vector<32x32xf32>
    %138 = tpu.matmul %136, %137, %cst_103 {dimension_numbers = #tpu.dot_dimension_numbers<[1], [0], [0], [1], [0, 0, 1, 1], [], []>} : vector<32x128xbf16>, vector<128x32xbf16>, vector<32x32xf32> -> vector<32x32xf32>
    %c1_104 = arith.constant 1 : index
    %c0_105 = arith.constant 0 : index
    %c0_106 = arith.constant 0 : index
    %139 = vector.load %arg12[%c1_104, %c0_105, %c0_106] : memref<9x32x32xf32, #tpu.memory_space<vmem>>, vector<1x32x32xf32>
    %140 = vector.shape_cast %139 : vector<1x32x32xf32> to vector<32x32xf32>
    %141 = arith.truncf %138 : vector<32x32xf32> to vector<32x32xbf16>
    %142 = arith.truncf %140 : vector<32x32xf32> to vector<32x32xbf16>
    %cst_107 = arith.constant dense<0.000000e+00> : vector<32x32xf32>
    %143 = tpu.matmul %141, %142, %cst_107 {dimension_numbers = #tpu.dot_dimension_numbers<[1], [0], [0], [1], [0, 0, 1, 1], [], []>} : vector<32x32xbf16>, vector<32x32xbf16>, vector<32x32xf32> -> vector<32x32xf32>
    %144 = arith.addf %134, %143 : vector<32x32xf32>
    %c2_108 = arith.constant 2 : index
    %c0_109 = arith.constant 0 : index
    %c0_110 = arith.constant 0 : index
    %145 = vector.load %arg6[%c2_108, %c0_109, %c0_110] : memref<9x32x128xbf16, #tpu.memory_space<vmem>>, vector<1x32x128xbf16>
    %146 = vector.shape_cast %145 : vector<1x32x128xbf16> to vector<32x128xbf16>
    %147 = arith.truncf %122 : vector<128x32xf32> to vector<128x32xbf16>
    %cst_111 = arith.constant dense<0.000000e+00> : vector<32x32xf32>
    %148 = tpu.matmul %146, %147, %cst_111 {dimension_numbers = #tpu.dot_dimension_numbers<[1], [0], [0], [1], [0, 0, 1, 1], [], []>} : vector<32x128xbf16>, vector<128x32xbf16>, vector<32x32xf32> -> vector<32x32xf32>
    %c2_112 = arith.constant 2 : index
    %c0_113 = arith.constant 0 : index
    %c0_114 = arith.constant 0 : index
    %149 = vector.load %arg12[%c2_112, %c0_113, %c0_114] : memref<9x32x32xf32, #tpu.memory_space<vmem>>, vector<1x32x32xf32>
    %150 = vector.shape_cast %149 : vector<1x32x32xf32> to vector<32x32xf32>
    %151 = arith.truncf %148 : vector<32x32xf32> to vector<32x32xbf16>
    %152 = arith.truncf %150 : vector<32x32xf32> to vector<32x32xbf16>
    %cst_115 = arith.constant dense<0.000000e+00> : vector<32x32xf32>
    %153 = tpu.matmul %151, %152, %cst_115 {dimension_numbers = #tpu.dot_dimension_numbers<[1], [0], [0], [1], [0, 0, 1, 1], [], []>} : vector<32x32xbf16>, vector<32x32xbf16>, vector<32x32xf32> -> vector<32x32xf32>
    %154 = arith.addf %144, %153 : vector<32x32xf32>
    %c3_116 = arith.constant 3 : index
    %c0_117 = arith.constant 0 : index
    %c0_118 = arith.constant 0 : index
    %155 = vector.load %arg6[%c3_116, %c0_117, %c0_118] : memref<9x32x128xbf16, #tpu.memory_space<vmem>>, vector<1x32x128xbf16>
    %156 = vector.shape_cast %155 : vector<1x32x128xbf16> to vector<32x128xbf16>
    %157 = arith.truncf %122 : vector<128x32xf32> to vector<128x32xbf16>
    %cst_119 = arith.constant dense<0.000000e+00> : vector<32x32xf32>
    %158 = tpu.matmul %156, %157, %cst_119 {dimension_numbers = #tpu.dot_dimension_numbers<[1], [0], [0], [1], [0, 0, 1, 1], [], []>} : vector<32x128xbf16>, vector<128x32xbf16>, vector<32x32xf32> -> vector<32x32xf32>
    %c3_120 = arith.constant 3 : index
    %c0_121 = arith.constant 0 : index
    %c0_122 = arith.constant 0 : index
    %159 = vector.load %arg12[%c3_120, %c0_121, %c0_122] : memref<9x32x32xf32, #tpu.memory_space<vmem>>, vector<1x32x32xf32>
    %160 = vector.shape_cast %159 : vector<1x32x32xf32> to vector<32x32xf32>
    %161 = arith.truncf %158 : vector<32x32xf32> to vector<32x32xbf16>
    %162 = arith.truncf %160 : vector<32x32xf32> to vector<32x32xbf16>
    %cst_123 = arith.constant dense<0.000000e+00> : vector<32x32xf32>
    %163 = tpu.matmul %161, %162, %cst_123 {dimension_numbers = #tpu.dot_dimension_numbers<[1], [0], [0], [1], [0, 0, 1, 1], [], []>} : vector<32x32xbf16>, vector<32x32xbf16>, vector<32x32xf32> -> vector<32x32xf32>
    %164 = arith.addf %154, %163 : vector<32x32xf32>
    %c4_124 = arith.constant 4 : index
    %c0_125 = arith.constant 0 : index
    %c0_126 = arith.constant 0 : index
    %165 = vector.load %arg6[%c4_124, %c0_125, %c0_126] : memref<9x32x128xbf16, #tpu.memory_space<vmem>>, vector<1x32x128xbf16>
    %166 = vector.shape_cast %165 : vector<1x32x128xbf16> to vector<32x128xbf16>
    %167 = arith.truncf %122 : vector<128x32xf32> to vector<128x32xbf16>
    %cst_127 = arith.constant dense<0.000000e+00> : vector<32x32xf32>
    %168 = tpu.matmul %166, %167, %cst_127 {dimension_numbers = #tpu.dot_dimension_numbers<[1], [0], [0], [1], [0, 0, 1, 1], [], []>} : vector<32x128xbf16>, vector<128x32xbf16>, vector<32x32xf32> -> vector<32x32xf32>
    %c4_128 = arith.constant 4 : index
    %c0_129 = arith.constant 0 : index
    %c0_130 = arith.constant 0 : index
    %169 = vector.load %arg12[%c4_128, %c0_129, %c0_130] : memref<9x32x32xf32, #tpu.memory_space<vmem>>, vector<1x32x32xf32>
    %170 = vector.shape_cast %169 : vector<1x32x32xf32> to vector<32x32xf32>
    %171 = arith.truncf %168 : vector<32x32xf32> to vector<32x32xbf16>
    %172 = arith.truncf %170 : vector<32x32xf32> to vector<32x32xbf16>
    %cst_131 = arith.constant dense<0.000000e+00> : vector<32x32xf32>
    %173 = tpu.matmul %171, %172, %cst_131 {dimension_numbers = #tpu.dot_dimension_numbers<[1], [0], [0], [1], [0, 0, 1, 1], [], []>} : vector<32x32xbf16>, vector<32x32xbf16>, vector<32x32xf32> -> vector<32x32xf32>
    %174 = arith.addf %164, %173 : vector<32x32xf32>
    %c5_132 = arith.constant 5 : index
    %c0_133 = arith.constant 0 : index
    %c0_134 = arith.constant 0 : index
    %175 = vector.load %arg6[%c5_132, %c0_133, %c0_134] : memref<9x32x128xbf16, #tpu.memory_space<vmem>>, vector<1x32x128xbf16>
    %176 = vector.shape_cast %175 : vector<1x32x128xbf16> to vector<32x128xbf16>
    %177 = arith.truncf %122 : vector<128x32xf32> to vector<128x32xbf16>
    %cst_135 = arith.constant dense<0.000000e+00> : vector<32x32xf32>
    %178 = tpu.matmul %176, %177, %cst_135 {dimension_numbers = #tpu.dot_dimension_numbers<[1], [0], [0], [1], [0, 0, 1, 1], [], []>} : vector<32x128xbf16>, vector<128x32xbf16>, vector<32x32xf32> -> vector<32x32xf32>
    %c5_136 = arith.constant 5 : index
    %c0_137 = arith.constant 0 : index
    %c0_138 = arith.constant 0 : index
    %179 = vector.load %arg12[%c5_136, %c0_137, %c0_138] : memref<9x32x32xf32, #tpu.memory_space<vmem>>, vector<1x32x32xf32>
    %180 = vector.shape_cast %179 : vector<1x32x32xf32> to vector<32x32xf32>
    %181 = arith.truncf %178 : vector<32x32xf32> to vector<32x32xbf16>
    %182 = arith.truncf %180 : vector<32x32xf32> to vector<32x32xbf16>
    %cst_139 = arith.constant dense<0.000000e+00> : vector<32x32xf32>
    %183 = tpu.matmul %181, %182, %cst_139 {dimension_numbers = #tpu.dot_dimension_numbers<[1], [0], [0], [1], [0, 0, 1, 1], [], []>} : vector<32x32xbf16>, vector<32x32xbf16>, vector<32x32xf32> -> vector<32x32xf32>
    %184 = arith.addf %174, %183 : vector<32x32xf32>
    %c6_140 = arith.constant 6 : index
    %c0_141 = arith.constant 0 : index
    %c0_142 = arith.constant 0 : index
    %185 = vector.load %arg6[%c6_140, %c0_141, %c0_142] : memref<9x32x128xbf16, #tpu.memory_space<vmem>>, vector<1x32x128xbf16>
    %186 = vector.shape_cast %185 : vector<1x32x128xbf16> to vector<32x128xbf16>
    %187 = arith.truncf %122 : vector<128x32xf32> to vector<128x32xbf16>
    %cst_143 = arith.constant dense<0.000000e+00> : vector<32x32xf32>
    %188 = tpu.matmul %186, %187, %cst_143 {dimension_numbers = #tpu.dot_dimension_numbers<[1], [0], [0], [1], [0, 0, 1, 1], [], []>} : vector<32x128xbf16>, vector<128x32xbf16>, vector<32x32xf32> -> vector<32x32xf32>
    %c6_144 = arith.constant 6 : index
    %c0_145 = arith.constant 0 : index
    %c0_146 = arith.constant 0 : index
    %189 = vector.load %arg12[%c6_144, %c0_145, %c0_146] : memref<9x32x32xf32, #tpu.memory_space<vmem>>, vector<1x32x32xf32>
    %190 = vector.shape_cast %189 : vector<1x32x32xf32> to vector<32x32xf32>
    %191 = arith.truncf %188 : vector<32x32xf32> to vector<32x32xbf16>
    %192 = arith.truncf %190 : vector<32x32xf32> to vector<32x32xbf16>
    %cst_147 = arith.constant dense<0.000000e+00> : vector<32x32xf32>
    %193 = tpu.matmul %191, %192, %cst_147 {dimension_numbers = #tpu.dot_dimension_numbers<[1], [0], [0], [1], [0, 0, 1, 1], [], []>} : vector<32x32xbf16>, vector<32x32xbf16>, vector<32x32xf32> -> vector<32x32xf32>
    %194 = arith.addf %184, %193 : vector<32x32xf32>
    %c7_148 = arith.constant 7 : index
    %c0_149 = arith.constant 0 : index
    %c0_150 = arith.constant 0 : index
    %195 = vector.load %arg6[%c7_148, %c0_149, %c0_150] : memref<9x32x128xbf16, #tpu.memory_space<vmem>>, vector<1x32x128xbf16>
    %196 = vector.shape_cast %195 : vector<1x32x128xbf16> to vector<32x128xbf16>
    %197 = arith.truncf %122 : vector<128x32xf32> to vector<128x32xbf16>
    %cst_151 = arith.constant dense<0.000000e+00> : vector<32x32xf32>
    %198 = tpu.matmul %196, %197, %cst_151 {dimension_numbers = #tpu.dot_dimension_numbers<[1], [0], [0], [1], [0, 0, 1, 1], [], []>} : vector<32x128xbf16>, vector<128x32xbf16>, vector<32x32xf32> -> vector<32x32xf32>
    %c7_152 = arith.constant 7 : index
    %c0_153 = arith.constant 0 : index
    %c0_154 = arith.constant 0 : index
    %199 = vector.load %arg12[%c7_152, %c0_153, %c0_154] : memref<9x32x32xf32, #tpu.memory_space<vmem>>, vector<1x32x32xf32>
    %200 = vector.shape_cast %199 : vector<1x32x32xf32> to vector<32x32xf32>
    %201 = arith.truncf %198 : vector<32x32xf32> to vector<32x32xbf16>
    %202 = arith.truncf %200 : vector<32x32xf32> to vector<32x32xbf16>
    %cst_155 = arith.constant dense<0.000000e+00> : vector<32x32xf32>
    %203 = tpu.matmul %201, %202, %cst_155 {dimension_numbers = #tpu.dot_dimension_numbers<[1], [0], [0], [1], [0, 0, 1, 1], [], []>} : vector<32x32xbf16>, vector<32x32xbf16>, vector<32x32xf32> -> vector<32x32xf32>
    %204 = arith.addf %194, %203 : vector<32x32xf32>
    %c8_156 = arith.constant 8 : index
    %c0_157 = arith.constant 0 : index
    %c0_158 = arith.constant 0 : index
    %205 = vector.load %arg6[%c8_156, %c0_157, %c0_158] : memref<9x32x128xbf16, #tpu.memory_space<vmem>>, vector<1x32x128xbf16>
    %206 = vector.shape_cast %205 : vector<1x32x128xbf16> to vector<32x128xbf16>
    %207 = arith.truncf %122 : vector<128x32xf32> to vector<128x32xbf16>
    %cst_159 = arith.constant dense<0.000000e+00> : vector<32x32xf32>
    %208 = tpu.matmul %206, %207, %cst_159 {dimension_numbers = #tpu.dot_dimension_numbers<[1], [0], [0], [1], [0, 0, 1, 1], [], []>} : vector<32x128xbf16>, vector<128x32xbf16>, vector<32x32xf32> -> vector<32x32xf32>
    %c8_160 = arith.constant 8 : index
    %c0_161 = arith.constant 0 : index
    %c0_162 = arith.constant 0 : index
    %209 = vector.load %arg12[%c8_160, %c0_161, %c0_162] : memref<9x32x32xf32, #tpu.memory_space<vmem>>, vector<1x32x32xf32>
    %210 = vector.shape_cast %209 : vector<1x32x32xf32> to vector<32x32xf32>
    %211 = arith.truncf %208 : vector<32x32xf32> to vector<32x32xbf16>
    %212 = arith.truncf %210 : vector<32x32xf32> to vector<32x32xbf16>
    %cst_163 = arith.constant dense<0.000000e+00> : vector<32x32xf32>
    %213 = tpu.matmul %211, %212, %cst_163 {dimension_numbers = #tpu.dot_dimension_numbers<[1], [0], [0], [1], [0, 0, 1, 1], [], []>} : vector<32x32xbf16>, vector<32x32xbf16>, vector<32x32xf32> -> vector<32x32xf32>
    %214 = arith.addf %204, %213 : vector<32x32xf32>
    %c0_164 = arith.constant 0 : index
    %c0_165 = arith.constant 0 : index
    %215 = vector.load %arg2[%c0_164, %c0_165] : memref<128x32xf32, #tpu.memory_space<vmem>>, vector<128x32xf32>
    %c0_166 = arith.constant 0 : index
    %c0_167 = arith.constant 0 : index
    %216 = vector.load %arg15[%c0_166, %c0_167] : memref<1x32xf32, #tpu.memory_space<vmem>>, vector<1x32xf32>
    %c0_168 = arith.constant 0 : index
    %c0_169 = arith.constant 0 : index
    %c0_170 = arith.constant 0 : index
    %217 = vector.load %arg6[%c0_168, %c0_169, %c0_170] : memref<9x32x128xbf16, #tpu.memory_space<vmem>>, vector<1x32x128xbf16>
    %218 = vector.shape_cast %217 : vector<1x32x128xbf16> to vector<32x128xbf16>
    %219 = arith.truncf %215 : vector<128x32xf32> to vector<128x32xbf16>
    %cst_171 = arith.constant dense<0.000000e+00> : vector<32x32xf32>
    %220 = tpu.matmul %218, %219, %cst_171 {dimension_numbers = #tpu.dot_dimension_numbers<[1], [0], [0], [1], [0, 0, 1, 1], [], []>} : vector<32x128xbf16>, vector<128x32xbf16>, vector<32x32xf32> -> vector<32x32xf32>
    %c0_172 = arith.constant 0 : index
    %c0_173 = arith.constant 0 : index
    %c0_174 = arith.constant 0 : index
    %221 = vector.load %arg14[%c0_172, %c0_173, %c0_174] : memref<9x32x32xf32, #tpu.memory_space<vmem>>, vector<1x32x32xf32>
    %222 = vector.shape_cast %221 : vector<1x32x32xf32> to vector<32x32xf32>
    %223 = arith.truncf %220 : vector<32x32xf32> to vector<32x32xbf16>
    %224 = arith.truncf %222 : vector<32x32xf32> to vector<32x32xbf16>
    %cst_175 = arith.constant dense<0.000000e+00> : vector<32x32xf32>
    %225 = tpu.matmul %223, %224, %cst_175 {dimension_numbers = #tpu.dot_dimension_numbers<[1], [0], [0], [1], [0, 0, 1, 1], [], []>} : vector<32x32xbf16>, vector<32x32xbf16>, vector<32x32xf32> -> vector<32x32xf32>
    %226 = vector.broadcast %216 : vector<1x32xf32> to vector<32x32xf32>
    %227 = arith.addf %226, %225 : vector<32x32xf32>
    %c1_176 = arith.constant 1 : index
    %c0_177 = arith.constant 0 : index
    %c0_178 = arith.constant 0 : index
    %228 = vector.load %arg6[%c1_176, %c0_177, %c0_178] : memref<9x32x128xbf16, #tpu.memory_space<vmem>>, vector<1x32x128xbf16>
    %229 = vector.shape_cast %228 : vector<1x32x128xbf16> to vector<32x128xbf16>
    %230 = arith.truncf %215 : vector<128x32xf32> to vector<128x32xbf16>
    %cst_179 = arith.constant dense<0.000000e+00> : vector<32x32xf32>
    %231 = tpu.matmul %229, %230, %cst_179 {dimension_numbers = #tpu.dot_dimension_numbers<[1], [0], [0], [1], [0, 0, 1, 1], [], []>} : vector<32x128xbf16>, vector<128x32xbf16>, vector<32x32xf32> -> vector<32x32xf32>
    %c1_180 = arith.constant 1 : index
    %c0_181 = arith.constant 0 : index
    %c0_182 = arith.constant 0 : index
    %232 = vector.load %arg14[%c1_180, %c0_181, %c0_182] : memref<9x32x32xf32, #tpu.memory_space<vmem>>, vector<1x32x32xf32>
    %233 = vector.shape_cast %232 : vector<1x32x32xf32> to vector<32x32xf32>
    %234 = arith.truncf %231 : vector<32x32xf32> to vector<32x32xbf16>
    %235 = arith.truncf %233 : vector<32x32xf32> to vector<32x32xbf16>
    %cst_183 = arith.constant dense<0.000000e+00> : vector<32x32xf32>
    %236 = tpu.matmul %234, %235, %cst_183 {dimension_numbers = #tpu.dot_dimension_numbers<[1], [0], [0], [1], [0, 0, 1, 1], [], []>} : vector<32x32xbf16>, vector<32x32xbf16>, vector<32x32xf32> -> vector<32x32xf32>
    %237 = arith.addf %227, %236 : vector<32x32xf32>
    %c2_184 = arith.constant 2 : index
    %c0_185 = arith.constant 0 : index
    %c0_186 = arith.constant 0 : index
    %238 = vector.load %arg6[%c2_184, %c0_185, %c0_186] : memref<9x32x128xbf16, #tpu.memory_space<vmem>>, vector<1x32x128xbf16>
    %239 = vector.shape_cast %238 : vector<1x32x128xbf16> to vector<32x128xbf16>
    %240 = arith.truncf %215 : vector<128x32xf32> to vector<128x32xbf16>
    %cst_187 = arith.constant dense<0.000000e+00> : vector<32x32xf32>
    %241 = tpu.matmul %239, %240, %cst_187 {dimension_numbers = #tpu.dot_dimension_numbers<[1], [0], [0], [1], [0, 0, 1, 1], [], []>} : vector<32x128xbf16>, vector<128x32xbf16>, vector<32x32xf32> -> vector<32x32xf32>
    %c2_188 = arith.constant 2 : index
    %c0_189 = arith.constant 0 : index
    %c0_190 = arith.constant 0 : index
    %242 = vector.load %arg14[%c2_188, %c0_189, %c0_190] : memref<9x32x32xf32, #tpu.memory_space<vmem>>, vector<1x32x32xf32>
    %243 = vector.shape_cast %242 : vector<1x32x32xf32> to vector<32x32xf32>
    %244 = arith.truncf %241 : vector<32x32xf32> to vector<32x32xbf16>
    %245 = arith.truncf %243 : vector<32x32xf32> to vector<32x32xbf16>
    %cst_191 = arith.constant dense<0.000000e+00> : vector<32x32xf32>
    %246 = tpu.matmul %244, %245, %cst_191 {dimension_numbers = #tpu.dot_dimension_numbers<[1], [0], [0], [1], [0, 0, 1, 1], [], []>} : vector<32x32xbf16>, vector<32x32xbf16>, vector<32x32xf32> -> vector<32x32xf32>
    %247 = arith.addf %237, %246 : vector<32x32xf32>
    %c3_192 = arith.constant 3 : index
    %c0_193 = arith.constant 0 : index
    %c0_194 = arith.constant 0 : index
    %248 = vector.load %arg6[%c3_192, %c0_193, %c0_194] : memref<9x32x128xbf16, #tpu.memory_space<vmem>>, vector<1x32x128xbf16>
    %249 = vector.shape_cast %248 : vector<1x32x128xbf16> to vector<32x128xbf16>
    %250 = arith.truncf %215 : vector<128x32xf32> to vector<128x32xbf16>
    %cst_195 = arith.constant dense<0.000000e+00> : vector<32x32xf32>
    %251 = tpu.matmul %249, %250, %cst_195 {dimension_numbers = #tpu.dot_dimension_numbers<[1], [0], [0], [1], [0, 0, 1, 1], [], []>} : vector<32x128xbf16>, vector<128x32xbf16>, vector<32x32xf32> -> vector<32x32xf32>
    %c3_196 = arith.constant 3 : index
    %c0_197 = arith.constant 0 : index
    %c0_198 = arith.constant 0 : index
    %252 = vector.load %arg14[%c3_196, %c0_197, %c0_198] : memref<9x32x32xf32, #tpu.memory_space<vmem>>, vector<1x32x32xf32>
    %253 = vector.shape_cast %252 : vector<1x32x32xf32> to vector<32x32xf32>
    %254 = arith.truncf %251 : vector<32x32xf32> to vector<32x32xbf16>
    %255 = arith.truncf %253 : vector<32x32xf32> to vector<32x32xbf16>
    %cst_199 = arith.constant dense<0.000000e+00> : vector<32x32xf32>
    %256 = tpu.matmul %254, %255, %cst_199 {dimension_numbers = #tpu.dot_dimension_numbers<[1], [0], [0], [1], [0, 0, 1, 1], [], []>} : vector<32x32xbf16>, vector<32x32xbf16>, vector<32x32xf32> -> vector<32x32xf32>
    %257 = arith.addf %247, %256 : vector<32x32xf32>
    %c4_200 = arith.constant 4 : index
    %c0_201 = arith.constant 0 : index
    %c0_202 = arith.constant 0 : index
    %258 = vector.load %arg6[%c4_200, %c0_201, %c0_202] : memref<9x32x128xbf16, #tpu.memory_space<vmem>>, vector<1x32x128xbf16>
    %259 = vector.shape_cast %258 : vector<1x32x128xbf16> to vector<32x128xbf16>
    %260 = arith.truncf %215 : vector<128x32xf32> to vector<128x32xbf16>
    %cst_203 = arith.constant dense<0.000000e+00> : vector<32x32xf32>
    %261 = tpu.matmul %259, %260, %cst_203 {dimension_numbers = #tpu.dot_dimension_numbers<[1], [0], [0], [1], [0, 0, 1, 1], [], []>} : vector<32x128xbf16>, vector<128x32xbf16>, vector<32x32xf32> -> vector<32x32xf32>
    %c4_204 = arith.constant 4 : index
    %c0_205 = arith.constant 0 : index
    %c0_206 = arith.constant 0 : index
    %262 = vector.load %arg14[%c4_204, %c0_205, %c0_206] : memref<9x32x32xf32, #tpu.memory_space<vmem>>, vector<1x32x32xf32>
    %263 = vector.shape_cast %262 : vector<1x32x32xf32> to vector<32x32xf32>
    %264 = arith.truncf %261 : vector<32x32xf32> to vector<32x32xbf16>
    %265 = arith.truncf %263 : vector<32x32xf32> to vector<32x32xbf16>
    %cst_207 = arith.constant dense<0.000000e+00> : vector<32x32xf32>
    %266 = tpu.matmul %264, %265, %cst_207 {dimension_numbers = #tpu.dot_dimension_numbers<[1], [0], [0], [1], [0, 0, 1, 1], [], []>} : vector<32x32xbf16>, vector<32x32xbf16>, vector<32x32xf32> -> vector<32x32xf32>
    %267 = arith.addf %257, %266 : vector<32x32xf32>
    %c5_208 = arith.constant 5 : index
    %c0_209 = arith.constant 0 : index
    %c0_210 = arith.constant 0 : index
    %268 = vector.load %arg6[%c5_208, %c0_209, %c0_210] : memref<9x32x128xbf16, #tpu.memory_space<vmem>>, vector<1x32x128xbf16>
    %269 = vector.shape_cast %268 : vector<1x32x128xbf16> to vector<32x128xbf16>
    %270 = arith.truncf %215 : vector<128x32xf32> to vector<128x32xbf16>
    %cst_211 = arith.constant dense<0.000000e+00> : vector<32x32xf32>
    %271 = tpu.matmul %269, %270, %cst_211 {dimension_numbers = #tpu.dot_dimension_numbers<[1], [0], [0], [1], [0, 0, 1, 1], [], []>} : vector<32x128xbf16>, vector<128x32xbf16>, vector<32x32xf32> -> vector<32x32xf32>
    %c5_212 = arith.constant 5 : index
    %c0_213 = arith.constant 0 : index
    %c0_214 = arith.constant 0 : index
    %272 = vector.load %arg14[%c5_212, %c0_213, %c0_214] : memref<9x32x32xf32, #tpu.memory_space<vmem>>, vector<1x32x32xf32>
    %273 = vector.shape_cast %272 : vector<1x32x32xf32> to vector<32x32xf32>
    %274 = arith.truncf %271 : vector<32x32xf32> to vector<32x32xbf16>
    %275 = arith.truncf %273 : vector<32x32xf32> to vector<32x32xbf16>
    %cst_215 = arith.constant dense<0.000000e+00> : vector<32x32xf32>
    %276 = tpu.matmul %274, %275, %cst_215 {dimension_numbers = #tpu.dot_dimension_numbers<[1], [0], [0], [1], [0, 0, 1, 1], [], []>} : vector<32x32xbf16>, vector<32x32xbf16>, vector<32x32xf32> -> vector<32x32xf32>
    %277 = arith.addf %267, %276 : vector<32x32xf32>
    %c6_216 = arith.constant 6 : index
    %c0_217 = arith.constant 0 : index
    %c0_218 = arith.constant 0 : index
    %278 = vector.load %arg6[%c6_216, %c0_217, %c0_218] : memref<9x32x128xbf16, #tpu.memory_space<vmem>>, vector<1x32x128xbf16>
    %279 = vector.shape_cast %278 : vector<1x32x128xbf16> to vector<32x128xbf16>
    %280 = arith.truncf %215 : vector<128x32xf32> to vector<128x32xbf16>
    %cst_219 = arith.constant dense<0.000000e+00> : vector<32x32xf32>
    %281 = tpu.matmul %279, %280, %cst_219 {dimension_numbers = #tpu.dot_dimension_numbers<[1], [0], [0], [1], [0, 0, 1, 1], [], []>} : vector<32x128xbf16>, vector<128x32xbf16>, vector<32x32xf32> -> vector<32x32xf32>
    %c6_220 = arith.constant 6 : index
    %c0_221 = arith.constant 0 : index
    %c0_222 = arith.constant 0 : index
    %282 = vector.load %arg14[%c6_220, %c0_221, %c0_222] : memref<9x32x32xf32, #tpu.memory_space<vmem>>, vector<1x32x32xf32>
    %283 = vector.shape_cast %282 : vector<1x32x32xf32> to vector<32x32xf32>
    %284 = arith.truncf %281 : vector<32x32xf32> to vector<32x32xbf16>
    %285 = arith.truncf %283 : vector<32x32xf32> to vector<32x32xbf16>
    %cst_223 = arith.constant dense<0.000000e+00> : vector<32x32xf32>
    %286 = tpu.matmul %284, %285, %cst_223 {dimension_numbers = #tpu.dot_dimension_numbers<[1], [0], [0], [1], [0, 0, 1, 1], [], []>} : vector<32x32xbf16>, vector<32x32xbf16>, vector<32x32xf32> -> vector<32x32xf32>
    %287 = arith.addf %277, %286 : vector<32x32xf32>
    %c7_224 = arith.constant 7 : index
    %c0_225 = arith.constant 0 : index
    %c0_226 = arith.constant 0 : index
    %288 = vector.load %arg6[%c7_224, %c0_225, %c0_226] : memref<9x32x128xbf16, #tpu.memory_space<vmem>>, vector<1x32x128xbf16>
    %289 = vector.shape_cast %288 : vector<1x32x128xbf16> to vector<32x128xbf16>
    %290 = arith.truncf %215 : vector<128x32xf32> to vector<128x32xbf16>
    %cst_227 = arith.constant dense<0.000000e+00> : vector<32x32xf32>
    %291 = tpu.matmul %289, %290, %cst_227 {dimension_numbers = #tpu.dot_dimension_numbers<[1], [0], [0], [1], [0, 0, 1, 1], [], []>} : vector<32x128xbf16>, vector<128x32xbf16>, vector<32x32xf32> -> vector<32x32xf32>
    %c7_228 = arith.constant 7 : index
    %c0_229 = arith.constant 0 : index
    %c0_230 = arith.constant 0 : index
    %292 = vector.load %arg14[%c7_228, %c0_229, %c0_230] : memref<9x32x32xf32, #tpu.memory_space<vmem>>, vector<1x32x32xf32>
    %293 = vector.shape_cast %292 : vector<1x32x32xf32> to vector<32x32xf32>
    %294 = arith.truncf %291 : vector<32x32xf32> to vector<32x32xbf16>
    %295 = arith.truncf %293 : vector<32x32xf32> to vector<32x32xbf16>
    %cst_231 = arith.constant dense<0.000000e+00> : vector<32x32xf32>
    %296 = tpu.matmul %294, %295, %cst_231 {dimension_numbers = #tpu.dot_dimension_numbers<[1], [0], [0], [1], [0, 0, 1, 1], [], []>} : vector<32x32xbf16>, vector<32x32xbf16>, vector<32x32xf32> -> vector<32x32xf32>
    %297 = arith.addf %287, %296 : vector<32x32xf32>
    %c8_232 = arith.constant 8 : index
    %c0_233 = arith.constant 0 : index
    %c0_234 = arith.constant 0 : index
    %298 = vector.load %arg6[%c8_232, %c0_233, %c0_234] : memref<9x32x128xbf16, #tpu.memory_space<vmem>>, vector<1x32x128xbf16>
    %299 = vector.shape_cast %298 : vector<1x32x128xbf16> to vector<32x128xbf16>
    %300 = arith.truncf %215 : vector<128x32xf32> to vector<128x32xbf16>
    %cst_235 = arith.constant dense<0.000000e+00> : vector<32x32xf32>
    %301 = tpu.matmul %299, %300, %cst_235 {dimension_numbers = #tpu.dot_dimension_numbers<[1], [0], [0], [1], [0, 0, 1, 1], [], []>} : vector<32x128xbf16>, vector<128x32xbf16>, vector<32x32xf32> -> vector<32x32xf32>
    %c8_236 = arith.constant 8 : index
    %c0_237 = arith.constant 0 : index
    %c0_238 = arith.constant 0 : index
    %302 = vector.load %arg14[%c8_236, %c0_237, %c0_238] : memref<9x32x32xf32, #tpu.memory_space<vmem>>, vector<1x32x32xf32>
    %303 = vector.shape_cast %302 : vector<1x32x32xf32> to vector<32x32xf32>
    %304 = arith.truncf %301 : vector<32x32xf32> to vector<32x32xbf16>
    %305 = arith.truncf %303 : vector<32x32xf32> to vector<32x32xbf16>
    %cst_239 = arith.constant dense<0.000000e+00> : vector<32x32xf32>
    %306 = tpu.matmul %304, %305, %cst_239 {dimension_numbers = #tpu.dot_dimension_numbers<[1], [0], [0], [1], [0, 0, 1, 1], [], []>} : vector<32x32xbf16>, vector<32x32xbf16>, vector<32x32xf32> -> vector<32x32xf32>
    %307 = arith.addf %297, %306 : vector<32x32xf32>
    %c0_240 = arith.constant 0 : index
    %c0_241 = arith.constant 0 : index
    %308 = vector.load %arg16[%c0_240, %c0_241] : memref<32x64xf32, #tpu.memory_space<vmem>>, vector<32x64xf32>
    %309 = arith.truncf %214 : vector<32x32xf32> to vector<32x32xbf16>
    %310 = arith.truncf %308 : vector<32x64xf32> to vector<32x64xbf16>
    %cst_242 = arith.constant dense<0.000000e+00> : vector<32x64xf32>
    %311 = tpu.matmul %309, %310, %cst_242 {dimension_numbers = #tpu.dot_dimension_numbers<[1], [0], [0], [1], [0, 0, 1, 1], [], []>} : vector<32x32xbf16>, vector<32x64xbf16>, vector<32x64xf32> -> vector<32x64xf32>
    %c0_243 = arith.constant 0 : index
    %c0_244 = arith.constant 0 : index
    %312 = vector.load %arg17[%c0_243, %c0_244] : memref<32x64xf32, #tpu.memory_space<vmem>>, vector<32x64xf32>
    %313 = arith.truncf %307 : vector<32x32xf32> to vector<32x32xbf16>
    %314 = arith.truncf %312 : vector<32x64xf32> to vector<32x64xbf16>
    %cst_245 = arith.constant dense<0.000000e+00> : vector<32x64xf32>
    %315 = tpu.matmul %313, %314, %cst_245 {dimension_numbers = #tpu.dot_dimension_numbers<[1], [0], [0], [1], [0, 0, 1, 1], [], []>} : vector<32x32xbf16>, vector<32x64xbf16>, vector<32x64xf32> -> vector<32x64xf32>
    %316 = arith.addf %311, %315 : vector<32x64xf32>
    %c0_246 = arith.constant 0 : index
    %c0_247 = arith.constant 0 : index
    %317 = vector.load %arg3[%c0_246, %c0_247] : memref<32x32xf32, #tpu.memory_space<vmem>>, vector<32x32xf32>
    %c0_248 = arith.constant 0 : index
    %c0_249 = arith.constant 0 : index
    %318 = vector.load %arg18[%c0_248, %c0_249] : memref<32x64xf32, #tpu.memory_space<vmem>>, vector<32x64xf32>
    %319 = arith.truncf %317 : vector<32x32xf32> to vector<32x32xbf16>
    %320 = arith.truncf %318 : vector<32x64xf32> to vector<32x64xbf16>
    %cst_250 = arith.constant dense<0.000000e+00> : vector<32x64xf32>
    %321 = tpu.matmul %319, %320, %cst_250 {dimension_numbers = #tpu.dot_dimension_numbers<[1], [0], [0], [1], [0, 0, 1, 1], [], []>} : vector<32x32xbf16>, vector<32x64xbf16>, vector<32x64xf32> -> vector<32x64xf32>
    %322 = arith.addf %316, %321 : vector<32x64xf32>
    %c0_251 = arith.constant 0 : index
    %c0_252 = arith.constant 0 : index
    %323 = vector.load %arg7[%c0_251, %c0_252] : memref<32x8xbf16, #tpu.memory_space<vmem>>, vector<32x8xbf16>
    %c0_253 = arith.constant 0 : index
    %c0_254 = arith.constant 0 : index
    %324 = vector.load %arg4[%c0_253, %c0_254] : memref<8x32xf32, #tpu.memory_space<vmem>>, vector<8x32xf32>
    %c0_255 = arith.constant 0 : index
    %c0_256 = arith.constant 0 : index
    %325 = vector.load %arg19[%c0_255, %c0_256] : memref<32x64xf32, #tpu.memory_space<vmem>>, vector<32x64xf32>
    %326 = arith.truncf %324 : vector<8x32xf32> to vector<8x32xbf16>
    %327 = arith.truncf %325 : vector<32x64xf32> to vector<32x64xbf16>
    %cst_257 = arith.constant dense<0.000000e+00> : vector<8x64xf32>
    %328 = tpu.matmul %326, %327, %cst_257 {dimension_numbers = #tpu.dot_dimension_numbers<[1], [0], [0], [1], [0, 0, 1, 1], [], []>} : vector<8x32xbf16>, vector<32x64xbf16>, vector<8x64xf32> -> vector<8x64xf32>
    %329 = arith.truncf %328 : vector<8x64xf32> to vector<8x64xbf16>
    %cst_258 = arith.constant dense<0.000000e+00> : vector<32x64xf32>
    %330 = tpu.matmul %323, %329, %cst_258 {dimension_numbers = #tpu.dot_dimension_numbers<[1], [0], [0], [1], [0, 0, 1, 1], [], []>} : vector<32x8xbf16>, vector<8x64xbf16>, vector<32x64xf32> -> vector<32x64xf32>
    %331 = arith.addf %322, %330 : vector<32x64xf32>
    %c0_259 = arith.constant 0 : index
    %c0_260 = arith.constant 0 : index
    %332 = vector.load %arg20[%c0_259, %c0_260] : memref<1x64xf32, #tpu.memory_space<vmem>>, vector<1x64xf32>
    %333 = vector.broadcast %332 : vector<1x64xf32> to vector<32x64xf32>
    %334 = arith.addf %331, %333 : vector<32x64xf32>
    %c0_261 = arith.constant 0 : index
    %c0_262 = arith.constant 0 : index
    %335 = vector.load %arg25[%c0_261, %c0_262] : memref<2x32xf32, #tpu.memory_space<vmem>>, vector<2x32xf32>
    %c0_263 = arith.constant 0 : index
    %c0_264 = arith.constant 0 : index
    %336 = vector.load %arg26[%c0_263, %c0_264] : memref<32x2xf32, #tpu.memory_space<vmem>>, vector<32x2xf32>
    %c0_265 = arith.constant 0 : index
    %c0_266 = arith.constant 0 : index
    %337 = vector.load %arg29[%c0_265, %c0_266] : memref<64x16xf32, #tpu.memory_space<vmem>>, vector<64x16xf32>
    %c0_267 = arith.constant 0 : index
    %c0_268 = arith.constant 0 : index
    %338 = vector.load %arg30[%c0_267, %c0_268] : memref<16x64xf32, #tpu.memory_space<vmem>>, vector<16x64xf32>
    %cst_269 = arith.constant dense<0.000000e+00> : vector<2x64xf32>
    %339 = tpu.matmul %335, %334, %cst_269 {dimension_numbers = #tpu.dot_dimension_numbers<[1], [0], [0], [1], [0, 0, 1, 1], [], []>} : vector<2x32xf32>, vector<32x64xf32>, vector<2x64xf32> -> vector<2x64xf32>
    %cst_270 = arith.constant dense<0.000000e+00> : vector<2x16xf32>
    %340 = tpu.matmul %339, %337, %cst_270 {dimension_numbers = #tpu.dot_dimension_numbers<[1], [0], [0], [1], [0, 0, 1, 1], [], []>} : vector<2x64xf32>, vector<64x16xf32>, vector<2x16xf32> -> vector<2x16xf32>
    %cst_271 = arith.constant 1.562500e-02 : f32
    %341 = vector.broadcast %cst_271 : f32 to vector<2x16xf32>
    %342 = arith.mulf %340, %341 : vector<2x16xf32>
    %cst_272 = arith.constant dense<0.000000e+00> : vector<2x64xf32>
    %343 = tpu.matmul %342, %338, %cst_272 {dimension_numbers = #tpu.dot_dimension_numbers<[1], [0], [0], [1], [0, 0, 1, 1], [], []>} : vector<2x16xf32>, vector<16x64xf32>, vector<2x64xf32> -> vector<2x64xf32>
    %cst_273 = arith.constant dense<0.000000e+00> : vector<32x64xf32>
    %344 = tpu.matmul %336, %343, %cst_273 {dimension_numbers = #tpu.dot_dimension_numbers<[1], [0], [0], [1], [0, 0, 1, 1], [], []>} : vector<32x2xf32>, vector<2x64xf32>, vector<32x64xf32> -> vector<32x64xf32>
    %345 = arith.subf %334, %344 : vector<32x64xf32>
    %346 = arith.mulf %345, %345 : vector<32x64xf32>
    %cst_274 = arith.constant dense<0.000000e+00> : vector<2x64xf32>
    %347 = tpu.matmul %335, %346, %cst_274 {dimension_numbers = #tpu.dot_dimension_numbers<[1], [0], [0], [1], [0, 0, 1, 1], [], []>} : vector<2x32xf32>, vector<32x64xf32>, vector<2x64xf32> -> vector<2x64xf32>
    %cst_275 = arith.constant dense<0.000000e+00> : vector<2x16xf32>
    %348 = tpu.matmul %347, %337, %cst_275 {dimension_numbers = #tpu.dot_dimension_numbers<[1], [0], [0], [1], [0, 0, 1, 1], [], []>} : vector<2x64xf32>, vector<64x16xf32>, vector<2x16xf32> -> vector<2x16xf32>
    %cst_276 = arith.constant 1.562500e-02 : f32
    %349 = vector.broadcast %cst_276 : f32 to vector<2x16xf32>
    %350 = arith.mulf %348, %349 : vector<2x16xf32>
    %cst_277 = arith.constant dense<0.000000e+00> : vector<2x64xf32>
    %351 = tpu.matmul %350, %338, %cst_277 {dimension_numbers = #tpu.dot_dimension_numbers<[1], [0], [0], [1], [0, 0, 1, 1], [], []>} : vector<2x16xf32>, vector<16x64xf32>, vector<2x64xf32> -> vector<2x64xf32>
    %cst_278 = arith.constant dense<0.000000e+00> : vector<32x64xf32>
    %352 = tpu.matmul %336, %351, %cst_278 {dimension_numbers = #tpu.dot_dimension_numbers<[1], [0], [0], [1], [0, 0, 1, 1], [], []>} : vector<32x2xf32>, vector<2x64xf32>, vector<32x64xf32> -> vector<32x64xf32>
    %cst_279 = arith.constant 9.99999974E-6 : f32
    %353 = vector.broadcast %cst_279 : f32 to vector<32x64xf32>
    %354 = arith.addf %352, %353 : vector<32x64xf32>
    %355 = math.rsqrt %354 : vector<32x64xf32>
    %356 = arith.mulf %345, %355 : vector<32x64xf32>
    %c0_280 = arith.constant 0 : index
    %c0_281 = arith.constant 0 : index
    %357 = vector.load %arg21[%c0_280, %c0_281] : memref<1x64xf32, #tpu.memory_space<vmem>>, vector<1x64xf32>
    %358 = vector.broadcast %357 : vector<1x64xf32> to vector<32x64xf32>
    %359 = arith.mulf %356, %358 : vector<32x64xf32>
    %c0_282 = arith.constant 0 : index
    %c0_283 = arith.constant 0 : index
    %360 = vector.load %arg22[%c0_282, %c0_283] : memref<1x64xf32, #tpu.memory_space<vmem>>, vector<1x64xf32>
    %361 = vector.broadcast %360 : vector<1x64xf32> to vector<32x64xf32>
    %362 = arith.addf %359, %361 : vector<32x64xf32>
    %cst_284 = arith.constant 0.000000e+00 : f32
    %363 = vector.broadcast %cst_284 : f32 to vector<32x64xf32>
    %364 = arith.maximumf %362, %363 : vector<32x64xf32>
    %c0_285 = arith.constant 0 : index
    %c0_286 = arith.constant 0 : index
    %365 = vector.load %arg31[%c0_285, %c0_286] : memref<32x64xf32, #tpu.memory_space<vmem>>, vector<32x64xf32>
    tpu.vector_store %arg31[%c0_285, %c0_286], %364 {strides = array<i32>} : memref<32x64xf32, #tpu.memory_space<vmem>>, vector<32x64xf32>,
    return
  }
  func.func @transform_0(%arg0: i32) -> (i32, i32) {
    %c0_i32 = arith.constant 0 : i32
    %c0_i32_0 = arith.constant 0 : i32
    %c0_i32_1 = arith.constant 0 : i32
    return %c0_i32, %c0_i32_0 : i32, i32
  }
  func.func @transform_1(%arg0: i32) -> (i32, i32) {
    %c0_i32 = arith.constant 0 : i32
    %c0_i32_0 = arith.constant 0 : i32
    %c0_i32_1 = arith.constant 0 : i32
    return %c0_i32, %c0_i32_0 : i32, i32
  }
  func.func @transform_2(%arg0: i32) -> (i32, i32) {
    %c0_i32 = arith.constant 0 : i32
    %c0_i32_0 = arith.constant 0 : i32
    %c0_i32_1 = arith.constant 0 : i32
    return %c0_i32, %c0_i32_0 : i32, i32
  }
  func.func @transform_3(%arg0: i32) -> (i32, i32) {
    %c0_i32 = arith.constant 0 : i32
    %c0_i32_0 = arith.constant 0 : i32
    %c0_i32_1 = arith.constant 0 : i32
    return %c0_i32, %c0_i32_0 : i32, i32
  }
  func.func @transform_4(%arg0: i32) -> (i32, i32, i32) {
    %c0_i32 = arith.constant 0 : i32
    %c0_i32_0 = arith.constant 0 : i32
    %c0_i32_1 = arith.constant 0 : i32
    %c0_i32_2 = arith.constant 0 : i32
    return %c0_i32, %c0_i32_0, %c0_i32_1 : i32, i32, i32
  }
  func.func @transform_5(%arg0: i32) -> (i32, i32, i32) {
    %c0_i32 = arith.constant 0 : i32
    %c0_i32_0 = arith.constant 0 : i32
    %c0_i32_1 = arith.constant 0 : i32
    %c0_i32_2 = arith.constant 0 : i32
    return %c0_i32, %c0_i32_0, %c0_i32_1 : i32, i32, i32
  }
  func.func @transform_6(%arg0: i32) -> (i32, i32) {
    %c0_i32 = arith.constant 0 : i32
    %c0_i32_0 = arith.constant 0 : i32
    %c0_i32_1 = arith.constant 0 : i32
    return %c0_i32, %c0_i32_0 : i32, i32
  }
  func.func @transform_7(%arg0: i32) -> (i32, i32, i32) {
    %c0_i32 = arith.constant 0 : i32
    %c0_i32_0 = arith.constant 0 : i32
    %c0_i32_1 = arith.constant 0 : i32
    %c0_i32_2 = arith.constant 0 : i32
    return %c0_i32, %c0_i32_0, %c0_i32_1 : i32, i32, i32
  }
  func.func @transform_8(%arg0: i32) -> (i32, i32) {
    %c0_i32 = arith.constant 0 : i32
    %c0_i32_0 = arith.constant 0 : i32
    %c0_i32_1 = arith.constant 0 : i32
    return %c0_i32, %c0_i32_0 : i32, i32
  }
  func.func @transform_9(%arg0: i32) -> (i32, i32) {
    %c0_i32 = arith.constant 0 : i32
    %c0_i32_0 = arith.constant 0 : i32
    %c0_i32_1 = arith.constant 0 : i32
    return %c0_i32, %c0_i32_0 : i32, i32
  }
  func.func @transform_10(%arg0: i32) -> (i32, i32) {
    %c0_i32 = arith.constant 0 : i32
    %c0_i32_0 = arith.constant 0 : i32
    %c0_i32_1 = arith.constant 0 : i32
    return %c0_i32, %c0_i32_0 : i32, i32
  }
  func.func @transform_11(%arg0: i32) -> (i32, i32, i32) {
    %c0_i32 = arith.constant 0 : i32
    %c0_i32_0 = arith.constant 0 : i32
    %c0_i32_1 = arith.constant 0 : i32
    %c0_i32_2 = arith.constant 0 : i32
    return %c0_i32, %c0_i32_0, %c0_i32_1 : i32, i32, i32
  }
  func.func @transform_12(%arg0: i32) -> (i32, i32) {
    %c0_i32 = arith.constant 0 : i32
    %c0_i32_0 = arith.constant 0 : i32
    %c0_i32_1 = arith.constant 0 : i32
    return %c0_i32, %c0_i32_0 : i32, i32
  }
  func.func @transform_13(%arg0: i32) -> (i32, i32, i32) {
    %c0_i32 = arith.constant 0 : i32
    %c0_i32_0 = arith.constant 0 : i32
    %c0_i32_1 = arith.constant 0 : i32
    %c0_i32_2 = arith.constant 0 : i32
    return %c0_i32, %c0_i32_0, %c0_i32_1 : i32, i32, i32
  }
  func.func @transform_14(%arg0: i32) -> (i32, i32) {
    %c0_i32 = arith.constant 0 : i32
    %c0_i32_0 = arith.constant 0 : i32
    %c0_i32_1 = arith.constant 0 : i32
    return %c0_i32, %c0_i32_0 : i32, i32
  }
  func.func @transform_15(%arg0: i32) -> (i32, i32) {
    %c0_i32 = arith.constant 0 : i32
    %c0_i32_0 = arith.constant 0 : i32
    %c0_i32_1 = arith.constant 0 : i32
    return %c0_i32, %c0_i32_0 : i32, i32
  }
  func.func @transform_16(%arg0: i32) -> (i32, i32) {
    %c0_i32 = arith.constant 0 : i32
    %c0_i32_0 = arith.constant 0 : i32
    %c0_i32_1 = arith.constant 0 : i32
    return %c0_i32, %c0_i32_0 : i32, i32
  }
  func.func @transform_17(%arg0: i32) -> (i32, i32) {
    %c0_i32 = arith.constant 0 : i32
    %c0_i32_0 = arith.constant 0 : i32
    %c0_i32_1 = arith.constant 0 : i32
    return %c0_i32, %c0_i32_0 : i32, i32
  }
  func.func @transform_18(%arg0: i32) -> (i32, i32) {
    %c0_i32 = arith.constant 0 : i32
    %c0_i32_0 = arith.constant 0 : i32
    %c0_i32_1 = arith.constant 0 : i32
    return %c0_i32, %c0_i32_0 : i32, i32
  }
  func.func @transform_19(%arg0: i32) -> (i32, i32) {
    %c0_i32 = arith.constant 0 : i32
    %c0_i32_0 = arith.constant 0 : i32
    %c0_i32_1 = arith.constant 0 : i32
    return %c0_i32, %c0_i32_0 : i32, i32
  }
  func.func @transform_20(%arg0: i32) -> (i32, i32) {
    %c0_i32 = arith.constant 0 : i32
    %c0_i32_0 = arith.constant 0 : i32
    %c0_i32_1 = arith.constant 0 : i32
    return %c0_i32, %c0_i32_0 : i32, i32
  }
  func.func @transform_21(%arg0: i32) -> (i32, i32) {
    %c0_i32 = arith.constant 0 : i32
    %c0_i32_0 = arith.constant 0 : i32
    %c0_i32_1 = arith.constant 0 : i32
    return %c0_i32, %c0_i32_0 : i32, i32
  }
  func.func @transform_22(%arg0: i32) -> (i32, i32) {
    %c0_i32 = arith.constant 0 : i32
    %c0_i32_0 = arith.constant 0 : i32
    %c0_i32_1 = arith.constant 0 : i32
    return %c0_i32, %c0_i32_0 : i32, i32
  }
  func.func @transform_23(%arg0: i32) -> (i32, i32) {
    %c0_i32 = arith.constant 0 : i32
    %c0_i32_0 = arith.constant 0 : i32
    %c0_i32_1 = arith.constant 0 : i32
    return %c0_i32, %c0_i32_0 : i32, i32
  }
  func.func @transform_24(%arg0: i32) -> (i32, i32) {
    %c0_i32 = arith.constant 0 : i32
    %c0_i32_0 = arith.constant 0 : i32
    %c0_i32_1 = arith.constant 0 : i32
    return %c0_i32, %c0_i32_0 : i32, i32
  }
  func.func @transform_25(%arg0: i32) -> (i32, i32) {
    %c0_i32 = arith.constant 0 : i32
    %c0_i32_0 = arith.constant 0 : i32
    %c0_i32_1 = arith.constant 0 : i32
    return %c0_i32, %c0_i32_0 : i32, i32
  }
  func.func @transform_26(%arg0: i32) -> (i32, i32) {
    %c0_i32 = arith.constant 0 : i32
    %c0_i32_0 = arith.constant 0 : i32
    %c0_i32_1 = arith.constant 0 : i32
    return %c0_i32, %c0_i32_0 : i32, i32
  }
  func.func @transform_27(%arg0: i32) -> (i32, i32) {
    %c0_i32 = arith.constant 0 : i32
    %c0_i32_0 = arith.constant 0 : i32
    %c0_i32_1 = arith.constant 0 : i32
    return %c0_i32, %c0_i32_0 : i32, i32
  }
  func.func @transform_28(%arg0: i32) -> (i32, i32) {
    %c0_i32 = arith.constant 0 : i32
    %c0_i32_0 = arith.constant 0 : i32
    %c0_i32_1 = arith.constant 0 : i32
    return %c0_i32, %c0_i32_0 : i32, i32
  }
  func.func @transform_29(%arg0: i32) -> (i32, i32) {
    %c0_i32 = arith.constant 0 : i32
    %c0_i32_0 = arith.constant 0 : i32
    %c0_i32_1 = arith.constant 0 : i32
    return %c0_i32, %c0_i32_0 : i32, i32
  }
  func.func @transform_30(%arg0: i32) -> (i32, i32) {
    %c0_i32 = arith.constant 0 : i32
    %c0_i32_0 = arith.constant 0 : i32
    %c0_i32_1 = arith.constant 0 : i32
    return %c0_i32, %c0_i32_0 : i32, i32
  }
}

</mosaic_0001>

<llo_original>
// kernel: ecodepth_dar_a_forward.5
$region0: #{ecodepth_dar_a_forward.5}
  #allocation0 [shape = 'u32[]', space=smem, size = 0x4, offset = 0x4, fixed_abs, tag = 'smem constant byte address 0x4 - core index']
  #allocation1 [shape = 'u32[72,128]{1,0:T(1,128)}', space=vmem, size = 0x9000, scoped, tag = 'internal scratch']
  #allocation2 [shape = 'f32[1,1]{1,0:T(1,128)S(1)}', space=vmem, size = 0x200, scoped, tag = 'scoped memory for ecodepth_dar_a_forward.5']
  %s0 = inlined_call_operand.vmem [shape: f32[32,16,32], index: 0, kind: input, shape index: {}]
  %s1 = inlined_call_operand.hbm [shape: f32[1,1,32], index: 1, kind: input, shape index: {}]
  %s2 = inlined_call_operand.<no memory space> [shape: f32[1,1], index: 2, kind: input, shape index: {}]
  %s3 = inlined_call_operand.vmem [shape: f32[32,32], index: 3, kind: input, shape index: {}]
  %s4 = inlined_call_operand.vmem [shape: f32[16,20], index: 4, kind: input, shape index: {}]
  %s5 = inlined_call_operand.vmem [shape: f32[128,32], index: 5, kind: input, shape index: {}]
  %s6 = inlined_call_operand.vmem [shape: f32[20,128], index: 6, kind: input, shape index: {}]
  %s7 = inlined_call_operand.hbm [shape: f32[128,128], index: 7, kind: output, shape index: {}]
  %s8 = sld [smem:[#allocation0]]
  $region42: #{ecodepth_dar_a_forward.5} parent=0
    _
  %s10 = ssub.s32 1, %s8
  %s11 = scalar_select 0, %s10, %s8
  %v12 = vstv %s2
  %13 = vst [vmem:[#allocation2] sm:$0x1] %v12
  $region1: #{ecodepth_dar_a_forward.5} parent=0
    #allocation3 [shape = 'u8[512]{0}', space=vmem, size = 0x400, scoped, tag = 'input window, operand 1, single buffered']
    #allocation4 [shape = 's32[1]{0}', space=sflag, size = 0x4, scoped, tag = 'scoped memory for ecodepth_dar_a_forward.5']
    #allocation5 [shape = 's32[1]{0}', space=sflag, size = 0x4, scoped, tag = 'scoped memory for ecodepth_dar_a_forward.5']
    #allocation6 [shape = 'u8[65536]{0}', space=vmem, size = 0x10000, scoped, tag = 'output window, operand 0, single buffered']
    %14 = vsyncpa [#allocation4], 0
    %15 = vsyncpa [#allocation5], 0
    // Predicated region
    $region2: #{ecodepth_dar_a_forward.5} parent=1 // pred_check
      _
    $region3: #{ecodepth_dar_a_forward.5} parent=1 // pred_check_branch
      %17 = sbr.rel (0) target = $region5
    $region4: #{ecodepth_dar_a_forward.5} parent=1 // pred_region
      _
    $region5: #{ecodepth_dar_a_forward.5} parent=1 // pred_fallthru
      _
    // Predicated region
    $region6: #{ecodepth_dar_a_forward.5} parent=1 // pred_check
      _
    $region7: #{ecodepth_dar_a_forward.5} parent=1 // pred_check_branch
      %19 = sbr.rel (0) target = $region9
    $region8: #{ecodepth_dar_a_forward.5} parent=1 // pred_region
      %21 = vsyncadd [#allocation4], 0
      %s23 = sshll.u32 %s1, 4
      %s24 = int_to_ptr.hbm [resolvable:$true] %s23
      %s25 = sshll.u32 [#allocation3], 4
      %s26 = int_to_ptr.vmem [resolvable:$true] %s25
      %28 = dma.hbm_to_vmem [thread:$0]  %s24, 16, %s26, [#allocation4]
    $region9: #{ecodepth_dar_a_forward.5} parent=1 // pred_fallthru
      _
    // Predicated region
    $region10: #{ecodepth_dar_a_forward.5} parent=1 // pred_check
      _
    $region11: #{ecodepth_dar_a_forward.5} parent=1 // pred_check_branch
      %30 = sbr.rel (0) target = $region13
    $region12: #{ecodepth_dar_a_forward.5} parent=1 // pred_region
      _
    $region13: #{ecodepth_dar_a_forward.5} parent=1 // pred_fallthru
      _
    // Predicated region
    $region14: #{ecodepth_dar_a_forward.5} parent=1 // pred_check
      _
    $region15: #{ecodepth_dar_a_forward.5} parent=1 // pred_check_branch
      %32 = sbr.rel (0) target = $region17
    $region16: #{ecodepth_dar_a_forward.5} parent=1 // pred_region
      _
    $region17: #{ecodepth_dar_a_forward.5} parent=1 // pred_fallthru
      _
    // Predicated region
    $region18: #{ecodepth_dar_a_forward.5} parent=1 // pred_check
      _
    $region19: #{ecodepth_dar_a_forward.5} parent=1 // pred_check_branch
      %34 = sbr.rel (0) target = $region21
    $region20: #{ecodepth_dar_a_forward.5} parent=1 // pred_region
      _
    $region21: #{ecodepth_dar_a_forward.5} parent=1 // pred_fallthru
      _
    // Predicated region
    $region22: #{ecodepth_dar_a_forward.5} parent=1 // pred_check
      _
    $region23: #{ecodepth_dar_a_forward.5} parent=1 // pred_check_branch
      %36 = sbr.rel (0) target = $region25
    $region24: #{ecodepth_dar_a_forward.5} parent=1 // pred_region
      _
    $region25: #{ecodepth_dar_a_forward.5} parent=1 // pred_fallthru
      _
    // Predicated region
    $region26: #{ecodepth_dar_a_forward.5} parent=1 // pred_check
      _
    $region27: #{ecodepth_dar_a_forward.5} parent=1 // pred_check_branch
      %38 = sbr.rel (0) target = $region29
    $region28: #{ecodepth_dar_a_forward.5} parent=1 // pred_region
      _
    $region29: #{ecodepth_dar_a_forward.5} parent=1 // pred_fallthru
      _
    // Predicated region
    $region30: #{ecodepth_dar_a_forward.5} parent=1 // pred_check
      _
    $region31: #{ecodepth_dar_a_forward.5} parent=1 // pred_check_branch
      %40 = sbr.rel (0) target = $region33
    $region32: #{ecodepth_dar_a_forward.5} parent=1 // pred_region
      %42 = dma.done [#allocation4], 16
    $region33: #{ecodepth_dar_a_forward.5} parent=1 // pred_fallthru
      _
    %v44 = vld [vmem:[%s0] sm:$0xff]
    %v45 = vld [vmem:[%s0 + $0x8] sm:$0xff]
    %v46 = vld [vmem:[%s0 + $0x10] sm:$0xff]
    %v47 = vld [vmem:[%s0 + $0x18] sm:$0xff]
    %v48 = vld [vmem:[%s0 + $0x20] sm:$0xff]
    %v49 = vld [vmem:[%s0 + $0x28] sm:$0xff]
    %v50 = vld [vmem:[%s0 + $0x30] sm:$0xff]
    %v51 = vld [vmem:[%s0 + $0x38] sm:$0xff]
    %v52 = vld [vmem:[%s0 + $0x40] sm:$0xff]
    %v53 = vld [vmem:[%s0 + $0x48] sm:$0xff]
    %v54 = vld [vmem:[%s0 + $0x50] sm:$0xff]
    %v55 = vld [vmem:[%s0 + $0x58] sm:$0xff]
    %v56 = vld [vmem:[%s0 + $0x60] sm:$0xff]
    %v57 = vld [vmem:[%s0 + $0x68] sm:$0xff]
    %v58 = vld [vmem:[%s0 + $0x70] sm:$0xff]
    %v59 = vld [vmem:[%s0 + $0x78] sm:$0xff]
    %v60 = vld [vmem:[%s0 + $0x80] sm:$0xff]
    %v61 = vld [vmem:[%s0 + $0x88] sm:$0xff]
    %v62 = vld [vmem:[%s0 + $0x90] sm:$0xff]
    %v63 = vld [vmem:[%s0 + $0x98] sm:$0xff]
    %v64 = vld [vmem:[%s0 + $0xa0] sm:$0xff]
    %v65 = vld [vmem:[%s0 + $0xa8] sm:$0xff]
    %v66 = vld [vmem:[%s0 + $0xb0] sm:$0xff]
    %v67 = vld [vmem:[%s0 + $0xb8] sm:$0xff]
    %v68 = vld [vmem:[%s0 + $0xc0] sm:$0xff]
    %v69 = vld [vmem:[%s0 + $0xc8] sm:$0xff]
    %v70 = vld [vmem:[%s0 + $0xd0] sm:$0xff]
    %v71 = vld [vmem:[%s0 + $0xd8] sm:$0xff]
    %v72 = vld [vmem:[%s0 + $0xe0] sm:$0xff]
    %v73 = vld [vmem:[%s0 + $0xe8] sm:$0xff]
    %v74 = vld [vmem:[%s0 + $0xf0] sm:$0xff]
    %v75 = vld [vmem:[%s0 + $0xf8] sm:$0xff]
    %v76 = vld [vmem:[%s0 + $0x100] sm:$0xff]
    %v77 = vld [vmem:[%s0 + $0x108] sm:$0xff]
    %v78 = vld [vmem:[%s0 + $0x110] sm:$0xff]
    %v79 = vld [vmem:[%s0 + $0x118] sm:$0xff]
    %v80 = vld [vmem:[%s0 + $0x120] sm:$0xff]
    %v81 = vld [vmem:[%s0 + $0x128] sm:$0xff]
    %v82 = vld [vmem:[%s0 + $0x130] sm:$0xff]
    %v83 = vld [vmem:[%s0 + $0x138] sm:$0xff]
    %v84 = vld [vmem:[%s0 + $0x140] sm:$0xff]
    %v85 = vld [vmem:[%s0 + $0x148] sm:$0xff]
    %v86 = vld [vmem:[%s0 + $0x150] sm:$0xff]
    %v87 = vld [vmem:[%s0 + $0x158] sm:$0xff]
    %v88 = vld [vmem:[%s0 + $0x160] sm:$0xff]
    %v89 = vld [vmem:[%s0 + $0x168] sm:$0xff]
    %v90 = vld [vmem:[%s0 + $0x170] sm:$0xff]
    %v91 = vld [vmem:[%s0 + $0x178] sm:$0xff]
    %v92 = vld [vmem:[%s0 + $0x180] sm:$0xff]
    %v93 = vld [vmem:[%s0 + $0x188] sm:$0xff]
    %v94 = vld [vmem:[%s0 + $0x190] sm:$0xff]
    %v95 = vld [vmem:[%s0 + $0x198] sm:$0xff]
    %v96 = vld [vmem:[%s0 + $0x1a0] sm:$0xff]
    %v97 = vld [vmem:[%s0 + $0x1a8] sm:$0xff]
    %v98 = vld [vmem:[%s0 + $0x1b0] sm:$0xff]
    %v99 = vld [vmem:[%s0 + $0x1b8] sm:$0xff]
    %v100 = vld [vmem:[%s0 + $0x1c0] sm:$0xff]
    %v101 = vld [vmem:[%s0 + $0x1c8] sm:$0xff]
    %v102 = vld [vmem:[%s0 + $0x1d0] sm:$0xff]
    %v103 = vld [vmem:[%s0 + $0x1d8] sm:$0xff]
    %v104 = vld [vmem:[%s0 + $0x1e0] sm:$0xff]
    %v105 = vld [vmem:[%s0 + $0x1e8] sm:$0xff]
    %v106 = vld [vmem:[%s0 + $0x1f0] sm:$0xff]
    %v107 = vld [vmem:[%s0 + $0x1f8] sm:$0xff]
    %v108 = vld [vmem:[#allocation3] sm:$0x1]
    %v110 = vperm.slane %v108, 0
    %v112 = vmul.f32 %v44, %v110
    %v113 = vmul.f32 %v45, %v110
    %v114 = vmul.f32 %v46, %v110
    %v115 = vmul.f32 %v47, %v110
    %v116 = vmul.f32 %v48, %v110
    %v117 = vmul.f32 %v49, %v110
    %v118 = vmul.f32 %v50, %v110
    %v119 = vmul.f32 %v51, %v110
    %v120 = vmul.f32 %v52, %v110
    %v121 = vmul.f32 %v53, %v110
    %v122 = vmul.f32 %v54, %v110
    %v123 = vmul.f32 %v55, %v110
    %v124 = vmul.f32 %v56, %v110
    %v125 = vmul.f32 %v57, %v110
    %v126 = vmul.f32 %v58, %v110
    %v127 = vmul.f32 %v59, %v110
    %v128 = vmul.f32 %v60, %v110
    %v129 = vmul.f32 %v61, %v110
    %v130 = vmul.f32 %v62, %v110
    %v131 = vmul.f32 %v63, %v110
    %v132 = vmul.f32 %v64, %v110
    %v133 = vmul.f32 %v65, %v110
    %v134 = vmul.f32 %v66, %v110
    %v135 = vmul.f32 %v67, %v110
    %v136 = vmul.f32 %v68, %v110
    %v137 = vmul.f32 %v69, %v110
    %v138 = vmul.f32 %v70, %v110
    %v139 = vmul.f32 %v71, %v110
    %v140 = vmul.f32 %v72, %v110
    %v141 = vmul.f32 %v73, %v110
    %v142 = vmul.f32 %v74, %v110
    %v143 = vmul.f32 %v75, %v110
    %v144 = vmul.f32 %v76, %v110
    %v145 = vmul.f32 %v77, %v110
    %v146 = vmul.f32 %v78, %v110
    %v147 = vmul.f32 %v79, %v110
    %v148 = vmul.f32 %v80, %v110
    %v149 = vmul.f32 %v81, %v110
    %v150 = vmul.f32 %v82, %v110
    %v151 = vmul.f32 %v83, %v110
    %v152 = vmul.f32 %v84, %v110
    %v153 = vmul.f32 %v85, %v110
    %v154 = vmul.f32 %v86, %v110
    %v155 = vmul.f32 %v87, %v110
    %v156 = vmul.f32 %v88, %v110
    %v157 = vmul.f32 %v89, %v110
    %v158 = vmul.f32 %v90, %v110
    %v159 = vmul.f32 %v91, %v110
    %v160 = vmul.f32 %v92, %v110
    %v161 = vmul.f32 %v93, %v110
    %v162 = vmul.f32 %v94, %v110
    %v163 = vmul.f32 %v95, %v110
    %v164 = vmul.f32 %v96, %v110
    %v165 = vmul.f32 %v97, %v110
    %v166 = vmul.f32 %v98, %v110
    %v167 = vmul.f32 %v99, %v110
    %v168 = vmul.f32 %v100, %v110
    %v169 = vmul.f32 %v101, %v110
    %v170 = vmul.f32 %v102, %v110
    %v171 = vmul.f32 %v103, %v110
    %v172 = vmul.f32 %v104, %v110
    %v173 = vmul.f32 %v105, %v110
    %v174 = vmul.f32 %v106, %v110
    %v175 = vmul.f32 %v107, %v110
    %vm176 = vcmask 261120
    %v177 = vsel %vm176, %v112, 0.0
    %178 = vadd.xlane.f32.xlu0 %v177
    %v179 = vpop.xlane.xlu0 %178
    %v180 = vsel %vm176, %v113, 0.0
    %181 = vadd.xlane.f32.xlu0 %v180
    %v182 = vpop.xlane.xlu0 %181
    %v183 = vsel %vm176, %v114, 0.0
    %184 = vadd.xlane.f32.xlu0 %v183
    %v185 = vpop.xlane.xlu0 %184
    %v186 = vsel %vm176, %v115, 0.0
    %187 = vadd.xlane.f32.xlu0 %v186
    %v188 = vpop.xlane.xlu0 %187
    %v189 = vsel %vm176, %v116, 0.0
    %190 = vadd.xlane.f32.xlu0 %v189
    %v191 = vpop.xlane.xlu0 %190
    %v192 = vsel %vm176, %v117, 0.0
    %193 = vadd.xlane.f32.xlu0 %v192
    %v194 = vpop.xlane.xlu0 %193
    %v195 = vsel %vm176, %v118, 0.0
    %196 = vadd.xlane.f32.xlu0 %v195
    %v197 = vpop.xlane.xlu0 %196
    %v198 = vsel %vm176, %v119, 0.0
    %199 = vadd.xlane.f32.xlu0 %v198
    %v200 = vpop.xlane.xlu0 %199
    %v201 = vsel %vm176, %v120, 0.0
    %202 = vadd.xlane.f32.xlu0 %v201
    %v203 = vpop.xlane.xlu0 %202
    %v204 = vsel %vm176, %v121, 0.0
    %205 = vadd.xlane.f32.xlu0 %v204
    %v206 = vpop.xlane.xlu0 %205
    %v207 = vsel %vm176, %v122, 0.0
    %208 = vadd.xlane.f32.xlu0 %v207
    %v209 = vpop.xlane.xlu0 %208
    %v210 = vsel %vm176, %v123, 0.0
    %211 = vadd.xlane.f32.xlu0 %v210
    %v212 = vpop.xlane.xlu0 %211
    %v213 = vsel %vm176, %v124, 0.0
    %214 = vadd.xlane.f32.xlu0 %v213
    %v215 = vpop.xlane.xlu0 %214
    %v216 = vsel %vm176, %v125, 0.0
    %217 = vadd.xlane.f32.xlu0 %v216
    %v218 = vpop.xlane.xlu0 %217
    %v219 = vsel %vm176, %v126, 0.0
    %220 = vadd.xlane.f32.xlu0 %v219
    %v221 = vpop.xlane.xlu0 %220
    %v222 = vsel %vm176, %v127, 0.0
    %223 = vadd.xlane.f32.xlu0 %v222
    %v224 = vpop.xlane.xlu0 %223
    %v225 = vsel %vm176, %v128, 0.0
    %226 = vadd.xlane.f32.xlu0 %v225
    %v227 = vpop.xlane.xlu0 %226
    %v228 = vsel %vm176, %v129, 0.0
    %229 = vadd.xlane.f32.xlu0 %v228
    %v230 = vpop.xlane.xlu0 %229
    %v231 = vsel %vm176, %v130, 0.0
    %232 = vadd.xlane.f32.xlu0 %v231
    %v233 = vpop.xlane.xlu0 %232
    %v234 = vsel %vm176, %v131, 0.0
    %235 = vadd.xlane.f32.xlu0 %v234
    %v236 = vpop.xlane.xlu0 %235
    %v237 = vsel %vm176, %v132, 0.0
    %238 = vadd.xlane.f32.xlu0 %v237
    %v239 = vpop.xlane.xlu0 %238
    %v240 = vsel %vm176, %v133, 0.0
    %241 = vadd.xlane.f32.xlu0 %v240
    %v242 = vpop.xlane.xlu0 %241
    %v243 = vsel %vm176, %v134, 0.0
    %244 = vadd.xlane.f32.xlu0 %v243
    %v245 = vpop.xlane.xlu0 %244
    %v246 = vsel %vm176, %v135, 0.0
    %247 = vadd.xlane.f32.xlu0 %v246
    %v248 = vpop.xlane.xlu0 %247
    %v249 = vsel %vm176, %v136, 0.0
    %250 = vadd.xlane.f32.xlu0 %v249
    %v251 = vpop.xlane.xlu0 %250
    %v252 = vsel %vm176, %v137, 0.0
    %253 = vadd.xlane.f32.xlu0 %v252
    %v254 = vpop.xlane.xlu0 %253
    %v255 = vsel %vm176, %v138, 0.0
    %256 = vadd.xlane.f32.xlu0 %v255
    %v257 = vpop.xlane.xlu0 %256
    %v258 = vsel %vm176, %v139, 0.0
    %259 = vadd.xlane.f32.xlu0 %v258
    %v260 = vpop.xlane.xlu0 %259
    %v261 = vsel %vm176, %v140, 0.0
    %262 = vadd.xlane.f32.xlu0 %v261
    %v263 = vpop.xlane.xlu0 %262
    %v264 = vsel %vm176, %v141, 0.0
    %265 = vadd.xlane.f32.xlu0 %v264
    %v266 = vpop.xlane.xlu0 %265
    %v267 = vsel %vm176, %v142, 0.0
    %268 = vadd.xlane.f32.xlu0 %v267
    %v269 = vpop.xlane.xlu0 %268
    %v270 = vsel %vm176, %v143, 0.0
    %271 = vadd.xlane.f32.xlu0 %v270
    %v272 = vpop.xlane.xlu0 %271
    %v273 = vsel %vm176, %v144, 0.0
    %274 = vadd.xlane.f32.xlu0 %v273
    %v275 = vpop.xlane.xlu0 %274
    %v276 = vsel %vm176, %v145, 0.0
    %277 = vadd.xlane.f32.xlu0 %v276
    %v278 = vpop.xlane.xlu0 %277
    %v279 = vsel %vm176, %v146, 0.0
    %280 = vadd.xlane.f32.xlu0 %v279
    %v281 = vpop.xlane.xlu0 %280
    %v282 = vsel %vm176, %v147, 0.0
    %283 = vadd.xlane.f32.xlu0 %v282
    %v284 = vpop.xlane.xlu0 %283
    %v285 = vsel %vm176, %v148, 0.0
    %286 = vadd.xlane.f32.xlu0 %v285
    %v287 = vpop.xlane.xlu0 %286
    %v288 = vsel %vm176, %v149, 0.0
    %289 = vadd.xlane.f32.xlu0 %v288
    %v290 = vpop.xlane.xlu0 %289
    %v291 = vsel %vm176, %v150, 0.0
    %292 = vadd.xlane.f32.xlu0 %v291
    %v293 = vpop.xlane.xlu0 %292
    %v294 = vsel %vm176, %v151, 0.0
    %295 = vadd.xlane.f32.xlu0 %v294
    %v296 = vpop.xlane.xlu0 %295
    %v297 = vsel %vm176, %v152, 0.0
    %298 = vadd.xlane.f32.xlu0 %v297
    %v299 = vpop.xlane.xlu0 %298
    %v300 = vsel %vm176, %v153, 0.0
    %301 = vadd.xlane.f32.xlu0 %v300
    %v302 = vpop.xlane.xlu0 %301
    %v303 = vsel %vm176, %v154, 0.0
    %304 = vadd.xlane.f32.xlu0 %v303
    %v305 = vpop.xlane.xlu0 %304
    %v306 = vsel %vm176, %v155, 0.0
    %307 = vadd.xlane.f32.xlu0 %v306
    %v308 = vpop.xlane.xlu0 %307
    %v309 = vsel %vm176, %v156, 0.0
    %310 = vadd.xlane.f32.xlu0 %v309
    %v311 = vpop.xlane.xlu0 %310
    %v312 = vsel %vm176, %v157, 0.0
    %313 = vadd.xlane.f32.xlu0 %v312
    %v314 = vpop.xlane.xlu0 %313
    %v315 = vsel %vm176, %v158, 0.0
    %316 = vadd.xlane.f32.xlu0 %v315
    %v317 = vpop.xlane.xlu0 %316
    %v318 = vsel %vm176, %v159, 0.0
    %319 = vadd.xlane.f32.xlu0 %v318
    %v320 = vpop.xlane.xlu0 %319
    %v321 = vsel %vm176, %v160, 0.0
    %322 = vadd.xlane.f32.xlu0 %v321
    %v323 = vpop.xlane.xlu0 %322
    %v324 = vsel %vm176, %v161, 0.0
    %325 = vadd.xlane.f32.xlu0 %v324
    %v326 = vpop.xlane.xlu0 %325
    %v327 = vsel %vm176, %v162, 0.0
    %328 = vadd.xlane.f32.xlu0 %v327
    %v329 = vpop.xlane.xlu0 %328
    %v330 = vsel %vm176, %v163, 0.0
    %331 = vadd.xlane.f32.xlu0 %v330
    %v332 = vpop.xlane.xlu0 %331
    %v333 = vsel %vm176, %v164, 0.0
    %334 = vadd.xlane.f32.xlu0 %v333
    %v335 = vpop.xlane.xlu0 %334
    %v336 = vsel %vm176, %v165, 0.0
    %337 = vadd.xlane.f32.xlu0 %v336
    %v338 = vpop.xlane.xlu0 %337
    %v339 = vsel %vm176, %v166, 0.0
    %340 = vadd.xlane.f32.xlu0 %v339
    %v341 = vpop.xlane.xlu0 %340
    %v342 = vsel %vm176, %v167, 0.0
    %343 = vadd.xlane.f32.xlu0 %v342
    %v344 = vpop.xlane.xlu0 %343
    %v345 = vsel %vm176, %v168, 0.0
    %346 = vadd.xlane.f32.xlu0 %v345
    %v347 = vpop.xlane.xlu0 %346
    %v348 = vsel %vm176, %v169, 0.0
    %349 = vadd.xlane.f32.xlu0 %v348
    %v350 = vpop.xlane.xlu0 %349
    %v351 = vsel %vm176, %v170, 0.0
    %352 = vadd.xlane.f32.xlu0 %v351
    %v353 = vpop.xlane.xlu0 %352
    %v354 = vsel %vm176, %v171, 0.0
    %355 = vadd.xlane.f32.xlu0 %v354
    %v356 = vpop.xlane.xlu0 %355
    %v357 = vsel %vm176, %v172, 0.0
    %358 = vadd.xlane.f32.xlu0 %v357
    %v359 = vpop.xlane.xlu0 %358
    %v360 = vsel %vm176, %v173, 0.0
    %361 = vadd.xlane.f32.xlu0 %v360
    %v362 = vpop.xlane.xlu0 %361
    %v363 = vsel %vm176, %v174, 0.0
    %364 = vadd.xlane.f32.xlu0 %v363
    %v365 = vpop.xlane.xlu0 %364
    %v366 = vsel %vm176, %v175, 0.0
    %367 = vadd.xlane.f32.xlu0 %v366
    %v368 = vpop.xlane.xlu0 %367
    %v369 = vld [vmem:[#allocation2] sm:$0x1]
    %v371 = vperm.slane %v369, 0
    %372 = vset.pattern.permute.xlu0 0
    %373 = vperm.xlu0 %372, %v371
    %v374 = vpop.permute.xlu0 %373
    %v376 = vadd.f32 %v179, %v374
    %v377 = vadd.f32 %v182, %v374
    %v378 = vadd.f32 %v185, %v374
    %v379 = vadd.f32 %v188, %v374
    %v380 = vadd.f32 %v191, %v374
    %v381 = vadd.f32 %v194, %v374
    %v382 = vadd.f32 %v197, %v374
    %v383 = vadd.f32 %v200, %v374
    %v384 = vadd.f32 %v203, %v374
    %v385 = vadd.f32 %v206, %v374
    %v386 = vadd.f32 %v209, %v374
    %v387 = vadd.f32 %v212, %v374
    %v388 = vadd.f32 %v215, %v374
    %v389 = vadd.f32 %v218, %v374
    %v390 = vadd.f32 %v221, %v374
    %v391 = vadd.f32 %v224, %v374
    %v392 = vadd.f32 %v227, %v374
    %v393 = vadd.f32 %v230, %v374
    %v394 = vadd.f32 %v233, %v374
    %v395 = vadd.f32 %v236, %v374
    %v396 = vadd.f32 %v239, %v374
    %v397 = vadd.f32 %v242, %v374
    %v398 = vadd.f32 %v245, %v374
    %v399 = vadd.f32 %v248, %v374
    %v400 = vadd.f32 %v251, %v374
    %v401 = vadd.f32 %v254, %v374
    %v402 = vadd.f32 %v257, %v374
    %v403 = vadd.f32 %v260, %v374
    %v404 = vadd.f32 %v263, %v374
    %v405 = vadd.f32 %v266, %v374
    %v406 = vadd.f32 %v269, %v374
    %v407 = vadd.f32 %v272, %v374
    %v408 = vadd.f32 %v275, %v374
    %v409 = vadd.f32 %v278, %v374
    %v410 = vadd.f32 %v281, %v374
    %v411 = vadd.f32 %v284, %v374
    %v412 = vadd.f32 %v287, %v374
    %v413 = vadd.f32 %v290, %v374
    %v414 = vadd.f32 %v293, %v374
    %v415 = vadd.f32 %v296, %v374
    %v416 = vadd.f32 %v299, %v374
    %v417 = vadd.f32 %v302, %v374
    %v418 = vadd.f32 %v305, %v374
    %v419 = vadd.f32 %v308, %v374
    %v420 = vadd.f32 %v311, %v374
    %v421 = vadd.f32 %v314, %v374
    %v422 = vadd.f32 %v317, %v374
    %v423 = vadd.f32 %v320, %v374
    %v424 = vadd.f32 %v323, %v374
    %v425 = vadd.f32 %v326, %v374
    %v426 = vadd.f32 %v329, %v374
    %v427 = vadd.f32 %v332, %v374
    %v428 = vadd.f32 %v335, %v374
    %v429 = vadd.f32 %v338, %v374
    %v430 = vadd.f32 %v341, %v374
    %v431 = vadd.f32 %v344, %v374
    %v432 = vadd.f32 %v347, %v374
    %v433 = vadd.f32 %v350, %v374
    %v434 = vadd.f32 %v353, %v374
    %v435 = vadd.f32 %v356, %v374
    %v436 = vadd.f32 %v359, %v374
    %v437 = vadd.f32 %v362, %v374
    %v438 = vadd.f32 %v365, %v374
    %v439 = vadd.f32 %v368, %v374
    %v440 = vld [vmem:[%s3] sm:$0xff]
    %v441 = vld [vmem:[%s3 + $0x8] sm:$0xff]
    %v442 = vld [vmem:[%s3 + $0x10] sm:$0xff]
    %v443 = vld [vmem:[%s3 + $0x18] sm:$0xff]
    %v444 = vpack.c.bf16 %v441, %v440
    %v445 = vpack.c.bf16 %v443, %v442
    %v446 = vpack.c.bf16 %v377, %v376
    %v447 = vpack.c.bf16 %v379, %v378
    %v448 = vpack.c.bf16 %v381, %v380
    %v449 = vpack.c.bf16 %v383, %v382
    %v450 = vpack.c.bf16 %v385, %v384
    %v451 = vpack.c.bf16 %v387, %v386
    %v452 = vpack.c.bf16 %v389, %v388
    %v453 = vpack.c.bf16 %v391, %v390
    %v454 = vpack.c.bf16 %v393, %v392
    %v455 = vpack.c.bf16 %v395, %v394
    %v456 = vpack.c.bf16 %v397, %v396
    %v457 = vpack.c.bf16 %v399, %v398
    %v458 = vpack.c.bf16 %v401, %v400
    %v459 = vpack.c.bf16 %v403, %v402
    %v460 = vpack.c.bf16 %v405, %v404
    %v461 = vpack.c.bf16 %v407, %v406
    %v462 = vpack.c.bf16 %v409, %v408
    %v463 = vpack.c.bf16 %v411, %v410
    %v464 = vpack.c.bf16 %v413, %v412
    %v465 = vpack.c.bf16 %v415, %v414
    %v466 = vpack.c.bf16 %v417, %v416
    %v467 = vpack.c.bf16 %v419, %v418
    %v468 = vpack.c.bf16 %v421, %v420
    %v469 = vpack.c.bf16 %v423, %v422
    %v470 = vpack.c.bf16 %v425, %v424
    %v471 = vpack.c.bf16 %v427, %v426
    %v472 = vpack.c.bf16 %v429, %v428
    %v473 = vpack.c.bf16 %v431, %v430
    %v474 = vpack.c.bf16 %v433, %v432
    %v475 = vpack.c.bf16 %v435, %v434
    %v476 = vpack.c.bf16 %v437, %v436
    %v477 = vpack.c.bf16 %v439, %v438
    %v510 = vunpack.c.l.b16 %v446
    %v511 = vunpack.c.h.b16 %v446
    %v512 = vunpack.c.l.b16 %v447
    %v513 = vunpack.c.h.b16 %v447
    %v514 = vunpack.c.l.b16 %v448
    %v515 = vunpack.c.h.b16 %v448
    %v516 = vunpack.c.l.b16 %v449
    %v517 = vunpack.c.h.b16 %v449
    %v518 = vunpack.c.l.b16 %v450
    %v519 = vunpack.c.h.b16 %v450
    %v520 = vunpack.c.l.b16 %v451
    %v521 = vunpack.c.h.b16 %v451
    %v522 = vunpack.c.l.b16 %v452
    %v523 = vunpack.c.h.b16 %v452
    %v524 = vunpack.c.l.b16 %v453
    %v525 = vunpack.c.h.b16 %v453
    %v526 = vunpack.c.l.b16 %v454
    %v527 = vunpack.c.h.b16 %v454
    %v528 = vunpack.c.l.b16 %v455
    %v529 = vunpack.c.h.b16 %v455
    %v530 = vunpack.c.l.b16 %v456
    %v531 = vunpack.c.h.b16 %v456
    %v532 = vunpack.c.l.b16 %v457
    %v533 = vunpack.c.h.b16 %v457
    %v534 = vunpack.c.l.b16 %v458
    %v535 = vunpack.c.h.b16 %v458
    %v536 = vunpack.c.l.b16 %v459
    %v537 = vunpack.c.h.b16 %v459
    %v538 = vunpack.c.l.b16 %v460
    %v539 = vunpack.c.h.b16 %v460
    %v540 = vunpack.c.l.b16 %v461
    %v541 = vunpack.c.h.b16 %v461
    %v542 = vunpack.c.l.b16 %v462
    %v543 = vunpack.c.h.b16 %v462
    %v544 = vunpack.c.l.b16 %v463
    %v545 = vunpack.c.h.b16 %v463
    %v546 = vunpack.c.l.b16 %v464
    %v547 = vunpack.c.h.b16 %v464
    %v548 = vunpack.c.l.b16 %v465
    %v549 = vunpack.c.h.b16 %v465
    %v550 = vunpack.c.l.b16 %v466
    %v551 = vunpack.c.h.b16 %v466
    %v552 = vunpack.c.l.b16 %v467
    %v553 = vunpack.c.h.b16 %v467
    %v554 = vunpack.c.l.b16 %v468
    %v555 = vunpack.c.h.b16 %v468
    %v556 = vunpack.c.l.b16 %v469
    %v557 = vunpack.c.h.b16 %v469
    %v558 = vunpack.c.l.b16 %v470
    %v559 = vunpack.c.h.b16 %v470
    %v560 = vunpack.c.l.b16 %v471
    %v561 = vunpack.c.h.b16 %v471
    %v562 = vunpack.c.l.b16 %v472
    %v563 = vunpack.c.h.b16 %v472
    %v564 = vunpack.c.l.b16 %v473
    %v565 = vunpack.c.h.b16 %v473
    %v566 = vunpack.c.l.b16 %v474
    %v567 = vunpack.c.h.b16 %v474
    %v568 = vunpack.c.l.b16 %v475
    %v569 = vunpack.c.h.b16 %v475
    %v570 = vunpack.c.l.b16 %v476
    %v571 = vunpack.c.h.b16 %v476
    %v572 = vunpack.c.l.b16 %v477
    %v573 = vunpack.c.h.b16 %v477
    %v574 = vlaneseq
    %v575 = vand.u32 %v574, 127
    %v576 = vperm.slane %v510, %v575
    %v577 = vadd.s32 %v575, 4294967288
    %v578 = vperm.slane %v511, %v577
    %vm579 = vcmask 130112
    %v580 = vsel %vm579, %v578, %v576
    %v581 = vperm.slane %v512, %v575
    %v582 = vperm.slane %v513, %v577
    %v583 = vsel %vm579, %v582, %v581
    %v584 = vperm.slane %v514, %v575
    %v585 = vperm.slane %v515, %v577
    %v586 = vsel %vm579, %v585, %v584
    %v587 = vperm.slane %v516, %v575
    %v588 = vperm.slane %v517, %v577
    %v589 = vsel %vm579, %v588, %v587
    %v590 = vperm.slane %v518, %v575
    %v591 = vperm.slane %v519, %v577
    %v592 = vsel %vm579, %v591, %v590
    %v593 = vperm.slane %v520, %v575
    %v594 = vperm.slane %v521, %v577
    %v595 = vsel %vm579, %v594, %v593
    %v596 = vperm.slane %v522, %v575
    %v597 = vperm.slane %v523, %v577
    %v598 = vsel %vm579, %v597, %v596
    %v599 = vperm.slane %v524, %v575
    %v600 = vperm.slane %v525, %v577
    %v601 = vsel %vm579, %v600, %v599
    %v602 = vperm.slane %v526, %v575
    %v603 = vperm.slane %v527, %v577
    %v604 = vsel %vm579, %v603, %v602
    %v605 = vperm.slane %v528, %v575
    %v606 = vperm.slane %v529, %v577
    %v607 = vsel %vm579, %v606, %v605
    %v608 = vperm.slane %v530, %v575
    %v609 = vperm.slane %v531, %v577
    %v610 = vsel %vm579, %v609, %v608
    %v611 = vperm.slane %v532, %v575
    %v612 = vperm.slane %v533, %v577
    %v613 = vsel %vm579, %v612, %v611
    %v614 = vperm.slane %v534, %v575
    %v615 = vperm.slane %v535, %v577
    %v616 = vsel %vm579, %v615, %v614
    %v617 = vperm.slane %v536, %v575
    %v618 = vperm.slane %v537, %v577
    %v619 = vsel %vm579, %v618, %v617
    %v620 = vperm.slane %v538, %v575
    %v621 = vperm.slane %v539, %v577
    %v622 = vsel %vm579, %v621, %v620
    %v623 = vperm.slane %v540, %v575
    %v624 = vperm.slane %v541, %v577
    %v625 = vsel %vm579, %v624, %v623
    %v626 = vperm.slane %v542, %v575
    %v627 = vperm.slane %v543, %v577
    %v628 = vsel %vm579, %v627, %v626
    %v629 = vperm.slane %v544, %v575
    %v630 = vperm.slane %v545, %v577
    %v631 = vsel %vm579, %v630, %v629
    %v632 = vperm.slane %v546, %v575
    %v633 = vperm.slane %v547, %v577
    %v634 = vsel %vm579, %v633, %v632
    %v635 = vperm.slane %v548, %v575
    %v636 = vperm.slane %v549, %v577
    %v637 = vsel %vm579, %v636, %v635
    %v638 = vperm.slane %v550, %v575
    %v639 = vperm.slane %v551, %v577
    %v640 = vsel %vm579, %v639, %v638
    %v641 = vperm.slane %v552, %v575
    %v642 = vperm.slane %v553, %v577
    %v643 = vsel %vm579, %v642, %v641
    %v644 = vperm.slane %v554, %v575
    %v645 = vperm.slane %v555, %v577
    %v646 = vsel %vm579, %v645, %v644
    %v647 = vperm.slane %v556, %v575
    %v648 = vperm.slane %v557, %v577
    %v649 = vsel %vm579, %v648, %v647
    %v650 = vperm.slane %v558, %v575
    %v651 = vperm.slane %v559, %v577
    %v652 = vsel %vm579, %v651, %v650
    %v653 = vperm.slane %v560, %v575
    %v654 = vperm.slane %v561, %v577
    %v655 = vsel %vm579, %v654, %v653
    %v656 = vperm.slane %v562, %v575
    %v657 = vperm.slane %v563, %v577
    %v658 = vsel %vm579, %v657, %v656
    %v659 = vperm.slane %v564, %v575
    %v660 = vperm.slane %v565, %v577
    %v661 = vsel %vm579, %v660, %v659
    %v662 = vperm.slane %v566, %v575
    %v663 = vperm.slane %v567, %v577
    %v664 = vsel %vm579, %v663, %v662
    %v665 = vperm.slane %v568, %v575
    %v666 = vperm.slane %v569, %v577
    %v667 = vsel %vm579, %v666, %v665
    %v668 = vperm.slane %v570, %v575
    %v669 = vperm.slane %v571, %v577
    %v670 = vsel %vm579, %v669, %v668
    %v671 = vperm.slane %v572, %v575
    %v672 = vperm.slane %v573, %v577
    %v673 = vsel %vm579, %v672, %v671
    %vm674 = vcmask 1041409
    %v675 = vsel %vm674, %v583, %v580
    %vm676 = vcmask 1042434
    %v677 = vsel %vm676, %v586, %v675
    %vm678 = vcmask 1043459
    %v679 = vsel %vm678, %v589, %v677
    %vm680 = vcmask 1044484
    %v681 = vsel %vm680, %v592, %v679
    %vm682 = vcmask 1045509
    %v683 = vsel %vm682, %v595, %v681
    %vm684 = vcmask 1046534
    %v685 = vsel %vm684, %v598, %v683
    %vm686 = vcmask 1047559
    %v687 = vsel %vm686, %v601, %v685
    %v688 = vsel %vm674, %v607, %v604
    %v689 = vsel %vm676, %v610, %v688
    %v690 = vsel %vm678, %v613, %v689
    %v691 = vsel %vm680, %v616, %v690
    %v692 = vsel %vm682, %v619, %v691
    %v693 = vsel %vm684, %v622, %v692
    %v694 = vsel %vm686, %v625, %v693
    %v695 = vsel %vm674, %v631, %v628
    %v696 = vsel %vm676, %v634, %v695
    %v697 = vsel %vm678, %v637, %v696
    %v698 = vsel %vm680, %v640, %v697
    %v699 = vsel %vm682, %v643, %v698
    %v700 = vsel %vm684, %v646, %v699
    %v701 = vsel %vm686, %v649, %v700
    %v702 = vsel %vm674, %v655, %v652
    %v703 = vsel %vm676, %v658, %v702
    %v704 = vsel %vm678, %v661, %v703
    %v705 = vsel %vm680, %v664, %v704
    %v706 = vsel %vm682, %v667, %v705
    %v707 = vsel %vm684, %v670, %v706
    %v708 = vsel %vm686, %v673, %v707
    %v709 = vpack.c.b16 %v694, %v687
    %v710 = vpack.c.b16 %v708, %v701
    %v714 = vsel %vm176, %v444, 0
    %v717 = vsel %vm176, %v445, 0
    %719 = vmatpush.bf16.msra.mxu0 0
    %720 = vmatpush.bf16.msra.mxu0 0
    %721 = vmatpush.bf16.msra.mxu0 0
    %722 = vmatpush.bf16.msra.mxu0 0
    %723 = vmatpush.bf16.msra.mxu0 0
    %724 = vmatpush.bf16.msra.mxu0 0
    %725 = vmatpush.bf16.msra.mxu0 %v710
    %726 = vmatpush.bf16.msra.mxu0 %v709
    %727 = vmatmul.bf16.gmra.mxu0 %v714
    %v728 = vpop.f32.mrf.mxu0
    %v729 = vadd.f32 0.0, %v728
    %v730 = vpop.f32.mrf.mxu0
    %v731 = vadd.f32 0.0, %v730
    %732 = vmatmul.bf16.gmra.mxu0 %v717
    %v733 = vpop.f32.mrf.mxu0
    %v734 = vadd.f32 0.0, %v733
    %v735 = vpop.f32.mrf.mxu0
    %v736 = vadd.f32 0.0, %v735
    %737 = vdwg.mxu0
    %v738 = vpack.c.bf16 %v731, %v729
    %v739 = vpack.c.bf16 %v736, %v734
    %v740 = vld [vmem:[%s4] sm:$0xff]
    %v741 = vld [vmem:[%s4 + $0x8] sm:$0xff]
    %v742 = vpack.c.bf16 %v741, %v740
    %vm743 = vcmask 130048
    %v745 = vsel %vm743, %v738, 0
    %v748 = vsel %vm743, %v739, 0
    %750 = vmatpush.bf16.msra.mxu0 0
    %751 = vmatpush.bf16.msra.mxu0 0
    %752 = vmatpush.bf16.msra.mxu0 0
    %753 = vmatpush.bf16.msra.mxu0 0
    %754 = vmatpush.bf16.msra.mxu0 0
    %755 = vmatpush.bf16.msra.mxu0 0
    %756 = vmatpush.bf16.msra.mxu0 0
    %757 = vmatpush.bf16.msra.mxu0 %v742
    %758 = vmatmul.bf16.gmra.mxu0 %v745
    %v759 = vpop.f32.mrf.mxu0
    %v760 = vadd.f32 0.0, %v759
    %v761 = vpop.f32.mrf.mxu0
    %v762 = vadd.f32 0.0, %v761
    %763 = vmatmul.bf16.gmra.mxu0 %v748
    %v764 = vpop.f32.mrf.mxu0
    %v765 = vadd.f32 0.0, %v764
    %v766 = vpop.f32.mrf.mxu0
    %v767 = vadd.f32 0.0, %v766
    %768 = vdwg.mxu0
    %v769 = vxor.u32 %v760, 2147483648
    %v770 = vxor.u32 %v762, 2147483648
    %v771 = vxor.u32 %v765, 2147483648
    %v772 = vxor.u32 %v767, 2147483648
    %v773 = vmul.f32 %v769, 1.442695
    %v774 = vpow.pop %v773
    %v775 = vmul.f32 %v770, 1.442695
    %v776 = vpow.pop %v775
    %v777 = vmul.f32 %v771, 1.442695
    %v778 = vpow.pop %v777
    %v779 = vmul.f32 %v772, 1.442695
    %v780 = vpow.pop %v779
    %v781 = vadd.f32 %v774, 1.0
    %v782 = vadd.f32 %v776, 1.0
    %v783 = vadd.f32 %v778, 1.0
    %v784 = vadd.f32 %v780, 1.0
    %v785 = vrcp.pop %v781
    %v786 = vmul.f32 %v781, %v785
    %v787 = vsub.f32 1.0, %v786
    %v788 = vmul.f32 %v785, %v787
    %v789 = vadd.f32 %v785, %v788
    %vm790 = vweird.f32 %v781
    %vm791 = vweird.f32 %v785
    %vm792 = vmor %vm790, %vm791
    %v793 = vsel %vm792, %v785, %v789
    %v794 = vand.u32 2147483647, %v781
    %vm795 = vcmp.eq.f32.partialorder %v794, 8.507059e+37
    %v796 = vand.u32 %v781, 2147483648
    %v797 = vor.u32 1.1754944e-38, %v796
    %v798 = vsel %vm795, %v797, %v793
    %v799 = vmul.f32 1.0, %v798
    %v800 = vrcp.pop %v782
    %v801 = vmul.f32 %v782, %v800
    %v802 = vsub.f32 1.0, %v801
    %v803 = vmul.f32 %v800, %v802
    %v804 = vadd.f32 %v800, %v803
    %vm805 = vweird.f32 %v782
    %vm806 = vweird.f32 %v800
    %vm807 = vmor %vm805, %vm806
    %v808 = vsel %vm807, %v800, %v804
    %v809 = vand.u32 2147483647, %v782
    %vm810 = vcmp.eq.f32.partialorder %v809, 8.507059e+37
    %v811 = vand.u32 %v782, 2147483648
    %v812 = vor.u32 1.1754944e-38, %v811
    %v813 = vsel %vm810, %v812, %v808
    %v814 = vmul.f32 1.0, %v813
    %v815 = vrcp.pop %v783
    %v816 = vmul.f32 %v783, %v815
    %v817 = vsub.f32 1.0, %v816
    %v818 = vmul.f32 %v815, %v817
    %v819 = vadd.f32 %v815, %v818
    %vm820 = vweird.f32 %v783
    %vm821 = vweird.f32 %v815
    %vm822 = vmor %vm820, %vm821
    %v823 = vsel %vm822, %v815, %v819
    %v824 = vand.u32 2147483647, %v783
    %vm825 = vcmp.eq.f32.partialorder %v824, 8.507059e+37
    %v826 = vand.u32 %v783, 2147483648
    %v827 = vor.u32 1.1754944e-38, %v826
    %v828 = vsel %vm825, %v827, %v823
    %v829 = vmul.f32 1.0, %v828
    %v830 = vrcp.pop %v784
    %v831 = vmul.f32 %v784, %v830
    %v832 = vsub.f32 1.0, %v831
    %v833 = vmul.f32 %v830, %v832
    %v834 = vadd.f32 %v830, %v833
    %vm835 = vweird.f32 %v784
    %vm836 = vweird.f32 %v830
    %vm837 = vmor %vm835, %vm836
    %v838 = vsel %vm837, %v830, %v834
    %v839 = vand.u32 2147483647, %v784
    %vm840 = vcmp.eq.f32.partialorder %v839, 8.507059e+37
    %v841 = vand.u32 %v784, 2147483648
    %v842 = vor.u32 1.1754944e-38, %v841
    %v843 = vsel %vm840, %v842, %v838
    %v844 = vmul.f32 1.0, %v843
    %v845 = vmul.f32 %v799, 9.9
    %v846 = vmul.f32 %v814, 9.9
    %v847 = vmul.f32 %v829, 9.9
    %v848 = vmul.f32 %v844, 9.9
    %v849 = vadd.f32 %v845, 0.1
    %v850 = vadd.f32 %v846, 0.1
    %v851 = vadd.f32 %v847, 0.1
    %v852 = vadd.f32 %v848, 0.1
    %v853 = vld [vmem:[%s5] sm:$0xff]
    %v854 = vld [vmem:[%s5 + $0x8] sm:$0xff]
    %v855 = vld [vmem:[%s5 + $0x10] sm:$0xff]
    %v856 = vld [vmem:[%s5 + $0x18] sm:$0xff]
    %v857 = vld [vmem:[%s5 + $0x20] sm:$0xff]
    %v858 = vld [vmem:[%s5 + $0x28] sm:$0xff]
    %v859 = vld [vmem:[%s5 + $0x30] sm:$0xff]
    %v860 = vld [vmem:[%s5 + $0x38] sm:$0xff]
    %v861 = vld [vmem:[%s5 + $0x40] sm:$0xff]
    %v862 = vld [vmem:[%s5 + $0x48] sm:$0xff]
    %v863 = vld [vmem:[%s5 + $0x50] sm:$0xff]
    %v864 = vld [vmem:[%s5 + $0x58] sm:$0xff]
    %v865 = vld [vmem:[%s5 + $0x60] sm:$0xff]
    %v866 = vld [vmem:[%s5 + $0x68] sm:$0xff]
    %v867 = vld [vmem:[%s5 + $0x70] sm:$0xff]
    %v868 = vld [vmem:[%s5 + $0x78] sm:$0xff]
    %v870 = vsel %vm176, %v853, 0
    %v873 = vsel %vm176, %v854, 0
    %v876 = vsel %vm176, %v855, 0
    %v879 = vsel %vm176, %v856, 0
    %v882 = vsel %vm176, %v857, 0
    %v885 = vsel %vm176, %v858, 0
    %v888 = vsel %vm176, %v859, 0
    %v891 = vsel %vm176, %v860, 0
    %v894 = vsel %vm176, %v861, 0
    %v897 = vsel %vm176, %v862, 0
    %v900 = vsel %vm176, %v863, 0
    %v903 = vsel %vm176, %v864, 0
    %v906 = vsel %vm176, %v865, 0
    %v909 = vsel %vm176, %v866, 0
    %v912 = vsel %vm176, %v867, 0
    %v915 = vsel %vm176, %v868, 0
    %917 = vmatpush.msra.mxu0 0.0
    %918 = vmatpush.msra.mxu0 0.0
    %919 = vmatpush.msra.mxu0 0.0
    %920 = vmatpush.msra.mxu0 0.0
    %921 = vmatpush.msra.mxu0 0.0
    %922 = vmatpush.msra.mxu0 0.0
    %923 = vmatpush.msra.mxu0 0.0
    %924 = vmatpush.msra.mxu0 0.0
    %925 = vmatpush.msra.mxu0 0.0
    %926 = vmatpush.msra.mxu0 0.0
    %927 = vmatpush.msra.mxu0 0.0
    %928 = vmatpush.msra.mxu0 0.0
    %929 = vmatpush.msra.mxu0 %v852
    %930 = vmatpush.msra.mxu0 %v851
    %931 = vmatpush.msra.mxu0 %v850
    %932 = vmatpush.msra.mxu0 %v849
    %933 = vmatmul.f32.gmra.mxu0 %v870
    %v934 = vpop.f32.mrf.mxu0
    %v935 = vadd.f32 0.0, %v934
    %936 = vmatmul.f32.gmra.mxu0 %v873
    %v937 = vpop.f32.mrf.mxu0
    %v938 = vadd.f32 0.0, %v937
    %939 = vmatmul.f32.gmra.mxu0 %v876
    %v940 = vpop.f32.mrf.mxu0
    %v941 = vadd.f32 0.0, %v940
    %942 = vmatmul.f32.gmra.mxu0 %v879
    %v943 = vpop.f32.mrf.mxu0
    %v944 = vadd.f32 0.0, %v943
    %945 = vmatmul.f32.gmra.mxu0 %v882
    %v946 = vpop.f32.mrf.mxu0
    %v947 = vadd.f32 0.0, %v946
    %948 = vmatmul.f32.gmra.mxu0 %v885
    %v949 = vpop.f32.mrf.mxu0
    %v950 = vadd.f32 0.0, %v949
    %951 = vmatmul.f32.gmra.mxu0 %v888
    %v952 = vpop.f32.mrf.mxu0
    %v953 = vadd.f32 0.0, %v952
    %954 = vmatmul.f32.gmra.mxu0 %v891
    %v955 = vpop.f32.mrf.mxu0
    %v956 = vadd.f32 0.0, %v955
    %957 = vmatmul.f32.gmra.mxu0 %v894
    %v958 = vpop.f32.mrf.mxu0
    %v959 = vadd.f32 0.0, %v958
    %960 = vmatmul.f32.gmra.mxu0 %v897
    %v961 = vpop.f32.mrf.mxu0
    %v962 = vadd.f32 0.0, %v961
    %963 = vmatmul.f32.gmra.mxu0 %v900
    %v964 = vpop.f32.mrf.mxu0
    %v965 = vadd.f32 0.0, %v964
    %966 = vmatmul.f32.gmra.mxu0 %v903
    %v967 = vpop.f32.mrf.mxu0
    %v968 = vadd.f32 0.0, %v967
    %969 = vmatmul.f32.gmra.mxu0 %v906
    %v970 = vpop.f32.mrf.mxu0
    %v971 = vadd.f32 0.0, %v970
    %972 = vmatmul.f32.gmra.mxu0 %v909
    %v973 = vpop.f32.mrf.mxu0
    %v974 = vadd.f32 0.0, %v973
    %975 = vmatmul.f32.gmra.mxu0 %v912
    %v976 = vpop.f32.mrf.mxu0
    %v977 = vadd.f32 0.0, %v976
    %978 = vmatmul.f32.gmra.mxu0 %v915
    %v979 = vpop.f32.mrf.mxu0
    %v980 = vadd.f32 0.0, %v979
    %981 = vdwg.mxu0
    %v982 = vld [vmem:[%s6] sm:$0xff]
    %v983 = vld [vmem:[%s6 + $0x8] sm:$0xff]
    %v984 = vld [vmem:[%s6 + $0x10] sm:$0xf]
    %vm985 = vcmask 162816
    %v987 = vsel %vm985, %v935, 0
    %v990 = vsel %vm985, %v938, 0
    %v993 = vsel %vm985, %v941, 0
    %v996 = vsel %vm985, %v944, 0
    %v999 = vsel %vm985, %v947, 0
    %v1002 = vsel %vm985, %v950, 0
    %v1005 = vsel %vm985, %v953, 0
    %v1008 = vsel %vm985, %v956, 0
    %v1011 = vsel %vm985, %v959, 0
    %v1014 = vsel %vm985, %v962, 0
    %v1017 = vsel %vm985, %v965, 0
    %v1020 = vsel %vm985, %v968, 0
    %v1023 = vsel %vm985, %v971, 0
    %v1026 = vsel %vm985, %v974, 0
    %v1029 = vsel %vm985, %v977, 0
    %v1032 = vsel %vm985, %v980, 0
    %vm1034 = vcmask 1043456
    %v1036 = vsel %vm1034, %v984, 0
    %1038 = vmatpush.msra.mxu0 0.0
    %1039 = vmatpush.msra.mxu0 0.0
    %1040 = vmatpush.msra.mxu0 0.0
    %1041 = vmatpush.msra.mxu0 0.0
    %1042 = vmatpush.msra.mxu0 0.0
    %1043 = vmatpush.msra.mxu0 0.0
    %1044 = vmatpush.msra.mxu0 0.0
    %1045 = vmatpush.msra.mxu0 0.0
    %1046 = vmatpush.msra.mxu0 0.0
    %1047 = vmatpush.msra.mxu0 0.0
    %1048 = vmatpush.msra.mxu0 0.0
    %1049 = vmatpush.msra.mxu0 0.0
    %1050 = vmatpush.msra.mxu0 0.0
    %1051 = vmatpush.msra.mxu0 %v1036
    %1052 = vmatpush.msra.mxu0 %v983
    %1053 = vmatpush.msra.mxu0 %v982
    %1054 = vmatmul.f32.gmra.mxu0 %v987
    %v1055 = vpop.f32.mrf.mxu0
    %v1056 = vadd.f32 0.0, %v1055
    %1057 = vmatmul.f32.gmra.mxu0 %v990
    %v1058 = vpop.f32.mrf.mxu0
    %v1059 = vadd.f32 0.0, %v1058
    %1060 = vmatmul.f32.gmra.mxu0 %v993
    %v1061 = vpop.f32.mrf.mxu0
    %v1062 = vadd.f32 0.0, %v1061
    %1063 = vmatmul.f32.gmra.mxu0 %v996
    %v1064 = vpop.f32.mrf.mxu0
    %v1065 = vadd.f32 0.0, %v1064
    %1066 = vmatmul.f32.gmra.mxu0 %v999
    %v1067 = vpop.f32.mrf.mxu0
    %v1068 = vadd.f32 0.0, %v1067
    %1069 = vmatmul.f32.gmra.mxu0 %v1002
    %v1070 = vpop.f32.mrf.mxu0
    %v1071 = vadd.f32 0.0, %v1070
    %1072 = vmatmul.f32.gmra.mxu0 %v1005
    %v1073 = vpop.f32.mrf.mxu0
    %v1074 = vadd.f32 0.0, %v1073
    %1075 = vmatmul.f32.gmra.mxu0 %v1008
    %v1076 = vpop.f32.mrf.mxu0
    %v1077 = vadd.f32 0.0, %v1076
    %1078 = vmatmul.f32.gmra.mxu0 %v1011
    %v1079 = vpop.f32.mrf.mxu0
    %v1080 = vadd.f32 0.0, %v1079
    %1081 = vmatmul.f32.gmra.mxu0 %v1014
    %v1082 = vpop.f32.mrf.mxu0
    %v1083 = vadd.f32 0.0, %v1082
    %1084 = vmatmul.f32.gmra.mxu0 %v1017
    %v1085 = vpop.f32.mrf.mxu0
    %v1086 = vadd.f32 0.0, %v1085
    %1087 = vmatmul.f32.gmra.mxu0 %v1020
    %v1088 = vpop.f32.mrf.mxu0
    %v1089 = vadd.f32 0.0, %v1088
    %1090 = vmatmul.f32.gmra.mxu0 %v1023
    %v1091 = vpop.f32.mrf.mxu0
    %v1092 = vadd.f32 0.0, %v1091
    %1093 = vmatmul.f32.gmra.mxu0 %v1026
    %v1094 = vpop.f32.mrf.mxu0
    %v1095 = vadd.f32 0.0, %v1094
    %1096 = vmatmul.f32.gmra.mxu0 %v1029
    %v1097 = vpop.f32.mrf.mxu0
    %v1098 = vadd.f32 0.0, %v1097
    %1099 = vmatmul.f32.gmra.mxu0 %v1032
    %v1100 = vpop.f32.mrf.mxu0
    %v1101 = vadd.f32 0.0, %v1100
    %1102 = vdwg.mxu0
    %1103 = vst [vmem:[#allocation6] sm:$0xff] %v1056
    %1104 = vst [vmem:[#allocation6 + $0x8] sm:$0xff] %v1059
    %1105 = vst [vmem:[#allocation6 + $0x10] sm:$0xff] %v1062
    %1106 = vst [vmem:[#allocation6 + $0x18] sm:$0xff] %v1065
    %1107 = vst [vmem:[#allocation6 + $0x20] sm:$0xff] %v1068
    %1108 = vst [vmem:[#allocation6 + $0x28] sm:$0xff] %v1071
    %1109 = vst [vmem:[#allocation6 + $0x30] sm:$0xff] %v1074
    %1110 = vst [vmem:[#allocation6 + $0x38] sm:$0xff] %v1077
    %1111 = vst [vmem:[#allocation6 + $0x40] sm:$0xff] %v1080
    %1112 = vst [vmem:[#allocation6 + $0x48] sm:$0xff] %v1083
    %1113 = vst [vmem:[#allocation6 + $0x50] sm:$0xff] %v1086
    %1114 = vst [vmem:[#allocation6 + $0x58] sm:$0xff] %v1089
    %1115 = vst [vmem:[#allocation6 + $0x60] sm:$0xff] %v1092
    %1116 = vst [vmem:[#allocation6 + $0x68] sm:$0xff] %v1095
    %1117 = vst [vmem:[#allocation6 + $0x70] sm:$0xff] %v1098
    %1118 = vst [vmem:[#allocation6 + $0x78] sm:$0xff] %v1101
    // Predicated region
    $region34: #{ecodepth_dar_a_forward.5} parent=1 // pred_check
      _
    $region35: #{ecodepth_dar_a_forward.5} parent=1 // pred_check_branch
      %1120 = sbr.rel (0) target = $region37
    $region36: #{ecodepth_dar_a_forward.5} parent=1 // pred_region
      %1122 = vsyncadd [#allocation5], 0
      %s1123 = sshll.u32 [#allocation6], 4
      %s1124 = int_to_ptr.vmem [resolvable:$true] %s1123
      %s1125 = sshll.u32 %s7, 4
      %s1126 = int_to_ptr.hbm [resolvable:$true] %s1125
      %1131 = dma.vmem_to_hbm [thread:$0]  %s1124, 2048, %s1126, [#allocation5], 128, 128, 8
    $region37: #{ecodepth_dar_a_forward.5} parent=1 // pred_fallthru
      _
    // Predicated region
    $region38: #{ecodepth_dar_a_forward.5} parent=1 // pred_check
      _
    $region39: #{ecodepth_dar_a_forward.5} parent=1 // pred_check_branch
      %1133 = sbr.rel (0) target = $region41
    $region40: #{ecodepth_dar_a_forward.5} parent=1 // pred_region
      %1135 = dma.done [#allocation5], 2048
    $region41: #{ecodepth_dar_a_forward.5} parent=1 // pred_fallthru
      _
    %1136 = vsyncpa [#allocation4], 1
    %1137 = vsyncpa [#allocation5], 1

// kernel: ecodepth_dar_a_forward.3
$region0: #{ecodepth_dar_a_forward.3}
  #allocation0 [shape = 'u32[]', space=smem, size = 0x4, offset = 0x4, fixed_abs, tag = 'smem constant byte address 0x4 - core index']
  #allocation1 [shape = 'u32[72,128]{1,0:T(1,128)}', space=vmem, size = 0x9000, scoped, tag = 'internal scratch']
  %s0 = inlined_call_operand.vmem [shape: f32[2,3], index: 0, kind: input, shape index: {}]
  %s1 = inlined_call_operand.vmem [shape: f32[680,3], index: 1, kind: input, shape index: {}]
  %s2 = inlined_call_operand.vmem [shape: f32[680,2], index: 2, kind: input, shape index: {}]
  %s3 = inlined_call_operand.vmem [shape: f32[3,128], index: 3, kind: input, shape index: {}]
  %s4 = inlined_call_operand.hbm [shape: f32[1,128], index: 4, kind: input, shape index: {}]
  %s5 = inlined_call_operand.vmem [shape: f32[128,64], index: 5, kind: input, shape index: {}]
  %s6 = inlined_call_operand.hbm [shape: f32[1,64], index: 6, kind: input, shape index: {}]
  %s7 = inlined_call_operand.vmem [shape: f32[64,32], index: 7, kind: input, shape index: {}]
  %s8 = inlined_call_operand.hbm [shape: f32[1,32], index: 8, kind: input, shape index: {}]
  %s9 = inlined_call_operand.vmem [shape: f32[32,32], index: 9, kind: input, shape index: {}]
  %s10 = inlined_call_operand.hbm [shape: f32[1,32], index: 10, kind: input, shape index: {}]
  %s11 = inlined_call_operand.vmem [shape: f32[32,128], index: 11, kind: input, shape index: {}]
  %s12 = inlined_call_operand.vmem [shape: f32[1,128], index: 12, kind: input, shape index: {}]
  %s13 = inlined_call_operand.vmem [shape: f32[3,128], index: 13, kind: input, shape index: {}]
  %s14 = inlined_call_operand.vmem [shape: f32[1,128], index: 14, kind: input, shape index: {}]
  %s15 = inlined_call_operand.vmem [shape: f32[680,128], index: 15, kind: output, shape index: {}]
  %s16 = sld [smem:[#allocation0]]
  $region86: #{ecodepth_dar_a_forward.3} parent=0
    _
  %s18 = ssub.s32 1, %s16
  %s19 = scalar_select 0, %s18, %s16
  $region1: #{ecodepth_dar_a_forward.3} parent=0
    #allocation2 [shape = 'u8[512]{0}', space=vmem, size = 0x400, scoped, tag = 'input window, operand 4, single buffered']
    #allocation3 [shape = 's32[1]{0}', space=sflag, size = 0x4, scoped, tag = 'scoped memory for ecodepth_dar_a_forward.3']
    #allocation4 [shape = 'u8[512]{0}', space=vmem, size = 0x400, scoped, tag = 'input window, operand 6, single buffered']
    #allocation5 [shape = 's32[1]{0}', space=sflag, size = 0x4, scoped, tag = 'scoped memory for ecodepth_dar_a_forward.3']
    #allocation6 [shape = 'u8[512]{0}', space=vmem, size = 0x400, scoped, tag = 'input window, operand 8, single buffered']
    #allocation7 [shape = 'u8[512]{0}', space=vmem, size = 0x400, scoped, tag = 'input window, operand 10, single buffered']
    #allocation8 [shape = 's32[1]{0}', space=sflag, size = 0x4, scoped, tag = 'scoped memory for ecodepth_dar_a_forward.3']
    %20 = vsyncpa [#allocation3], 0
    %21 = vsyncpa [#allocation5], 0
    %22 = vsyncpa [#allocation8], 0
    // Predicated region
    $region2: #{ecodepth_dar_a_forward.3} parent=1 // pred_check
      _
    $region3: #{ecodepth_dar_a_forward.3} parent=1 // pred_check_branch
      %24 = sbr.rel (0) target = $region5
    $region4: #{ecodepth_dar_a_forward.3} parent=1 // pred_region
      _
    $region5: #{ecodepth_dar_a_forward.3} parent=1 // pred_fallthru
      _
    // Predicated region
    $region6: #{ecodepth_dar_a_forward.3} parent=1 // pred_check
      _
    $region7: #{ecodepth_dar_a_forward.3} parent=1 // pred_check_branch
      %26 = sbr.rel (0) target = $region9
    $region8: #{ecodepth_dar_a_forward.3} parent=1 // pred_region
      _
    $region9: #{ecodepth_dar_a_forward.3} parent=1 // pred_fallthru
      _
    // Predicated region
    $region10: #{ecodepth_dar_a_forward.3} parent=1 // pred_check
      _
    $region11: #{ecodepth_dar_a_forward.3} parent=1 // pred_check_branch
      %28 = sbr.rel (0) target = $region13
    $region12: #{ecodepth_dar_a_forward.3} parent=1 // pred_region
      _
    $region13: #{ecodepth_dar_a_forward.3} parent=1 // pred_fallthru
      _
    // Predicated region
    $region14: #{ecodepth_dar_a_forward.3} parent=1 // pred_check
      _
    $region15: #{ecodepth_dar_a_forward.3} parent=1 // pred_check_branch
      %30 = sbr.rel (0) target = $region17
    $region16: #{ecodepth_dar_a_forward.3} parent=1 // pred_region
      _
    $region17: #{ecodepth_dar_a_forward.3} parent=1 // pred_fallthru
      _
    // Predicated region
    $region18: #{ecodepth_dar_a_forward.3} parent=1 // pred_check
      _
    $region19: #{ecodepth_dar_a_forward.3} parent=1 // pred_check_branch
      %32 = sbr.rel (0) target = $region21
    $region20: #{ecodepth_dar_a_forward.3} parent=1 // pred_region
      %34 = vsyncadd [#allocation3], 0
      %s36 = sshll.u32 %s4, 4
      %s37 = int_to_ptr.hbm [resolvable:$true] %s36
      %s38 = sshll.u32 [#allocation2], 4
      %s39 = int_to_ptr.vmem [resolvable:$true] %s38
      %41 = dma.hbm_to_vmem [thread:$0]  %s37, 16, %s39, [#allocation3]
    $region21: #{ecodepth_dar_a_forward.3} parent=1 // pred_fallthru
      _
    // Predicated region
    $region22: #{ecodepth_dar_a_forward.3} parent=1 // pred_check
      _
    $region23: #{ecodepth_dar_a_forward.3} parent=1 // pred_check_branch
      %43 = sbr.rel (0) target = $region25
    $region24: #{ecodepth_dar_a_forward.3} parent=1 // pred_region
      _
    $region25: #{ecodepth_dar_a_forward.3} parent=1 // pred_fallthru
      _
    // Predicated region
    $region26: #{ecodepth_dar_a_forward.3} parent=1 // pred_check
      _
    $region27: #{ecodepth_dar_a_forward.3} parent=1 // pred_check_branch
      %45 = sbr.rel (0) target = $region29
    $region28: #{ecodepth_dar_a_forward.3} parent=1 // pred_region
      %47 = vsyncadd [#allocation5], 0
      %s49 = sshll.u32 %s6, 4
      %s50 = int_to_ptr.hbm [resolvable:$true] %s49
      %s51 = sshll.u32 [#allocation4], 4
      %s52 = int_to_ptr.vmem [resolvable:$true] %s51
      %54 = dma.hbm_to_vmem [thread:$0]  %s50, 16, %s52, [#allocation5]
    $region29: #{ecodepth_dar_a_forward.3} parent=1 // pred_fallthru
      _
    // Predicated region
    $region30: #{ecodepth_dar_a_forward.3} parent=1 // pred_check
      _
    $region31: #{ecodepth_dar_a_forward.3} parent=1 // pred_check_branch
      %56 = sbr.rel (0) target = $region33
    $region32: #{ecodepth_dar_a_forward.3} parent=1 // pred_region
      _
    $region33: #{ecodepth_dar_a_forward.3} parent=1 // pred_fallthru
      _
    // Predicated region
    $region34: #{ecodepth_dar_a_forward.3} parent=1 // pred_check
      _
    $region35: #{ecodepth_dar_a_forward.3} parent=1 // pred_check_branch
      %58 = sbr.rel (0) target = $region37
    $region36: #{ecodepth_dar_a_forward.3} parent=1 // pred_region
      %60 = vsyncadd [#allocation5], 0
      %s62 = sshll.u32 %s8, 4
      %s63 = int_to_ptr.hbm [resolvable:$true] %s62
      %s64 = sshll.u32 [#allocation6], 4
      %s65 = int_to_ptr.vmem [resolvable:$true] %s64
      %67 = dma.hbm_to_vmem [thread:$0]  %s63, 16, %s65, [#allocation5]
    $region37: #{ecodepth_dar_a_forward.3} parent=1 // pred_fallthru
      _
    // Predicated region
    $region38: #{ecodepth_dar_a_forward.3} parent=1 // pred_check
      _
    $region39: #{ecodepth_dar_a_forward.3} parent=1 // pred_check_branch
      %69 = sbr.rel (0) target = $region41
    $region40: #{ecodepth_dar_a_forward.3} parent=1 // pred_region
      _
    $region41: #{ecodepth_dar_a_forward.3} parent=1 // pred_fallthru
      _
    // Predicated region
    $region42: #{ecodepth_dar_a_forward.3} parent=1 // pred_check
      _
    $region43: #{ecodepth_dar_a_forward.3} parent=1 // pred_check_branch
      %71 = sbr.rel (0) target = $region45
    $region44: #{ecodepth_dar_a_forward.3} parent=1 // pred_region
      %73 = vsyncadd [#allocation8], 0
      %s75 = sshll.u32 %s10, 4
      %s76 = int_to_ptr.hbm [resolvable:$true] %s75
      %s77 = sshll.u32 [#allocation7], 4
      %s78 = int_to_ptr.vmem [resolvable:$true] %s77
      %80 = dma.hbm_to_vmem [thread:$0]  %s76, 16, %s78, [#allocation8]
    $region45: #{ecodepth_dar_a_forward.3} parent=1 // pred_fallthru
      _
    // Predicated region
    $region46: #{ecodepth_dar_a_forward.3} parent=1 // pred_check
      _
    $region47: #{ecodepth_dar_a_forward.3} parent=1 // pred_check_branch
      %82 = sbr.rel (0) target = $region49
    $region48: #{ecodepth_dar_a_forward.3} parent=1 // pred_region
      _
    $region49: #{ecodepth_dar_a_forward.3} parent=1 // pred_fallthru
      _
    // Predicated region
    $region50: #{ecodepth_dar_a_forward.3} parent=1 // pred_check
      _
    $region51: #{ecodepth_dar_a_forward.3} parent=1 // pred_check_branch
      %84 = sbr.rel (0) target = $region53
    $region52: #{ecodepth_dar_a_forward.3} parent=1 // pred_region
      _
    $region53: #{ecodepth_dar_a_forward.3} parent=1 // pred_fallthru
      _
    // Predicated region
    $region54: #{ecodepth_dar_a_forward.3} parent=1 // pred_check
      _
    $region55: #{ecodepth_dar_a_forward.3} parent=1 // pred_check_branch
      %86 = sbr.rel (0) target = $region57
    $region56: #{ecodepth_dar_a_forward.3} parent=1 // pred_region
      _
    $region57: #{ecodepth_dar_a_forward.3} parent=1 // pred_fallthru
      _
    // Predicated region
    $region58: #{ecodepth_dar_a_forward.3} parent=1 // pred_check
      _
    $region59: #{ecodepth_dar_a_forward.3} parent=1 // pred_check_branch
      %88 = sbr.rel (0) target = $region61
    $region60: #{ecodepth_dar_a_forward.3} parent=1 // pred_region
      _
    $region61: #{ecodepth_dar_a_forward.3} parent=1 // pred_fallthru
      _
    // Predicated region
    $region62: #{ecodepth_dar_a_forward.3} parent=1 // pred_check
      _
    $region63: #{ecodepth_dar_a_forward.3} parent=1 // pred_check_branch
      %90 = sbr.rel (0) target = $region65
    $region64: #{ecodepth_dar_a_forward.3} parent=1 // pred_region
      %92 = dma.done [#allocation3], 16
    $region65: #{ecodepth_dar_a_forward.3} parent=1 // pred_fallthru
      _
    // Predicated region
    $region66: #{ecodepth_dar_a_forward.3} parent=1 // pred_check
      _
    $region67: #{ecodepth_dar_a_forward.3} parent=1 // pred_check_branch
      %94 = sbr.rel (0) target = $region69
    $region68: #{ecodepth_dar_a_forward.3} parent=1 // pred_region
      %96 = dma.done [#allocation5], 16
    $region69: #{ecodepth_dar_a_forward.3} parent=1 // pred_fallthru
      _
    // Predicated region
    $region70: #{ecodepth_dar_a_forward.3} parent=1 // pred_check
      _
    $region71: #{ecodepth_dar_a_forward.3} parent=1 // pred_check_branch
      %98 = sbr.rel (0) target = $region73
    $region72: #{ecodepth_dar_a_forward.3} parent=1 // pred_region
      %100 = dma.done [#allocation5], 16
    $region73: #{ecodepth_dar_a_forward.3} parent=1 // pred_fallthru
      _
    // Predicated region
    $region74: #{ecodepth_dar_a_forward.3} parent=1 // pred_check
      _
    $region75: #{ecodepth_dar_a_forward.3} parent=1 // pred_check_branch
      %102 = sbr.rel (0) target = $region77
    $region76: #{ecodepth_dar_a_forward.3} parent=1 // pred_region
      %104 = dma.done [#allocation8], 16
    $region77: #{ecodepth_dar_a_forward.3} parent=1 // pred_fallthru
      _
    %v106 = vld [vmem:[%s0] sm:$0x3]
    %v107 = vmul.f32 %v106, 2.0
    %v108 = vsub.f32 %v107, 1.0
    %v109 = vld [vmem:[%s3] sm:$0x7]
    %v110 = vpack.c.bf16 %v108, %v108
    %v111 = vpack.c.bf16 %v109, %v109
    %v112 = vld [vmem:[#allocation2] sm:$0x1]
    %v114 = vperm.slane %v112, 0
    %vm116 = vcmask 23552
    %v118 = vsel %vm116, %v110, 0
    %vm120 = vcmask 1040384
    %vm121 = vcmask 1041408
    %v122 = vsel %vm120, 4294967295, 65535
    %v123 = vsel %vm121, %v122, 0
    %v125 = vand.u32 %v111, %v123
    %127 = vmatpush.bf16.msra.mxu0 0
    %128 = vmatpush.bf16.msra.mxu0 0
    %129 = vmatpush.bf16.msra.mxu0 0
    %130 = vmatpush.bf16.msra.mxu0 0
    %131 = vmatpush.bf16.msra.mxu0 0
    %132 = vmatpush.bf16.msra.mxu0 0
    %133 = vmatpush.bf16.msra.mxu0 0
    %134 = vmatpush.bf16.msra.mxu0 %v125
    %135 = vmatmul.bf16.gmra.mxu0 %v118
    %v136 = vpop.f32.mrf.mxu0
    %v137 = vadd.f32 %v114, %v136
    %v138 = vpop.f32.mrf.mxu0
    %139 = vdwg.mxu0
    %v140 = vld [vmem:[%s5] sm:$0xff]
    %v141 = vld [vmem:[%s5 + $0x8] sm:$0xff]
    %v142 = vld [vmem:[%s5 + $0x10] sm:$0xff]
    %v143 = vld [vmem:[%s5 + $0x18] sm:$0xff]
    %v144 = vld [vmem:[%s5 + $0x20] sm:$0xff]
    %v145 = vld [vmem:[%s5 + $0x28] sm:$0xff]
    %v146 = vld [vmem:[%s5 + $0x30] sm:$0xff]
    %v147 = vld [vmem:[%s5 + $0x38] sm:$0xff]
    %v148 = vld [vmem:[%s5 + $0x40] sm:$0xff]
    %v149 = vld [vmem:[%s5 + $0x48] sm:$0xff]
    %v150 = vld [vmem:[%s5 + $0x50] sm:$0xff]
    %v151 = vld [vmem:[%s5 + $0x58] sm:$0xff]
    %v152 = vld [vmem:[%s5 + $0x60] sm:$0xff]
    %v153 = vld [vmem:[%s5 + $0x68] sm:$0xff]
    %v154 = vld [vmem:[%s5 + $0x70] sm:$0xff]
    %v155 = vld [vmem:[%s5 + $0x78] sm:$0xff]
    %v156 = vpack.c.bf16 %v137, %v137
    %v157 = vpack.c.bf16 %v141, %v140
    %v158 = vpack.c.bf16 %v143, %v142
    %v159 = vpack.c.bf16 %v145, %v144
    %v160 = vpack.c.bf16 %v147, %v146
    %v161 = vpack.c.bf16 %v149, %v148
    %v162 = vpack.c.bf16 %v151, %v150
    %v163 = vpack.c.bf16 %v153, %v152
    %v164 = vpack.c.bf16 %v155, %v154
    %v165 = vld [vmem:[#allocation4] sm:$0x1]
    %v167 = vperm.slane %v165, 0
    %169 = vmatpush.bf16.msra.mxu0 %v164
    %170 = vmatpush.bf16.msra.mxu0 %v163
    %171 = vmatpush.bf16.msra.mxu0 %v162
    %172 = vmatpush.bf16.msra.mxu0 %v161
    %173 = vmatpush.bf16.msra.mxu0 %v160
    %174 = vmatpush.bf16.msra.mxu0 %v159
    %175 = vmatpush.bf16.msra.mxu0 %v158
    %176 = vmatpush.bf16.msra.mxu0 %v157
    %177 = vmatmul.bf16.gmra.mxu0 %v156
    %v178 = vpop.f32.mrf.mxu0
    %v179 = vadd.f32 %v167, %v178
    %v180 = vpop.f32.mrf.mxu0
    %181 = vdwg.mxu0
    %v182 = vmul.f32 %v179, 0.5
    %v183 = vmul.f32 %v179, 0.044715
    %v184 = vmul.f32 %v183, %v179
    %v185 = vmul.f32 %v184, %v179
    %v186 = vadd.f32 %v179, %v185
    %v187 = vmul.f32 %v186, 0.7978846
    %v188 = vtanh.pop %v187
    %v189 = vadd.f32 %v188, 1.0
    %v190 = vmul.f32 %v182, %v189
    %v191 = vld [vmem:[%s7] sm:$0xff]
    %v192 = vld [vmem:[%s7 + $0x8] sm:$0xff]
    %v193 = vld [vmem:[%s7 + $0x10] sm:$0xff]
    %v194 = vld [vmem:[%s7 + $0x18] sm:$0xff]
    %v195 = vld [vmem:[%s7 + $0x20] sm:$0xff]
    %v196 = vld [vmem:[%s7 + $0x28] sm:$0xff]
    %v197 = vld [vmem:[%s7 + $0x30] sm:$0xff]
    %v198 = vld [vmem:[%s7 + $0x38] sm:$0xff]
    %v199 = vpack.c.bf16 %v190, %v190
    %v200 = vpack.c.bf16 %v192, %v191
    %v201 = vpack.c.bf16 %v194, %v193
    %v202 = vpack.c.bf16 %v196, %v195
    %v203 = vpack.c.bf16 %v198, %v197
    %v204 = vld [vmem:[#allocation6] sm:$0x1]
    %v206 = vperm.slane %v204, 0
    %vm208 = vcmask 523264
    %v210 = vsel %vm208, %v199, 0
    %212 = vmatpush.bf16.msra.mxu0 0
    %213 = vmatpush.bf16.msra.mxu0 0
    %214 = vmatpush.bf16.msra.mxu0 0
    %215 = vmatpush.bf16.msra.mxu0 0
    %216 = vmatpush.bf16.msra.mxu0 %v203
    %217 = vmatpush.bf16.msra.mxu0 %v202
    %218 = vmatpush.bf16.msra.mxu0 %v201
    %219 = vmatpush.bf16.msra.mxu0 %v200
    %220 = vmatmul.bf16.gmra.mxu0 %v210
    %v221 = vpop.f32.mrf.mxu0
    %v222 = vadd.f32 %v206, %v221
    %v223 = vpop.f32.mrf.mxu0
    %224 = vdwg.mxu0
    %vm225 = vcmask 254976
    %v226 = vsel %vm225, %v222, -inf
    %227 = vmax.xlane.f32.xlu0 %v226
    %v228 = vpop.xlane.xlu0 %227
    %v229 = vsub.f32 %v222, %v228
    %v230 = vmul.f32 %v229, 1.442695
    %v231 = vpow.pop %v230
    %v232 = vsel %vm225, %v231, 0.0
    %233 = vadd.xlane.f32.xlu0 %v232
    %v234 = vpop.xlane.xlu0 %233
    %v235 = vrcp.pop %v234
    %v236 = vmul.f32 %v234, %v235
    %v237 = vsub.f32 1.0, %v236
    %v238 = vmul.f32 %v235, %v237
    %v239 = vadd.f32 %v235, %v238
    %vm240 = vweird.f32 %v234
    %vm241 = vweird.f32 %v235
    %vm242 = vmor %vm240, %vm241
    %v243 = vsel %vm242, %v235, %v239
    %v244 = vand.u32 2147483647, %v234
    %vm245 = vcmp.eq.f32.partialorder %v244, 8.507059e+37
    %v246 = vand.u32 %v234, 2147483648
    %v247 = vor.u32 1.1754944e-38, %v246
    %v248 = vsel %vm245, %v247, %v243
    %v249 = vmul.f32 %v231, %v248
    %v250 = vld [vmem:[%s9] sm:$0xff]
    %v251 = vld [vmem:[%s9 + $0x8] sm:$0xff]
    %v252 = vld [vmem:[%s9 + $0x10] sm:$0xff]
    %v253 = vld [vmem:[%s9 + $0x18] sm:$0xff]
    %v254 = vpack.c.bf16 %v249, %v249
    %v255 = vpack.c.bf16 %v251, %v250
    %v256 = vpack.c.bf16 %v253, %v252
    %vm257 = vcmask 261120
    %v259 = vsel %vm257, %v254, 0
    %261 = vmatpush.bf16.msra.mxu0 0
    %262 = vmatpush.bf16.msra.mxu0 0
    %263 = vmatpush.bf16.msra.mxu0 0
    %264 = vmatpush.bf16.msra.mxu0 0
    %265 = vmatpush.bf16.msra.mxu0 0
    %266 = vmatpush.bf16.msra.mxu0 0
    %267 = vmatpush.bf16.msra.mxu0 %v256
    %268 = vmatpush.bf16.msra.mxu0 %v255
    %269 = vmatmul.bf16.gmra.mxu0 %v259
    %v270 = vpop.f32.mrf.mxu0
    %v271 = vadd.f32 0.0, %v270
    %v272 = vpop.f32.mrf.mxu0
    %273 = vdwg.mxu0
    %v274 = vld [vmem:[#allocation7] sm:$0x1]
    %v276 = vperm.slane %v274, 0
    %v278 = vmul.f32 %v271, %v276
    %v279 = vld [vmem:[%s11] sm:$0xff]
    %v280 = vld [vmem:[%s11 + $0x8] sm:$0xff]
    %v281 = vld [vmem:[%s11 + $0x10] sm:$0xff]
    %v282 = vld [vmem:[%s11 + $0x18] sm:$0xff]
    %v283 = vpack.c.bf16 %v278, %v278
    %v284 = vpack.c.bf16 %v280, %v279
    %v285 = vpack.c.bf16 %v282, %v281
    %v286 = vld [vmem:[%s12] sm:$0x1]
    %v288 = vperm.slane %v286, 0
    %v291 = vsel %vm257, %v283, 0
    %293 = vmatpush.bf16.msra.mxu0 0
    %294 = vmatpush.bf16.msra.mxu0 0
    %295 = vmatpush.bf16.msra.mxu0 0
    %296 = vmatpush.bf16.msra.mxu0 0
    %297 = vmatpush.bf16.msra.mxu0 0
    %298 = vmatpush.bf16.msra.mxu0 0
    %299 = vmatpush.bf16.msra.mxu0 %v285
    %300 = vmatpush.bf16.msra.mxu0 %v284
    %301 = vmatmul.bf16.gmra.mxu0 %v291
    %v302 = vpop.f32.mrf.mxu0
    %v303 = vadd.f32 %v288, %v302
    %v304 = vpop.f32.mrf.mxu0
    %305 = vdwg.mxu0
    %v306 = vld [vmem:[%s1] sm:$0xff]
    %v307 = vld [vmem:[%s1 + $0x8] sm:$0xff]
    %v308 = vld [vmem:[%s1 + $0x10] sm:$0xff]
    %v309 = vld [vmem:[%s1 + $0x18] sm:$0xff]
    %v310 = vld [vmem:[%s1 + $0x20] sm:$0xff]
    %v311 = vld [vmem:[%s1 + $0x28] sm:$0xff]
    %v312 = vld [vmem:[%s1 + $0x30] sm:$0xff]
    %v313 = vld [vmem:[%s1 + $0x38] sm:$0xff]
    %v314 = vld [vmem:[%s1 + $0x40] sm:$0xff]
    %v315 = vld [vmem:[%s1 + $0x48] sm:$0xff]
    %v316 = vld [vmem:[%s1 + $0x50] sm:$0xff]
    %v317 = vld [vmem:[%s1 + $0x58] sm:$0xff]
    %v318 = vld [vmem:[%s1 + $0x60] sm:$0xff]
    %v319 = vld [vmem:[%s1 + $0x68] sm:$0xff]
    %v320 = vld [vmem:[%s1 + $0x70] sm:$0xff]
    %v321 = vld [vmem:[%s1 + $0x78] sm:$0xff]
    %v322 = vld [vmem:[%s1 + $0x80] sm:$0xff]
    %v323 = vld [vmem:[%s1 + $0x88] sm:$0xff]
    %v324 = vld [vmem:[%s1 + $0x90] sm:$0xff]
    %v325 = vld [vmem:[%s1 + $0x98] sm:$0xff]
    %v326 = vld [vmem:[%s1 + $0xa0] sm:$0xff]
    %v327 = vld [vmem:[%s1 + $0xa8] sm:$0xff]
    %v328 = vld [vmem:[%s1 + $0xb0] sm:$0xff]
    %v329 = vld [vmem:[%s1 + $0xb8] sm:$0xff]
    %v330 = vld [vmem:[%s1 + $0xc0] sm:$0xff]
    %v331 = vld [vmem:[%s1 + $0xc8] sm:$0xff]
    %v332 = vld [vmem:[%s1 + $0xd0] sm:$0xff]
    %v333 = vld [vmem:[%s1 + $0xd8] sm:$0xff]
    %v334 = vld [vmem:[%s1 + $0xe0] sm:$0xff]
    %v335 = vld [vmem:[%s1 + $0xe8] sm:$0xff]
    %v336 = vld [vmem:[%s1 + $0xf0] sm:$0xff]
    %v337 = vld [vmem:[%s1 + $0xf8] sm:$0xff]
    %v338 = vld [vmem:[%s1 + $0x100] sm:$0xff]
    %v339 = vld [vmem:[%s1 + $0x108] sm:$0xff]
    %v340 = vld [vmem:[%s1 + $0x110] sm:$0xff]
    %v341 = vld [vmem:[%s1 + $0x118] sm:$0xff]
    %v342 = vld [vmem:[%s1 + $0x120] sm:$0xff]
    %v343 = vld [vmem:[%s1 + $0x128] sm:$0xff]
    %v344 = vld [vmem:[%s1 + $0x130] sm:$0xff]
    %v345 = vld [vmem:[%s1 + $0x138] sm:$0xff]
    %v346 = vld [vmem:[%s1 + $0x140] sm:$0xff]
    %v347 = vld [vmem:[%s1 + $0x148] sm:$0xff]
    %v348 = vld [vmem:[%s1 + $0x150] sm:$0xff]
    %v349 = vld [vmem:[%s1 + $0x158] sm:$0xff]
    %v350 = vld [vmem:[%s1 + $0x160] sm:$0xff]
    %v351 = vld [vmem:[%s1 + $0x168] sm:$0xff]
    %v352 = vld [vmem:[%s1 + $0x170] sm:$0xff]
    %v353 = vld [vmem:[%s1 + $0x178] sm:$0xff]
    %v354 = vld [vmem:[%s1 + $0x180] sm:$0xff]
    %v355 = vld [vmem:[%s1 + $0x188] sm:$0xff]
    %v356 = vld [vmem:[%s1 + $0x190] sm:$0xff]
    %v357 = vld [vmem:[%s1 + $0x198] sm:$0xff]
    %v358 = vld [vmem:[%s1 + $0x1a0] sm:$0xff]
    %v359 = vld [vmem:[%s1 + $0x1a8] sm:$0xff]
    %v360 = vld [vmem:[%s1 + $0x1b0] sm:$0xff]
    %v361 = vld [vmem:[%s1 + $0x1b8] sm:$0xff]
    %v362 = vld [vmem:[%s1 + $0x1c0] sm:$0xff]
    %v363 = vld [vmem:[%s1 + $0x1c8] sm:$0xff]
    %v364 = vld [vmem:[%s1 + $0x1d0] sm:$0xff]
    %v365 = vld [vmem:[%s1 + $0x1d8] sm:$0xff]
    %v366 = vld [vmem:[%s1 + $0x1e0] sm:$0xff]
    %v367 = vld [vmem:[%s1 + $0x1e8] sm:$0xff]
    %v368 = vld [vmem:[%s1 + $0x1f0] sm:$0xff]
    %v369 = vld [vmem:[%s1 + $0x1f8] sm:$0xff]
    %v370 = vld [vmem:[%s1 + $0x200] sm:$0xff]
    %v371 = vld [vmem:[%s1 + $0x208] sm:$0xff]
    %v372 = vld [vmem:[%s1 + $0x210] sm:$0xff]
    %v373 = vld [vmem:[%s1 + $0x218] sm:$0xff]
    %v374 = vld [vmem:[%s1 + $0x220] sm:$0xff]
    %v375 = vld [vmem:[%s1 + $0x228] sm:$0xff]
    %v376 = vld [vmem:[%s1 + $0x230] sm:$0xff]
    %v377 = vld [vmem:[%s1 + $0x238] sm:$0xff]
    %v378 = vld [vmem:[%s1 + $0x240] sm:$0xff]
    %v379 = vld [vmem:[%s1 + $0x248] sm:$0xff]
    %v380 = vld [vmem:[%s1 + $0x250] sm:$0xff]
    %v381 = vld [vmem:[%s1 + $0x258] sm:$0xff]
    %v382 = vld [vmem:[%s1 + $0x260] sm:$0xff]
    %v383 = vld [vmem:[%s1 + $0x268] sm:$0xff]
    %v384 = vld [vmem:[%s1 + $0x270] sm:$0xff]
    %v385 = vld [vmem:[%s1 + $0x278] sm:$0xff]
    %v386 = vld [vmem:[%s1 + $0x280] sm:$0xff]
    %v387 = vld [vmem:[%s1 + $0x288] sm:$0xff]
    %v388 = vld [vmem:[%s1 + $0x290] sm:$0xff]
    %v389 = vld [vmem:[%s1 + $0x298] sm:$0xff]
    %v390 = vld [vmem:[%s1 + $0x2a0] sm:$0xff]
    %v391 = vld [vmem:[%s13] sm:$0x7]
    %v392 = vpack.c.bf16 %v307, %v306
    %v393 = vpack.c.bf16 %v309, %v308
    %v394 = vpack.c.bf16 %v311, %v310
    %v395 = vpack.c.bf16 %v313, %v312
    %v396 = vpack.c.bf16 %v315, %v314
    %v397 = vpack.c.bf16 %v317, %v316
    %v398 = vpack.c.bf16 %v319, %v318
    %v399 = vpack.c.bf16 %v321, %v320
    %v400 = vpack.c.bf16 %v323, %v322
    %v401 = vpack.c.bf16 %v325, %v324
    %v402 = vpack.c.bf16 %v327, %v326
    %v403 = vpack.c.bf16 %v329, %v328
    %v404 = vpack.c.bf16 %v331, %v330
    %v405 = vpack.c.bf16 %v333, %v332
    %v406 = vpack.c.bf16 %v335, %v334
    %v407 = vpack.c.bf16 %v337, %v336
    %v408 = vpack.c.bf16 %v339, %v338
    %v409 = vpack.c.bf16 %v341, %v340
    %v410 = vpack.c.bf16 %v343, %v342
    %v411 = vpack.c.bf16 %v345, %v344
    %v412 = vpack.c.bf16 %v347, %v346
    %v413 = vpack.c.bf16 %v349, %v348
    %v414 = vpack.c.bf16 %v351, %v350
    %v415 = vpack.c.bf16 %v353, %v352
    %v416 = vpack.c.bf16 %v355, %v354
    %v417 = vpack.c.bf16 %v357, %v356
    %v418 = vpack.c.bf16 %v359, %v358
    %v419 = vpack.c.bf16 %v361, %v360
    %v420 = vpack.c.bf16 %v363, %v362
    %v421 = vpack.c.bf16 %v365, %v364
    %v422 = vpack.c.bf16 %v367, %v366
    %v423 = vpack.c.bf16 %v369, %v368
    %v424 = vpack.c.bf16 %v371, %v370
    %v425 = vpack.c.bf16 %v373, %v372
    %v426 = vpack.c.bf16 %v375, %v374
    %v427 = vpack.c.bf16 %v377, %v376
    %v428 = vpack.c.bf16 %v379, %v378
    %v429 = vpack.c.bf16 %v381, %v380
    %v430 = vpack.c.bf16 %v383, %v382
    %v431 = vpack.c.bf16 %v385, %v384
    %v432 = vpack.c.bf16 %v387, %v386
    %v433 = vpack.c.bf16 %v389, %v388
    %v434 = vpack.c.bf16 %v390, %v390
    %v435 = vpack.c.bf16 %v391, %v391
    %v436 = vld [vmem:[%s14] sm:$0x1]
    %v438 = vperm.slane %v436, 0
    %v441 = vsel %vm116, %v392, 0
    %v444 = vsel %vm116, %v393, 0
    %v447 = vsel %vm116, %v394, 0
    %v450 = vsel %vm116, %v395, 0
    %v453 = vsel %vm116, %v396, 0
    %v456 = vsel %vm116, %v397, 0
    %v459 = vsel %vm116, %v398, 0
    %v462 = vsel %vm116, %v399, 0
    %v465 = vsel %vm116, %v400, 0
    %v468 = vsel %vm116, %v401, 0
    %v471 = vsel %vm116, %v402, 0
    %v474 = vsel %vm116, %v403, 0
    %v477 = vsel %vm116, %v404, 0
    %v480 = vsel %vm116, %v405, 0
    %v483 = vsel %vm116, %v406, 0
    %v486 = vsel %vm116, %v407, 0
    %v489 = vsel %vm116, %v408, 0
    %v492 = vsel %vm116, %v409, 0
    %v495 = vsel %vm116, %v410, 0
    %v498 = vsel %vm116, %v411, 0
    %v501 = vsel %vm116, %v412, 0
    %v504 = vsel %vm116, %v413, 0
    %v507 = vsel %vm116, %v414, 0
    %v510 = vsel %vm116, %v415, 0
    %v513 = vsel %vm116, %v416, 0
    %v516 = vsel %vm116, %v417, 0
    %v519 = vsel %vm116, %v418, 0
    %v522 = vsel %vm116, %v419, 0
    %v525 = vsel %vm116, %v420, 0
    %v528 = vsel %vm116, %v421, 0
    %v531 = vsel %vm116, %v422, 0
    %v534 = vsel %vm116, %v423, 0
    %v537 = vsel %vm116, %v424, 0
    %v540 = vsel %vm116, %v425, 0
    %v543 = vsel %vm116, %v426, 0
    %v546 = vsel %vm116, %v427, 0
    %v549 = vsel %vm116, %v428, 0
    %v552 = vsel %vm116, %v429, 0
    %v555 = vsel %vm116, %v430, 0
    %v558 = vsel %vm116, %v431, 0
    %v561 = vsel %vm116, %v432, 0
    %v564 = vsel %vm116, %v433, 0
    %v567 = vsel %vm116, %v434, 0
    %v570 = vand.u32 %v435, %v123
    %572 = vmatpush.bf16.msra.mxu0 0
    %573 = vmatpush.bf16.msra.mxu0 0
    %574 = vmatpush.bf16.msra.mxu0 0
    %575 = vmatpush.bf16.msra.mxu0 0
    %576 = vmatpush.bf16.msra.mxu0 0
    %577 = vmatpush.bf16.msra.mxu0 0
    %578 = vmatpush.bf16.msra.mxu0 0
    %579 = vmatpush.bf16.msra.mxu0 %v570
    %580 = vmatmul.bf16.gmra.mxu0 %v441
    %v581 = vpop.f32.mrf.mxu0
    %v582 = vadd.f32 %v438, %v581
    %v583 = vpop.f32.mrf.mxu0
    %v584 = vadd.f32 %v438, %v583
    %585 = vmatmul.bf16.gmra.mxu0 %v444
    %v586 = vpop.f32.mrf.mxu0
    %v587 = vadd.f32 %v438, %v586
    %v588 = vpop.f32.mrf.mxu0
    %v589 = vadd.f32 %v438, %v588
    %590 = vmatmul.bf16.gmra.mxu0 %v447
    %v591 = vpop.f32.mrf.mxu0
    %v592 = vadd.f32 %v438, %v591
    %v593 = vpop.f32.mrf.mxu0
    %v594 = vadd.f32 %v438, %v593
    %595 = vmatmul.bf16.gmra.mxu0 %v450
    %v596 = vpop.f32.mrf.mxu0
    %v597 = vadd.f32 %v438, %v596
    %v598 = vpop.f32.mrf.mxu0
    %v599 = vadd.f32 %v438, %v598
    %600 = vmatmul.bf16.gmra.mxu0 %v453
    %v601 = vpop.f32.mrf.mxu0
    %v602 = vadd.f32 %v438, %v601
    %v603 = vpop.f32.mrf.mxu0
    %v604 = vadd.f32 %v438, %v603
    %605 = vmatmul.bf16.gmra.mxu0 %v456
    %v606 = vpop.f32.mrf.mxu0
    %v607 = vadd.f32 %v438, %v606
    %v608 = vpop.f32.mrf.mxu0
    %v609 = vadd.f32 %v438, %v608
    %610 = vmatmul.bf16.gmra.mxu0 %v459
    %v611 = vpop.f32.mrf.mxu0
    %v612 = vadd.f32 %v438, %v611
    %v613 = vpop.f32.mrf.mxu0
    %v614 = vadd.f32 %v438, %v613
    %615 = vmatmul.bf16.gmra.mxu0 %v462
    %v616 = vpop.f32.mrf.mxu0
    %v617 = vadd.f32 %v438, %v616
    %v618 = vpop.f32.mrf.mxu0
    %v619 = vadd.f32 %v438, %v618
    %620 = vmatmul.bf16.gmra.mxu0 %v465
    %v621 = vpop.f32.mrf.mxu0
    %v622 = vadd.f32 %v438, %v621
    %v623 = vpop.f32.mrf.mxu0
    %v624 = vadd.f32 %v438, %v623
    %625 = vmatmul.bf16.gmra.mxu0 %v468
    %v626 = vpop.f32.mrf.mxu0
    %v627 = vadd.f32 %v438, %v626
    %v628 = vpop.f32.mrf.mxu0
    %v629 = vadd.f32 %v438, %v628
    %630 = vmatmul.bf16.gmra.mxu0 %v471
    %v631 = vpop.f32.mrf.mxu0
    %v632 = vadd.f32 %v438, %v631
    %v633 = vpop.f32.mrf.mxu0
    %v634 = vadd.f32 %v438, %v633
    %635 = vmatmul.bf16.gmra.mxu0 %v474
    %v636 = vpop.f32.mrf.mxu0
    %v637 = vadd.f32 %v438, %v636
    %v638 = vpop.f32.mrf.mxu0
    %v639 = vadd.f32 %v438, %v638
    %640 = vmatmul.bf16.gmra.mxu0 %v477
    %v641 = vpop.f32.mrf.mxu0
    %v642 = vadd.f32 %v438, %v641
    %v643 = vpop.f32.mrf.mxu0
    %v644 = vadd.f32 %v438, %v643
    %645 = vmatmul.bf16.gmra.mxu0 %v480
    %v646 = vpop.f32.mrf.mxu0
    %v647 = vadd.f32 %v438, %v646
    %v648 = vpop.f32.mrf.mxu0
    %v649 = vadd.f32 %v438, %v648
    %650 = vmatmul.bf16.gmra.mxu0 %v483
    %v651 = vpop.f32.mrf.mxu0
    %v652 = vadd.f32 %v438, %v651
    %v653 = vpop.f32.mrf.mxu0
    %v654 = vadd.f32 %v438, %v653
    %655 = vmatmul.bf16.gmra.mxu0 %v486
    %v656 = vpop.f32.mrf.mxu0
    %v657 = vadd.f32 %v438, %v656
    %v658 = vpop.f32.mrf.mxu0
    %v659 = vadd.f32 %v438, %v658
    %660 = vmatmul.bf16.gmra.mxu0 %v489
    %v661 = vpop.f32.mrf.mxu0
    %v662 = vadd.f32 %v438, %v661
    %v663 = vpop.f32.mrf.mxu0
    %v664 = vadd.f32 %v438, %v663
    %665 = vmatmul.bf16.gmra.mxu0 %v492
    %v666 = vpop.f32.mrf.mxu0
    %v667 = vadd.f32 %v438, %v666
    %v668 = vpop.f32.mrf.mxu0
    %v669 = vadd.f32 %v438, %v668
    %670 = vmatmul.bf16.gmra.mxu0 %v495
    %v671 = vpop.f32.mrf.mxu0
    %v672 = vadd.f32 %v438, %v671
    %v673 = vpop.f32.mrf.mxu0
    %v674 = vadd.f32 %v438, %v673
    %675 = vmatmul.bf16.gmra.mxu0 %v498
    %v676 = vpop.f32.mrf.mxu0
    %v677 = vadd.f32 %v438, %v676
    %v678 = vpop.f32.mrf.mxu0
    %v679 = vadd.f32 %v438, %v678
    %680 = vmatmul.bf16.gmra.mxu0 %v501
    %v681 = vpop.f32.mrf.mxu0
    %v682 = vadd.f32 %v438, %v681
    %v683 = vpop.f32.mrf.mxu0
    %v684 = vadd.f32 %v438, %v683
    %685 = vmatmul.bf16.gmra.mxu0 %v504
    %v686 = vpop.f32.mrf.mxu0
    %v687 = vadd.f32 %v438, %v686
    %v688 = vpop.f32.mrf.mxu0
    %v689 = vadd.f32 %v438, %v688
    %690 = vmatmul.bf16.gmra.mxu0 %v507
    %v691 = vpop.f32.mrf.mxu0
    %v692 = vadd.f32 %v438, %v691
    %v693 = vpop.f32.mrf.mxu0
    %v694 = vadd.f32 %v438, %v693
    %695 = vmatmul.bf16.gmra.mxu0 %v510
    %v696 = vpop.f32.mrf.mxu0
    %v697 = vadd.f32 %v438, %v696
    %v698 = vpop.f32.mrf.mxu0
    %v699 = vadd.f32 %v438, %v698
    %700 = vmatmul.bf16.gmra.mxu0 %v513
    %v701 = vpop.f32.mrf.mxu0
    %v702 = vadd.f32 %v438, %v701
    %v703 = vpop.f32.mrf.mxu0
    %v704 = vadd.f32 %v438, %v703
    %705 = vmatmul.bf16.gmra.mxu0 %v516
    %v706 = vpop.f32.mrf.mxu0
    %v707 = vadd.f32 %v438, %v706
    %v708 = vpop.f32.mrf.mxu0
    %v709 = vadd.f32 %v438, %v708
    %710 = vmatmul.bf16.gmra.mxu0 %v519
    %v711 = vpop.f32.mrf.mxu0
    %v712 = vadd.f32 %v438, %v711
    %v713 = vpop.f32.mrf.mxu0
    %v714 = vadd.f32 %v438, %v713
    %715 = vmatmul.bf16.gmra.mxu0 %v522
    %v716 = vpop.f32.mrf.mxu0
    %v717 = vadd.f32 %v438, %v716
    %v718 = vpop.f32.mrf.mxu0
    %v719 = vadd.f32 %v438, %v718
    %720 = vmatmul.bf16.gmra.mxu0 %v525
    %v721 = vpop.f32.mrf.mxu0
    %v722 = vadd.f32 %v438, %v721
    %v723 = vpop.f32.mrf.mxu0
    %v724 = vadd.f32 %v438, %v723
    %725 = vmatmul.bf16.gmra.mxu0 %v528
    %v726 = vpop.f32.mrf.mxu0
    %v727 = vadd.f32 %v438, %v726
    %v728 = vpop.f32.mrf.mxu0
    %v729 = vadd.f32 %v438, %v728
    %730 = vmatmul.bf16.gmra.mxu0 %v531
    %v731 = vpop.f32.mrf.mxu0
    %v732 = vadd.f32 %v438, %v731
    %v733 = vpop.f32.mrf.mxu0
    %v734 = vadd.f32 %v438, %v733
    %735 = vmatmul.bf16.gmra.mxu0 %v534
    %v736 = vpop.f32.mrf.mxu0
    %v737 = vadd.f32 %v438, %v736
    %v738 = vpop.f32.mrf.mxu0
    %v739 = vadd.f32 %v438, %v738
    %740 = vmatmul.bf16.gmra.mxu0 %v537
    %v741 = vpop.f32.mrf.mxu0
    %v742 = vadd.f32 %v438, %v741
    %v743 = vpop.f32.mrf.mxu0
    %v744 = vadd.f32 %v438, %v743
    %745 = vmatmul.bf16.gmra.mxu0 %v540
    %v746 = vpop.f32.mrf.mxu0
    %v747 = vadd.f32 %v438, %v746
    %v748 = vpop.f32.mrf.mxu0
    %v749 = vadd.f32 %v438, %v748
    %750 = vmatmul.bf16.gmra.mxu0 %v543
    %v751 = vpop.f32.mrf.mxu0
    %v752 = vadd.f32 %v438, %v751
    %v753 = vpop.f32.mrf.mxu0
    %v754 = vadd.f32 %v438, %v753
    %755 = vmatmul.bf16.gmra.mxu0 %v546
    %v756 = vpop.f32.mrf.mxu0
    %v757 = vadd.f32 %v438, %v756
    %v758 = vpop.f32.mrf.mxu0
    %v759 = vadd.f32 %v438, %v758
    %760 = vmatmul.bf16.gmra.mxu0 %v549
    %v761 = vpop.f32.mrf.mxu0
    %v762 = vadd.f32 %v438, %v761
    %v763 = vpop.f32.mrf.mxu0
    %v764 = vadd.f32 %v438, %v763
    %765 = vmatmul.bf16.gmra.mxu0 %v552
    %v766 = vpop.f32.mrf.mxu0
    %v767 = vadd.f32 %v438, %v766
    %v768 = vpop.f32.mrf.mxu0
    %v769 = vadd.f32 %v438, %v768
    %770 = vmatmul.bf16.gmra.mxu0 %v555
    %v771 = vpop.f32.mrf.mxu0
    %v772 = vadd.f32 %v438, %v771
    %v773 = vpop.f32.mrf.mxu0
    %v774 = vadd.f32 %v438, %v773
    %775 = vmatmul.bf16.gmra.mxu0 %v558
    %v776 = vpop.f32.mrf.mxu0
    %v777 = vadd.f32 %v438, %v776
    %v778 = vpop.f32.mrf.mxu0
    %v779 = vadd.f32 %v438, %v778
    %780 = vmatmul.bf16.gmra.mxu0 %v561
    %v781 = vpop.f32.mrf.mxu0
    %v782 = vadd.f32 %v438, %v781
    %v783 = vpop.f32.mrf.mxu0
    %v784 = vadd.f32 %v438, %v783
    %785 = vmatmul.bf16.gmra.mxu0 %v564
    %v786 = vpop.f32.mrf.mxu0
    %v787 = vadd.f32 %v438, %v786
    %v788 = vpop.f32.mrf.mxu0
    %v789 = vadd.f32 %v438, %v788
    %790 = vmatmul.bf16.gmra.mxu0 %v567
    %v791 = vpop.f32.mrf.mxu0
    %v792 = vadd.f32 %v438, %v791
    %v793 = vpop.f32.mrf.mxu0
    %794 = vdwg.mxu0
    %v795 = vld [vmem:[%s2] sm:$0xff]
    %v796 = vld [vmem:[%s2 + $0x8] sm:$0xff]
    %v797 = vld [vmem:[%s2 + $0x10] sm:$0xff]
    %v798 = vld [vmem:[%s2 + $0x18] sm:$0xff]
    %v799 = vld [vmem:[%s2 + $0x20] sm:$0xff]
    %v800 = vld [vmem:[%s2 + $0x28] sm:$0xff]
    %v801 = vld [vmem:[%s2 + $0x30] sm:$0xff]
    %v802 = vld [vmem:[%s2 + $0x38] sm:$0xff]
    %v803 = vld [vmem:[%s2 + $0x40] sm:$0xff]
    %v804 = vld [vmem:[%s2 + $0x48] sm:$0xff]
    %v805 = vld [vmem:[%s2 + $0x50] sm:$0xff]
    %v806 = vld [vmem:[%s2 + $0x58] sm:$0xff]
    %v807 = vld [vmem:[%s2 + $0x60] sm:$0xff]
    %v808 = vld [vmem:[%s2 + $0x68] sm:$0xff]
    %v809 = vld [vmem:[%s2 + $0x70] sm:$0xff]
    %v810 = vld [vmem:[%s2 + $0x78] sm:$0xff]
    %v811 = vld [vmem:[%s2 + $0x80] sm:$0xff]
    %v812 = vld [vmem:[%s2 + $0x88] sm:$0xff]
    %v813 = vld [vmem:[%s2 + $0x90] sm:$0xff]
    %v814 = vld [vmem:[%s2 + $0x98] sm:$0xff]
    %v815 = vld [vmem:[%s2 + $0xa0] sm:$0xff]
    %v816 = vld [vmem:[%s2 + $0xa8] sm:$0xff]
    %v817 = vld [vmem:[%s2 + $0xb0] sm:$0xff]
    %v818 = vld [vmem:[%s2 + $0xb8] sm:$0xff]
    %v819 = vld [vmem:[%s2 + $0xc0] sm:$0xff]
    %v820 = vld [vmem:[%s2 + $0xc8] sm:$0xff]
    %v821 = vld [vmem:[%s2 + $0xd0] sm:$0xff]
    %v822 = vld [vmem:[%s2 + $0xd8] sm:$0xff]
    %v823 = vld [vmem:[%s2 + $0xe0] sm:$0xff]
    %v824 = vld [vmem:[%s2 + $0xe8] sm:$0xff]
    %v825 = vld [vmem:[%s2 + $0xf0] sm:$0xff]
    %v826 = vld [vmem:[%s2 + $0xf8] sm:$0xff]
    %v827 = vld [vmem:[%s2 + $0x100] sm:$0xff]
    %v828 = vld [vmem:[%s2 + $0x108] sm:$0xff]
    %v829 = vld [vmem:[%s2 + $0x110] sm:$0xff]
    %v830 = vld [vmem:[%s2 + $0x118] sm:$0xff]
    %v831 = vld [vmem:[%s2 + $0x120] sm:$0xff]
    %v832 = vld [vmem:[%s2 + $0x128] sm:$0xff]
    %v833 = vld [vmem:[%s2 + $0x130] sm:$0xff]
    %v834 = vld [vmem:[%s2 + $0x138] sm:$0xff]
    %v835 = vld [vmem:[%s2 + $0x140] sm:$0xff]
    %v836 = vld [vmem:[%s2 + $0x148] sm:$0xff]
    %v837 = vld [vmem:[%s2 + $0x150] sm:$0xff]
    %v838 = vld [vmem:[%s2 + $0x158] sm:$0xff]
    %v839 = vld [vmem:[%s2 + $0x160] sm:$0xff]
    %v840 = vld [vmem:[%s2 + $0x168] sm:$0xff]
    %v841 = vld [vmem:[%s2 + $0x170] sm:$0xff]
    %v842 = vld [vmem:[%s2 + $0x178] sm:$0xff]
    %v843 = vld [vmem:[%s2 + $0x180] sm:$0xff]
    %v844 = vld [vmem:[%s2 + $0x188] sm:$0xff]
    %v845 = vld [vmem:[%s2 + $0x190] sm:$0xff]
    %v846 = vld [vmem:[%s2 + $0x198] sm:$0xff]
    %v847 = vld [vmem:[%s2 + $0x1a0] sm:$0xff]
    %v848 = vld [vmem:[%s2 + $0x1a8] sm:$0xff]
    %v849 = vld [vmem:[%s2 + $0x1b0] sm:$0xff]
    %v850 = vld [vmem:[%s2 + $0x1b8] sm:$0xff]
    %v851 = vld [vmem:[%s2 + $0x1c0] sm:$0xff]
    %v852 = vld [vmem:[%s2 + $0x1c8] sm:$0xff]
    %v853 = vld [vmem:[%s2 + $0x1d0] sm:$0xff]
    %v854 = vld [vmem:[%s2 + $0x1d8] sm:$0xff]
    %v855 = vld [vmem:[%s2 + $0x1e0] sm:$0xff]
    %v856 = vld [vmem:[%s2 + $0x1e8] sm:$0xff]
    %v857 = vld [vmem:[%s2 + $0x1f0] sm:$0xff]
    %v858 = vld [vmem:[%s2 + $0x1f8] sm:$0xff]
    %v859 = vld [vmem:[%s2 + $0x200] sm:$0xff]
    %v860 = vld [vmem:[%s2 + $0x208] sm:$0xff]
    %v861 = vld [vmem:[%s2 + $0x210] sm:$0xff]
    %v862 = vld [vmem:[%s2 + $0x218] sm:$0xff]
    %v863 = vld [vmem:[%s2 + $0x220] sm:$0xff]
    %v864 = vld [vmem:[%s2 + $0x228] sm:$0xff]
    %v865 = vld [vmem:[%s2 + $0x230] sm:$0xff]
    %v866 = vld [vmem:[%s2 + $0x238] sm:$0xff]
    %v867 = vld [vmem:[%s2 + $0x240] sm:$0xff]
    %v868 = vld [vmem:[%s2 + $0x248] sm:$0xff]
    %v869 = vld [vmem:[%s2 + $0x250] sm:$0xff]
    %v870 = vld [vmem:[%s2 + $0x258] sm:$0xff]
    %v871 = vld [vmem:[%s2 + $0x260] sm:$0xff]
    %v872 = vld [vmem:[%s2 + $0x268] sm:$0xff]
    %v873 = vld [vmem:[%s2 + $0x270] sm:$0xff]
    %v874 = vld [vmem:[%s2 + $0x278] sm:$0xff]
    %v875 = vld [vmem:[%s2 + $0x280] sm:$0xff]
    %v876 = vld [vmem:[%s2 + $0x288] sm:$0xff]
    %v877 = vld [vmem:[%s2 + $0x290] sm:$0xff]
    %v878 = vld [vmem:[%s2 + $0x298] sm:$0xff]
    %v879 = vld [vmem:[%s2 + $0x2a0] sm:$0xff]
    %vm880 = vcmask 15360
    %v882 = vsel %vm880, %v795, 0
    %v885 = vsel %vm880, %v796, 0
    %v888 = vsel %vm880, %v797, 0
    %v891 = vsel %vm880, %v798, 0
    %v894 = vsel %vm880, %v799, 0
    %v897 = vsel %vm880, %v800, 0
    %v900 = vsel %vm880, %v801, 0
    %v903 = vsel %vm880, %v802, 0
    %v906 = vsel %vm880, %v803, 0
    %v909 = vsel %vm880, %v804, 0
    %v912 = vsel %vm880, %v805, 0
    %v915 = vsel %vm880, %v806, 0
    %v918 = vsel %vm880, %v807, 0
    %v921 = vsel %vm880, %v808, 0
    %v924 = vsel %vm880, %v809, 0
    %v927 = vsel %vm880, %v810, 0
    %v930 = vsel %vm880, %v811, 0
    %v933 = vsel %vm880, %v812, 0
    %v936 = vsel %vm880, %v813, 0
    %v939 = vsel %vm880, %v814, 0
    %v942 = vsel %vm880, %v815, 0
    %v945 = vsel %vm880, %v816, 0
    %v948 = vsel %vm880, %v817, 0
    %v951 = vsel %vm880, %v818, 0
    %v954 = vsel %vm880, %v819, 0
    %v957 = vsel %vm880, %v820, 0
    %v960 = vsel %vm880, %v821, 0
    %v963 = vsel %vm880, %v822, 0
    %v966 = vsel %vm880, %v823, 0
    %v969 = vsel %vm880, %v824, 0
    %v972 = vsel %vm880, %v825, 0
    %v975 = vsel %vm880, %v826, 0
    %v978 = vsel %vm880, %v827, 0
    %v981 = vsel %vm880, %v828, 0
    %v984 = vsel %vm880, %v829, 0
    %v987 = vsel %vm880, %v830, 0
    %v990 = vsel %vm880, %v831, 0
    %v993 = vsel %vm880, %v832, 0
    %v996 = vsel %vm880, %v833, 0
    %v999 = vsel %vm880, %v834, 0
    %v1002 = vsel %vm880, %v835, 0
    %v1005 = vsel %vm880, %v836, 0
    %v1008 = vsel %vm880, %v837, 0
    %v1011 = vsel %vm880, %v838, 0
    %v1014 = vsel %vm880, %v839, 0
    %v1017 = vsel %vm880, %v840, 0
    %v1020 = vsel %vm880, %v841, 0
    %v1023 = vsel %vm880, %v842, 0
    %v1026 = vsel %vm880, %v843, 0
    %v1029 = vsel %vm880, %v844, 0
    %v1032 = vsel %vm880, %v845, 0
    %v1035 = vsel %vm880, %v846, 0
    %v1038 = vsel %vm880, %v847, 0
    %v1041 = vsel %vm880, %v848, 0
    %v1044 = vsel %vm880, %v849, 0
    %v1047 = vsel %vm880, %v850, 0
    %v1050 = vsel %vm880, %v851, 0
    %v1053 = vsel %vm880, %v852, 0
    %v1056 = vsel %vm880, %v853, 0
    %v1059 = vsel %vm880, %v854, 0
    %v1062 = vsel %vm880, %v855, 0
    %v1065 = vsel %vm880, %v856, 0
    %v1068 = vsel %vm880, %v857, 0
    %v1071 = vsel %vm880, %v858, 0
    %v1074 = vsel %vm880, %v859, 0
    %v1077 = vsel %vm880, %v860, 0
    %v1080 = vsel %vm880, %v861, 0
    %v1083 = vsel %vm880, %v862, 0
    %v1086 = vsel %vm880, %v863, 0
    %v1089 = vsel %vm880, %v864, 0
    %v1092 = vsel %vm880, %v865, 0
    %v1095 = vsel %vm880, %v866, 0
    %v1098 = vsel %vm880, %v867, 0
    %v1101 = vsel %vm880, %v868, 0
    %v1104 = vsel %vm880, %v869, 0
    %v1107 = vsel %vm880, %v870, 0
    %v1110 = vsel %vm880, %v871, 0
    %v1113 = vsel %vm880, %v872, 0
    %v1116 = vsel %vm880, %v873, 0
    %v1119 = vsel %vm880, %v874, 0
    %v1122 = vsel %vm880, %v875, 0
    %v1125 = vsel %vm880, %v876, 0
    %v1128 = vsel %vm880, %v877, 0
    %v1131 = vsel %vm880, %v878, 0
    %v1134 = vsel %vm880, %v879, 0
    %v1137 = vsel %vm121, %v303, 0
    %1139 = vmatpush.msra.mxu0 0.0
    %1140 = vmatpush.msra.mxu0 0.0
    %1141 = vmatpush.msra.mxu0 0.0
    %1142 = vmatpush.msra.mxu0 0.0
    %1143 = vmatpush.msra.mxu0 0.0
    %1144 = vmatpush.msra.mxu0 0.0
    %1145 = vmatpush.msra.mxu0 0.0
    %1146 = vmatpush.msra.mxu0 0.0
    %1147 = vmatpush.msra.mxu0 0.0
    %1148 = vmatpush.msra.mxu0 0.0
    %1149 = vmatpush.msra.mxu0 0.0
    %1150 = vmatpush.msra.mxu0 0.0
    %1151 = vmatpush.msra.mxu0 0.0
    %1152 = vmatpush.msra.mxu0 0.0
    %1153 = vmatpush.msra.mxu0 0.0
    %1154 = vmatpush.msra.mxu0 %v1137
    %1155 = vmatmul.f32.gmra.mxu0 %v882
    %v1156 = vpop.f32.mrf.mxu0
    %v1157 = vadd.f32 0.0, %v1156
    %1158 = vmatmul.f32.gmra.mxu0 %v885
    %v1159 = vpop.f32.mrf.mxu0
    %v1160 = vadd.f32 0.0, %v1159
    %1161 = vmatmul.f32.gmra.mxu0 %v888
    %v1162 = vpop.f32.mrf.mxu0
    %v1163 = vadd.f32 0.0, %v1162
    %1164 = vmatmul.f32.gmra.mxu0 %v891
    %v1165 = vpop.f32.mrf.mxu0
    %v1166 = vadd.f32 0.0, %v1165
    %1167 = vmatmul.f32.gmra.mxu0 %v894
    %v1168 = vpop.f32.mrf.mxu0
    %v1169 = vadd.f32 0.0, %v1168
    %1170 = vmatmul.f32.gmra.mxu0 %v897
    %v1171 = vpop.f32.mrf.mxu0
    %v1172 = vadd.f32 0.0, %v1171
    %1173 = vmatmul.f32.gmra.mxu0 %v900
    %v1174 = vpop.f32.mrf.mxu0
    %v1175 = vadd.f32 0.0, %v1174
    %1176 = vmatmul.f32.gmra.mxu0 %v903
    %v1177 = vpop.f32.mrf.mxu0
    %v1178 = vadd.f32 0.0, %v1177
    %1179 = vmatmul.f32.gmra.mxu0 %v906
    %v1180 = vpop.f32.mrf.mxu0
    %v1181 = vadd.f32 0.0, %v1180
    %1182 = vmatmul.f32.gmra.mxu0 %v909
    %v1183 = vpop.f32.mrf.mxu0
    %v1184 = vadd.f32 0.0, %v1183
    %1185 = vmatmul.f32.gmra.mxu0 %v912
    %v1186 = vpop.f32.mrf.mxu0
    %v1187 = vadd.f32 0.0, %v1186
    %1188 = vmatmul.f32.gmra.mxu0 %v915
    %v1189 = vpop.f32.mrf.mxu0
    %v1190 = vadd.f32 0.0, %v1189
    %1191 = vmatmul.f32.gmra.mxu0 %v918
    %v1192 = vpop.f32.mrf.mxu0
    %v1193 = vadd.f32 0.0, %v1192
    %1194 = vmatmul.f32.gmra.mxu0 %v921
    %v1195 = vpop.f32.mrf.mxu0
    %v1196 = vadd.f32 0.0, %v1195
    %1197 = vmatmul.f32.gmra.mxu0 %v924
    %v1198 = vpop.f32.mrf.mxu0
    %v1199 = vadd.f32 0.0, %v1198
    %1200 = vmatmul.f32.gmra.mxu0 %v927
    %v1201 = vpop.f32.mrf.mxu0
    %v1202 = vadd.f32 0.0, %v1201
    %1203 = vmatmul.f32.gmra.mxu0 %v930
    %v1204 = vpop.f32.mrf.mxu0
    %v1205 = vadd.f32 0.0, %v1204
    %1206 = vmatmul.f32.gmra.mxu0 %v933
    %v1207 = vpop.f32.mrf.mxu0
    %v1208 = vadd.f32 0.0, %v1207
    %1209 = vmatmul.f32.gmra.mxu0 %v936
    %v1210 = vpop.f32.mrf.mxu0
    %v1211 = vadd.f32 0.0, %v1210
    %1212 = vmatmul.f32.gmra.mxu0 %v939
    %v1213 = vpop.f32.mrf.mxu0
    %v1214 = vadd.f32 0.0, %v1213
    %1215 = vmatmul.f32.gmra.mxu0 %v942
    %v1216 = vpop.f32.mrf.mxu0
    %v1217 = vadd.f32 0.0, %v1216
    %1218 = vmatmul.f32.gmra.mxu0 %v945
    %v1219 = vpop.f32.mrf.mxu0
    %v1220 = vadd.f32 0.0, %v1219
    %1221 = vmatmul.f32.gmra.mxu0 %v948
    %v1222 = vpop.f32.mrf.mxu0
    %v1223 = vadd.f32 0.0, %v1222
    %1224 = vmatmul.f32.gmra.mxu0 %v951
    %v1225 = vpop.f32.mrf.mxu0
    %v1226 = vadd.f32 0.0, %v1225
    %1227 = vmatmul.f32.gmra.mxu0 %v954
    %v1228 = vpop.f32.mrf.mxu0
    %v1229 = vadd.f32 0.0, %v1228
    %1230 = vmatmul.f32.gmra.mxu0 %v957
    %v1231 = vpop.f32.mrf.mxu0
    %v1232 = vadd.f32 0.0, %v1231
    %1233 = vmatmul.f32.gmra.mxu0 %v960
    %v1234 = vpop.f32.mrf.mxu0
    %v1235 = vadd.f32 0.0, %v1234
    %1236 = vmatmul.f32.gmra.mxu0 %v963
    %v1237 = vpop.f32.mrf.mxu0
    %v1238 = vadd.f32 0.0, %v1237
    %1239 = vmatmul.f32.gmra.mxu0 %v966
    %v1240 = vpop.f32.mrf.mxu0
    %v1241 = vadd.f32 0.0, %v1240
    %1242 = vmatmul.f32.gmra.mxu0 %v969
    %v1243 = vpop.f32.mrf.mxu0
    %v1244 = vadd.f32 0.0, %v1243
    %1245 = vmatmul.f32.gmra.mxu0 %v972
    %v1246 = vpop.f32.mrf.mxu0
    %v1247 = vadd.f32 0.0, %v1246
    %1248 = vmatmul.f32.gmra.mxu0 %v975
    %v1249 = vpop.f32.mrf.mxu0
    %v1250 = vadd.f32 0.0, %v1249
    %1251 = vmatmul.f32.gmra.mxu0 %v978
    %v1252 = vpop.f32.mrf.mxu0
    %v1253 = vadd.f32 0.0, %v1252
    %1254 = vmatmul.f32.gmra.mxu0 %v981
    %v1255 = vpop.f32.mrf.mxu0
    %v1256 = vadd.f32 0.0, %v1255
    %1257 = vmatmul.f32.gmra.mxu0 %v984
    %v1258 = vpop.f32.mrf.mxu0
    %v1259 = vadd.f32 0.0, %v1258
    %1260 = vmatmul.f32.gmra.mxu0 %v987
    %v1261 = vpop.f32.mrf.mxu0
    %v1262 = vadd.f32 0.0, %v1261
    %1263 = vmatmul.f32.gmra.mxu0 %v990
    %v1264 = vpop.f32.mrf.mxu0
    %v1265 = vadd.f32 0.0, %v1264
    %1266 = vmatmul.f32.gmra.mxu0 %v993
    %v1267 = vpop.f32.mrf.mxu0
    %v1268 = vadd.f32 0.0, %v1267
    %1269 = vmatmul.f32.gmra.mxu0 %v996
    %v1270 = vpop.f32.mrf.mxu0
    %v1271 = vadd.f32 0.0, %v1270
    %1272 = vmatmul.f32.gmra.mxu0 %v999
    %v1273 = vpop.f32.mrf.mxu0
    %v1274 = vadd.f32 0.0, %v1273
    %1275 = vmatmul.f32.gmra.mxu0 %v1002
    %v1276 = vpop.f32.mrf.mxu0
    %v1277 = vadd.f32 0.0, %v1276
    %1278 = vmatmul.f32.gmra.mxu0 %v1005
    %v1279 = vpop.f32.mrf.mxu0
    %v1280 = vadd.f32 0.0, %v1279
    %1281 = vmatmul.f32.gmra.mxu0 %v1008
    %v1282 = vpop.f32.mrf.mxu0
    %v1283 = vadd.f32 0.0, %v1282
    %1284 = vmatmul.f32.gmra.mxu0 %v1011
    %v1285 = vpop.f32.mrf.mxu0
    %v1286 = vadd.f32 0.0, %v1285
    %1287 = vmatmul.f32.gmra.mxu0 %v1014
    %v1288 = vpop.f32.mrf.mxu0
    %v1289 = vadd.f32 0.0, %v1288
    %1290 = vmatmul.f32.gmra.mxu0 %v1017
    %v1291 = vpop.f32.mrf.mxu0
    %v1292 = vadd.f32 0.0, %v1291
    %1293 = vmatmul.f32.gmra.mxu0 %v1020
    %v1294 = vpop.f32.mrf.mxu0
    %v1295 = vadd.f32 0.0, %v1294
    %1296 = vmatmul.f32.gmra.mxu0 %v1023
    %v1297 = vpop.f32.mrf.mxu0
    %v1298 = vadd.f32 0.0, %v1297
    %1299 = vmatmul.f32.gmra.mxu0 %v1026
    %v1300 = vpop.f32.mrf.mxu0
    %v1301 = vadd.f32 0.0, %v1300
    %1302 = vmatmul.f32.gmra.mxu0 %v1029
    %v1303 = vpop.f32.mrf.mxu0
    %v1304 = vadd.f32 0.0, %v1303
    %1305 = vmatmul.f32.gmra.mxu0 %v1032
    %v1306 = vpop.f32.mrf.mxu0
    %v1307 = vadd.f32 0.0, %v1306
    %1308 = vmatmul.f32.gmra.mxu0 %v1035
    %v1309 = vpop.f32.mrf.mxu0
    %v1310 = vadd.f32 0.0, %v1309
    %1311 = vmatmul.f32.gmra.mxu0 %v1038
    %v1312 = vpop.f32.mrf.mxu0
    %v1313 = vadd.f32 0.0, %v1312
    %1314 = vmatmul.f32.gmra.mxu0 %v1041
    %v1315 = vpop.f32.mrf.mxu0
    %v1316 = vadd.f32 0.0, %v1315
    %1317 = vmatmul.f32.gmra.mxu0 %v1044
    %v1318 = vpop.f32.mrf.mxu0
    %v1319 = vadd.f32 0.0, %v1318
    %1320 = vmatmul.f32.gmra.mxu0 %v1047
    %v1321 = vpop.f32.mrf.mxu0
    %v1322 = vadd.f32 0.0, %v1321
    %1323 = vmatmul.f32.gmra.mxu0 %v1050
    %v1324 = vpop.f32.mrf.mxu0
    %v1325 = vadd.f32 0.0, %v1324
    %1326 = vmatmul.f32.gmra.mxu0 %v1053
    %v1327 = vpop.f32.mrf.mxu0
    %v1328 = vadd.f32 0.0, %v1327
    %1329 = vmatmul.f32.gmra.mxu0 %v1056
    %v1330 = vpop.f32.mrf.mxu0
    %v1331 = vadd.f32 0.0, %v1330
    %1332 = vmatmul.f32.gmra.mxu0 %v1059
    %v1333 = vpop.f32.mrf.mxu0
    %v1334 = vadd.f32 0.0, %v1333
    %1335 = vmatmul.f32.gmra.mxu0 %v1062
    %v1336 = vpop.f32.mrf.mxu0
    %v1337 = vadd.f32 0.0, %v1336
    %1338 = vmatmul.f32.gmra.mxu0 %v1065
    %v1339 = vpop.f32.mrf.mxu0
    %v1340 = vadd.f32 0.0, %v1339
    %1341 = vmatmul.f32.gmra.mxu0 %v1068
    %v1342 = vpop.f32.mrf.mxu0
    %v1343 = vadd.f32 0.0, %v1342
    %1344 = vmatmul.f32.gmra.mxu0 %v1071
    %v1345 = vpop.f32.mrf.mxu0
    %v1346 = vadd.f32 0.0, %v1345
    %1347 = vmatmul.f32.gmra.mxu0 %v1074
    %v1348 = vpop.f32.mrf.mxu0
    %v1349 = vadd.f32 0.0, %v1348
    %1350 = vmatmul.f32.gmra.mxu0 %v1077
    %v1351 = vpop.f32.mrf.mxu0
    %v1352 = vadd.f32 0.0, %v1351
    %1353 = vmatmul.f32.gmra.mxu0 %v1080
    %v1354 = vpop.f32.mrf.mxu0
    %v1355 = vadd.f32 0.0, %v1354
    %1356 = vmatmul.f32.gmra.mxu0 %v1083
    %v1357 = vpop.f32.mrf.mxu0
    %v1358 = vadd.f32 0.0, %v1357
    %1359 = vmatmul.f32.gmra.mxu0 %v1086
    %v1360 = vpop.f32.mrf.mxu0
    %v1361 = vadd.f32 0.0, %v1360
    %1362 = vmatmul.f32.gmra.mxu0 %v1089
    %v1363 = vpop.f32.mrf.mxu0
    %v1364 = vadd.f32 0.0, %v1363
    %1365 = vmatmul.f32.gmra.mxu0 %v1092
    %v1366 = vpop.f32.mrf.mxu0
    %v1367 = vadd.f32 0.0, %v1366
    %1368 = vmatmul.f32.gmra.mxu0 %v1095
    %v1369 = vpop.f32.mrf.mxu0
    %v1370 = vadd.f32 0.0, %v1369
    %1371 = vmatmul.f32.gmra.mxu0 %v1098
    %v1372 = vpop.f32.mrf.mxu0
    %v1373 = vadd.f32 0.0, %v1372
    %1374 = vmatmul.f32.gmra.mxu0 %v1101
    %v1375 = vpop.f32.mrf.mxu0
    %v1376 = vadd.f32 0.0, %v1375
    %1377 = vmatmul.f32.gmra.mxu0 %v1104
    %v1378 = vpop.f32.mrf.mxu0
    %v1379 = vadd.f32 0.0, %v1378
    %1380 = vmatmul.f32.gmra.mxu0 %v1107
    %v1381 = vpop.f32.mrf.mxu0
    %v1382 = vadd.f32 0.0, %v1381
    %1383 = vmatmul.f32.gmra.mxu0 %v1110
    %v1384 = vpop.f32.mrf.mxu0
    %v1385 = vadd.f32 0.0, %v1384
    %1386 = vmatmul.f32.gmra.mxu0 %v1113
    %v1387 = vpop.f32.mrf.mxu0
    %v1388 = vadd.f32 0.0, %v1387
    %1389 = vmatmul.f32.gmra.mxu0 %v1116
    %v1390 = vpop.f32.mrf.mxu0
    %v1391 = vadd.f32 0.0, %v1390
    %1392 = vmatmul.f32.gmra.mxu0 %v1119
    %v1393 = vpop.f32.mrf.mxu0
    %v1394 = vadd.f32 0.0, %v1393
    %1395 = vmatmul.f32.gmra.mxu0 %v1122
    %v1396 = vpop.f32.mrf.mxu0
    %v1397 = vadd.f32 0.0, %v1396
    %1398 = vmatmul.f32.gmra.mxu0 %v1125
    %v1399 = vpop.f32.mrf.mxu0
    %v1400 = vadd.f32 0.0, %v1399
    %1401 = vmatmul.f32.gmra.mxu0 %v1128
    %v1402 = vpop.f32.mrf.mxu0
    %v1403 = vadd.f32 0.0, %v1402
    %1404 = vmatmul.f32.gmra.mxu0 %v1131
    %v1405 = vpop.f32.mrf.mxu0
    %v1406 = vadd.f32 0.0, %v1405
    %1407 = vmatmul.f32.gmra.mxu0 %v1134
    %v1408 = vpop.f32.mrf.mxu0
    %v1409 = vadd.f32 0.0, %v1408
    %1410 = vdwg.mxu0
    %v1411 = vadd.f32 %v582, %v1157
    %v1412 = vadd.f32 %v584, %v1160
    %v1413 = vadd.f32 %v587, %v1163
    %v1414 = vadd.f32 %v589, %v1166
    %v1415 = vadd.f32 %v592, %v1169
    %v1416 = vadd.f32 %v594, %v1172
    %v1417 = vadd.f32 %v597, %v1175
    %v1418 = vadd.f32 %v599, %v1178
    %v1419 = vadd.f32 %v602, %v1181
    %v1420 = vadd.f32 %v604, %v1184
    %v1421 = vadd.f32 %v607, %v1187
    %v1422 = vadd.f32 %v609, %v1190
    %v1423 = vadd.f32 %v612, %v1193
    %v1424 = vadd.f32 %v614, %v1196
    %v1425 = vadd.f32 %v617, %v1199
    %v1426 = vadd.f32 %v619, %v1202
    %v1427 = vadd.f32 %v622, %v1205
    %v1428 = vadd.f32 %v624, %v1208
    %v1429 = vadd.f32 %v627, %v1211
    %v1430 = vadd.f32 %v629, %v1214
    %v1431 = vadd.f32 %v632, %v1217
    %v1432 = vadd.f32 %v634, %v1220
    %v1433 = vadd.f32 %v637, %v1223
    %v1434 = vadd.f32 %v639, %v1226
    %v1435 = vadd.f32 %v642, %v1229
    %v1436 = vadd.f32 %v644, %v1232
    %v1437 = vadd.f32 %v647, %v1235
    %v1438 = vadd.f32 %v649, %v1238
    %v1439 = vadd.f32 %v652, %v1241
    %v1440 = vadd.f32 %v654, %v1244
    %v1441 = vadd.f32 %v657, %v1247
    %v1442 = vadd.f32 %v659, %v1250
    %v1443 = vadd.f32 %v662, %v1253
    %v1444 = vadd.f32 %v664, %v1256
    %v1445 = vadd.f32 %v667, %v1259
    %v1446 = vadd.f32 %v669, %v1262
    %v1447 = vadd.f32 %v672, %v1265
    %v1448 = vadd.f32 %v674, %v1268
    %v1449 = vadd.f32 %v677, %v1271
    %v1450 = vadd.f32 %v679, %v1274
    %v1451 = vadd.f32 %v682, %v1277
    %v1452 = vadd.f32 %v684, %v1280
    %v1453 = vadd.f32 %v687, %v1283
    %v1454 = vadd.f32 %v689, %v1286
    %v1455 = vadd.f32 %v692, %v1289
    %v1456 = vadd.f32 %v694, %v1292
    %v1457 = vadd.f32 %v697, %v1295
    %v1458 = vadd.f32 %v699, %v1298
    %v1459 = vadd.f32 %v702, %v1301
    %v1460 = vadd.f32 %v704, %v1304
    %v1461 = vadd.f32 %v707, %v1307
    %v1462 = vadd.f32 %v709, %v1310
    %v1463 = vadd.f32 %v712, %v1313
    %v1464 = vadd.f32 %v714, %v1316
    %v1465 = vadd.f32 %v717, %v1319
    %v1466 = vadd.f32 %v719, %v1322
    %v1467 = vadd.f32 %v722, %v1325
    %v1468 = vadd.f32 %v724, %v1328
    %v1469 = vadd.f32 %v727, %v1331
    %v1470 = vadd.f32 %v729, %v1334
    %v1471 = vadd.f32 %v732, %v1337
    %v1472 = vadd.f32 %v734, %v1340
    %v1473 = vadd.f32 %v737, %v1343
    %v1474 = vadd.f32 %v739, %v1346
    %v1475 = vadd.f32 %v742, %v1349
    %v1476 = vadd.f32 %v744, %v1352
    %v1477 = vadd.f32 %v747, %v1355
    %v1478 = vadd.f32 %v749, %v1358
    %v1479 = vadd.f32 %v752, %v1361
    %v1480 = vadd.f32 %v754, %v1364
    %v1481 = vadd.f32 %v757, %v1367
    %v1482 = vadd.f32 %v759, %v1370
    %v1483 = vadd.f32 %v762, %v1373
    %v1484 = vadd.f32 %v764, %v1376
    %v1485 = vadd.f32 %v767, %v1379
    %v1486 = vadd.f32 %v769, %v1382
    %v1487 = vadd.f32 %v772, %v1385
    %v1488 = vadd.f32 %v774, %v1388
    %v1489 = vadd.f32 %v777, %v1391
    %v1490 = vadd.f32 %v779, %v1394
    %v1491 = vadd.f32 %v782, %v1397
    %v1492 = vadd.f32 %v784, %v1400
    %v1493 = vadd.f32 %v787, %v1403
    %v1494 = vadd.f32 %v789, %v1406
    %v1495 = vadd.f32 %v792, %v1409
    %1496 = vst [vmem:[%s15] sm:$0xff] %v1411
    %1497 = vst [vmem:[%s15 + $0x8] sm:$0xff] %v1412
    %1498 = vst [vmem:[%s15 + $0x10] sm:$0xff] %v1413
    %1499 = vst [vmem:[%s15 + $0x18] sm:$0xff] %v1414
    %1500 = vst [vmem:[%s15 + $0x20] sm:$0xff] %v1415
    %1501 = vst [vmem:[%s15 + $0x28] sm:$0xff] %v1416
    %1502 = vst [vmem:[%s15 + $0x30] sm:$0xff] %v1417
    %1503 = vst [vmem:[%s15 + $0x38] sm:$0xff] %v1418
    %1504 = vst [vmem:[%s15 + $0x40] sm:$0xff] %v1419
    %1505 = vst [vmem:[%s15 + $0x48] sm:$0xff] %v1420
    %1506 = vst [vmem:[%s15 + $0x50] sm:$0xff] %v1421
    %1507 = vst [vmem:[%s15 + $0x58] sm:$0xff] %v1422
    %1508 = vst [vmem:[%s15 + $0x60] sm:$0xff] %v1423
    %1509 = vst [vmem:[%s15 + $0x68] sm:$0xff] %v1424
    %1510 = vst [vmem:[%s15 + $0x70] sm:$0xff] %v1425
    %1511 = vst [vmem:[%s15 + $0x78] sm:$0xff] %v1426
    %1512 = vst [vmem:[%s15 + $0x80] sm:$0xff] %v1427
    %1513 = vst [vmem:[%s15 + $0x88] sm:$0xff] %v1428
    %1514 = vst [vmem:[%s15 + $0x90] sm:$0xff] %v1429
    %1515 = vst [vmem:[%s15 + $0x98] sm:$0xff] %v1430
    %1516 = vst [vmem:[%s15 + $0xa0] sm:$0xff] %v1431
    %1517 = vst [vmem:[%s15 + $0xa8] sm:$0xff] %v1432
    %1518 = vst [vmem:[%s15 + $0xb0] sm:$0xff] %v1433
    %1519 = vst [vmem:[%s15 + $0xb8] sm:$0xff] %v1434
    %1520 = vst [vmem:[%s15 + $0xc0] sm:$0xff] %v1435
    %1521 = vst [vmem:[%s15 + $0xc8] sm:$0xff] %v1436
    %1522 = vst [vmem:[%s15 + $0xd0] sm:$0xff] %v1437
    %1523 = vst [vmem:[%s15 + $0xd8] sm:$0xff] %v1438
    %1524 = vst [vmem:[%s15 + $0xe0] sm:$0xff] %v1439
    %1525 = vst [vmem:[%s15 + $0xe8] sm:$0xff] %v1440
    %1526 = vst [vmem:[%s15 + $0xf0] sm:$0xff] %v1441
    %1527 = vst [vmem:[%s15 + $0xf8] sm:$0xff] %v1442
    %1528 = vst [vmem:[%s15 + $0x100] sm:$0xff] %v1443
    %1529 = vst [vmem:[%s15 + $0x108] sm:$0xff] %v1444
    %1530 = vst [vmem:[%s15 + $0x110] sm:$0xff] %v1445
    %1531 = vst [vmem:[%s15 + $0x118] sm:$0xff] %v1446
    %1532 = vst [vmem:[%s15 + $0x120] sm:$0xff] %v1447
    %1533 = vst [vmem:[%s15 + $0x128] sm:$0xff] %v1448
    %1534 = vst [vmem:[%s15 + $0x130] sm:$0xff] %v1449
    %1535 = vst [vmem:[%s15 + $0x138] sm:$0xff] %v1450
    %1536 = vst [vmem:[%s15 + $0x140] sm:$0xff] %v1451
    %1537 = vst [vmem:[%s15 + $0x148] sm:$0xff] %v1452
    %1538 = vst [vmem:[%s15 + $0x150] sm:$0xff] %v1453
    %1539 = vst [vmem:[%s15 + $0x158] sm:$0xff] %v1454
    %1540 = vst [vmem:[%s15 + $0x160] sm:$0xff] %v1455
    %1541 = vst [vmem:[%s15 + $0x168] sm:$0xff] %v1456
    %1542 = vst [vmem:[%s15 + $0x170] sm:$0xff] %v1457
    %1543 = vst [vmem:[%s15 + $0x178] sm:$0xff] %v1458
    %1544 = vst [vmem:[%s15 + $0x180] sm:$0xff] %v1459
    %1545 = vst [vmem:[%s15 + $0x188] sm:$0xff] %v1460
    %1546 = vst [vmem:[%s15 + $0x190] sm:$0xff] %v1461
    %1547 = vst [vmem:[%s15 + $0x198] sm:$0xff] %v1462
    %1548 = vst [vmem:[%s15 + $0x1a0] sm:$0xff] %v1463
    %1549 = vst [vmem:[%s15 + $0x1a8] sm:$0xff] %v1464
    %1550 = vst [vmem:[%s15 + $0x1b0] sm:$0xff] %v1465
    %1551 = vst [vmem:[%s15 + $0x1b8] sm:$0xff] %v1466
    %1552 = vst [vmem:[%s15 + $0x1c0] sm:$0xff] %v1467
    %1553 = vst [vmem:[%s15 + $0x1c8] sm:$0xff] %v1468
    %1554 = vst [vmem:[%s15 + $0x1d0] sm:$0xff] %v1469
    %1555 = vst [vmem:[%s15 + $0x1d8] sm:$0xff] %v1470
    %1556 = vst [vmem:[%s15 + $0x1e0] sm:$0xff] %v1471
    %1557 = vst [vmem:[%s15 + $0x1e8] sm:$0xff] %v1472
    %1558 = vst [vmem:[%s15 + $0x1f0] sm:$0xff] %v1473
    %1559 = vst [vmem:[%s15 + $0x1f8] sm:$0xff] %v1474
    %1560 = vst [vmem:[%s15 + $0x200] sm:$0xff] %v1475
    %1561 = vst [vmem:[%s15 + $0x208] sm:$0xff] %v1476
    %1562 = vst [vmem:[%s15 + $0x210] sm:$0xff] %v1477
    %1563 = vst [vmem:[%s15 + $0x218] sm:$0xff] %v1478
    %1564 = vst [vmem:[%s15 + $0x220] sm:$0xff] %v1479
    %1565 = vst [vmem:[%s15 + $0x228] sm:$0xff] %v1480
    %1566 = vst [vmem:[%s15 + $0x230] sm:$0xff] %v1481
    %1567 = vst [vmem:[%s15 + $0x238] sm:$0xff] %v1482
    %1568 = vst [vmem:[%s15 + $0x240] sm:$0xff] %v1483
    %1569 = vst [vmem:[%s15 + $0x248] sm:$0xff] %v1484
    %1570 = vst [vmem:[%s15 + $0x250] sm:$0xff] %v1485
    %1571 = vst [vmem:[%s15 + $0x258] sm:$0xff] %v1486
    %1572 = vst [vmem:[%s15 + $0x260] sm:$0xff] %v1487
    %1573 = vst [vmem:[%s15 + $0x268] sm:$0xff] %v1488
    %1574 = vst [vmem:[%s15 + $0x270] sm:$0xff] %v1489
    %1575 = vst [vmem:[%s15 + $0x278] sm:$0xff] %v1490
    %1576 = vst [vmem:[%s15 + $0x280] sm:$0xff] %v1491
    %1577 = vst [vmem:[%s15 + $0x288] sm:$0xff] %v1492
    %1578 = vst [vmem:[%s15 + $0x290] sm:$0xff] %v1493
    %1579 = vst [vmem:[%s15 + $0x298] sm:$0xff] %v1494
    %1580 = vst [vmem:[%s15 + $0x2a0] sm:$0xff] %v1495
    // Predicated region
    $region78: #{ecodepth_dar_a_forward.3} parent=1 // pred_check
      _
    $region79: #{ecodepth_dar_a_forward.3} parent=1 // pred_check_branch
      %1582 = sbr.rel (0) target = $region81
    $region80: #{ecodepth_dar_a_forward.3} parent=1 // pred_region
      _
    $region81: #{ecodepth_dar_a_forward.3} parent=1 // pred_fallthru
      _
    // Predicated region
    $region82: #{ecodepth_dar_a_forward.3} parent=1 // pred_check
      _
    $region83: #{ecodepth_dar_a_forward.3} parent=1 // pred_check_branch
      %1584 = sbr.rel (0) target = $region85
    $region84: #{ecodepth_dar_a_forward.3} parent=1 // pred_region
      _
    $region85: #{ecodepth_dar_a_forward.3} parent=1 // pred_fallthru
      _
    %1585 = vsyncpa [#allocation3], 1
    %1586 = vsyncpa [#allocation5], 1
    %1587 = vsyncpa [#allocation8], 1

// kernel: ecodepth_dar_a_forward.4
$region0: #{ecodepth_dar_a_forward.4}
  #allocation0 [shape = 'u32[]', space=smem, size = 0x4, offset = 0x4, fixed_abs, tag = 'smem constant byte address 0x4 - core index']
  #allocation1 [shape = 'u32[72,128]{1,0:T(1,128)}', space=vmem, size = 0x9000, scoped, tag = 'internal scratch']
  %s0 = inlined_call_operand.smem [shape: u32[31], index: -1, kind: input, shape index: {}]
  %s1 = sld [smem:[%s0]]
  %s2 = scalar_lea.smem %s0, 1
  %s3 = sld [smem:[%s2]]
  %s4 = scalar_lea.smem %s0, 2
  %s5 = sld [smem:[%s4]]
  %s6 = scalar_lea.smem %s0, 3
  %s7 = sld [smem:[%s6]]
  %s8 = scalar_lea.smem %s0, 4
  %s9 = sld [smem:[%s8]]
  %s10 = scalar_lea.smem %s0, 5
  %s11 = sld [smem:[%s10]]
  %s12 = scalar_lea.smem %s0, 6
  %s13 = sld [smem:[%s12]]
  %s14 = scalar_lea.smem %s0, 7
  %s15 = sld [smem:[%s14]]
  %s16 = scalar_lea.smem %s0, 8
  %s17 = sld [smem:[%s16]]
  %s18 = scalar_lea.smem %s0, 9
  %s19 = sld [smem:[%s18]]
  %s20 = scalar_lea.smem %s0, 10
  %s21 = sld [smem:[%s20]]
  %s22 = scalar_lea.smem %s0, 11
  %s23 = sld [smem:[%s22]]
  %s24 = scalar_lea.smem %s0, 12
  %s25 = sld [smem:[%s24]]
  %s26 = scalar_lea.smem %s0, 13
  %s27 = sld [smem:[%s26]]
  %s28 = scalar_lea.smem %s0, 14
  %s29 = sld [smem:[%s28]]
  %s30 = scalar_lea.smem %s0, 15
  %s31 = sld [smem:[%s30]]
  %s32 = scalar_lea.smem %s0, 16
  %s33 = sld [smem:[%s32]]
  %s34 = scalar_lea.smem %s0, 17
  %s35 = sld [smem:[%s34]]
  %s36 = scalar_lea.smem %s0, 18
  %s37 = sld [smem:[%s36]]
  %s38 = scalar_lea.smem %s0, 19
  %s39 = sld [smem:[%s38]]
  %s40 = scalar_lea.smem %s0, 20
  %s41 = sld [smem:[%s40]]
  %s42 = scalar_lea.smem %s0, 21
  %s43 = sld [smem:[%s42]]
  %s44 = scalar_lea.smem %s0, 22
  %s45 = sld [smem:[%s44]]
  %s46 = scalar_lea.smem %s0, 23
  %s47 = sld [smem:[%s46]]
  %s48 = scalar_lea.smem %s0, 24
  %s49 = sld [smem:[%s48]]
  %s50 = scalar_lea.smem %s0, 25
  %s51 = sld [smem:[%s50]]
  %s52 = scalar_lea.smem %s0, 26
  %s53 = sld [smem:[%s52]]
  %s54 = scalar_lea.smem %s0, 27
  %s55 = sld [smem:[%s54]]
  %s56 = scalar_lea.smem %s0, 28
  %s57 = sld [smem:[%s56]]
  %s58 = scalar_lea.smem %s0, 29
  %s59 = sld [smem:[%s58]]
  %s60 = scalar_lea.smem %s0, 30
  %s61 = sld [smem:[%s60]]
  %s62 = sld [smem:[#allocation0]]
  $region170: #{ecodepth_dar_a_forward.4} parent=0
    _
  %s64 = ssub.s32 1, %s62
  %s65 = scalar_select 0, %s64, %s62
  $region1: #{ecodepth_dar_a_forward.4} parent=0
    #allocation2 [shape = 'u8[512]{0}', space=vmem, size = 0x400, scoped, tag = 'input window, operand 8, single buffered']
    #allocation3 [shape = 's32[1]{0}', space=sflag, size = 0x4, scoped, tag = 'scoped memory for ecodepth_dar_a_forward.4']
    #allocation4 [shape = 's32[1]{0}', space=sflag, size = 0x4, scoped, tag = 'scoped memory for ecodepth_dar_a_forward.4']
    #allocation5 [shape = 'u8[512]{0}', space=vmem, size = 0x400, scoped, tag = 'input window, operand 9, single buffered']
    #allocation6 [shape = 's32[1]{0}', space=sflag, size = 0x4, scoped, tag = 'scoped memory for ecodepth_dar_a_forward.4']
    #allocation7 [shape = 'u8[512]{0}', space=vmem, size = 0x400, scoped, tag = 'input window, operand 10, single buffered']
    #allocation8 [shape = 'u8[512]{0}', space=vmem, size = 0x400, scoped, tag = 'input window, operand 12, single buffered']
    #allocation9 [shape = 's32[1]{0}', space=sflag, size = 0x4, scoped, tag = 'scoped memory for ecodepth_dar_a_forward.4']
    #allocation10 [shape = 'u8[512]{0}', space=vmem, size = 0x400, scoped, tag = 'input window, operand 14, single buffered']
    #allocation11 [shape = 'u8[512]{0}', space=vmem, size = 0x400, scoped, tag = 'input window, operand 19, single buffered']
    #allocation12 [shape = 's32[1]{0}', space=sflag, size = 0x4, scoped, tag = 'scoped memory for ecodepth_dar_a_forward.4']
    #allocation13 [shape = 'u8[512]{0}', space=vmem, size = 0x400, scoped, tag = 'input window, operand 20, single buffered']
    #allocation14 [shape = 'u8[512]{0}', space=vmem, size = 0x400, scoped, tag = 'input window, operand 21, single buffered']
    #allocation15 [shape = 's32[1]{0}', space=sflag, size = 0x4, scoped, tag = 'scoped memory for ecodepth_dar_a_forward.4']
    #allocation16 [shape = 'u8[1024]{0}', space=vmem, size = 0x400, scoped, tag = 'input window, operand 22, single buffered']
    #allocation17 [shape = 'u8[1024]{0}', space=vmem, size = 0x400, scoped, tag = 'input window, operand 24, single buffered']
    #allocation18 [shape = 's32[1]{0}', space=sflag, size = 0x4, scoped, tag = 'scoped memory for ecodepth_dar_a_forward.4']
    #allocation19 [shape = 'u8[16384]{0}', space=vmem, size = 0x4000, scoped, tag = 'output window, operand 0, single buffered']
    %66 = vsyncpa [#allocation3], 0
    %67 = vsyncpa [#allocation6], 0
    %68 = vsyncpa [#allocation9], 0
    %69 = vsyncpa [#allocation12], 0
    %70 = vsyncpa [#allocation15], 0
    %71 = vsyncpa [#allocation18], 0
    %72 = vsyncpa [#allocation4], 0
    // Predicated region
    $region2: #{ecodepth_dar_a_forward.4} parent=1 // pred_check
      _
    $region3: #{ecodepth_dar_a_forward.4} parent=1 // pred_check_branch
      %74 = sbr.rel (0) target = $region5
    $region4: #{ecodepth_dar_a_forward.4} parent=1 // pred_region
      _
    $region5: #{ecodepth_dar_a_forward.4} parent=1 // pred_fallthru
      _
    // Predicated region
    $region6: #{ecodepth_dar_a_forward.4} parent=1 // pred_check
      _
    $region7: #{ecodepth_dar_a_forward.4} parent=1 // pred_check_branch
      %76 = sbr.rel (0) target = $region9
    $region8: #{ecodepth_dar_a_forward.4} parent=1 // pred_region
      _
    $region9: #{ecodepth_dar_a_forward.4} parent=1 // pred_fallthru
      _
    // Predicated region
    $region10: #{ecodepth_dar_a_forward.4} parent=1 // pred_check
      _
    $region11: #{ecodepth_dar_a_forward.4} parent=1 // pred_check_branch
      %78 = sbr.rel (0) target = $region13
    $region12: #{ecodepth_dar_a_forward.4} parent=1 // pred_region
      _
    $region13: #{ecodepth_dar_a_forward.4} parent=1 // pred_fallthru
      _
    // Predicated region
    $region14: #{ecodepth_dar_a_forward.4} parent=1 // pred_check
      _
    $region15: #{ecodepth_dar_a_forward.4} parent=1 // pred_check_branch
      %80 = sbr.rel (0) target = $region17
    $region16: #{ecodepth_dar_a_forward.4} parent=1 // pred_region
      _
    $region17: #{ecodepth_dar_a_forward.4} parent=1 // pred_fallthru
      _
    // Predicated region
    $region18: #{ecodepth_dar_a_forward.4} parent=1 // pred_check
      _
    $region19: #{ecodepth_dar_a_forward.4} parent=1 // pred_check_branch
      %82 = sbr.rel (0) target = $region21
    $region20: #{ecodepth_dar_a_forward.4} parent=1 // pred_region
      _
    $region21: #{ecodepth_dar_a_forward.4} parent=1 // pred_fallthru
      _
    // Predicated region
    $region22: #{ecodepth_dar_a_forward.4} parent=1 // pred_check
      _
    $region23: #{ecodepth_dar_a_forward.4} parent=1 // pred_check_branch
      %84 = sbr.rel (0) target = $region25
    $region24: #{ecodepth_dar_a_forward.4} parent=1 // pred_region
      _
    $region25: #{ecodepth_dar_a_forward.4} parent=1 // pred_fallthru
      _
    // Predicated region
    $region26: #{ecodepth_dar_a_forward.4} parent=1 // pred_check
      _
    $region27: #{ecodepth_dar_a_forward.4} parent=1 // pred_check_branch
      %86 = sbr.rel (0) target = $region29
    $region28: #{ecodepth_dar_a_forward.4} parent=1 // pred_region
      _
    $region29: #{ecodepth_dar_a_forward.4} parent=1 // pred_fallthru
      _
    // Predicated region
    $region30: #{ecodepth_dar_a_forward.4} parent=1 // pred_check
      _
    $region31: #{ecodepth_dar_a_forward.4} parent=1 // pred_check_branch
      %88 = sbr.rel (0) target = $region33
    $region32: #{ecodepth_dar_a_forward.4} parent=1 // pred_region
      _
    $region33: #{ecodepth_dar_a_forward.4} parent=1 // pred_fallthru
      _
    // Predicated region
    $region34: #{ecodepth_dar_a_forward.4} parent=1 // pred_check
      _
    $region35: #{ecodepth_dar_a_forward.4} parent=1 // pred_check_branch
      %90 = sbr.rel (0) target = $region37
    $region36: #{ecodepth_dar_a_forward.4} parent=1 // pred_region
      %92 = vsyncadd [#allocation3], 0
      %s94 = sshll.u32 %s17, 4
      %s95 = int_to_ptr.hbm [resolvable:$true] %s94
      %s96 = sshll.u32 [#allocation2], 4
      %s97 = int_to_ptr.vmem [resolvable:$true] %s96
      %99 = dma.hbm_to_vmem [thread:$0]  %s95, 16, %s97, [#allocation3]
    $region37: #{ecodepth_dar_a_forward.4} parent=1 // pred_fallthru
      _
    // Predicated region
    $region38: #{ecodepth_dar_a_forward.4} parent=1 // pred_check
      _
    $region39: #{ecodepth_dar_a_forward.4} parent=1 // pred_check_branch
      %101 = sbr.rel (0) target = $region41
    $region40: #{ecodepth_dar_a_forward.4} parent=1 // pred_region
      %103 = vsyncadd [#allocation6], 0
      %s105 = sshll.u32 %s19, 4
      %s106 = int_to_ptr.hbm [resolvable:$true] %s105
      %s107 = sshll.u32 [#allocation5], 4
      %s108 = int_to_ptr.vmem [resolvable:$true] %s107
      %110 = dma.hbm_to_vmem [thread:$0]  %s106, 16, %s108, [#allocation6]
    $region41: #{ecodepth_dar_a_forward.4} parent=1 // pred_fallthru
      _
    // Predicated region
    $region42: #{ecodepth_dar_a_forward.4} parent=1 // pred_check
      _
    $region43: #{ecodepth_dar_a_forward.4} parent=1 // pred_check_branch
      %112 = sbr.rel (0) target = $region45
    $region44: #{ecodepth_dar_a_forward.4} parent=1 // pred_region
      %114 = vsyncadd [#allocation6], 0
      %s116 = sshll.u32 %s21, 4
      %s117 = int_to_ptr.hbm [resolvable:$true] %s116
      %s118 = sshll.u32 [#allocation7], 4
      %s119 = int_to_ptr.vmem [resolvable:$true] %s118
      %121 = dma.hbm_to_vmem [thread:$0]  %s117, 16, %s119, [#allocation6]
    $region45: #{ecodepth_dar_a_forward.4} parent=1 // pred_fallthru
      _
    // Predicated region
    $region46: #{ecodepth_dar_a_forward.4} parent=1 // pred_check
      _
    $region47: #{ecodepth_dar_a_forward.4} parent=1 // pred_check_branch
      %123 = sbr.rel (0) target = $region49
    $region48: #{ecodepth_dar_a_forward.4} parent=1 // pred_region
      _
    $region49: #{ecodepth_dar_a_forward.4} parent=1 // pred_fallthru
      _
    // Predicated region
    $region50: #{ecodepth_dar_a_forward.4} parent=1 // pred_check
      _
    $region51: #{ecodepth_dar_a_forward.4} parent=1 // pred_check_branch
      %125 = sbr.rel (0) target = $region53
    $region52: #{ecodepth_dar_a_forward.4} parent=1 // pred_region
      %127 = vsyncadd [#allocation9], 0
      %s129 = sshll.u32 %s25, 4
      %s130 = int_to_ptr.hbm [resolvable:$true] %s129
      %s131 = sshll.u32 [#allocation8], 4
      %s132 = int_to_ptr.vmem [resolvable:$true] %s131
      %134 = dma.hbm_to_vmem [thread:$0]  %s130, 16, %s132, [#allocation9]
    $region53: #{ecodepth_dar_a_forward.4} parent=1 // pred_fallthru
      _
    // Predicated region
    $region54: #{ecodepth_dar_a_forward.4} parent=1 // pred_check
      _
    $region55: #{ecodepth_dar_a_forward.4} parent=1 // pred_check_branch
      %136 = sbr.rel (0) target = $region57
    $region56: #{ecodepth_dar_a_forward.4} parent=1 // pred_region
      _
    $region57: #{ecodepth_dar_a_forward.4} parent=1 // pred_fallthru
      _
    // Predicated region
    $region58: #{ecodepth_dar_a_forward.4} parent=1 // pred_check
      _
    $region59: #{ecodepth_dar_a_forward.4} parent=1 // pred_check_branch
      %138 = sbr.rel (0) target = $region61
    $region60: #{ecodepth_dar_a_forward.4} parent=1 // pred_region
      %140 = vsyncadd [#allocation9], 0
      %s142 = sshll.u32 %s29, 4
      %s143 = int_to_ptr.hbm [resolvable:$true] %s142
      %s144 = sshll.u32 [#allocation10], 4
      %s145 = int_to_ptr.vmem [resolvable:$true] %s144
      %147 = dma.hbm_to_vmem [thread:$0]  %s143, 16, %s145, [#allocation9]
    $region61: #{ecodepth_dar_a_forward.4} parent=1 // pred_fallthru
      _
    // Predicated region
    $region62: #{ecodepth_dar_a_forward.4} parent=1 // pred_check
      _
    $region63: #{ecodepth_dar_a_forward.4} parent=1 // pred_check_branch
      %149 = sbr.rel (0) target = $region65
    $region64: #{ecodepth_dar_a_forward.4} parent=1 // pred_region
      _
    $region65: #{ecodepth_dar_a_forward.4} parent=1 // pred_fallthru
      _
    // Predicated region
    $region66: #{ecodepth_dar_a_forward.4} parent=1 // pred_check
      _
    $region67: #{ecodepth_dar_a_forward.4} parent=1 // pred_check_branch
      %151 = sbr.rel (0) target = $region69
    $region68: #{ecodepth_dar_a_forward.4} parent=1 // pred_region
      _
    $region69: #{ecodepth_dar_a_forward.4} parent=1 // pred_fallthru
      _
    // Predicated region
    $region70: #{ecodepth_dar_a_forward.4} parent=1 // pred_check
      _
    $region71: #{ecodepth_dar_a_forward.4} parent=1 // pred_check_branch
      %153 = sbr.rel (0) target = $region73
    $region72: #{ecodepth_dar_a_forward.4} parent=1 // pred_region
      _
    $region73: #{ecodepth_dar_a_forward.4} parent=1 // pred_fallthru
      _
    // Predicated region
    $region74: #{ecodepth_dar_a_forward.4} parent=1 // pred_check
      _
    $region75: #{ecodepth_dar_a_forward.4} parent=1 // pred_check_branch
      %155 = sbr.rel (0) target = $region77
    $region76: #{ecodepth_dar_a_forward.4} parent=1 // pred_region
      _
    $region77: #{ecodepth_dar_a_forward.4} parent=1 // pred_fallthru
      _
    // Predicated region
    $region78: #{ecodepth_dar_a_forward.4} parent=1 // pred_check
      _
    $region79: #{ecodepth_dar_a_forward.4} parent=1 // pred_check_branch
      %157 = sbr.rel (0) target = $region81
    $region80: #{ecodepth_dar_a_forward.4} parent=1 // pred_region
      %159 = vsyncadd [#allocation12], 0
      %s161 = sshll.u32 %s39, 4
      %s162 = int_to_ptr.hbm [resolvable:$true] %s161
      %s163 = sshll.u32 [#allocation11], 4
      %s164 = int_to_ptr.vmem [resolvable:$true] %s163
      %166 = dma.hbm_to_vmem [thread:$0]  %s162, 16, %s164, [#allocation12]
    $region81: #{ecodepth_dar_a_forward.4} parent=1 // pred_fallthru
      _
    // Predicated region
    $region82: #{ecodepth_dar_a_forward.4} parent=1 // pred_check
      _
    $region83: #{ecodepth_dar_a_forward.4} parent=1 // pred_check_branch
      %168 = sbr.rel (0) target = $region85
    $region84: #{ecodepth_dar_a_forward.4} parent=1 // pred_region
      %170 = vsyncadd [#allocation12], 0
      %s172 = sshll.u32 %s41, 4
      %s173 = int_to_ptr.hbm [resolvable:$true] %s172
      %s174 = sshll.u32 [#allocation13], 4
      %s175 = int_to_ptr.vmem [resolvable:$true] %s174
      %177 = dma.hbm_to_vmem [thread:$0]  %s173, 16, %s175, [#allocation12]
    $region85: #{ecodepth_dar_a_forward.4} parent=1 // pred_fallthru
      _
    // Predicated region
    $region86: #{ecodepth_dar_a_forward.4} parent=1 // pred_check
      _
    $region87: #{ecodepth_dar_a_forward.4} parent=1 // pred_check_branch
      %179 = sbr.rel (0) target = $region89
    $region88: #{ecodepth_dar_a_forward.4} parent=1 // pred_region
      %181 = vsyncadd [#allocation15], 0
      %s183 = sshll.u32 %s43, 4
      %s184 = int_to_ptr.hbm [resolvable:$true] %s183
      %s185 = sshll.u32 [#allocation14], 4
      %s186 = int_to_ptr.vmem [resolvable:$true] %s185
      %188 = dma.hbm_to_vmem [thread:$0]  %s184, 16, %s186, [#allocation15]
    $region89: #{ecodepth_dar_a_forward.4} parent=1 // pred_fallthru
      _
    // Predicated region
    $region90: #{ecodepth_dar_a_forward.4} parent=1 // pred_check
      _
    $region91: #{ecodepth_dar_a_forward.4} parent=1 // pred_check_branch
      %190 = sbr.rel (0) target = $region93
    $region92: #{ecodepth_dar_a_forward.4} parent=1 // pred_region
      %192 = vsyncadd [#allocation15], 0
      %s194 = sshll.u32 %s45, 4
      %s195 = int_to_ptr.hbm [resolvable:$true] %s194
      %s196 = sshll.u32 [#allocation16], 4
      %s197 = int_to_ptr.vmem [resolvable:$true] %s196
      %199 = dma.hbm_to_vmem [thread:$0]  %s195, 32, %s197, [#allocation15]
    $region93: #{ecodepth_dar_a_forward.4} parent=1 // pred_fallthru
      _
    // Predicated region
    $region94: #{ecodepth_dar_a_forward.4} parent=1 // pred_check
      _
    $region95: #{ecodepth_dar_a_forward.4} parent=1 // pred_check_branch
      %201 = sbr.rel (0) target = $region97
    $region96: #{ecodepth_dar_a_forward.4} parent=1 // pred_region
      _
    $region97: #{ecodepth_dar_a_forward.4} parent=1 // pred_fallthru
      _
    // Predicated region
    $region98: #{ecodepth_dar_a_forward.4} parent=1 // pred_check
      _
    $region99: #{ecodepth_dar_a_forward.4} parent=1 // pred_check_branch
      %203 = sbr.rel (0) target = $region101
    $region100: #{ecodepth_dar_a_forward.4} parent=1 // pred_region
      %205 = vsyncadd [#allocation18], 0
      %s207 = sshll.u32 %s49, 4
      %s208 = int_to_ptr.hbm [resolvable:$true] %s207
      %s209 = sshll.u32 [#allocation17], 4
      %s210 = int_to_ptr.vmem [resolvable:$true] %s209
      %212 = dma.hbm_to_vmem [thread:$0]  %s208, 32, %s210, [#allocation18]
    $region101: #{ecodepth_dar_a_forward.4} parent=1 // pred_fallthru
      _
    // Predicated region
    $region102: #{ecodepth_dar_a_forward.4} parent=1 // pred_check
      _
    $region103: #{ecodepth_dar_a_forward.4} parent=1 // pred_check_branch
      %214 = sbr.rel (0) target = $region105
    $region104: #{ecodepth_dar_a_forward.4} parent=1 // pred_region
      _
    $region105: #{ecodepth_dar_a_forward.4} parent=1 // pred_fallthru
      _
    // Predicated region
    $region106: #{ecodepth_dar_a_forward.4} parent=1 // pred_check
      _
    $region107: #{ecodepth_dar_a_forward.4} parent=1 // pred_check_branch
      %216 = sbr.rel (0) target = $region109
    $region108: #{ecodepth_dar_a_forward.4} parent=1 // pred_region
      _
    $region109: #{ecodepth_dar_a_forward.4} parent=1 // pred_fallthru
      _
    // Predicated region
    $region110: #{ecodepth_dar_a_forward.4} parent=1 // pred_check
      _
    $region111: #{ecodepth_dar_a_forward.4} parent=1 // pred_check_branch
      %218 = sbr.rel (0) target = $region113
    $region112: #{ecodepth_dar_a_forward.4} parent=1 // pred_region
      _
    $region113: #{ecodepth_dar_a_forward.4} parent=1 // pred_fallthru
      _
    // Predicated region
    $region114: #{ecodepth_dar_a_forward.4} parent=1 // pred_check
      _
    $region115: #{ecodepth_dar_a_forward.4} parent=1 // pred_check_branch
      %220 = sbr.rel (0) target = $region117
    $region116: #{ecodepth_dar_a_forward.4} parent=1 // pred_region
      _
    $region117: #{ecodepth_dar_a_forward.4} parent=1 // pred_fallthru
      _
    // Predicated region
    $region118: #{ecodepth_dar_a_forward.4} parent=1 // pred_check
      _
    $region119: #{ecodepth_dar_a_forward.4} parent=1 // pred_check_branch
      %222 = sbr.rel (0) target = $region121
    $region120: #{ecodepth_dar_a_forward.4} parent=1 // pred_region
      _
    $region121: #{ecodepth_dar_a_forward.4} parent=1 // pred_fallthru
      _
    // Predicated region
    $region122: #{ecodepth_dar_a_forward.4} parent=1 // pred_check
      _
    $region123: #{ecodepth_dar_a_forward.4} parent=1 // pred_check_branch
      %224 = sbr.rel (0) target = $region125
    $region124: #{ecodepth_dar_a_forward.4} parent=1 // pred_region
      %226 = dma.done [#allocation3], 16
    $region125: #{ecodepth_dar_a_forward.4} parent=1 // pred_fallthru
      _
    // Predicated region
    $region126: #{ecodepth_dar_a_forward.4} parent=1 // pred_check
      _
    $region127: #{ecodepth_dar_a_forward.4} parent=1 // pred_check_branch
      %228 = sbr.rel (0) target = $region129
    $region128: #{ecodepth_dar_a_forward.4} parent=1 // pred_region
      %230 = dma.done [#allocation6], 16
    $region129: #{ecodepth_dar_a_forward.4} parent=1 // pred_fallthru
      _
    // Predicated region
    $region130: #{ecodepth_dar_a_forward.4} parent=1 // pred_check
      _
    $region131: #{ecodepth_dar_a_forward.4} parent=1 // pred_check_branch
      %232 = sbr.rel (0) target = $region133
    $region132: #{ecodepth_dar_a_forward.4} parent=1 // pred_region
      %234 = dma.done [#allocation6], 16
    $region133: #{ecodepth_dar_a_forward.4} parent=1 // pred_fallthru
      _
    // Predicated region
    $region134: #{ecodepth_dar_a_forward.4} parent=1 // pred_check
      _
    $region135: #{ecodepth_dar_a_forward.4} parent=1 // pred_check_branch
      %236 = sbr.rel (0) target = $region137
    $region136: #{ecodepth_dar_a_forward.4} parent=1 // pred_region
      %238 = dma.done [#allocation9], 16
    $region137: #{ecodepth_dar_a_forward.4} parent=1 // pred_fallthru
      _
    // Predicated region
    $region138: #{ecodepth_dar_a_forward.4} parent=1 // pred_check
      _
    $region139: #{ecodepth_dar_a_forward.4} parent=1 // pred_check_branch
      %240 = sbr.rel (0) target = $region141
    $region140: #{ecodepth_dar_a_forward.4} parent=1 // pred_region
      %242 = dma.done [#allocation9], 16
    $region141: #{ecodepth_dar_a_forward.4} parent=1 // pred_fallthru
      _
    // Predicated region
    $region142: #{ecodepth_dar_a_forward.4} parent=1 // pred_check
      _
    $region143: #{ecodepth_dar_a_forward.4} parent=1 // pred_check_branch
      %244 = sbr.rel (0) target = $region145
    $region144: #{ecodepth_dar_a_forward.4} parent=1 // pred_region
      %246 = dma.done [#allocation12], 16
    $region145: #{ecodepth_dar_a_forward.4} parent=1 // pred_fallthru
      _
    // Predicated region
    $region146: #{ecodepth_dar_a_forward.4} parent=1 // pred_check
      _
    $region147: #{ecodepth_dar_a_forward.4} parent=1 // pred_check_branch
      %248 = sbr.rel (0) target = $region149
    $region148: #{ecodepth_dar_a_forward.4} parent=1 // pred_region
      %250 = dma.done [#allocation12], 16
    $region149: #{ecodepth_dar_a_forward.4} parent=1 // pred_fallthru
      _
    // Predicated region
    $region150: #{ecodepth_dar_a_forward.4} parent=1 // pred_check
      _
    $region151: #{ecodepth_dar_a_forward.4} parent=1 // pred_check_branch
      %252 = sbr.rel (0) target = $region153
    $region152: #{ecodepth_dar_a_forward.4} parent=1 // pred_region
      %254 = dma.done [#allocation15], 16
    $region153: #{ecodepth_dar_a_forward.4} parent=1 // pred_fallthru
      _
    // Predicated region
    $region154: #{ecodepth_dar_a_forward.4} parent=1 // pred_check
      _
    $region155: #{ecodepth_dar_a_forward.4} parent=1 // pred_check_branch
      %256 = sbr.rel (0) target = $region157
    $region156: #{ecodepth_dar_a_forward.4} parent=1 // pred_region
      %258 = dma.done [#allocation15], 32
    $region157: #{ecodepth_dar_a_forward.4} parent=1 // pred_fallthru
      _
    // Predicated region
    $region158: #{ecodepth_dar_a_forward.4} parent=1 // pred_check
      _
    $region159: #{ecodepth_dar_a_forward.4} parent=1 // pred_check_branch
      %260 = sbr.rel (0) target = $region161
    $region160: #{ecodepth_dar_a_forward.4} parent=1 // pred_region
      %262 = dma.done [#allocation18], 32
    $region161: #{ecodepth_dar_a_forward.4} parent=1 // pred_fallthru
      _
    %v264 = vld [vmem:[%s1] sm:$0xff]
    %v265 = vld [vmem:[%s1 + $0x8] sm:$0xff]
    %v266 = vld [vmem:[%s1 + $0x10] sm:$0xff]
    %v267 = vld [vmem:[%s1 + $0x18] sm:$0xff]
    %v268 = vld [vmem:[%s1 + $0x20] sm:$0xff]
    %v269 = vld [vmem:[%s1 + $0x28] sm:$0xff]
    %v270 = vld [vmem:[%s1 + $0x30] sm:$0xff]
    %v271 = vld [vmem:[%s1 + $0x38] sm:$0xff]
    %v272 = vld [vmem:[%s1 + $0x40] sm:$0xff]
    %v273 = vld [vmem:[%s1 + $0x48] sm:$0xff]
    %v274 = vld [vmem:[%s1 + $0x50] sm:$0xff]
    %v275 = vld [vmem:[%s1 + $0x58] sm:$0xff]
    %v276 = vld [vmem:[%s1 + $0x60] sm:$0xff]
    %v277 = vld [vmem:[%s1 + $0x68] sm:$0xff]
    %v278 = vld [vmem:[%s1 + $0x70] sm:$0xff]
    %v279 = vld [vmem:[%s1 + $0x78] sm:$0xff]
    %v280 = vld [vmem:[%s1 + $0x80] sm:$0xff]
    %v281 = vld [vmem:[%s1 + $0x88] sm:$0xff]
    %v282 = vld [vmem:[%s1 + $0x90] sm:$0xff]
    %v283 = vld [vmem:[%s1 + $0x98] sm:$0xff]
    %v284 = vld [vmem:[%s1 + $0xa0] sm:$0xff]
    %v285 = vld [vmem:[%s1 + $0xa8] sm:$0xff]
    %v286 = vld [vmem:[%s1 + $0xb0] sm:$0xff]
    %v287 = vld [vmem:[%s1 + $0xb8] sm:$0xff]
    %v288 = vld [vmem:[%s1 + $0xc0] sm:$0xff]
    %v289 = vld [vmem:[%s1 + $0xc8] sm:$0xff]
    %v290 = vld [vmem:[%s1 + $0xd0] sm:$0xff]
    %v291 = vld [vmem:[%s1 + $0xd8] sm:$0xff]
    %v292 = vld [vmem:[%s1 + $0xe0] sm:$0xff]
    %v293 = vld [vmem:[%s1 + $0xe8] sm:$0xff]
    %v294 = vld [vmem:[%s1 + $0xf0] sm:$0xff]
    %v295 = vld [vmem:[%s1 + $0xf8] sm:$0xff]
    %v296 = vld [vmem:[%s1 + $0x100] sm:$0xff]
    %v297 = vld [vmem:[%s1 + $0x108] sm:$0xff]
    %v298 = vld [vmem:[%s1 + $0x110] sm:$0xff]
    %v299 = vld [vmem:[%s1 + $0x118] sm:$0xff]
    %v300 = vld [vmem:[%s1 + $0x120] sm:$0xff]
    %v301 = vld [vmem:[%s1 + $0x128] sm:$0xff]
    %v302 = vld [vmem:[%s1 + $0x130] sm:$0xff]
    %v303 = vld [vmem:[%s1 + $0x138] sm:$0xff]
    %v304 = vld [vmem:[%s1 + $0x140] sm:$0xff]
    %v305 = vld [vmem:[%s1 + $0x148] sm:$0xff]
    %v306 = vld [vmem:[%s1 + $0x150] sm:$0xff]
    %v307 = vld [vmem:[%s1 + $0x158] sm:$0xff]
    %v308 = vld [vmem:[%s1 + $0x160] sm:$0xff]
    %v309 = vld [vmem:[%s1 + $0x168] sm:$0xff]
    %v310 = vld [vmem:[%s1 + $0x170] sm:$0xff]
    %v311 = vld [vmem:[%s1 + $0x178] sm:$0xff]
    %v312 = vld [vmem:[%s1 + $0x180] sm:$0xff]
    %v313 = vld [vmem:[%s1 + $0x188] sm:$0xff]
    %v314 = vld [vmem:[%s1 + $0x190] sm:$0xff]
    %v315 = vld [vmem:[%s1 + $0x198] sm:$0xff]
    %v316 = vld [vmem:[%s1 + $0x1a0] sm:$0xff]
    %v317 = vld [vmem:[%s1 + $0x1a8] sm:$0xff]
    %v318 = vld [vmem:[%s1 + $0x1b0] sm:$0xff]
    %v319 = vld [vmem:[%s1 + $0x1b8] sm:$0xff]
    %v320 = vld [vmem:[%s1 + $0x1c0] sm:$0xff]
    %v321 = vld [vmem:[%s1 + $0x1c8] sm:$0xff]
    %v322 = vld [vmem:[%s1 + $0x1d0] sm:$0xff]
    %v323 = vld [vmem:[%s1 + $0x1d8] sm:$0xff]
    %v324 = vld [vmem:[%s1 + $0x1e0] sm:$0xff]
    %v325 = vld [vmem:[%s1 + $0x1e8] sm:$0xff]
    %v326 = vld [vmem:[%s1 + $0x1f0] sm:$0xff]
    %v327 = vld [vmem:[%s1 + $0x1f8] sm:$0xff]
    %v328 = vld [vmem:[#allocation2] sm:$0x1]
    %v329 = vld [vmem:[%s9] sm:$0xff]
    %v330 = vld [vmem:[%s9 + $0x8] sm:$0xff]
    %v331 = vld [vmem:[%s9 + $0x10] sm:$0xff]
    %v332 = vld [vmem:[%s9 + $0x18] sm:$0xff]
    %v333 = vld [vmem:[%s9 + $0x20] sm:$0xff]
    %v334 = vld [vmem:[%s9 + $0x28] sm:$0xff]
    %v335 = vld [vmem:[%s9 + $0x30] sm:$0xff]
    %v336 = vld [vmem:[%s9 + $0x38] sm:$0xff]
    %v337 = vld [vmem:[%s9 + $0x40] sm:$0xff]
    %v338 = vld [vmem:[%s9 + $0x48] sm:$0xff]
    %v339 = vld [vmem:[%s9 + $0x50] sm:$0xff]
    %v340 = vld [vmem:[%s9 + $0x58] sm:$0xff]
    %v341 = vld [vmem:[%s9 + $0x60] sm:$0xff]
    %v342 = vld [vmem:[%s9 + $0x68] sm:$0xff]
    %v343 = vld [vmem:[%s9 + $0x70] sm:$0xff]
    %v344 = vld [vmem:[%s9 + $0x78] sm:$0xff]
    %v345 = vld [vmem:[%s9 + $0x80] sm:$0xff]
    %v346 = vld [vmem:[%s9 + $0x88] sm:$0xff]
    %v347 = vld [vmem:[%s9 + $0x90] sm:$0xff]
    %v348 = vld [vmem:[%s9 + $0x98] sm:$0xff]
    %v349 = vld [vmem:[%s9 + $0xa0] sm:$0xff]
    %v350 = vld [vmem:[%s9 + $0xa8] sm:$0xff]
    %v351 = vld [vmem:[%s9 + $0xb0] sm:$0xff]
    %v352 = vld [vmem:[%s9 + $0xb8] sm:$0xff]
    %v353 = vld [vmem:[%s9 + $0xc0] sm:$0xff]
    %v354 = vld [vmem:[%s9 + $0xc8] sm:$0xff]
    %v355 = vld [vmem:[%s9 + $0xd0] sm:$0xff]
    %v356 = vld [vmem:[%s9 + $0xd8] sm:$0xff]
    %v357 = vld [vmem:[%s9 + $0xe0] sm:$0xff]
    %v358 = vld [vmem:[%s9 + $0xe8] sm:$0xff]
    %v359 = vld [vmem:[%s9 + $0xf0] sm:$0xff]
    %v360 = vld [vmem:[%s9 + $0xf8] sm:$0xff]
    %v361 = vpack.c.bf16 %v265, %v264
    %v362 = vpack.c.bf16 %v267, %v266
    %v363 = vpack.c.bf16 %v269, %v268
    %v364 = vpack.c.bf16 %v271, %v270
    %v365 = vpack.c.bf16 %v273, %v272
    %v366 = vpack.c.bf16 %v275, %v274
    %v367 = vpack.c.bf16 %v277, %v276
    %v368 = vpack.c.bf16 %v279, %v278
    %v369 = vpack.c.bf16 %v281, %v280
    %v370 = vpack.c.bf16 %v283, %v282
    %v371 = vpack.c.bf16 %v285, %v284
    %v372 = vpack.c.bf16 %v287, %v286
    %v373 = vpack.c.bf16 %v289, %v288
    %v374 = vpack.c.bf16 %v291, %v290
    %v375 = vpack.c.bf16 %v293, %v292
    %v376 = vpack.c.bf16 %v295, %v294
    %v377 = vpack.c.bf16 %v297, %v296
    %v378 = vpack.c.bf16 %v299, %v298
    %v379 = vpack.c.bf16 %v301, %v300
    %v380 = vpack.c.bf16 %v303, %v302
    %v381 = vpack.c.bf16 %v305, %v304
    %v382 = vpack.c.bf16 %v307, %v306
    %v383 = vpack.c.bf16 %v309, %v308
    %v384 = vpack.c.bf16 %v311, %v310
    %v385 = vpack.c.bf16 %v313, %v312
    %v386 = vpack.c.bf16 %v315, %v314
    %v387 = vpack.c.bf16 %v317, %v316
    %v388 = vpack.c.bf16 %v319, %v318
    %v389 = vpack.c.bf16 %v321, %v320
    %v390 = vpack.c.bf16 %v323, %v322
    %v391 = vpack.c.bf16 %v325, %v324
    %v392 = vpack.c.bf16 %v327, %v326
    %v425 = vunpack.c.l.b16 %v329
    %v426 = vunpack.c.h.b16 %v329
    %v427 = vunpack.c.l.b16 %v330
    %v428 = vunpack.c.h.b16 %v330
    %v429 = vunpack.c.l.b16 %v331
    %v430 = vunpack.c.h.b16 %v331
    %v431 = vunpack.c.l.b16 %v332
    %v432 = vunpack.c.h.b16 %v332
    %v433 = vunpack.c.l.b16 %v333
    %v434 = vunpack.c.h.b16 %v333
    %v435 = vunpack.c.l.b16 %v334
    %v436 = vunpack.c.h.b16 %v334
    %v437 = vunpack.c.l.b16 %v335
    %v438 = vunpack.c.h.b16 %v335
    %v439 = vunpack.c.l.b16 %v336
    %v440 = vunpack.c.h.b16 %v336
    %v441 = vunpack.c.l.b16 %v337
    %v442 = vunpack.c.h.b16 %v337
    %v443 = vunpack.c.l.b16 %v338
    %v444 = vunpack.c.h.b16 %v338
    %v445 = vunpack.c.l.b16 %v339
    %v446 = vunpack.c.h.b16 %v339
    %v447 = vunpack.c.l.b16 %v340
    %v448 = vunpack.c.h.b16 %v340
    %v449 = vunpack.c.l.b16 %v341
    %v450 = vunpack.c.h.b16 %v341
    %v451 = vunpack.c.l.b16 %v342
    %v452 = vunpack.c.h.b16 %v342
    %v453 = vunpack.c.l.b16 %v343
    %v454 = vunpack.c.h.b16 %v343
    %v455 = vunpack.c.l.b16 %v344
    %v456 = vunpack.c.h.b16 %v344
    %v457 = vunpack.c.l.b16 %v345
    %v458 = vunpack.c.h.b16 %v345
    %v459 = vunpack.c.l.b16 %v346
    %v460 = vunpack.c.h.b16 %v346
    %v461 = vunpack.c.l.b16 %v347
    %v462 = vunpack.c.h.b16 %v347
    %v463 = vunpack.c.l.b16 %v348
    %v464 = vunpack.c.h.b16 %v348
    %v465 = vunpack.c.l.b16 %v349
    %v466 = vunpack.c.h.b16 %v349
    %v467 = vunpack.c.l.b16 %v350
    %v468 = vunpack.c.h.b16 %v350
    %v469 = vunpack.c.l.b16 %v351
    %v470 = vunpack.c.h.b16 %v351
    %v471 = vunpack.c.l.b16 %v352
    %v472 = vunpack.c.h.b16 %v352
    %v473 = vunpack.c.l.b16 %v353
    %v474 = vunpack.c.h.b16 %v353
    %v475 = vunpack.c.l.b16 %v354
    %v476 = vunpack.c.h.b16 %v354
    %v477 = vunpack.c.l.b16 %v355
    %v478 = vunpack.c.h.b16 %v355
    %v479 = vunpack.c.l.b16 %v356
    %v480 = vunpack.c.h.b16 %v356
    %v481 = vunpack.c.l.b16 %v357
    %v482 = vunpack.c.h.b16 %v357
    %v483 = vunpack.c.l.b16 %v358
    %v484 = vunpack.c.h.b16 %v358
    %v485 = vunpack.c.l.b16 %v359
    %v486 = vunpack.c.h.b16 %v359
    %v487 = vunpack.c.l.b16 %v360
    %v488 = vunpack.c.h.b16 %v360
    %v489 = vpack.c.b16 %v429, %v425
    %v490 = vpack.c.b16 %v430, %v426
    %v491 = vpack.c.b16 %v431, %v427
    %v492 = vpack.c.b16 %v432, %v428
    %v493 = vpack.c.b16 %v437, %v433
    %v494 = vpack.c.b16 %v438, %v434
    %v495 = vpack.c.b16 %v439, %v435
    %v496 = vpack.c.b16 %v440, %v436
    %v497 = vpack.c.b16 %v445, %v441
    %v498 = vpack.c.b16 %v446, %v442
    %v499 = vpack.c.b16 %v447, %v443
    %v500 = vpack.c.b16 %v448, %v444
    %v501 = vpack.c.b16 %v453, %v449
    %v502 = vpack.c.b16 %v454, %v450
    %v503 = vpack.c.b16 %v455, %v451
    %v504 = vpack.c.b16 %v456, %v452
    %v505 = vpack.c.b16 %v461, %v457
    %v506 = vpack.c.b16 %v462, %v458
    %v507 = vpack.c.b16 %v463, %v459
    %v508 = vpack.c.b16 %v464, %v460
    %v509 = vpack.c.b16 %v469, %v465
    %v510 = vpack.c.b16 %v470, %v466
    %v511 = vpack.c.b16 %v471, %v467
    %v512 = vpack.c.b16 %v472, %v468
    %v513 = vpack.c.b16 %v477, %v473
    %v514 = vpack.c.b16 %v478, %v474
    %v515 = vpack.c.b16 %v479, %v475
    %v516 = vpack.c.b16 %v480, %v476
    %v517 = vpack.c.b16 %v485, %v481
    %v518 = vpack.c.b16 %v486, %v482
    %v519 = vpack.c.b16 %v487, %v483
    %v520 = vpack.c.b16 %v488, %v484
    %553 = vmatpush.bf16.msra.mxu0 %v368
    %554 = vmatpush.bf16.msra.mxu0 %v367
    %555 = vmatpush.bf16.msra.mxu0 %v366
    %556 = vmatpush.bf16.msra.mxu0 %v365
    %557 = vmatpush.bf16.msra.mxu0 %v364
    %558 = vmatpush.bf16.msra.mxu0 %v363
    %559 = vmatpush.bf16.msra.mxu0 %v362
    %560 = vmatpush.bf16.msra.mxu0 %v361
    %561 = vmatmul.bf16.gmra.mxu0 %v489
    %v562 = vpop.f32.mrf.mxu0
    %v563 = vadd.f32 0.0, %v562
    %v564 = vpop.f32.mrf.mxu0
    %v565 = vadd.f32 0.0, %v564
    %566 = vmatmul.bf16.gmra.mxu0 %v493
    %v567 = vpop.f32.mrf.mxu0
    %v568 = vadd.f32 0.0, %v567
    %v569 = vpop.f32.mrf.mxu0
    %v570 = vadd.f32 0.0, %v569
    %571 = vmatmul.bf16.gmra.mxu0 %v497
    %v572 = vpop.f32.mrf.mxu0
    %v573 = vadd.f32 0.0, %v572
    %v574 = vpop.f32.mrf.mxu0
    %v575 = vadd.f32 0.0, %v574
    %576 = vmatmul.bf16.gmra.mxu0 %v501
    %v577 = vpop.f32.mrf.mxu0
    %v578 = vadd.f32 0.0, %v577
    %v579 = vpop.f32.mrf.mxu0
    %v580 = vadd.f32 0.0, %v579
    %581 = vmatmul.bf16.gmra.mxu0 %v505
    %v582 = vpop.f32.mrf.mxu0
    %v583 = vadd.f32 0.0, %v582
    %v584 = vpop.f32.mrf.mxu0
    %v585 = vadd.f32 0.0, %v584
    %586 = vmatmul.bf16.gmra.mxu0 %v509
    %v587 = vpop.f32.mrf.mxu0
    %v588 = vadd.f32 0.0, %v587
    %v589 = vpop.f32.mrf.mxu0
    %v590 = vadd.f32 0.0, %v589
    %591 = vmatmul.bf16.gmra.mxu0 %v513
    %v592 = vpop.f32.mrf.mxu0
    %v593 = vadd.f32 0.0, %v592
    %v594 = vpop.f32.mrf.mxu0
    %v595 = vadd.f32 0.0, %v594
    %596 = vmatmul.bf16.gmra.mxu0 %v517
    %v597 = vpop.f32.mrf.mxu0
    %v598 = vadd.f32 0.0, %v597
    %v599 = vpop.f32.mrf.mxu0
    %v600 = vadd.f32 0.0, %v599
    %601 = vdwg.mxu0
    %602 = vmatpush.bf16.msra.mxu0 %v376
    %603 = vmatpush.bf16.msra.mxu0 %v375
    %604 = vmatpush.bf16.msra.mxu0 %v374
    %605 = vmatpush.bf16.msra.mxu0 %v373
    %606 = vmatpush.bf16.msra.mxu0 %v372
    %607 = vmatpush.bf16.msra.mxu0 %v371
    %608 = vmatpush.bf16.msra.mxu0 %v370
    %609 = vmatpush.bf16.msra.mxu0 %v369
    %610 = vmatmul.bf16.gmra.mxu0 %v490
    %v611 = vpop.f32.mrf.mxu0
    %v612 = vadd.f32 %v563, %v611
    %v613 = vpop.f32.mrf.mxu0
    %v614 = vadd.f32 %v565, %v613
    %615 = vmatmul.bf16.gmra.mxu0 %v494
    %v616 = vpop.f32.mrf.mxu0
    %v617 = vadd.f32 %v568, %v616
    %v618 = vpop.f32.mrf.mxu0
    %v619 = vadd.f32 %v570, %v618
    %620 = vmatmul.bf16.gmra.mxu0 %v498
    %v621 = vpop.f32.mrf.mxu0
    %v622 = vadd.f32 %v573, %v621
    %v623 = vpop.f32.mrf.mxu0
    %v624 = vadd.f32 %v575, %v623
    %625 = vmatmul.bf16.gmra.mxu0 %v502
    %v626 = vpop.f32.mrf.mxu0
    %v627 = vadd.f32 %v578, %v626
    %v628 = vpop.f32.mrf.mxu0
    %v629 = vadd.f32 %v580, %v628
    %630 = vmatmul.bf16.gmra.mxu0 %v506
    %v631 = vpop.f32.mrf.mxu0
    %v632 = vadd.f32 %v583, %v631
    %v633 = vpop.f32.mrf.mxu0
    %v634 = vadd.f32 %v585, %v633
    %635 = vmatmul.bf16.gmra.mxu0 %v510
    %v636 = vpop.f32.mrf.mxu0
    %v637 = vadd.f32 %v588, %v636
    %v638 = vpop.f32.mrf.mxu0
    %v639 = vadd.f32 %v590, %v638
    %640 = vmatmul.bf16.gmra.mxu0 %v514
    %v641 = vpop.f32.mrf.mxu0
    %v642 = vadd.f32 %v593, %v641
    %v643 = vpop.f32.mrf.mxu0
    %v644 = vadd.f32 %v595, %v643
    %645 = vmatmul.bf16.gmra.mxu0 %v518
    %v646 = vpop.f32.mrf.mxu0
    %v647 = vadd.f32 %v598, %v646
    %v648 = vpop.f32.mrf.mxu0
    %v649 = vadd.f32 %v600, %v648
    %650 = vdwg.mxu0
    %651 = vmatpush.bf16.msra.mxu0 %v384
    %652 = vmatpush.bf16.msra.mxu0 %v383
    %653 = vmatpush.bf16.msra.mxu0 %v382
    %654 = vmatpush.bf16.msra.mxu0 %v381
    %655 = vmatpush.bf16.msra.mxu0 %v380
    %656 = vmatpush.bf16.msra.mxu0 %v379
    %657 = vmatpush.bf16.msra.mxu0 %v378
    %658 = vmatpush.bf16.msra.mxu0 %v377
    %659 = vmatmul.bf16.gmra.mxu0 %v491
    %v660 = vpop.f32.mrf.mxu0
    %v661 = vadd.f32 %v612, %v660
    %v662 = vpop.f32.mrf.mxu0
    %v663 = vadd.f32 %v614, %v662
    %664 = vmatmul.bf16.gmra.mxu0 %v495
    %v665 = vpop.f32.mrf.mxu0
    %v666 = vadd.f32 %v617, %v665
    %v667 = vpop.f32.mrf.mxu0
    %v668 = vadd.f32 %v619, %v667
    %669 = vmatmul.bf16.gmra.mxu0 %v499
    %v670 = vpop.f32.mrf.mxu0
    %v671 = vadd.f32 %v622, %v670
    %v672 = vpop.f32.mrf.mxu0
    %v673 = vadd.f32 %v624, %v672
    %674 = vmatmul.bf16.gmra.mxu0 %v503
    %v675 = vpop.f32.mrf.mxu0
    %v676 = vadd.f32 %v627, %v675
    %v677 = vpop.f32.mrf.mxu0
    %v678 = vadd.f32 %v629, %v677
    %679 = vmatmul.bf16.gmra.mxu0 %v507
    %v680 = vpop.f32.mrf.mxu0
    %v681 = vadd.f32 %v632, %v680
    %v682 = vpop.f32.mrf.mxu0
    %v683 = vadd.f32 %v634, %v682
    %684 = vmatmul.bf16.gmra.mxu0 %v511
    %v685 = vpop.f32.mrf.mxu0
    %v686 = vadd.f32 %v637, %v685
    %v687 = vpop.f32.mrf.mxu0
    %v688 = vadd.f32 %v639, %v687
    %689 = vmatmul.bf16.gmra.mxu0 %v515
    %v690 = vpop.f32.mrf.mxu0
    %v691 = vadd.f32 %v642, %v690
    %v692 = vpop.f32.mrf.mxu0
    %v693 = vadd.f32 %v644, %v692
    %694 = vmatmul.bf16.gmra.mxu0 %v519
    %v695 = vpop.f32.mrf.mxu0
    %v696 = vadd.f32 %v647, %v695
    %v697 = vpop.f32.mrf.mxu0
    %v698 = vadd.f32 %v649, %v697
    %699 = vdwg.mxu0
    %700 = vmatpush.bf16.msra.mxu0 %v392
    %701 = vmatpush.bf16.msra.mxu0 %v391
    %702 = vmatpush.bf16.msra.mxu0 %v390
    %703 = vmatpush.bf16.msra.mxu0 %v389
    %704 = vmatpush.bf16.msra.mxu0 %v388
    %705 = vmatpush.bf16.msra.mxu0 %v387
    %706 = vmatpush.bf16.msra.mxu0 %v386
    %707 = vmatpush.bf16.msra.mxu0 %v385
    %708 = vmatmul.bf16.gmra.mxu0 %v492
    %v709 = vpop.f32.mrf.mxu0
    %v710 = vadd.f32 %v661, %v709
    %v711 = vpop.f32.mrf.mxu0
    %v712 = vadd.f32 %v663, %v711
    %713 = vmatmul.bf16.gmra.mxu0 %v496
    %v714 = vpop.f32.mrf.mxu0
    %v715 = vadd.f32 %v666, %v714
    %v716 = vpop.f32.mrf.mxu0
    %v717 = vadd.f32 %v668, %v716
    %718 = vmatmul.bf16.gmra.mxu0 %v500
    %v719 = vpop.f32.mrf.mxu0
    %v720 = vadd.f32 %v671, %v719
    %v721 = vpop.f32.mrf.mxu0
    %v722 = vadd.f32 %v673, %v721
    %723 = vmatmul.bf16.gmra.mxu0 %v504
    %v724 = vpop.f32.mrf.mxu0
    %v725 = vadd.f32 %v676, %v724
    %v726 = vpop.f32.mrf.mxu0
    %v727 = vadd.f32 %v678, %v726
    %728 = vmatmul.bf16.gmra.mxu0 %v508
    %v729 = vpop.f32.mrf.mxu0
    %v730 = vadd.f32 %v681, %v729
    %v731 = vpop.f32.mrf.mxu0
    %v732 = vadd.f32 %v683, %v731
    %733 = vmatmul.bf16.gmra.mxu0 %v512
    %v734 = vpop.f32.mrf.mxu0
    %v735 = vadd.f32 %v686, %v734
    %v736 = vpop.f32.mrf.mxu0
    %v737 = vadd.f32 %v688, %v736
    %738 = vmatmul.bf16.gmra.mxu0 %v516
    %v739 = vpop.f32.mrf.mxu0
    %v740 = vadd.f32 %v691, %v739
    %v741 = vpop.f32.mrf.mxu0
    %v742 = vadd.f32 %v693, %v741
    %743 = vmatmul.bf16.gmra.mxu0 %v520
    %v744 = vpop.f32.mrf.mxu0
    %v745 = vadd.f32 %v696, %v744
    %v746 = vpop.f32.mrf.mxu0
    %v747 = vadd.f32 %v698, %v746
    %748 = vdwg.mxu0
    %v749 = vld [vmem:[%s15] sm:$0xff]
    %v750 = vld [vmem:[%s15 + $0x8] sm:$0xff]
    %v751 = vld [vmem:[%s15 + $0x10] sm:$0xff]
    %v752 = vld [vmem:[%s15 + $0x18] sm:$0xff]
    %v753 = vpack.c.bf16 %v712, %v710
    %v754 = vpack.c.bf16 %v717, %v715
    %v755 = vpack.c.bf16 %v722, %v720
    %v756 = vpack.c.bf16 %v727, %v725
    %v757 = vpack.c.bf16 %v732, %v730
    %v758 = vpack.c.bf16 %v737, %v735
    %v759 = vpack.c.bf16 %v742, %v740
    %v760 = vpack.c.bf16 %v747, %v745
    %v761 = vpack.c.bf16 %v750, %v749
    %v762 = vpack.c.bf16 %v752, %v751
    %vm763 = vcmask 261120
    %v765 = vsel %vm763, %v753, 0
    %v768 = vsel %vm763, %v754, 0
    %v771 = vsel %vm763, %v755, 0
    %v774 = vsel %vm763, %v756, 0
    %v777 = vsel %vm763, %v757, 0
    %v780 = vsel %vm763, %v758, 0
    %v783 = vsel %vm763, %v759, 0
    %v786 = vsel %vm763, %v760, 0
    %788 = vmatpush.bf16.msra.mxu0 0
    %789 = vmatpush.bf16.msra.mxu0 0
    %790 = vmatpush.bf16.msra.mxu0 0
    %791 = vmatpush.bf16.msra.mxu0 0
    %792 = vmatpush.bf16.msra.mxu0 0
    %793 = vmatpush.bf16.msra.mxu0 0
    %794 = vmatpush.bf16.msra.mxu0 %v762
    %795 = vmatpush.bf16.msra.mxu0 %v761
    %796 = vmatmul.bf16.gmra.mxu0 %v765
    %v797 = vpop.f32.mrf.mxu0
    %v798 = vadd.f32 0.0, %v797
    %v799 = vpop.f32.mrf.mxu0
    %v800 = vadd.f32 0.0, %v799
    %801 = vmatmul.bf16.gmra.mxu0 %v768
    %v802 = vpop.f32.mrf.mxu0
    %v803 = vadd.f32 0.0, %v802
    %v804 = vpop.f32.mrf.mxu0
    %v805 = vadd.f32 0.0, %v804
    %806 = vmatmul.bf16.gmra.mxu0 %v771
    %v807 = vpop.f32.mrf.mxu0
    %v808 = vadd.f32 0.0, %v807
    %v809 = vpop.f32.mrf.mxu0
    %v810 = vadd.f32 0.0, %v809
    %811 = vmatmul.bf16.gmra.mxu0 %v774
    %v812 = vpop.f32.mrf.mxu0
    %v813 = vadd.f32 0.0, %v812
    %v814 = vpop.f32.mrf.mxu0
    %v815 = vadd.f32 0.0, %v814
    %816 = vmatmul.bf16.gmra.mxu0 %v777
    %v817 = vpop.f32.mrf.mxu0
    %v818 = vadd.f32 0.0, %v817
    %v819 = vpop.f32.mrf.mxu0
    %v820 = vadd.f32 0.0, %v819
    %821 = vmatmul.bf16.gmra.mxu0 %v780
    %v822 = vpop.f32.mrf.mxu0
    %v823 = vadd.f32 0.0, %v822
    %v824 = vpop.f32.mrf.mxu0
    %v825 = vadd.f32 0.0, %v824
    %826 = vmatmul.bf16.gmra.mxu0 %v783
    %v827 = vpop.f32.mrf.mxu0
    %v828 = vadd.f32 0.0, %v827
    %v829 = vpop.f32.mrf.mxu0
    %v830 = vadd.f32 0.0, %v829
    %831 = vmatmul.bf16.gmra.mxu0 %v786
    %v832 = vpop.f32.mrf.mxu0
    %v833 = vadd.f32 0.0, %v832
    %v834 = vpop.f32.mrf.mxu0
    %v835 = vadd.f32 0.0, %v834
    %836 = vdwg.mxu0
    %v838 = vperm.slane %v328, 0
    %v840 = vadd.f32 %v838, %v798
    %v841 = vadd.f32 %v838, %v800
    %v842 = vadd.f32 %v838, %v803
    %v843 = vadd.f32 %v838, %v805
    %v844 = vadd.f32 %v838, %v808
    %v845 = vadd.f32 %v838, %v810
    %v846 = vadd.f32 %v838, %v813
    %v847 = vadd.f32 %v838, %v815
    %v848 = vadd.f32 %v838, %v818
    %v849 = vadd.f32 %v838, %v820
    %v850 = vadd.f32 %v838, %v823
    %v851 = vadd.f32 %v838, %v825
    %v852 = vadd.f32 %v838, %v828
    %v853 = vadd.f32 %v838, %v830
    %v854 = vadd.f32 %v838, %v833
    %v855 = vadd.f32 %v838, %v835
    %s856 = scalar_lea.vmem %s9, 256
    %v857 = vld [vmem:[%s856] sm:$0xff]
    %v858 = vld [vmem:[%s856 + $0x8] sm:$0xff]
    %v859 = vld [vmem:[%s856 + $0x10] sm:$0xff]
    %v860 = vld [vmem:[%s856 + $0x18] sm:$0xff]
    %v861 = vld [vmem:[%s856 + $0x20] sm:$0xff]
    %v862 = vld [vmem:[%s856 + $0x28] sm:$0xff]
    %v863 = vld [vmem:[%s856 + $0x30] sm:$0xff]
    %v864 = vld [vmem:[%s856 + $0x38] sm:$0xff]
    %v865 = vld [vmem:[%s856 + $0x40] sm:$0xff]
    %v866 = vld [vmem:[%s856 + $0x48] sm:$0xff]
    %v867 = vld [vmem:[%s856 + $0x50] sm:$0xff]
    %v868 = vld [vmem:[%s856 + $0x58] sm:$0xff]
    %v869 = vld [vmem:[%s856 + $0x60] sm:$0xff]
    %v870 = vld [vmem:[%s856 + $0x68] sm:$0xff]
    %v871 = vld [vmem:[%s856 + $0x70] sm:$0xff]
    %v872 = vld [vmem:[%s856 + $0x78] sm:$0xff]
    %v873 = vld [vmem:[%s856 + $0x80] sm:$0xff]
    %v874 = vld [vmem:[%s856 + $0x88] sm:$0xff]
    %v875 = vld [vmem:[%s856 + $0x90] sm:$0xff]
    %v876 = vld [vmem:[%s856 + $0x98] sm:$0xff]
    %v877 = vld [vmem:[%s856 + $0xa0] sm:$0xff]
    %v878 = vld [vmem:[%s856 + $0xa8] sm:$0xff]
    %v879 = vld [vmem:[%s856 + $0xb0] sm:$0xff]
    %v880 = vld [vmem:[%s856 + $0xb8] sm:$0xff]
    %v881 = vld [vmem:[%s856 + $0xc0] sm:$0xff]
    %v882 = vld [vmem:[%s856 + $0xc8] sm:$0xff]
    %v883 = vld [vmem:[%s856 + $0xd0] sm:$0xff]
    %v884 = vld [vmem:[%s856 + $0xd8] sm:$0xff]
    %v885 = vld [vmem:[%s856 + $0xe0] sm:$0xff]
    %v886 = vld [vmem:[%s856 + $0xe8] sm:$0xff]
    %v887 = vld [vmem:[%s856 + $0xf0] sm:$0xff]
    %v888 = vld [vmem:[%s856 + $0xf8] sm:$0xff]
    %v921 = vunpack.c.l.b16 %v857
    %v922 = vunpack.c.h.b16 %v857
    %v923 = vunpack.c.l.b16 %v858
    %v924 = vunpack.c.h.b16 %v858
    %v925 = vunpack.c.l.b16 %v859
    %v926 = vunpack.c.h.b16 %v859
    %v927 = vunpack.c.l.b16 %v860
    %v928 = vunpack.c.h.b16 %v860
    %v929 = vunpack.c.l.b16 %v861
    %v930 = vunpack.c.h.b16 %v861
    %v931 = vunpack.c.l.b16 %v862
    %v932 = vunpack.c.h.b16 %v862
    %v933 = vunpack.c.l.b16 %v863
    %v934 = vunpack.c.h.b16 %v863
    %v935 = vunpack.c.l.b16 %v864
    %v936 = vunpack.c.h.b16 %v864
    %v937 = vunpack.c.l.b16 %v865
    %v938 = vunpack.c.h.b16 %v865
    %v939 = vunpack.c.l.b16 %v866
    %v940 = vunpack.c.h.b16 %v866
    %v941 = vunpack.c.l.b16 %v867
    %v942 = vunpack.c.h.b16 %v867
    %v943 = vunpack.c.l.b16 %v868
    %v944 = vunpack.c.h.b16 %v868
    %v945 = vunpack.c.l.b16 %v869
    %v946 = vunpack.c.h.b16 %v869
    %v947 = vunpack.c.l.b16 %v870
    %v948 = vunpack.c.h.b16 %v870
    %v949 = vunpack.c.l.b16 %v871
    %v950 = vunpack.c.h.b16 %v871
    %v951 = vunpack.c.l.b16 %v872
    %v952 = vunpack.c.h.b16 %v872
    %v953 = vunpack.c.l.b16 %v873
    %v954 = vunpack.c.h.b16 %v873
    %v955 = vunpack.c.l.b16 %v874
    %v956 = vunpack.c.h.b16 %v874
    %v957 = vunpack.c.l.b16 %v875
    %v958 = vunpack.c.h.b16 %v875
    %v959 = vunpack.c.l.b16 %v876
    %v960 = vunpack.c.h.b16 %v876
    %v961 = vunpack.c.l.b16 %v877
    %v962 = vunpack.c.h.b16 %v877
    %v963 = vunpack.c.l.b16 %v878
    %v964 = vunpack.c.h.b16 %v878
    %v965 = vunpack.c.l.b16 %v879
    %v966 = vunpack.c.h.b16 %v879
    %v967 = vunpack.c.l.b16 %v880
    %v968 = vunpack.c.h.b16 %v880
    %v969 = vunpack.c.l.b16 %v881
    %v970 = vunpack.c.h.b16 %v881
    %v971 = vunpack.c.l.b16 %v882
    %v972 = vunpack.c.h.b16 %v882
    %v973 = vunpack.c.l.b16 %v883
    %v974 = vunpack.c.h.b16 %v883
    %v975 = vunpack.c.l.b16 %v884
    %v976 = vunpack.c.h.b16 %v884
    %v977 = vunpack.c.l.b16 %v885
    %v978 = vunpack.c.h.b16 %v885
    %v979 = vunpack.c.l.b16 %v886
    %v980 = vunpack.c.h.b16 %v886
    %v981 = vunpack.c.l.b16 %v887
    %v982 = vunpack.c.h.b16 %v887
    %v983 = vunpack.c.l.b16 %v888
    %v984 = vunpack.c.h.b16 %v888
    %v985 = vpack.c.b16 %v925, %v921
    %v986 = vpack.c.b16 %v926, %v922
    %v987 = vpack.c.b16 %v927, %v923
    %v988 = vpack.c.b16 %v928, %v924
    %v989 = vpack.c.b16 %v933, %v929
    %v990 = vpack.c.b16 %v934, %v930
    %v991 = vpack.c.b16 %v935, %v931
    %v992 = vpack.c.b16 %v936, %v932
    %v993 = vpack.c.b16 %v941, %v937
    %v994 = vpack.c.b16 %v942, %v938
    %v995 = vpack.c.b16 %v943, %v939
    %v996 = vpack.c.b16 %v944, %v940
    %v997 = vpack.c.b16 %v949, %v945
    %v998 = vpack.c.b16 %v950, %v946
    %v999 = vpack.c.b16 %v951, %v947
    %v1000 = vpack.c.b16 %v952, %v948
    %v1001 = vpack.c.b16 %v957, %v953
    %v1002 = vpack.c.b16 %v958, %v954
    %v1003 = vpack.c.b16 %v959, %v955
    %v1004 = vpack.c.b16 %v960, %v956
    %v1005 = vpack.c.b16 %v965, %v961
    %v1006 = vpack.c.b16 %v966, %v962
    %v1007 = vpack.c.b16 %v967, %v963
    %v1008 = vpack.c.b16 %v968, %v964
    %v1009 = vpack.c.b16 %v973, %v969
    %v1010 = vpack.c.b16 %v974, %v970
    %v1011 = vpack.c.b16 %v975, %v971
    %v1012 = vpack.c.b16 %v976, %v972
    %v1013 = vpack.c.b16 %v981, %v977
    %v1014 = vpack.c.b16 %v982, %v978
    %v1015 = vpack.c.b16 %v983, %v979
    %v1016 = vpack.c.b16 %v984, %v980
    %1049 = vmatpush.bf16.msra.mxu0 %v368
    %1050 = vmatpush.bf16.msra.mxu0 %v367
    %1051 = vmatpush.bf16.msra.mxu0 %v366
    %1052 = vmatpush.bf16.msra.mxu0 %v365
    %1053 = vmatpush.bf16.msra.mxu0 %v364
    %1054 = vmatpush.bf16.msra.mxu0 %v363
    %1055 = vmatpush.bf16.msra.mxu0 %v362
    %1056 = vmatpush.bf16.msra.mxu0 %v361
    %1057 = vmatmul.bf16.gmra.mxu0 %v985
    %v1058 = vpop.f32.mrf.mxu0
    %v1059 = vadd.f32 0.0, %v1058
    %v1060 = vpop.f32.mrf.mxu0
    %v1061 = vadd.f32 0.0, %v1060
    %1062 = vmatmul.bf16.gmra.mxu0 %v989
    %v1063 = vpop.f32.mrf.mxu0
    %v1064 = vadd.f32 0.0, %v1063
    %v1065 = vpop.f32.mrf.mxu0
    %v1066 = vadd.f32 0.0, %v1065
    %1067 = vmatmul.bf16.gmra.mxu0 %v993
    %v1068 = vpop.f32.mrf.mxu0
    %v1069 = vadd.f32 0.0, %v1068
    %v1070 = vpop.f32.mrf.mxu0
    %v1071 = vadd.f32 0.0, %v1070
    %1072 = vmatmul.bf16.gmra.mxu0 %v997
    %v1073 = vpop.f32.mrf.mxu0
    %v1074 = vadd.f32 0.0, %v1073
    %v1075 = vpop.f32.mrf.mxu0
    %v1076 = vadd.f32 0.0, %v1075
    %1077 = vmatmul.bf16.gmra.mxu0 %v1001
    %v1078 = vpop.f32.mrf.mxu0
    %v1079 = vadd.f32 0.0, %v1078
    %v1080 = vpop.f32.mrf.mxu0
    %v1081 = vadd.f32 0.0, %v1080
    %1082 = vmatmul.bf16.gmra.mxu0 %v1005
    %v1083 = vpop.f32.mrf.mxu0
    %v1084 = vadd.f32 0.0, %v1083
    %v1085 = vpop.f32.mrf.mxu0
    %v1086 = vadd.f32 0.0, %v1085
    %1087 = vmatmul.bf16.gmra.mxu0 %v1009
    %v1088 = vpop.f32.mrf.mxu0
    %v1089 = vadd.f32 0.0, %v1088
    %v1090 = vpop.f32.mrf.mxu0
    %v1091 = vadd.f32 0.0, %v1090
    %1092 = vmatmul.bf16.gmra.mxu0 %v1013
    %v1093 = vpop.f32.mrf.mxu0
    %v1094 = vadd.f32 0.0, %v1093
    %v1095 = vpop.f32.mrf.mxu0
    %v1096 = vadd.f32 0.0, %v1095
    %1097 = vdwg.mxu0
    %1098 = vmatpush.bf16.msra.mxu0 %v376
    %1099 = vmatpush.bf16.msra.mxu0 %v375
    %1100 = vmatpush.bf16.msra.mxu0 %v374
    %1101 = vmatpush.bf16.msra.mxu0 %v373
    %1102 = vmatpush.bf16.msra.mxu0 %v372
    %1103 = vmatpush.bf16.msra.mxu0 %v371
    %1104 = vmatpush.bf16.msra.mxu0 %v370
    %1105 = vmatpush.bf16.msra.mxu0 %v369
    %1106 = vmatmul.bf16.gmra.mxu0 %v986
    %v1107 = vpop.f32.mrf.mxu0
    %v1108 = vadd.f32 %v1059, %v1107
    %v1109 = vpop.f32.mrf.mxu0
    %v1110 = vadd.f32 %v1061, %v1109
    %1111 = vmatmul.bf16.gmra.mxu0 %v990
    %v1112 = vpop.f32.mrf.mxu0
    %v1113 = vadd.f32 %v1064, %v1112
    %v1114 = vpop.f32.mrf.mxu0
    %v1115 = vadd.f32 %v1066, %v1114
    %1116 = vmatmul.bf16.gmra.mxu0 %v994
    %v1117 = vpop.f32.mrf.mxu0
    %v1118 = vadd.f32 %v1069, %v1117
    %v1119 = vpop.f32.mrf.mxu0
    %v1120 = vadd.f32 %v1071, %v1119
    %1121 = vmatmul.bf16.gmra.mxu0 %v998
    %v1122 = vpop.f32.mrf.mxu0
    %v1123 = vadd.f32 %v1074, %v1122
    %v1124 = vpop.f32.mrf.mxu0
    %v1125 = vadd.f32 %v1076, %v1124
    %1126 = vmatmul.bf16.gmra.mxu0 %v1002
    %v1127 = vpop.f32.mrf.mxu0
    %v1128 = vadd.f32 %v1079, %v1127
    %v1129 = vpop.f32.mrf.mxu0
    %v1130 = vadd.f32 %v1081, %v1129
    %1131 = vmatmul.bf16.gmra.mxu0 %v1006
    %v1132 = vpop.f32.mrf.mxu0
    %v1133 = vadd.f32 %v1084, %v1132
    %v1134 = vpop.f32.mrf.mxu0
    %v1135 = vadd.f32 %v1086, %v1134
    %1136 = vmatmul.bf16.gmra.mxu0 %v1010
    %v1137 = vpop.f32.mrf.mxu0
    %v1138 = vadd.f32 %v1089, %v1137
    %v1139 = vpop.f32.mrf.mxu0
    %v1140 = vadd.f32 %v1091, %v1139
    %1141 = vmatmul.bf16.gmra.mxu0 %v1014
    %v1142 = vpop.f32.mrf.mxu0
    %v1143 = vadd.f32 %v1094, %v1142
    %v1144 = vpop.f32.mrf.mxu0
    %v1145 = vadd.f32 %v1096, %v1144
    %1146 = vdwg.mxu0
    %1147 = vmatpush.bf16.msra.mxu0 %v384
    %1148 = vmatpush.bf16.msra.mxu0 %v383
    %1149 = vmatpush.bf16.msra.mxu0 %v382
    %1150 = vmatpush.bf16.msra.mxu0 %v381
    %1151 = vmatpush.bf16.msra.mxu0 %v380
    %1152 = vmatpush.bf16.msra.mxu0 %v379
    %1153 = vmatpush.bf16.msra.mxu0 %v378
    %1154 = vmatpush.bf16.msra.mxu0 %v377
    %1155 = vmatmul.bf16.gmra.mxu0 %v987
    %v1156 = vpop.f32.mrf.mxu0
    %v1157 = vadd.f32 %v1108, %v1156
    %v1158 = vpop.f32.mrf.mxu0
    %v1159 = vadd.f32 %v1110, %v1158
    %1160 = vmatmul.bf16.gmra.mxu0 %v991
    %v1161 = vpop.f32.mrf.mxu0
    %v1162 = vadd.f32 %v1113, %v1161
    %v1163 = vpop.f32.mrf.mxu0
    %v1164 = vadd.f32 %v1115, %v1163
    %1165 = vmatmul.bf16.gmra.mxu0 %v995
    %v1166 = vpop.f32.mrf.mxu0
    %v1167 = vadd.f32 %v1118, %v1166
    %v1168 = vpop.f32.mrf.mxu0
    %v1169 = vadd.f32 %v1120, %v1168
    %1170 = vmatmul.bf16.gmra.mxu0 %v999
    %v1171 = vpop.f32.mrf.mxu0
    %v1172 = vadd.f32 %v1123, %v1171
    %v1173 = vpop.f32.mrf.mxu0
    %v1174 = vadd.f32 %v1125, %v1173
    %1175 = vmatmul.bf16.gmra.mxu0 %v1003
    %v1176 = vpop.f32.mrf.mxu0
    %v1177 = vadd.f32 %v1128, %v1176
    %v1178 = vpop.f32.mrf.mxu0
    %v1179 = vadd.f32 %v1130, %v1178
    %1180 = vmatmul.bf16.gmra.mxu0 %v1007
    %v1181 = vpop.f32.mrf.mxu0
    %v1182 = vadd.f32 %v1133, %v1181
    %v1183 = vpop.f32.mrf.mxu0
    %v1184 = vadd.f32 %v1135, %v1183
    %1185 = vmatmul.bf16.gmra.mxu0 %v1011
    %v1186 = vpop.f32.mrf.mxu0
    %v1187 = vadd.f32 %v1138, %v1186
    %v1188 = vpop.f32.mrf.mxu0
    %v1189 = vadd.f32 %v1140, %v1188
    %1190 = vmatmul.bf16.gmra.mxu0 %v1015
    %v1191 = vpop.f32.mrf.mxu0
    %v1192 = vadd.f32 %v1143, %v1191
    %v1193 = vpop.f32.mrf.mxu0
    %v1194 = vadd.f32 %v1145, %v1193
    %1195 = vdwg.mxu0
    %1196 = vmatpush.bf16.msra.mxu0 %v392
    %1197 = vmatpush.bf16.msra.mxu0 %v391
    %1198 = vmatpush.bf16.msra.mxu0 %v390
    %1199 = vmatpush.bf16.msra.mxu0 %v389
    %1200 = vmatpush.bf16.msra.mxu0 %v388
    %1201 = vmatpush.bf16.msra.mxu0 %v387
    %1202 = vmatpush.bf16.msra.mxu0 %v386
    %1203 = vmatpush.bf16.msra.mxu0 %v385
    %1204 = vmatmul.bf16.gmra.mxu0 %v988
    %v1205 = vpop.f32.mrf.mxu0
    %v1206 = vadd.f32 %v1157, %v1205
    %v1207 = vpop.f32.mrf.mxu0
    %v1208 = vadd.f32 %v1159, %v1207
    %1209 = vmatmul.bf16.gmra.mxu0 %v992
    %v1210 = vpop.f32.mrf.mxu0
    %v1211 = vadd.f32 %v1162, %v1210
    %v1212 = vpop.f32.mrf.mxu0
    %v1213 = vadd.f32 %v1164, %v1212
    %1214 = vmatmul.bf16.gmra.mxu0 %v996
    %v1215 = vpop.f32.mrf.mxu0
    %v1216 = vadd.f32 %v1167, %v1215
    %v1217 = vpop.f32.mrf.mxu0
    %v1218 = vadd.f32 %v1169, %v1217
    %1219 = vmatmul.bf16.gmra.mxu0 %v1000
    %v1220 = vpop.f32.mrf.mxu0
    %v1221 = vadd.f32 %v1172, %v1220
    %v1222 = vpop.f32.mrf.mxu0
    %v1223 = vadd.f32 %v1174, %v1222
    %1224 = vmatmul.bf16.gmra.mxu0 %v1004
    %v1225 = vpop.f32.mrf.mxu0
    %v1226 = vadd.f32 %v1177, %v1225
    %v1227 = vpop.f32.mrf.mxu0
    %v1228 = vadd.f32 %v1179, %v1227
    %1229 = vmatmul.bf16.gmra.mxu0 %v1008
    %v1230 = vpop.f32.mrf.mxu0
    %v1231 = vadd.f32 %v1182, %v1230
    %v1232 = vpop.f32.mrf.mxu0
    %v1233 = vadd.f32 %v1184, %v1232
    %1234 = vmatmul.bf16.gmra.mxu0 %v1012
    %v1235 = vpop.f32.mrf.mxu0
    %v1236 = vadd.f32 %v1187, %v1235
    %v1237 = vpop.f32.mrf.mxu0
    %v1238 = vadd.f32 %v1189, %v1237
    %1239 = vmatmul.bf16.gmra.mxu0 %v1016
    %v1240 = vpop.f32.mrf.mxu0
    %v1241 = vadd.f32 %v1192, %v1240
    %v1242 = vpop.f32.mrf.mxu0
    %v1243 = vadd.f32 %v1194, %v1242
    %1244 = vdwg.mxu0
    %s1245 = scalar_lea.vmem %s15, 32
    %v1246 = vld [vmem:[%s1245] sm:$0xff]
    %v1247 = vld [vmem:[%s1245 + $0x8] sm:$0xff]
    %v1248 = vld [vmem:[%s1245 + $0x10] sm:$0xff]
    %v1249 = vld [vmem:[%s1245 + $0x18] sm:$0xff]
    %v1250 = vpack.c.bf16 %v1208, %v1206
    %v1251 = vpack.c.bf16 %v1213, %v1211
    %v1252 = vpack.c.bf16 %v1218, %v1216
    %v1253 = vpack.c.bf16 %v1223, %v1221
    %v1254 = vpack.c.bf16 %v1228, %v1226
    %v1255 = vpack.c.bf16 %v1233, %v1231
    %v1256 = vpack.c.bf16 %v1238, %v1236
    %v1257 = vpack.c.bf16 %v1243, %v1241
    %v1258 = vpack.c.bf16 %v1247, %v1246
    %v1259 = vpack.c.bf16 %v1249, %v1248
    %v1261 = vsel %vm763, %v1250, 0
    %v1264 = vsel %vm763, %v1251, 0
    %v1267 = vsel %vm763, %v1252, 0
    %v1270 = vsel %vm763, %v1253, 0
    %v1273 = vsel %vm763, %v1254, 0
    %v1276 = vsel %vm763, %v1255, 0
    %v1279 = vsel %vm763, %v1256, 0
    %v1282 = vsel %vm763, %v1257, 0
    %1284 = vmatpush.bf16.msra.mxu0 0
    %1285 = vmatpush.bf16.msra.mxu0 0
    %1286 = vmatpush.bf16.msra.mxu0 0
    %1287 = vmatpush.bf16.msra.mxu0 0
    %1288 = vmatpush.bf16.msra.mxu0 0
    %1289 = vmatpush.bf16.msra.mxu0 0
    %1290 = vmatpush.bf16.msra.mxu0 %v1259
    %1291 = vmatpush.bf16.msra.mxu0 %v1258
    %1292 = vmatmul.bf16.gmra.mxu0 %v1261
    %v1293 = vpop.f32.mrf.mxu0
    %v1294 = vadd.f32 0.0, %v1293
    %v1295 = vpop.f32.mrf.mxu0
    %v1296 = vadd.f32 0.0, %v1295
    %1297 = vmatmul.bf16.gmra.mxu0 %v1264
    %v1298 = vpop.f32.mrf.mxu0
    %v1299 = vadd.f32 0.0, %v1298
    %v1300 = vpop.f32.mrf.mxu0
    %v1301 = vadd.f32 0.0, %v1300
    %1302 = vmatmul.bf16.gmra.mxu0 %v1267
    %v1303 = vpop.f32.mrf.mxu0
    %v1304 = vadd.f32 0.0, %v1303
    %v1305 = vpop.f32.mrf.mxu0
    %v1306 = vadd.f32 0.0, %v1305
    %1307 = vmatmul.bf16.gmra.mxu0 %v1270
    %v1308 = vpop.f32.mrf.mxu0
    %v1309 = vadd.f32 0.0, %v1308
    %v1310 = vpop.f32.mrf.mxu0
    %v1311 = vadd.f32 0.0, %v1310
    %1312 = vmatmul.bf16.gmra.mxu0 %v1273
    %v1313 = vpop.f32.mrf.mxu0
    %v1314 = vadd.f32 0.0, %v1313
    %v1315 = vpop.f32.mrf.mxu0
    %v1316 = vadd.f32 0.0, %v1315
    %1317 = vmatmul.bf16.gmra.mxu0 %v1276
    %v1318 = vpop.f32.mrf.mxu0
    %v1319 = vadd.f32 0.0, %v1318
    %v1320 = vpop.f32.mrf.mxu0
    %v1321 = vadd.f32 0.0, %v1320
    %1322 = vmatmul.bf16.gmra.mxu0 %v1279
    %v1323 = vpop.f32.mrf.mxu0
    %v1324 = vadd.f32 0.0, %v1323
    %v1325 = vpop.f32.mrf.mxu0
    %v1326 = vadd.f32 0.0, %v1325
    %1327 = vmatmul.bf16.gmra.mxu0 %v1282
    %v1328 = vpop.f32.mrf.mxu0
    %v1329 = vadd.f32 0.0, %v1328
    %v1330 = vpop.f32.mrf.mxu0
    %v1331 = vadd.f32 0.0, %v1330
    %1332 = vdwg.mxu0
    %v1333 = vadd.f32 %v840, %v1294
    %v1334 = vadd.f32 %v841, %v1296
    %v1335 = vadd.f32 %v842, %v1299
    %v1336 = vadd.f32 %v843, %v1301
    %v1337 = vadd.f32 %v844, %v1304
    %v1338 = vadd.f32 %v845, %v1306
    %v1339 = vadd.f32 %v846, %v1309
    %v1340 = vadd.f32 %v847, %v1311
    %v1341 = vadd.f32 %v848, %v1314
    %v1342 = vadd.f32 %v849, %v1316
    %v1343 = vadd.f32 %v850, %v1319
    %v1344 = vadd.f32 %v851, %v1321
    %v1345 = vadd.f32 %v852, %v1324
    %v1346 = vadd.f32 %v853, %v1326
    %v1347 = vadd.f32 %v854, %v1329
    %v1348 = vadd.f32 %v855, %v1331
    %s1349 = scalar_lea.vmem %s9, 512
    %v1350 = vld [vmem:[%s1349] sm:$0xff]
    %v1351 = vld [vmem:[%s1349 + $0x8] sm:$0xff]
    %v1352 = vld [vmem:[%s1349 + $0x10] sm:$0xff]
    %v1353 = vld [vmem:[%s1349 + $0x18] sm:$0xff]
    %v1354 = vld [vmem:[%s1349 + $0x20] sm:$0xff]
    %v1355 = vld [vmem:[%s1349 + $0x28] sm:$0xff]
    %v1356 = vld [vmem:[%s1349 + $0x30] sm:$0xff]
    %v1357 = vld [vmem:[%s1349 + $0x38] sm:$0xff]
    %v1358 = vld [vmem:[%s1349 + $0x40] sm:$0xff]
    %v1359 = vld [vmem:[%s1349 + $0x48] sm:$0xff]
    %v1360 = vld [vmem:[%s1349 + $0x50] sm:$0xff]
    %v1361 = vld [vmem:[%s1349 + $0x58] sm:$0xff]
    %v1362 = vld [vmem:[%s1349 + $0x60] sm:$0xff]
    %v1363 = vld [vmem:[%s1349 + $0x68] sm:$0xff]
    %v1364 = vld [vmem:[%s1349 + $0x70] sm:$0xff]
    %v1365 = vld [vmem:[%s1349 + $0x78] sm:$0xff]
    %v1366 = vld [vmem:[%s1349 + $0x80] sm:$0xff]
    %v1367 = vld [vmem:[%s1349 + $0x88] sm:$0xff]
    %v1368 = vld [vmem:[%s1349 + $0x90] sm:$0xff]
    %v1369 = vld [vmem:[%s1349 + $0x98] sm:$0xff]
    %v1370 = vld [vmem:[%s1349 + $0xa0] sm:$0xff]
    %v1371 = vld [vmem:[%s1349 + $0xa8] sm:$0xff]
    %v1372 = vld [vmem:[%s1349 + $0xb0] sm:$0xff]
    %v1373 = vld [vmem:[%s1349 + $0xb8] sm:$0xff]
    %v1374 = vld [vmem:[%s1349 + $0xc0] sm:$0xff]
    %v1375 = vld [vmem:[%s1349 + $0xc8] sm:$0xff]
    %v1376 = vld [vmem:[%s1349 + $0xd0] sm:$0xff]
    %v1377 = vld [vmem:[%s1349 + $0xd8] sm:$0xff]
    %v1378 = vld [vmem:[%s1349 + $0xe0] sm:$0xff]
    %v1379 = vld [vmem:[%s1349 + $0xe8] sm:$0xff]
    %v1380 = vld [vmem:[%s1349 + $0xf0] sm:$0xff]
    %v1381 = vld [vmem:[%s1349 + $0xf8] sm:$0xff]
    %v1414 = vunpack.c.l.b16 %v1350
    %v1415 = vunpack.c.h.b16 %v1350
    %v1416 = vunpack.c.l.b16 %v1351
    %v1417 = vunpack.c.h.b16 %v1351
    %v1418 = vunpack.c.l.b16 %v1352
    %v1419 = vunpack.c.h.b16 %v1352
    %v1420 = vunpack.c.l.b16 %v1353
    %v1421 = vunpack.c.h.b16 %v1353
    %v1422 = vunpack.c.l.b16 %v1354
    %v1423 = vunpack.c.h.b16 %v1354
    %v1424 = vunpack.c.l.b16 %v1355
    %v1425 = vunpack.c.h.b16 %v1355
    %v1426 = vunpack.c.l.b16 %v1356
    %v1427 = vunpack.c.h.b16 %v1356
    %v1428 = vunpack.c.l.b16 %v1357
    %v1429 = vunpack.c.h.b16 %v1357
    %v1430 = vunpack.c.l.b16 %v1358
    %v1431 = vunpack.c.h.b16 %v1358
    %v1432 = vunpack.c.l.b16 %v1359
    %v1433 = vunpack.c.h.b16 %v1359
    %v1434 = vunpack.c.l.b16 %v1360
    %v1435 = vunpack.c.h.b16 %v1360
    %v1436 = vunpack.c.l.b16 %v1361
    %v1437 = vunpack.c.h.b16 %v1361
    %v1438 = vunpack.c.l.b16 %v1362
    %v1439 = vunpack.c.h.b16 %v1362
    %v1440 = vunpack.c.l.b16 %v1363
    %v1441 = vunpack.c.h.b16 %v1363
    %v1442 = vunpack.c.l.b16 %v1364
    %v1443 = vunpack.c.h.b16 %v1364
    %v1444 = vunpack.c.l.b16 %v1365
    %v1445 = vunpack.c.h.b16 %v1365
    %v1446 = vunpack.c.l.b16 %v1366
    %v1447 = vunpack.c.h.b16 %v1366
    %v1448 = vunpack.c.l.b16 %v1367
    %v1449 = vunpack.c.h.b16 %v1367
    %v1450 = vunpack.c.l.b16 %v1368
    %v1451 = vunpack.c.h.b16 %v1368
    %v1452 = vunpack.c.l.b16 %v1369
    %v1453 = vunpack.c.h.b16 %v1369
    %v1454 = vunpack.c.l.b16 %v1370
    %v1455 = vunpack.c.h.b16 %v1370
    %v1456 = vunpack.c.l.b16 %v1371
    %v1457 = vunpack.c.h.b16 %v1371
    %v1458 = vunpack.c.l.b16 %v1372
    %v1459 = vunpack.c.h.b16 %v1372
    %v1460 = vunpack.c.l.b16 %v1373
    %v1461 = vunpack.c.h.b16 %v1373
    %v1462 = vunpack.c.l.b16 %v1374
    %v1463 = vunpack.c.h.b16 %v1374
    %v1464 = vunpack.c.l.b16 %v1375
    %v1465 = vunpack.c.h.b16 %v1375
    %v1466 = vunpack.c.l.b16 %v1376
    %v1467 = vunpack.c.h.b16 %v1376
    %v1468 = vunpack.c.l.b16 %v1377
    %v1469 = vunpack.c.h.b16 %v1377
    %v1470 = vunpack.c.l.b16 %v1378
    %v1471 = vunpack.c.h.b16 %v1378
    %v1472 = vunpack.c.l.b16 %v1379
    %v1473 = vunpack.c.h.b16 %v1379
    %v1474 = vunpack.c.l.b16 %v1380
    %v1475 = vunpack.c.h.b16 %v1380
    %v1476 = vunpack.c.l.b16 %v1381
    %v1477 = vunpack.c.h.b16 %v1381
    %v1478 = vpack.c.b16 %v1418, %v1414
    %v1479 = vpack.c.b16 %v1419, %v1415
    %v1480 = vpack.c.b16 %v1420, %v1416
    %v1481 = vpack.c.b16 %v1421, %v1417
    %v1482 = vpack.c.b16 %v1426, %v1422
    %v1483 = vpack.c.b16 %v1427, %v1423
    %v1484 = vpack.c.b16 %v1428, %v1424
    %v1485 = vpack.c.b16 %v1429, %v1425
    %v1486 = vpack.c.b16 %v1434, %v1430
    %v1487 = vpack.c.b16 %v1435, %v1431
    %v1488 = vpack.c.b16 %v1436, %v1432
    %v1489 = vpack.c.b16 %v1437, %v1433
    %v1490 = vpack.c.b16 %v1442, %v1438
    %v1491 = vpack.c.b16 %v1443, %v1439
    %v1492 = vpack.c.b16 %v1444, %v1440
    %v1493 = vpack.c.b16 %v1445, %v1441
    %v1494 = vpack.c.b16 %v1450, %v1446
    %v1495 = vpack.c.b16 %v1451, %v1447
    %v1496 = vpack.c.b16 %v1452, %v1448
    %v1497 = vpack.c.b16 %v1453, %v1449
    %v1498 = vpack.c.b16 %v1458, %v1454
    %v1499 = vpack.c.b16 %v1459, %v1455
    %v1500 = vpack.c.b16 %v1460, %v1456
    %v1501 = vpack.c.b16 %v1461, %v1457
    %v1502 = vpack.c.b16 %v1466, %v1462
    %v1503 = vpack.c.b16 %v1467, %v1463
    %v1504 = vpack.c.b16 %v1468, %v1464
    %v1505 = vpack.c.b16 %v1469, %v1465
    %v1506 = vpack.c.b16 %v1474, %v1470
    %v1507 = vpack.c.b16 %v1475, %v1471
    %v1508 = vpack.c.b16 %v1476, %v1472
    %v1509 = vpack.c.b16 %v1477, %v1473
    %1542 = vmatpush.bf16.msra.mxu0 %v368
    %1543 = vmatpush.bf16.msra.mxu0 %v367
    %1544 = vmatpush.bf16.msra.mxu0 %v366
    %1545 = vmatpush.bf16.msra.mxu0 %v365
    %1546 = vmatpush.bf16.msra.mxu0 %v364
    %1547 = vmatpush.bf16.msra.mxu0 %v363
    %1548 = vmatpush.bf16.msra.mxu0 %v362
    %1549 = vmatpush.bf16.msra.mxu0 %v361
    %1550 = vmatmul.bf16.gmra.mxu0 %v1478
    %v1551 = vpop.f32.mrf.mxu0
    %v1552 = vadd.f32 0.0, %v1551
    %v1553 = vpop.f32.mrf.mxu0
    %v1554 = vadd.f32 0.0, %v1553
    %1555 = vmatmul.bf16.gmra.mxu0 %v1482
    %v1556 = vpop.f32.mrf.mxu0
    %v1557 = vadd.f32 0.0, %v1556
    %v1558 = vpop.f32.mrf.mxu0
    %v1559 = vadd.f32 0.0, %v1558
    %1560 = vmatmul.bf16.gmra.mxu0 %v1486
    %v1561 = vpop.f32.mrf.mxu0
    %v1562 = vadd.f32 0.0, %v1561
    %v1563 = vpop.f32.mrf.mxu0
    %v1564 = vadd.f32 0.0, %v1563
    %1565 = vmatmul.bf16.gmra.mxu0 %v1490
    %v1566 = vpop.f32.mrf.mxu0
    %v1567 = vadd.f32 0.0, %v1566
    %v1568 = vpop.f32.mrf.mxu0
    %v1569 = vadd.f32 0.0, %v1568
    %1570 = vmatmul.bf16.gmra.mxu0 %v1494
    %v1571 = vpop.f32.mrf.mxu0
    %v1572 = vadd.f32 0.0, %v1571
    %v1573 = vpop.f32.mrf.mxu0
    %v1574 = vadd.f32 0.0, %v1573
    %1575 = vmatmul.bf16.gmra.mxu0 %v1498
    %v1576 = vpop.f32.mrf.mxu0
    %v1577 = vadd.f32 0.0, %v1576
    %v1578 = vpop.f32.mrf.mxu0
    %v1579 = vadd.f32 0.0, %v1578
    %1580 = vmatmul.bf16.gmra.mxu0 %v1502
    %v1581 = vpop.f32.mrf.mxu0
    %v1582 = vadd.f32 0.0, %v1581
    %v1583 = vpop.f32.mrf.mxu0
    %v1584 = vadd.f32 0.0, %v1583
    %1585 = vmatmul.bf16.gmra.mxu0 %v1506
    %v1586 = vpop.f32.mrf.mxu0
    %v1587 = vadd.f32 0.0, %v1586
    %v1588 = vpop.f32.mrf.mxu0
    %v1589 = vadd.f32 0.0, %v1588
    %1590 = vdwg.mxu0
    %1591 = vmatpush.bf16.msra.mxu0 %v376
    %1592 = vmatpush.bf16.msra.mxu0 %v375
    %1593 = vmatpush.bf16.msra.mxu0 %v374
    %1594 = vmatpush.bf16.msra.mxu0 %v373
    %1595 = vmatpush.bf16.msra.mxu0 %v372
    %1596 = vmatpush.bf16.msra.mxu0 %v371
    %1597 = vmatpush.bf16.msra.mxu0 %v370
    %1598 = vmatpush.bf16.msra.mxu0 %v369
    %1599 = vmatmul.bf16.gmra.mxu0 %v1479
    %v1600 = vpop.f32.mrf.mxu0
    %v1601 = vadd.f32 %v1552, %v1600
    %v1602 = vpop.f32.mrf.mxu0
    %v1603 = vadd.f32 %v1554, %v1602
    %1604 = vmatmul.bf16.gmra.mxu0 %v1483
    %v1605 = vpop.f32.mrf.mxu0
    %v1606 = vadd.f32 %v1557, %v1605
    %v1607 = vpop.f32.mrf.mxu0
    %v1608 = vadd.f32 %v1559, %v1607
    %1609 = vmatmul.bf16.gmra.mxu0 %v1487
    %v1610 = vpop.f32.mrf.mxu0
    %v1611 = vadd.f32 %v1562, %v1610
    %v1612 = vpop.f32.mrf.mxu0
    %v1613 = vadd.f32 %v1564, %v1612
    %1614 = vmatmul.bf16.gmra.mxu0 %v1491
    %v1615 = vpop.f32.mrf.mxu0
    %v1616 = vadd.f32 %v1567, %v1615
    %v1617 = vpop.f32.mrf.mxu0
    %v1618 = vadd.f32 %v1569, %v1617
    %1619 = vmatmul.bf16.gmra.mxu0 %v1495
    %v1620 = vpop.f32.mrf.mxu0
    %v1621 = vadd.f32 %v1572, %v1620
    %v1622 = vpop.f32.mrf.mxu0
    %v1623 = vadd.f32 %v1574, %v1622
    %1624 = vmatmul.bf16.gmra.mxu0 %v1499
    %v1625 = vpop.f32.mrf.mxu0
    %v1626 = vadd.f32 %v1577, %v1625
    %v1627 = vpop.f32.mrf.mxu0
    %v1628 = vadd.f32 %v1579, %v1627
    %1629 = vmatmul.bf16.gmra.mxu0 %v1503
    %v1630 = vpop.f32.mrf.mxu0
    %v1631 = vadd.f32 %v1582, %v1630
    %v1632 = vpop.f32.mrf.mxu0
    %v1633 = vadd.f32 %v1584, %v1632
    %1634 = vmatmul.bf16.gmra.mxu0 %v1507
    %v1635 = vpop.f32.mrf.mxu0
    %v1636 = vadd.f32 %v1587, %v1635
    %v1637 = vpop.f32.mrf.mxu0
    %v1638 = vadd.f32 %v1589, %v1637
    %1639 = vdwg.mxu0
    %1640 = vmatpush.bf16.msra.mxu0 %v384
    %1641 = vmatpush.bf16.msra.mxu0 %v383
    %1642 = vmatpush.bf16.msra.mxu0 %v382
    %1643 = vmatpush.bf16.msra.mxu0 %v381
    %1644 = vmatpush.bf16.msra.mxu0 %v380
    %1645 = vmatpush.bf16.msra.mxu0 %v379
    %1646 = vmatpush.bf16.msra.mxu0 %v378
    %1647 = vmatpush.bf16.msra.mxu0 %v377
    %1648 = vmatmul.bf16.gmra.mxu0 %v1480
    %v1649 = vpop.f32.mrf.mxu0
    %v1650 = vadd.f32 %v1601, %v1649
    %v1651 = vpop.f32.mrf.mxu0
    %v1652 = vadd.f32 %v1603, %v1651
    %1653 = vmatmul.bf16.gmra.mxu0 %v1484
    %v1654 = vpop.f32.mrf.mxu0
    %v1655 = vadd.f32 %v1606, %v1654
    %v1656 = vpop.f32.mrf.mxu0
    %v1657 = vadd.f32 %v1608, %v1656
    %1658 = vmatmul.bf16.gmra.mxu0 %v1488
    %v1659 = vpop.f32.mrf.mxu0
    %v1660 = vadd.f32 %v1611, %v1659
    %v1661 = vpop.f32.mrf.mxu0
    %v1662 = vadd.f32 %v1613, %v1661
    %1663 = vmatmul.bf16.gmra.mxu0 %v1492
    %v1664 = vpop.f32.mrf.mxu0
    %v1665 = vadd.f32 %v1616, %v1664
    %v1666 = vpop.f32.mrf.mxu0
    %v1667 = vadd.f32 %v1618, %v1666
    %1668 = vmatmul.bf16.gmra.mxu0 %v1496
    %v1669 = vpop.f32.mrf.mxu0
    %v1670 = vadd.f32 %v1621, %v1669
    %v1671 = vpop.f32.mrf.mxu0
    %v1672 = vadd.f32 %v1623, %v1671
    %1673 = vmatmul.bf16.gmra.mxu0 %v1500
    %v1674 = vpop.f32.mrf.mxu0
    %v1675 = vadd.f32 %v1626, %v1674
    %v1676 = vpop.f32.mrf.mxu0
    %v1677 = vadd.f32 %v1628, %v1676
    %1678 = vmatmul.bf16.gmra.mxu0 %v1504
    %v1679 = vpop.f32.mrf.mxu0
    %v1680 = vadd.f32 %v1631, %v1679
    %v1681 = vpop.f32.mrf.mxu0
    %v1682 = vadd.f32 %v1633, %v1681
    %1683 = vmatmul.bf16.gmra.mxu0 %v1508
    %v1684 = vpop.f32.mrf.mxu0
    %v1685 = vadd.f32 %v1636, %v1684
    %v1686 = vpop.f32.mrf.mxu0
    %v1687 = vadd.f32 %v1638, %v1686
    %1688 = vdwg.mxu0
    %1689 = vmatpush.bf16.msra.mxu0 %v392
    %1690 = vmatpush.bf16.msra.mxu0 %v391
    %1691 = vmatpush.bf16.msra.mxu0 %v390
    %1692 = vmatpush.bf16.msra.mxu0 %v389
    %1693 = vmatpush.bf16.msra.mxu0 %v388
    %1694 = vmatpush.bf16.msra.mxu0 %v387
    %1695 = vmatpush.bf16.msra.mxu0 %v386
    %1696 = vmatpush.bf16.msra.mxu0 %v385
    %1697 = vmatmul.bf16.gmra.mxu0 %v1481
    %v1698 = vpop.f32.mrf.mxu0
    %v1699 = vadd.f32 %v1650, %v1698
    %v1700 = vpop.f32.mrf.mxu0
    %v1701 = vadd.f32 %v1652, %v1700
    %1702 = vmatmul.bf16.gmra.mxu0 %v1485
    %v1703 = vpop.f32.mrf.mxu0
    %v1704 = vadd.f32 %v1655, %v1703
    %v1705 = vpop.f32.mrf.mxu0
    %v1706 = vadd.f32 %v1657, %v1705
    %1707 = vmatmul.bf16.gmra.mxu0 %v1489
    %v1708 = vpop.f32.mrf.mxu0
    %v1709 = vadd.f32 %v1660, %v1708
    %v1710 = vpop.f32.mrf.mxu0
    %v1711 = vadd.f32 %v1662, %v1710
    %1712 = vmatmul.bf16.gmra.mxu0 %v1493
    %v1713 = vpop.f32.mrf.mxu0
    %v1714 = vadd.f32 %v1665, %v1713
    %v1715 = vpop.f32.mrf.mxu0
    %v1716 = vadd.f32 %v1667, %v1715
    %1717 = vmatmul.bf16.gmra.mxu0 %v1497
    %v1718 = vpop.f32.mrf.mxu0
    %v1719 = vadd.f32 %v1670, %v1718
    %v1720 = vpop.f32.mrf.mxu0
    %v1721 = vadd.f32 %v1672, %v1720
    %1722 = vmatmul.bf16.gmra.mxu0 %v1501
    %v1723 = vpop.f32.mrf.mxu0
    %v1724 = vadd.f32 %v1675, %v1723
    %v1725 = vpop.f32.mrf.mxu0
    %v1726 = vadd.f32 %v1677, %v1725
    %1727 = vmatmul.bf16.gmra.mxu0 %v1505
    %v1728 = vpop.f32.mrf.mxu0
    %v1729 = vadd.f32 %v1680, %v1728
    %v1730 = vpop.f32.mrf.mxu0
    %v1731 = vadd.f32 %v1682, %v1730
    %1732 = vmatmul.bf16.gmra.mxu0 %v1509
    %v1733 = vpop.f32.mrf.mxu0
    %v1734 = vadd.f32 %v1685, %v1733
    %v1735 = vpop.f32.mrf.mxu0
    %v1736 = vadd.f32 %v1687, %v1735
    %1737 = vdwg.mxu0
    %s1738 = scalar_lea.vmem %s15, 64
    %v1739 = vld [vmem:[%s1738] sm:$0xff]
    %v1740 = vld [vmem:[%s1738 + $0x8] sm:$0xff]
    %v1741 = vld [vmem:[%s1738 + $0x10] sm:$0xff]
    %v1742 = vld [vmem:[%s1738 + $0x18] sm:$0xff]
    %v1743 = vpack.c.bf16 %v1701, %v1699
    %v1744 = vpack.c.bf16 %v1706, %v1704
    %v1745 = vpack.c.bf16 %v1711, %v1709
    %v1746 = vpack.c.bf16 %v1716, %v1714
    %v1747 = vpack.c.bf16 %v1721, %v1719
    %v1748 = vpack.c.bf16 %v1726, %v1724
    %v1749 = vpack.c.bf16 %v1731, %v1729
    %v1750 = vpack.c.bf16 %v1736, %v1734
    %v1751 = vpack.c.bf16 %v1740, %v1739
    %v1752 = vpack.c.bf16 %v1742, %v1741
    %v1754 = vsel %vm763, %v1743, 0
    %v1757 = vsel %vm763, %v1744, 0
    %v1760 = vsel %vm763, %v1745, 0
    %v1763 = vsel %vm763, %v1746, 0
    %v1766 = vsel %vm763, %v1747, 0
    %v1769 = vsel %vm763, %v1748, 0
    %v1772 = vsel %vm763, %v1749, 0
    %v1775 = vsel %vm763, %v1750, 0
    %1777 = vmatpush.bf16.msra.mxu0 0
    %1778 = vmatpush.bf16.msra.mxu0 0
    %1779 = vmatpush.bf16.msra.mxu0 0
    %1780 = vmatpush.bf16.msra.mxu0 0
    %1781 = vmatpush.bf16.msra.mxu0 0
    %1782 = vmatpush.bf16.msra.mxu0 0
    %1783 = vmatpush.bf16.msra.mxu0 %v1752
    %1784 = vmatpush.bf16.msra.mxu0 %v1751
    %1785 = vmatmul.bf16.gmra.mxu0 %v1754
    %v1786 = vpop.f32.mrf.mxu0
    %v1787 = vadd.f32 0.0, %v1786
    %v1788 = vpop.f32.mrf.mxu0
    %v1789 = vadd.f32 0.0, %v1788
    %1790 = vmatmul.bf16.gmra.mxu0 %v1757
    %v1791 = vpop.f32.mrf.mxu0
    %v1792 = vadd.f32 0.0, %v1791
    %v1793 = vpop.f32.mrf.mxu0
    %v1794 = vadd.f32 0.0, %v1793
    %1795 = vmatmul.bf16.gmra.mxu0 %v1760
    %v1796 = vpop.f32.mrf.mxu0
    %v1797 = vadd.f32 0.0, %v1796
    %v1798 = vpop.f32.mrf.mxu0
    %v1799 = vadd.f32 0.0, %v1798
    %1800 = vmatmul.bf16.gmra.mxu0 %v1763
    %v1801 = vpop.f32.mrf.mxu0
    %v1802 = vadd.f32 0.0, %v1801
    %v1803 = vpop.f32.mrf.mxu0
    %v1804 = vadd.f32 0.0, %v1803
    %1805 = vmatmul.bf16.gmra.mxu0 %v1766
    %v1806 = vpop.f32.mrf.mxu0
    %v1807 = vadd.f32 0.0, %v1806
    %v1808 = vpop.f32.mrf.mxu0
    %v1809 = vadd.f32 0.0, %v1808
    %1810 = vmatmul.bf16.gmra.mxu0 %v1769
    %v1811 = vpop.f32.mrf.mxu0
    %v1812 = vadd.f32 0.0, %v1811
    %v1813 = vpop.f32.mrf.mxu0
    %v1814 = vadd.f32 0.0, %v1813
    %1815 = vmatmul.bf16.gmra.mxu0 %v1772
    %v1816 = vpop.f32.mrf.mxu0
    %v1817 = vadd.f32 0.0, %v1816
    %v1818 = vpop.f32.mrf.mxu0
    %v1819 = vadd.f32 0.0, %v1818
    %1820 = vmatmul.bf16.gmra.mxu0 %v1775
    %v1821 = vpop.f32.mrf.mxu0
    %v1822 = vadd.f32 0.0, %v1821
    %v1823 = vpop.f32.mrf.mxu0
    %v1824 = vadd.f32 0.0, %v1823
    %1825 = vdwg.mxu0
    %v1826 = vadd.f32 %v1333, %v1787
    %v1827 = vadd.f32 %v1334, %v1789
    %v1828 = vadd.f32 %v1335, %v1792
    %v1829 = vadd.f32 %v1336, %v1794
    %v1830 = vadd.f32 %v1337, %v1797
    %v1831 = vadd.f32 %v1338, %v1799
    %v1832 = vadd.f32 %v1339, %v1802
    %v1833 = vadd.f32 %v1340, %v1804
    %v1834 = vadd.f32 %v1341, %v1807
    %v1835 = vadd.f32 %v1342, %v1809
    %v1836 = vadd.f32 %v1343, %v1812
    %v1837 = vadd.f32 %v1344, %v1814
    %v1838 = vadd.f32 %v1345, %v1817
    %v1839 = vadd.f32 %v1346, %v1819
    %v1840 = vadd.f32 %v1347, %v1822
    %v1841 = vadd.f32 %v1348, %v1824
    %s1842 = scalar_lea.vmem %s9, 768
    %v1843 = vld [vmem:[%s1842] sm:$0xff]
    %v1844 = vld [vmem:[%s1842 + $0x8] sm:$0xff]
    %v1845 = vld [vmem:[%s1842 + $0x10] sm:$0xff]
    %v1846 = vld [vmem:[%s1842 + $0x18] sm:$0xff]
    %v1847 = vld [vmem:[%s1842 + $0x20] sm:$0xff]
    %v1848 = vld [vmem:[%s1842 + $0x28] sm:$0xff]
    %v1849 = vld [vmem:[%s1842 + $0x30] sm:$0xff]
    %v1850 = vld [vmem:[%s1842 + $0x38] sm:$0xff]
    %v1851 = vld [vmem:[%s1842 + $0x40] sm:$0xff]
    %v1852 = vld [vmem:[%s1842 + $0x48] sm:$0xff]
    %v1853 = vld [vmem:[%s1842 + $0x50] sm:$0xff]
    %v1854 = vld [vmem:[%s1842 + $0x58] sm:$0xff]
    %v1855 = vld [vmem:[%s1842 + $0x60] sm:$0xff]
    %v1856 = vld [vmem:[%s1842 + $0x68] sm:$0xff]
    %v1857 = vld [vmem:[%s1842 + $0x70] sm:$0xff]
    %v1858 = vld [vmem:[%s1842 + $0x78] sm:$0xff]
    %v1859 = vld [vmem:[%s1842 + $0x80] sm:$0xff]
    %v1860 = vld [vmem:[%s1842 + $0x88] sm:$0xff]
    %v1861 = vld [vmem:[%s1842 + $0x90] sm:$0xff]
    %v1862 = vld [vmem:[%s1842 + $0x98] sm:$0xff]
    %v1863 = vld [vmem:[%s1842 + $0xa0] sm:$0xff]
    %v1864 = vld [vmem:[%s1842 + $0xa8] sm:$0xff]
    %v1865 = vld [vmem:[%s1842 + $0xb0] sm:$0xff]
    %v1866 = vld [vmem:[%s1842 + $0xb8] sm:$0xff]
    %v1867 = vld [vmem:[%s1842 + $0xc0] sm:$0xff]
    %v1868 = vld [vmem:[%s1842 + $0xc8] sm:$0xff]
    %v1869 = vld [vmem:[%s1842 + $0xd0] sm:$0xff]
    %v1870 = vld [vmem:[%s1842 + $0xd8] sm:$0xff]
    %v1871 = vld [vmem:[%s1842 + $0xe0] sm:$0xff]
    %v1872 = vld [vmem:[%s1842 + $0xe8] sm:$0xff]
    %v1873 = vld [vmem:[%s1842 + $0xf0] sm:$0xff]
    %v1874 = vld [vmem:[%s1842 + $0xf8] sm:$0xff]
    %v1907 = vunpack.c.l.b16 %v1843
    %v1908 = vunpack.c.h.b16 %v1843
    %v1909 = vunpack.c.l.b16 %v1844
    %v1910 = vunpack.c.h.b16 %v1844
    %v1911 = vunpack.c.l.b16 %v1845
    %v1912 = vunpack.c.h.b16 %v1845
    %v1913 = vunpack.c.l.b16 %v1846
    %v1914 = vunpack.c.h.b16 %v1846
    %v1915 = vunpack.c.l.b16 %v1847
    %v1916 = vunpack.c.h.b16 %v1847
    %v1917 = vunpack.c.l.b16 %v1848
    %v1918 = vunpack.c.h.b16 %v1848
    %v1919 = vunpack.c.l.b16 %v1849
    %v1920 = vunpack.c.h.b16 %v1849
    %v1921 = vunpack.c.l.b16 %v1850
    %v1922 = vunpack.c.h.b16 %v1850
    %v1923 = vunpack.c.l.b16 %v1851
    %v1924 = vunpack.c.h.b16 %v1851
    %v1925 = vunpack.c.l.b16 %v1852
    %v1926 = vunpack.c.h.b16 %v1852
    %v1927 = vunpack.c.l.b16 %v1853
    %v1928 = vunpack.c.h.b16 %v1853
    %v1929 = vunpack.c.l.b16 %v1854
    %v1930 = vunpack.c.h.b16 %v1854
    %v1931 = vunpack.c.l.b16 %v1855
    %v1932 = vunpack.c.h.b16 %v1855
    %v1933 = vunpack.c.l.b16 %v1856
    %v1934 = vunpack.c.h.b16 %v1856
    %v1935 = vunpack.c.l.b16 %v1857
    %v1936 = vunpack.c.h.b16 %v1857
    %v1937 = vunpack.c.l.b16 %v1858
    %v1938 = vunpack.c.h.b16 %v1858
    %v1939 = vunpack.c.l.b16 %v1859
    %v1940 = vunpack.c.h.b16 %v1859
    %v1941 = vunpack.c.l.b16 %v1860
    %v1942 = vunpack.c.h.b16 %v1860
    %v1943 = vunpack.c.l.b16 %v1861
    %v1944 = vunpack.c.h.b16 %v1861
    %v1945 = vunpack.c.l.b16 %v1862
    %v1946 = vunpack.c.h.b16 %v1862
    %v1947 = vunpack.c.l.b16 %v1863
    %v1948 = vunpack.c.h.b16 %v1863
    %v1949 = vunpack.c.l.b16 %v1864
    %v1950 = vunpack.c.h.b16 %v1864
    %v1951 = vunpack.c.l.b16 %v1865
    %v1952 = vunpack.c.h.b16 %v1865
    %v1953 = vunpack.c.l.b16 %v1866
    %v1954 = vunpack.c.h.b16 %v1866
    %v1955 = vunpack.c.l.b16 %v1867
    %v1956 = vunpack.c.h.b16 %v1867
    %v1957 = vunpack.c.l.b16 %v1868
    %v1958 = vunpack.c.h.b16 %v1868
    %v1959 = vunpack.c.l.b16 %v1869
    %v1960 = vunpack.c.h.b16 %v1869
    %v1961 = vunpack.c.l.b16 %v1870
    %v1962 = vunpack.c.h.b16 %v1870
    %v1963 = vunpack.c.l.b16 %v1871
    %v1964 = vunpack.c.h.b16 %v1871
    %v1965 = vunpack.c.l.b16 %v1872
    %v1966 = vunpack.c.h.b16 %v1872
    %v1967 = vunpack.c.l.b16 %v1873
    %v1968 = vunpack.c.h.b16 %v1873
    %v1969 = vunpack.c.l.b16 %v1874
    %v1970 = vunpack.c.h.b16 %v1874
    %v1971 = vpack.c.b16 %v1911, %v1907
    %v1972 = vpack.c.b16 %v1912, %v1908
    %v1973 = vpack.c.b16 %v1913, %v1909
    %v1974 = vpack.c.b16 %v1914, %v1910
    %v1975 = vpack.c.b16 %v1919, %v1915
    %v1976 = vpack.c.b16 %v1920, %v1916
    %v1977 = vpack.c.b16 %v1921, %v1917
    %v1978 = vpack.c.b16 %v1922, %v1918
    %v1979 = vpack.c.b16 %v1927, %v1923
    %v1980 = vpack.c.b16 %v1928, %v1924
    %v1981 = vpack.c.b16 %v1929, %v1925
    %v1982 = vpack.c.b16 %v1930, %v1926
    %v1983 = vpack.c.b16 %v1935, %v1931
    %v1984 = vpack.c.b16 %v1936, %v1932
    %v1985 = vpack.c.b16 %v1937, %v1933
    %v1986 = vpack.c.b16 %v1938, %v1934
    %v1987 = vpack.c.b16 %v1943, %v1939
    %v1988 = vpack.c.b16 %v1944, %v1940
    %v1989 = vpack.c.b16 %v1945, %v1941
    %v1990 = vpack.c.b16 %v1946, %v1942
    %v1991 = vpack.c.b16 %v1951, %v1947
    %v1992 = vpack.c.b16 %v1952, %v1948
    %v1993 = vpack.c.b16 %v1953, %v1949
    %v1994 = vpack.c.b16 %v1954, %v1950
    %v1995 = vpack.c.b16 %v1959, %v1955
    %v1996 = vpack.c.b16 %v1960, %v1956
    %v1997 = vpack.c.b16 %v1961, %v1957
    %v1998 = vpack.c.b16 %v1962, %v1958
    %v1999 = vpack.c.b16 %v1967, %v1963
    %v2000 = vpack.c.b16 %v1968, %v1964
    %v2001 = vpack.c.b16 %v1969, %v1965
    %v2002 = vpack.c.b16 %v1970, %v1966
    %2035 = vmatpush.bf16.msra.mxu0 %v368
    %2036 = vmatpush.bf16.msra.mxu0 %v367
    %2037 = vmatpush.bf16.msra.mxu0 %v366
    %2038 = vmatpush.bf16.msra.mxu0 %v365
    %2039 = vmatpush.bf16.msra.mxu0 %v364
    %2040 = vmatpush.bf16.msra.mxu0 %v363
    %2041 = vmatpush.bf16.msra.mxu0 %v362
    %2042 = vmatpush.bf16.msra.mxu0 %v361
    %2043 = vmatmul.bf16.gmra.mxu0 %v1971
    %v2044 = vpop.f32.mrf.mxu0
    %v2045 = vadd.f32 0.0, %v2044
    %v2046 = vpop.f32.mrf.mxu0
    %v2047 = vadd.f32 0.0, %v2046
    %2048 = vmatmul.bf16.gmra.mxu0 %v1975
    %v2049 = vpop.f32.mrf.mxu0
    %v2050 = vadd.f32 0.0, %v2049
    %v2051 = vpop.f32.mrf.mxu0
    %v2052 = vadd.f32 0.0, %v2051
    %2053 = vmatmul.bf16.gmra.mxu0 %v1979
    %v2054 = vpop.f32.mrf.mxu0
    %v2055 = vadd.f32 0.0, %v2054
    %v2056 = vpop.f32.mrf.mxu0
    %v2057 = vadd.f32 0.0, %v2056
    %2058 = vmatmul.bf16.gmra.mxu0 %v1983
    %v2059 = vpop.f32.mrf.mxu0
    %v2060 = vadd.f32 0.0, %v2059
    %v2061 = vpop.f32.mrf.mxu0
    %v2062 = vadd.f32 0.0, %v2061
    %2063 = vmatmul.bf16.gmra.mxu0 %v1987
    %v2064 = vpop.f32.mrf.mxu0
    %v2065 = vadd.f32 0.0, %v2064
    %v2066 = vpop.f32.mrf.mxu0
    %v2067 = vadd.f32 0.0, %v2066
    %2068 = vmatmul.bf16.gmra.mxu0 %v1991
    %v2069 = vpop.f32.mrf.mxu0
    %v2070 = vadd.f32 0.0, %v2069
    %v2071 = vpop.f32.mrf.mxu0
    %v2072 = vadd.f32 0.0, %v2071
    %2073 = vmatmul.bf16.gmra.mxu0 %v1995
    %v2074 = vpop.f32.mrf.mxu0
    %v2075 = vadd.f32 0.0, %v2074
    %v2076 = vpop.f32.mrf.mxu0
    %v2077 = vadd.f32 0.0, %v2076
    %2078 = vmatmul.bf16.gmra.mxu0 %v1999
    %v2079 = vpop.f32.mrf.mxu0
    %v2080 = vadd.f32 0.0, %v2079
    %v2081 = vpop.f32.mrf.mxu0
    %v2082 = vadd.f32 0.0, %v2081
    %2083 = vdwg.mxu0
    %2084 = vmatpush.bf16.msra.mxu0 %v376
    %2085 = vmatpush.bf16.msra.mxu0 %v375
    %2086 = vmatpush.bf16.msra.mxu0 %v374
    %2087 = vmatpush.bf16.msra.mxu0 %v373
    %2088 = vmatpush.bf16.msra.mxu0 %v372
    %2089 = vmatpush.bf16.msra.mxu0 %v371
    %2090 = vmatpush.bf16.msra.mxu0 %v370
    %2091 = vmatpush.bf16.msra.mxu0 %v369
    %2092 = vmatmul.bf16.gmra.mxu0 %v1972
    %v2093 = vpop.f32.mrf.mxu0
    %v2094 = vadd.f32 %v2045, %v2093
    %v2095 = vpop.f32.mrf.mxu0
    %v2096 = vadd.f32 %v2047, %v2095
    %2097 = vmatmul.bf16.gmra.mxu0 %v1976
    %v2098 = vpop.f32.mrf.mxu0
    %v2099 = vadd.f32 %v2050, %v2098
    %v2100 = vpop.f32.mrf.mxu0
    %v2101 = vadd.f32 %v2052, %v2100
    %2102 = vmatmul.bf16.gmra.mxu0 %v1980
    %v2103 = vpop.f32.mrf.mxu0
    %v2104 = vadd.f32 %v2055, %v2103
    %v2105 = vpop.f32.mrf.mxu0
    %v2106 = vadd.f32 %v2057, %v2105
    %2107 = vmatmul.bf16.gmra.mxu0 %v1984
    %v2108 = vpop.f32.mrf.mxu0
    %v2109 = vadd.f32 %v2060, %v2108
    %v2110 = vpop.f32.mrf.mxu0
    %v2111 = vadd.f32 %v2062, %v2110
    %2112 = vmatmul.bf16.gmra.mxu0 %v1988
    %v2113 = vpop.f32.mrf.mxu0
    %v2114 = vadd.f32 %v2065, %v2113
    %v2115 = vpop.f32.mrf.mxu0
    %v2116 = vadd.f32 %v2067, %v2115
    %2117 = vmatmul.bf16.gmra.mxu0 %v1992
    %v2118 = vpop.f32.mrf.mxu0
    %v2119 = vadd.f32 %v2070, %v2118
    %v2120 = vpop.f32.mrf.mxu0
    %v2121 = vadd.f32 %v2072, %v2120
    %2122 = vmatmul.bf16.gmra.mxu0 %v1996
    %v2123 = vpop.f32.mrf.mxu0
    %v2124 = vadd.f32 %v2075, %v2123
    %v2125 = vpop.f32.mrf.mxu0
    %v2126 = vadd.f32 %v2077, %v2125
    %2127 = vmatmul.bf16.gmra.mxu0 %v2000
    %v2128 = vpop.f32.mrf.mxu0
    %v2129 = vadd.f32 %v2080, %v2128
    %v2130 = vpop.f32.mrf.mxu0
    %v2131 = vadd.f32 %v2082, %v2130
    %2132 = vdwg.mxu0
    %2133 = vmatpush.bf16.msra.mxu0 %v384
    %2134 = vmatpush.bf16.msra.mxu0 %v383
    %2135 = vmatpush.bf16.msra.mxu0 %v382
    %2136 = vmatpush.bf16.msra.mxu0 %v381
    %2137 = vmatpush.bf16.msra.mxu0 %v380
    %2138 = vmatpush.bf16.msra.mxu0 %v379
    %2139 = vmatpush.bf16.msra.mxu0 %v378
    %2140 = vmatpush.bf16.msra.mxu0 %v377
    %2141 = vmatmul.bf16.gmra.mxu0 %v1973
    %v2142 = vpop.f32.mrf.mxu0
    %v2143 = vadd.f32 %v2094, %v2142
    %v2144 = vpop.f32.mrf.mxu0
    %v2145 = vadd.f32 %v2096, %v2144
    %2146 = vmatmul.bf16.gmra.mxu0 %v1977
    %v2147 = vpop.f32.mrf.mxu0
    %v2148 = vadd.f32 %v2099, %v2147
    %v2149 = vpop.f32.mrf.mxu0
    %v2150 = vadd.f32 %v2101, %v2149
    %2151 = vmatmul.bf16.gmra.mxu0 %v1981
    %v2152 = vpop.f32.mrf.mxu0
    %v2153 = vadd.f32 %v2104, %v2152
    %v2154 = vpop.f32.mrf.mxu0
    %v2155 = vadd.f32 %v2106, %v2154
    %2156 = vmatmul.bf16.gmra.mxu0 %v1985
    %v2157 = vpop.f32.mrf.mxu0
    %v2158 = vadd.f32 %v2109, %v2157
    %v2159 = vpop.f32.mrf.mxu0
    %v2160 = vadd.f32 %v2111, %v2159
    %2161 = vmatmul.bf16.gmra.mxu0 %v1989
    %v2162 = vpop.f32.mrf.mxu0
    %v2163 = vadd.f32 %v2114, %v2162
    %v2164 = vpop.f32.mrf.mxu0
    %v2165 = vadd.f32 %v2116, %v2164
    %2166 = vmatmul.bf16.gmra.mxu0 %v1993
    %v2167 = vpop.f32.mrf.mxu0
    %v2168 = vadd.f32 %v2119, %v2167
    %v2169 = vpop.f32.mrf.mxu0
    %v2170 = vadd.f32 %v2121, %v2169
    %2171 = vmatmul.bf16.gmra.mxu0 %v1997
    %v2172 = vpop.f32.mrf.mxu0
    %v2173 = vadd.f32 %v2124, %v2172
    %v2174 = vpop.f32.mrf.mxu0
    %v2175 = vadd.f32 %v2126, %v2174
    %2176 = vmatmul.bf16.gmra.mxu0 %v2001
    %v2177 = vpop.f32.mrf.mxu0
    %v2178 = vadd.f32 %v2129, %v2177
    %v2179 = vpop.f32.mrf.mxu0
    %v2180 = vadd.f32 %v2131, %v2179
    %2181 = vdwg.mxu0
    %2182 = vmatpush.bf16.msra.mxu0 %v392
    %2183 = vmatpush.bf16.msra.mxu0 %v391
    %2184 = vmatpush.bf16.msra.mxu0 %v390
    %2185 = vmatpush.bf16.msra.mxu0 %v389
    %2186 = vmatpush.bf16.msra.mxu0 %v388
    %2187 = vmatpush.bf16.msra.mxu0 %v387
    %2188 = vmatpush.bf16.msra.mxu0 %v386
    %2189 = vmatpush.bf16.msra.mxu0 %v385
    %2190 = vmatmul.bf16.gmra.mxu0 %v1974
    %v2191 = vpop.f32.mrf.mxu0
    %v2192 = vadd.f32 %v2143, %v2191
    %v2193 = vpop.f32.mrf.mxu0
    %v2194 = vadd.f32 %v2145, %v2193
    %2195 = vmatmul.bf16.gmra.mxu0 %v1978
    %v2196 = vpop.f32.mrf.mxu0
    %v2197 = vadd.f32 %v2148, %v2196
    %v2198 = vpop.f32.mrf.mxu0
    %v2199 = vadd.f32 %v2150, %v2198
    %2200 = vmatmul.bf16.gmra.mxu0 %v1982
    %v2201 = vpop.f32.mrf.mxu0
    %v2202 = vadd.f32 %v2153, %v2201
    %v2203 = vpop.f32.mrf.mxu0
    %v2204 = vadd.f32 %v2155, %v2203
    %2205 = vmatmul.bf16.gmra.mxu0 %v1986
    %v2206 = vpop.f32.mrf.mxu0
    %v2207 = vadd.f32 %v2158, %v2206
    %v2208 = vpop.f32.mrf.mxu0
    %v2209 = vadd.f32 %v2160, %v2208
    %2210 = vmatmul.bf16.gmra.mxu0 %v1990
    %v2211 = vpop.f32.mrf.mxu0
    %v2212 = vadd.f32 %v2163, %v2211
    %v2213 = vpop.f32.mrf.mxu0
    %v2214 = vadd.f32 %v2165, %v2213
    %2215 = vmatmul.bf16.gmra.mxu0 %v1994
    %v2216 = vpop.f32.mrf.mxu0
    %v2217 = vadd.f32 %v2168, %v2216
    %v2218 = vpop.f32.mrf.mxu0
    %v2219 = vadd.f32 %v2170, %v2218
    %2220 = vmatmul.bf16.gmra.mxu0 %v1998
    %v2221 = vpop.f32.mrf.mxu0
    %v2222 = vadd.f32 %v2173, %v2221
    %v2223 = vpop.f32.mrf.mxu0
    %v2224 = vadd.f32 %v2175, %v2223
    %2225 = vmatmul.bf16.gmra.mxu0 %v2002
    %v2226 = vpop.f32.mrf.mxu0
    %v2227 = vadd.f32 %v2178, %v2226
    %v2228 = vpop.f32.mrf.mxu0
    %v2229 = vadd.f32 %v2180, %v2228
    %2230 = vdwg.mxu0
    %s2231 = scalar_lea.vmem %s15, 96
    %v2232 = vld [vmem:[%s2231] sm:$0xff]
    %v2233 = vld [vmem:[%s2231 + $0x8] sm:$0xff]
    %v2234 = vld [vmem:[%s2231 + $0x10] sm:$0xff]
    %v2235 = vld [vmem:[%s2231 + $0x18] sm:$0xff]
    %v2236 = vpack.c.bf16 %v2194, %v2192
    %v2237 = vpack.c.bf16 %v2199, %v2197
    %v2238 = vpack.c.bf16 %v2204, %v2202
    %v2239 = vpack.c.bf16 %v2209, %v2207
    %v2240 = vpack.c.bf16 %v2214, %v2212
    %v2241 = vpack.c.bf16 %v2219, %v2217
    %v2242 = vpack.c.bf16 %v2224, %v2222
    %v2243 = vpack.c.bf16 %v2229, %v2227
    %v2244 = vpack.c.bf16 %v2233, %v2232
    %v2245 = vpack.c.bf16 %v2235, %v2234
    %v2247 = vsel %vm763, %v2236, 0
    %v2250 = vsel %vm763, %v2237, 0
    %v2253 = vsel %vm763, %v2238, 0
    %v2256 = vsel %vm763, %v2239, 0
    %v2259 = vsel %vm763, %v2240, 0
    %v2262 = vsel %vm763, %v2241, 0
    %v2265 = vsel %vm763, %v2242, 0
    %v2268 = vsel %vm763, %v2243, 0
    %2270 = vmatpush.bf16.msra.mxu0 0
    %2271 = vmatpush.bf16.msra.mxu0 0
    %2272 = vmatpush.bf16.msra.mxu0 0
    %2273 = vmatpush.bf16.msra.mxu0 0
    %2274 = vmatpush.bf16.msra.mxu0 0
    %2275 = vmatpush.bf16.msra.mxu0 0
    %2276 = vmatpush.bf16.msra.mxu0 %v2245
    %2277 = vmatpush.bf16.msra.mxu0 %v2244
    %2278 = vmatmul.bf16.gmra.mxu0 %v2247
    %v2279 = vpop.f32.mrf.mxu0
    %v2280 = vadd.f32 0.0, %v2279
    %v2281 = vpop.f32.mrf.mxu0
    %v2282 = vadd.f32 0.0, %v2281
    %2283 = vmatmul.bf16.gmra.mxu0 %v2250
    %v2284 = vpop.f32.mrf.mxu0
    %v2285 = vadd.f32 0.0, %v2284
    %v2286 = vpop.f32.mrf.mxu0
    %v2287 = vadd.f32 0.0, %v2286
    %2288 = vmatmul.bf16.gmra.mxu0 %v2253
    %v2289 = vpop.f32.mrf.mxu0
    %v2290 = vadd.f32 0.0, %v2289
    %v2291 = vpop.f32.mrf.mxu0
    %v2292 = vadd.f32 0.0, %v2291
    %2293 = vmatmul.bf16.gmra.mxu0 %v2256
    %v2294 = vpop.f32.mrf.mxu0
    %v2295 = vadd.f32 0.0, %v2294
    %v2296 = vpop.f32.mrf.mxu0
    %v2297 = vadd.f32 0.0, %v2296
    %2298 = vmatmul.bf16.gmra.mxu0 %v2259
    %v2299 = vpop.f32.mrf.mxu0
    %v2300 = vadd.f32 0.0, %v2299
    %v2301 = vpop.f32.mrf.mxu0
    %v2302 = vadd.f32 0.0, %v2301
    %2303 = vmatmul.bf16.gmra.mxu0 %v2262
    %v2304 = vpop.f32.mrf.mxu0
    %v2305 = vadd.f32 0.0, %v2304
    %v2306 = vpop.f32.mrf.mxu0
    %v2307 = vadd.f32 0.0, %v2306
    %2308 = vmatmul.bf16.gmra.mxu0 %v2265
    %v2309 = vpop.f32.mrf.mxu0
    %v2310 = vadd.f32 0.0, %v2309
    %v2311 = vpop.f32.mrf.mxu0
    %v2312 = vadd.f32 0.0, %v2311
    %2313 = vmatmul.bf16.gmra.mxu0 %v2268
    %v2314 = vpop.f32.mrf.mxu0
    %v2315 = vadd.f32 0.0, %v2314
    %v2316 = vpop.f32.mrf.mxu0
    %v2317 = vadd.f32 0.0, %v2316
    %2318 = vdwg.mxu0
    %v2319 = vadd.f32 %v1826, %v2280
    %v2320 = vadd.f32 %v1827, %v2282
    %v2321 = vadd.f32 %v1828, %v2285
    %v2322 = vadd.f32 %v1829, %v2287
    %v2323 = vadd.f32 %v1830, %v2290
    %v2324 = vadd.f32 %v1831, %v2292
    %v2325 = vadd.f32 %v1832, %v2295
    %v2326 = vadd.f32 %v1833, %v2297
    %v2327 = vadd.f32 %v1834, %v2300
    %v2328 = vadd.f32 %v1835, %v2302
    %v2329 = vadd.f32 %v1836, %v2305
    %v2330 = vadd.f32 %v1837, %v2307
    %v2331 = vadd.f32 %v1838, %v2310
    %v2332 = vadd.f32 %v1839, %v2312
    %v2333 = vadd.f32 %v1840, %v2315
    %v2334 = vadd.f32 %v1841, %v2317
    %s2335 = scalar_lea.vmem %s9, 1024
    %v2336 = vld [vmem:[%s2335] sm:$0xff]
    %v2337 = vld [vmem:[%s2335 + $0x8] sm:$0xff]
    %v2338 = vld [vmem:[%s2335 + $0x10] sm:$0xff]
    %v2339 = vld [vmem:[%s2335 + $0x18] sm:$0xff]
    %v2340 = vld [vmem:[%s2335 + $0x20] sm:$0xff]
    %v2341 = vld [vmem:[%s2335 + $0x28] sm:$0xff]
    %v2342 = vld [vmem:[%s2335 + $0x30] sm:$0xff]
    %v2343 = vld [vmem:[%s2335 + $0x38] sm:$0xff]
    %v2344 = vld [vmem:[%s2335 + $0x40] sm:$0xff]
    %v2345 = vld [vmem:[%s2335 + $0x48] sm:$0xff]
    %v2346 = vld [vmem:[%s2335 + $0x50] sm:$0xff]
    %v2347 = vld [vmem:[%s2335 + $0x58] sm:$0xff]
    %v2348 = vld [vmem:[%s2335 + $0x60] sm:$0xff]
    %v2349 = vld [vmem:[%s2335 + $0x68] sm:$0xff]
    %v2350 = vld [vmem:[%s2335 + $0x70] sm:$0xff]
    %v2351 = vld [vmem:[%s2335 + $0x78] sm:$0xff]
    %v2352 = vld [vmem:[%s2335 + $0x80] sm:$0xff]
    %v2353 = vld [vmem:[%s2335 + $0x88] sm:$0xff]
    %v2354 = vld [vmem:[%s2335 + $0x90] sm:$0xff]
    %v2355 = vld [vmem:[%s2335 + $0x98] sm:$0xff]
    %v2356 = vld [vmem:[%s2335 + $0xa0] sm:$0xff]
    %v2357 = vld [vmem:[%s2335 + $0xa8] sm:$0xff]
    %v2358 = vld [vmem:[%s2335 + $0xb0] sm:$0xff]
    %v2359 = vld [vmem:[%s2335 + $0xb8] sm:$0xff]
    %v2360 = vld [vmem:[%s2335 + $0xc0] sm:$0xff]
    %v2361 = vld [vmem:[%s2335 + $0xc8] sm:$0xff]
    %v2362 = vld [vmem:[%s2335 + $0xd0] sm:$0xff]
    %v2363 = vld [vmem:[%s2335 + $0xd8] sm:$0xff]
    %v2364 = vld [vmem:[%s2335 + $0xe0] sm:$0xff]
    %v2365 = vld [vmem:[%s2335 + $0xe8] sm:$0xff]
    %v2366 = vld [vmem:[%s2335 + $0xf0] sm:$0xff]
    %v2367 = vld [vmem:[%s2335 + $0xf8] sm:$0xff]
    %v2400 = vunpack.c.l.b16 %v2336
    %v2401 = vunpack.c.h.b16 %v2336
    %v2402 = vunpack.c.l.b16 %v2337
    %v2403 = vunpack.c.h.b16 %v2337
    %v2404 = vunpack.c.l.b16 %v2338
    %v2405 = vunpack.c.h.b16 %v2338
    %v2406 = vunpack.c.l.b16 %v2339
    %v2407 = vunpack.c.h.b16 %v2339
    %v2408 = vunpack.c.l.b16 %v2340
    %v2409 = vunpack.c.h.b16 %v2340
    %v2410 = vunpack.c.l.b16 %v2341
    %v2411 = vunpack.c.h.b16 %v2341
    %v2412 = vunpack.c.l.b16 %v2342
    %v2413 = vunpack.c.h.b16 %v2342
    %v2414 = vunpack.c.l.b16 %v2343
    %v2415 = vunpack.c.h.b16 %v2343
    %v2416 = vunpack.c.l.b16 %v2344
    %v2417 = vunpack.c.h.b16 %v2344
    %v2418 = vunpack.c.l.b16 %v2345
    %v2419 = vunpack.c.h.b16 %v2345
    %v2420 = vunpack.c.l.b16 %v2346
    %v2421 = vunpack.c.h.b16 %v2346
    %v2422 = vunpack.c.l.b16 %v2347
    %v2423 = vunpack.c.h.b16 %v2347
    %v2424 = vunpack.c.l.b16 %v2348
    %v2425 = vunpack.c.h.b16 %v2348
    %v2426 = vunpack.c.l.b16 %v2349
    %v2427 = vunpack.c.h.b16 %v2349
    %v2428 = vunpack.c.l.b16 %v2350
    %v2429 = vunpack.c.h.b16 %v2350
    %v2430 = vunpack.c.l.b16 %v2351
    %v2431 = vunpack.c.h.b16 %v2351
    %v2432 = vunpack.c.l.b16 %v2352
    %v2433 = vunpack.c.h.b16 %v2352
    %v2434 = vunpack.c.l.b16 %v2353
    %v2435 = vunpack.c.h.b16 %v2353
    %v2436 = vunpack.c.l.b16 %v2354
    %v2437 = vunpack.c.h.b16 %v2354
    %v2438 = vunpack.c.l.b16 %v2355
    %v2439 = vunpack.c.h.b16 %v2355
    %v2440 = vunpack.c.l.b16 %v2356
    %v2441 = vunpack.c.h.b16 %v2356
    %v2442 = vunpack.c.l.b16 %v2357
    %v2443 = vunpack.c.h.b16 %v2357
    %v2444 = vunpack.c.l.b16 %v2358
    %v2445 = vunpack.c.h.b16 %v2358
    %v2446 = vunpack.c.l.b16 %v2359
    %v2447 = vunpack.c.h.b16 %v2359
    %v2448 = vunpack.c.l.b16 %v2360
    %v2449 = vunpack.c.h.b16 %v2360
    %v2450 = vunpack.c.l.b16 %v2361
    %v2451 = vunpack.c.h.b16 %v2361
    %v2452 = vunpack.c.l.b16 %v2362
    %v2453 = vunpack.c.h.b16 %v2362
    %v2454 = vunpack.c.l.b16 %v2363
    %v2455 = vunpack.c.h.b16 %v2363
    %v2456 = vunpack.c.l.b16 %v2364
    %v2457 = vunpack.c.h.b16 %v2364
    %v2458 = vunpack.c.l.b16 %v2365
    %v2459 = vunpack.c.h.b16 %v2365
    %v2460 = vunpack.c.l.b16 %v2366
    %v2461 = vunpack.c.h.b16 %v2366
    %v2462 = vunpack.c.l.b16 %v2367
    %v2463 = vunpack.c.h.b16 %v2367
    %v2464 = vpack.c.b16 %v2404, %v2400
    %v2465 = vpack.c.b16 %v2405, %v2401
    %v2466 = vpack.c.b16 %v2406, %v2402
    %v2467 = vpack.c.b16 %v2407, %v2403
    %v2468 = vpack.c.b16 %v2412, %v2408
    %v2469 = vpack.c.b16 %v2413, %v2409
    %v2470 = vpack.c.b16 %v2414, %v2410
    %v2471 = vpack.c.b16 %v2415, %v2411
    %v2472 = vpack.c.b16 %v2420, %v2416
    %v2473 = vpack.c.b16 %v2421, %v2417
    %v2474 = vpack.c.b16 %v2422, %v2418
    %v2475 = vpack.c.b16 %v2423, %v2419
    %v2476 = vpack.c.b16 %v2428, %v2424
    %v2477 = vpack.c.b16 %v2429, %v2425
    %v2478 = vpack.c.b16 %v2430, %v2426
    %v2479 = vpack.c.b16 %v2431, %v2427
    %v2480 = vpack.c.b16 %v2436, %v2432
    %v2481 = vpack.c.b16 %v2437, %v2433
    %v2482 = vpack.c.b16 %v2438, %v2434
    %v2483 = vpack.c.b16 %v2439, %v2435
    %v2484 = vpack.c.b16 %v2444, %v2440
    %v2485 = vpack.c.b16 %v2445, %v2441
    %v2486 = vpack.c.b16 %v2446, %v2442
    %v2487 = vpack.c.b16 %v2447, %v2443
    %v2488 = vpack.c.b16 %v2452, %v2448
    %v2489 = vpack.c.b16 %v2453, %v2449
    %v2490 = vpack.c.b16 %v2454, %v2450
    %v2491 = vpack.c.b16 %v2455, %v2451
    %v2492 = vpack.c.b16 %v2460, %v2456
    %v2493 = vpack.c.b16 %v2461, %v2457
    %v2494 = vpack.c.b16 %v2462, %v2458
    %v2495 = vpack.c.b16 %v2463, %v2459
    %2528 = vmatpush.bf16.msra.mxu0 %v368
    %2529 = vmatpush.bf16.msra.mxu0 %v367
    %2530 = vmatpush.bf16.msra.mxu0 %v366
    %2531 = vmatpush.bf16.msra.mxu0 %v365
    %2532 = vmatpush.bf16.msra.mxu0 %v364
    %2533 = vmatpush.bf16.msra.mxu0 %v363
    %2534 = vmatpush.bf16.msra.mxu0 %v362
    %2535 = vmatpush.bf16.msra.mxu0 %v361
    %2536 = vmatmul.bf16.gmra.mxu0 %v2464
    %v2537 = vpop.f32.mrf.mxu0
    %v2538 = vadd.f32 0.0, %v2537
    %v2539 = vpop.f32.mrf.mxu0
    %v2540 = vadd.f32 0.0, %v2539
    %2541 = vmatmul.bf16.gmra.mxu0 %v2468
    %v2542 = vpop.f32.mrf.mxu0
    %v2543 = vadd.f32 0.0, %v2542
    %v2544 = vpop.f32.mrf.mxu0
    %v2545 = vadd.f32 0.0, %v2544
    %2546 = vmatmul.bf16.gmra.mxu0 %v2472
    %v2547 = vpop.f32.mrf.mxu0
    %v2548 = vadd.f32 0.0, %v2547
    %v2549 = vpop.f32.mrf.mxu0
    %v2550 = vadd.f32 0.0, %v2549
    %2551 = vmatmul.bf16.gmra.mxu0 %v2476
    %v2552 = vpop.f32.mrf.mxu0
    %v2553 = vadd.f32 0.0, %v2552
    %v2554 = vpop.f32.mrf.mxu0
    %v2555 = vadd.f32 0.0, %v2554
    %2556 = vmatmul.bf16.gmra.mxu0 %v2480
    %v2557 = vpop.f32.mrf.mxu0
    %v2558 = vadd.f32 0.0, %v2557
    %v2559 = vpop.f32.mrf.mxu0
    %v2560 = vadd.f32 0.0, %v2559
    %2561 = vmatmul.bf16.gmra.mxu0 %v2484
    %v2562 = vpop.f32.mrf.mxu0
    %v2563 = vadd.f32 0.0, %v2562
    %v2564 = vpop.f32.mrf.mxu0
    %v2565 = vadd.f32 0.0, %v2564
    %2566 = vmatmul.bf16.gmra.mxu0 %v2488
    %v2567 = vpop.f32.mrf.mxu0
    %v2568 = vadd.f32 0.0, %v2567
    %v2569 = vpop.f32.mrf.mxu0
    %v2570 = vadd.f32 0.0, %v2569
    %2571 = vmatmul.bf16.gmra.mxu0 %v2492
    %v2572 = vpop.f32.mrf.mxu0
    %v2573 = vadd.f32 0.0, %v2572
    %v2574 = vpop.f32.mrf.mxu0
    %v2575 = vadd.f32 0.0, %v2574
    %2576 = vdwg.mxu0
    %2577 = vmatpush.bf16.msra.mxu0 %v376
    %2578 = vmatpush.bf16.msra.mxu0 %v375
    %2579 = vmatpush.bf16.msra.mxu0 %v374
    %2580 = vmatpush.bf16.msra.mxu0 %v373
    %2581 = vmatpush.bf16.msra.mxu0 %v372
    %2582 = vmatpush.bf16.msra.mxu0 %v371
    %2583 = vmatpush.bf16.msra.mxu0 %v370
    %2584 = vmatpush.bf16.msra.mxu0 %v369
    %2585 = vmatmul.bf16.gmra.mxu0 %v2465
    %v2586 = vpop.f32.mrf.mxu0
    %v2587 = vadd.f32 %v2538, %v2586
    %v2588 = vpop.f32.mrf.mxu0
    %v2589 = vadd.f32 %v2540, %v2588
    %2590 = vmatmul.bf16.gmra.mxu0 %v2469
    %v2591 = vpop.f32.mrf.mxu0
    %v2592 = vadd.f32 %v2543, %v2591
    %v2593 = vpop.f32.mrf.mxu0
    %v2594 = vadd.f32 %v2545, %v2593
    %2595 = vmatmul.bf16.gmra.mxu0 %v2473
    %v2596 = vpop.f32.mrf.mxu0
    %v2597 = vadd.f32 %v2548, %v2596
    %v2598 = vpop.f32.mrf.mxu0
    %v2599 = vadd.f32 %v2550, %v2598
    %2600 = vmatmul.bf16.gmra.mxu0 %v2477
    %v2601 = vpop.f32.mrf.mxu0
    %v2602 = vadd.f32 %v2553, %v2601
    %v2603 = vpop.f32.mrf.mxu0
    %v2604 = vadd.f32 %v2555, %v2603
    %2605 = vmatmul.bf16.gmra.mxu0 %v2481
    %v2606 = vpop.f32.mrf.mxu0
    %v2607 = vadd.f32 %v2558, %v2606
    %v2608 = vpop.f32.mrf.mxu0
    %v2609 = vadd.f32 %v2560, %v2608
    %2610 = vmatmul.bf16.gmra.mxu0 %v2485
    %v2611 = vpop.f32.mrf.mxu0
    %v2612 = vadd.f32 %v2563, %v2611
    %v2613 = vpop.f32.mrf.mxu0
    %v2614 = vadd.f32 %v2565, %v2613
    %2615 = vmatmul.bf16.gmra.mxu0 %v2489
    %v2616 = vpop.f32.mrf.mxu0
    %v2617 = vadd.f32 %v2568, %v2616
    %v2618 = vpop.f32.mrf.mxu0
    %v2619 = vadd.f32 %v2570, %v2618
    %2620 = vmatmul.bf16.gmra.mxu0 %v2493
    %v2621 = vpop.f32.mrf.mxu0
    %v2622 = vadd.f32 %v2573, %v2621
    %v2623 = vpop.f32.mrf.mxu0
    %v2624 = vadd.f32 %v2575, %v2623
    %2625 = vdwg.mxu0
    %2626 = vmatpush.bf16.msra.mxu0 %v384
    %2627 = vmatpush.bf16.msra.mxu0 %v383
    %2628 = vmatpush.bf16.msra.mxu0 %v382
    %2629 = vmatpush.bf16.msra.mxu0 %v381
    %2630 = vmatpush.bf16.msra.mxu0 %v380
    %2631 = vmatpush.bf16.msra.mxu0 %v379
    %2632 = vmatpush.bf16.msra.mxu0 %v378
    %2633 = vmatpush.bf16.msra.mxu0 %v377
    %2634 = vmatmul.bf16.gmra.mxu0 %v2466
    %v2635 = vpop.f32.mrf.mxu0
    %v2636 = vadd.f32 %v2587, %v2635
    %v2637 = vpop.f32.mrf.mxu0
    %v2638 = vadd.f32 %v2589, %v2637
    %2639 = vmatmul.bf16.gmra.mxu0 %v2470
    %v2640 = vpop.f32.mrf.mxu0
    %v2641 = vadd.f32 %v2592, %v2640
    %v2642 = vpop.f32.mrf.mxu0
    %v2643 = vadd.f32 %v2594, %v2642
    %2644 = vmatmul.bf16.gmra.mxu0 %v2474
    %v2645 = vpop.f32.mrf.mxu0
    %v2646 = vadd.f32 %v2597, %v2645
    %v2647 = vpop.f32.mrf.mxu0
    %v2648 = vadd.f32 %v2599, %v2647
    %2649 = vmatmul.bf16.gmra.mxu0 %v2478
    %v2650 = vpop.f32.mrf.mxu0
    %v2651 = vadd.f32 %v2602, %v2650
    %v2652 = vpop.f32.mrf.mxu0
    %v2653 = vadd.f32 %v2604, %v2652
    %2654 = vmatmul.bf16.gmra.mxu0 %v2482
    %v2655 = vpop.f32.mrf.mxu0
    %v2656 = vadd.f32 %v2607, %v2655
    %v2657 = vpop.f32.mrf.mxu0
    %v2658 = vadd.f32 %v2609, %v2657
    %2659 = vmatmul.bf16.gmra.mxu0 %v2486
    %v2660 = vpop.f32.mrf.mxu0
    %v2661 = vadd.f32 %v2612, %v2660
    %v2662 = vpop.f32.mrf.mxu0
    %v2663 = vadd.f32 %v2614, %v2662
    %2664 = vmatmul.bf16.gmra.mxu0 %v2490
    %v2665 = vpop.f32.mrf.mxu0
    %v2666 = vadd.f32 %v2617, %v2665
    %v2667 = vpop.f32.mrf.mxu0
    %v2668 = vadd.f32 %v2619, %v2667
    %2669 = vmatmul.bf16.gmra.mxu0 %v2494
    %v2670 = vpop.f32.mrf.mxu0
    %v2671 = vadd.f32 %v2622, %v2670
    %v2672 = vpop.f32.mrf.mxu0
    %v2673 = vadd.f32 %v2624, %v2672
    %2674 = vdwg.mxu0
    %2675 = vmatpush.bf16.msra.mxu0 %v392
    %2676 = vmatpush.bf16.msra.mxu0 %v391
    %2677 = vmatpush.bf16.msra.mxu0 %v390
    %2678 = vmatpush.bf16.msra.mxu0 %v389
    %2679 = vmatpush.bf16.msra.mxu0 %v388
    %2680 = vmatpush.bf16.msra.mxu0 %v387
    %2681 = vmatpush.bf16.msra.mxu0 %v386
    %2682 = vmatpush.bf16.msra.mxu0 %v385
    %2683 = vmatmul.bf16.gmra.mxu0 %v2467
    %v2684 = vpop.f32.mrf.mxu0
    %v2685 = vadd.f32 %v2636, %v2684
    %v2686 = vpop.f32.mrf.mxu0
    %v2687 = vadd.f32 %v2638, %v2686
    %2688 = vmatmul.bf16.gmra.mxu0 %v2471
    %v2689 = vpop.f32.mrf.mxu0
    %v2690 = vadd.f32 %v2641, %v2689
    %v2691 = vpop.f32.mrf.mxu0
    %v2692 = vadd.f32 %v2643, %v2691
    %2693 = vmatmul.bf16.gmra.mxu0 %v2475
    %v2694 = vpop.f32.mrf.mxu0
    %v2695 = vadd.f32 %v2646, %v2694
    %v2696 = vpop.f32.mrf.mxu0
    %v2697 = vadd.f32 %v2648, %v2696
    %2698 = vmatmul.bf16.gmra.mxu0 %v2479
    %v2699 = vpop.f32.mrf.mxu0
    %v2700 = vadd.f32 %v2651, %v2699
    %v2701 = vpop.f32.mrf.mxu0
    %v2702 = vadd.f32 %v2653, %v2701
    %2703 = vmatmul.bf16.gmra.mxu0 %v2483
    %v2704 = vpop.f32.mrf.mxu0
    %v2705 = vadd.f32 %v2656, %v2704
    %v2706 = vpop.f32.mrf.mxu0
    %v2707 = vadd.f32 %v2658, %v2706
    %2708 = vmatmul.bf16.gmra.mxu0 %v2487
    %v2709 = vpop.f32.mrf.mxu0
    %v2710 = vadd.f32 %v2661, %v2709
    %v2711 = vpop.f32.mrf.mxu0
    %v2712 = vadd.f32 %v2663, %v2711
    %2713 = vmatmul.bf16.gmra.mxu0 %v2491
    %v2714 = vpop.f32.mrf.mxu0
    %v2715 = vadd.f32 %v2666, %v2714
    %v2716 = vpop.f32.mrf.mxu0
    %v2717 = vadd.f32 %v2668, %v2716
    %2718 = vmatmul.bf16.gmra.mxu0 %v2495
    %v2719 = vpop.f32.mrf.mxu0
    %v2720 = vadd.f32 %v2671, %v2719
    %v2721 = vpop.f32.mrf.mxu0
    %v2722 = vadd.f32 %v2673, %v2721
    %2723 = vdwg.mxu0
    %s2724 = scalar_lea.vmem %s15, 128
    %v2725 = vld [vmem:[%s2724] sm:$0xff]
    %v2726 = vld [vmem:[%s2724 + $0x8] sm:$0xff]
    %v2727 = vld [vmem:[%s2724 + $0x10] sm:$0xff]
    %v2728 = vld [vmem:[%s2724 + $0x18] sm:$0xff]
    %v2729 = vpack.c.bf16 %v2687, %v2685
    %v2730 = vpack.c.bf16 %v2692, %v2690
    %v2731 = vpack.c.bf16 %v2697, %v2695
    %v2732 = vpack.c.bf16 %v2702, %v2700
    %v2733 = vpack.c.bf16 %v2707, %v2705
    %v2734 = vpack.c.bf16 %v2712, %v2710
    %v2735 = vpack.c.bf16 %v2717, %v2715
    %v2736 = vpack.c.bf16 %v2722, %v2720
    %v2737 = vpack.c.bf16 %v2726, %v2725
    %v2738 = vpack.c.bf16 %v2728, %v2727
    %v2740 = vsel %vm763, %v2729, 0
    %v2743 = vsel %vm763, %v2730, 0
    %v2746 = vsel %vm763, %v2731, 0
    %v2749 = vsel %vm763, %v2732, 0
    %v2752 = vsel %vm763, %v2733, 0
    %v2755 = vsel %vm763, %v2734, 0
    %v2758 = vsel %vm763, %v2735, 0
    %v2761 = vsel %vm763, %v2736, 0
    %2763 = vmatpush.bf16.msra.mxu0 0
    %2764 = vmatpush.bf16.msra.mxu0 0
    %2765 = vmatpush.bf16.msra.mxu0 0
    %2766 = vmatpush.bf16.msra.mxu0 0
    %2767 = vmatpush.bf16.msra.mxu0 0
    %2768 = vmatpush.bf16.msra.mxu0 0
    %2769 = vmatpush.bf16.msra.mxu0 %v2738
    %2770 = vmatpush.bf16.msra.mxu0 %v2737
    %2771 = vmatmul.bf16.gmra.mxu0 %v2740
    %v2772 = vpop.f32.mrf.mxu0
    %v2773 = vadd.f32 0.0, %v2772
    %v2774 = vpop.f32.mrf.mxu0
    %v2775 = vadd.f32 0.0, %v2774
    %2776 = vmatmul.bf16.gmra.mxu0 %v2743
    %v2777 = vpop.f32.mrf.mxu0
    %v2778 = vadd.f32 0.0, %v2777
    %v2779 = vpop.f32.mrf.mxu0
    %v2780 = vadd.f32 0.0, %v2779
    %2781 = vmatmul.bf16.gmra.mxu0 %v2746
    %v2782 = vpop.f32.mrf.mxu0
    %v2783 = vadd.f32 0.0, %v2782
    %v2784 = vpop.f32.mrf.mxu0
    %v2785 = vadd.f32 0.0, %v2784
    %2786 = vmatmul.bf16.gmra.mxu0 %v2749
    %v2787 = vpop.f32.mrf.mxu0
    %v2788 = vadd.f32 0.0, %v2787
    %v2789 = vpop.f32.mrf.mxu0
    %v2790 = vadd.f32 0.0, %v2789
    %2791 = vmatmul.bf16.gmra.mxu0 %v2752
    %v2792 = vpop.f32.mrf.mxu0
    %v2793 = vadd.f32 0.0, %v2792
    %v2794 = vpop.f32.mrf.mxu0
    %v2795 = vadd.f32 0.0, %v2794
    %2796 = vmatmul.bf16.gmra.mxu0 %v2755
    %v2797 = vpop.f32.mrf.mxu0
    %v2798 = vadd.f32 0.0, %v2797
    %v2799 = vpop.f32.mrf.mxu0
    %v2800 = vadd.f32 0.0, %v2799
    %2801 = vmatmul.bf16.gmra.mxu0 %v2758
    %v2802 = vpop.f32.mrf.mxu0
    %v2803 = vadd.f32 0.0, %v2802
    %v2804 = vpop.f32.mrf.mxu0
    %v2805 = vadd.f32 0.0, %v2804
    %2806 = vmatmul.bf16.gmra.mxu0 %v2761
    %v2807 = vpop.f32.mrf.mxu0
    %v2808 = vadd.f32 0.0, %v2807
    %v2809 = vpop.f32.mrf.mxu0
    %v2810 = vadd.f32 0.0, %v2809
    %2811 = vdwg.mxu0
    %v2812 = vadd.f32 %v2319, %v2773
    %v2813 = vadd.f32 %v2320, %v2775
    %v2814 = vadd.f32 %v2321, %v2778
    %v2815 = vadd.f32 %v2322, %v2780
    %v2816 = vadd.f32 %v2323, %v2783
    %v2817 = vadd.f32 %v2324, %v2785
    %v2818 = vadd.f32 %v2325, %v2788
    %v2819 = vadd.f32 %v2326, %v2790
    %v2820 = vadd.f32 %v2327, %v2793
    %v2821 = vadd.f32 %v2328, %v2795
    %v2822 = vadd.f32 %v2329, %v2798
    %v2823 = vadd.f32 %v2330, %v2800
    %v2824 = vadd.f32 %v2331, %v2803
    %v2825 = vadd.f32 %v2332, %v2805
    %v2826 = vadd.f32 %v2333, %v2808
    %v2827 = vadd.f32 %v2334, %v2810
    %s2828 = scalar_lea.vmem %s9, 1280
    %v2829 = vld [vmem:[%s2828] sm:$0xff]
    %v2830 = vld [vmem:[%s2828 + $0x8] sm:$0xff]
    %v2831 = vld [vmem:[%s2828 + $0x10] sm:$0xff]
    %v2832 = vld [vmem:[%s2828 + $0x18] sm:$0xff]
    %v2833 = vld [vmem:[%s2828 + $0x20] sm:$0xff]
    %v2834 = vld [vmem:[%s2828 + $0x28] sm:$0xff]
    %v2835 = vld [vmem:[%s2828 + $0x30] sm:$0xff]
    %v2836 = vld [vmem:[%s2828 + $0x38] sm:$0xff]
    %v2837 = vld [vmem:[%s2828 + $0x40] sm:$0xff]
    %v2838 = vld [vmem:[%s2828 + $0x48] sm:$0xff]
    %v2839 = vld [vmem:[%s2828 + $0x50] sm:$0xff]
    %v2840 = vld [vmem:[%s2828 + $0x58] sm:$0xff]
    %v2841 = vld [vmem:[%s2828 + $0x60] sm:$0xff]
    %v2842 = vld [vmem:[%s2828 + $0x68] sm:$0xff]
    %v2843 = vld [vmem:[%s2828 + $0x70] sm:$0xff]
    %v2844 = vld [vmem:[%s2828 + $0x78] sm:$0xff]
    %v2845 = vld [vmem:[%s2828 + $0x80] sm:$0xff]
    %v2846 = vld [vmem:[%s2828 + $0x88] sm:$0xff]
    %v2847 = vld [vmem:[%s2828 + $0x90] sm:$0xff]
    %v2848 = vld [vmem:[%s2828 + $0x98] sm:$0xff]
    %v2849 = vld [vmem:[%s2828 + $0xa0] sm:$0xff]
    %v2850 = vld [vmem:[%s2828 + $0xa8] sm:$0xff]
    %v2851 = vld [vmem:[%s2828 + $0xb0] sm:$0xff]
    %v2852 = vld [vmem:[%s2828 + $0xb8] sm:$0xff]
    %v2853 = vld [vmem:[%s2828 + $0xc0] sm:$0xff]
    %v2854 = vld [vmem:[%s2828 + $0xc8] sm:$0xff]
    %v2855 = vld [vmem:[%s2828 + $0xd0] sm:$0xff]
    %v2856 = vld [vmem:[%s2828 + $0xd8] sm:$0xff]
    %v2857 = vld [vmem:[%s2828 + $0xe0] sm:$0xff]
    %v2858 = vld [vmem:[%s2828 + $0xe8] sm:$0xff]
    %v2859 = vld [vmem:[%s2828 + $0xf0] sm:$0xff]
    %v2860 = vld [vmem:[%s2828 + $0xf8] sm:$0xff]
    %v2893 = vunpack.c.l.b16 %v2829
    %v2894 = vunpack.c.h.b16 %v2829
    %v2895 = vunpack.c.l.b16 %v2830
    %v2896 = vunpack.c.h.b16 %v2830
    %v2897 = vunpack.c.l.b16 %v2831
    %v2898 = vunpack.c.h.b16 %v2831
    %v2899 = vunpack.c.l.b16 %v2832
    %v2900 = vunpack.c.h.b16 %v2832
    %v2901 = vunpack.c.l.b16 %v2833
    %v2902 = vunpack.c.h.b16 %v2833
    %v2903 = vunpack.c.l.b16 %v2834
    %v2904 = vunpack.c.h.b16 %v2834
    %v2905 = vunpack.c.l.b16 %v2835
    %v2906 = vunpack.c.h.b16 %v2835
    %v2907 = vunpack.c.l.b16 %v2836
    %v2908 = vunpack.c.h.b16 %v2836
    %v2909 = vunpack.c.l.b16 %v2837
    %v2910 = vunpack.c.h.b16 %v2837
    %v2911 = vunpack.c.l.b16 %v2838
    %v2912 = vunpack.c.h.b16 %v2838
    %v2913 = vunpack.c.l.b16 %v2839
    %v2914 = vunpack.c.h.b16 %v2839
    %v2915 = vunpack.c.l.b16 %v2840
    %v2916 = vunpack.c.h.b16 %v2840
    %v2917 = vunpack.c.l.b16 %v2841
    %v2918 = vunpack.c.h.b16 %v2841
    %v2919 = vunpack.c.l.b16 %v2842
    %v2920 = vunpack.c.h.b16 %v2842
    %v2921 = vunpack.c.l.b16 %v2843
    %v2922 = vunpack.c.h.b16 %v2843
    %v2923 = vunpack.c.l.b16 %v2844
    %v2924 = vunpack.c.h.b16 %v2844
    %v2925 = vunpack.c.l.b16 %v2845
    %v2926 = vunpack.c.h.b16 %v2845
    %v2927 = vunpack.c.l.b16 %v2846
    %v2928 = vunpack.c.h.b16 %v2846
    %v2929 = vunpack.c.l.b16 %v2847
    %v2930 = vunpack.c.h.b16 %v2847
    %v2931 = vunpack.c.l.b16 %v2848
    %v2932 = vunpack.c.h.b16 %v2848
    %v2933 = vunpack.c.l.b16 %v2849
    %v2934 = vunpack.c.h.b16 %v2849
    %v2935 = vunpack.c.l.b16 %v2850
    %v2936 = vunpack.c.h.b16 %v2850
    %v2937 = vunpack.c.l.b16 %v2851
    %v2938 = vunpack.c.h.b16 %v2851
    %v2939 = vunpack.c.l.b16 %v2852
    %v2940 = vunpack.c.h.b16 %v2852
    %v2941 = vunpack.c.l.b16 %v2853
    %v2942 = vunpack.c.h.b16 %v2853
    %v2943 = vunpack.c.l.b16 %v2854
    %v2944 = vunpack.c.h.b16 %v2854
    %v2945 = vunpack.c.l.b16 %v2855
    %v2946 = vunpack.c.h.b16 %v2855
    %v2947 = vunpack.c.l.b16 %v2856
    %v2948 = vunpack.c.h.b16 %v2856
    %v2949 = vunpack.c.l.b16 %v2857
    %v2950 = vunpack.c.h.b16 %v2857
    %v2951 = vunpack.c.l.b16 %v2858
    %v2952 = vunpack.c.h.b16 %v2858
    %v2953 = vunpack.c.l.b16 %v2859
    %v2954 = vunpack.c.h.b16 %v2859
    %v2955 = vunpack.c.l.b16 %v2860
    %v2956 = vunpack.c.h.b16 %v2860
    %v2957 = vpack.c.b16 %v2897, %v2893
    %v2958 = vpack.c.b16 %v2898, %v2894
    %v2959 = vpack.c.b16 %v2899, %v2895
    %v2960 = vpack.c.b16 %v2900, %v2896
    %v2961 = vpack.c.b16 %v2905, %v2901
    %v2962 = vpack.c.b16 %v2906, %v2902
    %v2963 = vpack.c.b16 %v2907, %v2903
    %v2964 = vpack.c.b16 %v2908, %v2904
    %v2965 = vpack.c.b16 %v2913, %v2909
    %v2966 = vpack.c.b16 %v2914, %v2910
    %v2967 = vpack.c.b16 %v2915, %v2911
    %v2968 = vpack.c.b16 %v2916, %v2912
    %v2969 = vpack.c.b16 %v2921, %v2917
    %v2970 = vpack.c.b16 %v2922, %v2918
    %v2971 = vpack.c.b16 %v2923, %v2919
    %v2972 = vpack.c.b16 %v2924, %v2920
    %v2973 = vpack.c.b16 %v2929, %v2925
    %v2974 = vpack.c.b16 %v2930, %v2926
    %v2975 = vpack.c.b16 %v2931, %v2927
    %v2976 = vpack.c.b16 %v2932, %v2928
    %v2977 = vpack.c.b16 %v2937, %v2933
    %v2978 = vpack.c.b16 %v2938, %v2934
    %v2979 = vpack.c.b16 %v2939, %v2935
    %v2980 = vpack.c.b16 %v2940, %v2936
    %v2981 = vpack.c.b16 %v2945, %v2941
    %v2982 = vpack.c.b16 %v2946, %v2942
    %v2983 = vpack.c.b16 %v2947, %v2943
    %v2984 = vpack.c.b16 %v2948, %v2944
    %v2985 = vpack.c.b16 %v2953, %v2949
    %v2986 = vpack.c.b16 %v2954, %v2950
    %v2987 = vpack.c.b16 %v2955, %v2951
    %v2988 = vpack.c.b16 %v2956, %v2952
    %3021 = vmatpush.bf16.msra.mxu0 %v368
    %3022 = vmatpush.bf16.msra.mxu0 %v367
    %3023 = vmatpush.bf16.msra.mxu0 %v366
    %3024 = vmatpush.bf16.msra.mxu0 %v365
    %3025 = vmatpush.bf16.msra.mxu0 %v364
    %3026 = vmatpush.bf16.msra.mxu0 %v363
    %3027 = vmatpush.bf16.msra.mxu0 %v362
    %3028 = vmatpush.bf16.msra.mxu0 %v361
    %3029 = vmatmul.bf16.gmra.mxu0 %v2957
    %v3030 = vpop.f32.mrf.mxu0
    %v3031 = vadd.f32 0.0, %v3030
    %v3032 = vpop.f32.mrf.mxu0
    %v3033 = vadd.f32 0.0, %v3032
    %3034 = vmatmul.bf16.gmra.mxu0 %v2961
    %v3035 = vpop.f32.mrf.mxu0
    %v3036 = vadd.f32 0.0, %v3035
    %v3037 = vpop.f32.mrf.mxu0
    %v3038 = vadd.f32 0.0, %v3037
    %3039 = vmatmul.bf16.gmra.mxu0 %v2965
    %v3040 = vpop.f32.mrf.mxu0
    %v3041 = vadd.f32 0.0, %v3040
    %v3042 = vpop.f32.mrf.mxu0
    %v3043 = vadd.f32 0.0, %v3042
    %3044 = vmatmul.bf16.gmra.mxu0 %v2969
    %v3045 = vpop.f32.mrf.mxu0
    %v3046 = vadd.f32 0.0, %v3045
    %v3047 = vpop.f32.mrf.mxu0
    %v3048 = vadd.f32 0.0, %v3047
    %3049 = vmatmul.bf16.gmra.mxu0 %v2973
    %v3050 = vpop.f32.mrf.mxu0
    %v3051 = vadd.f32 0.0, %v3050
    %v3052 = vpop.f32.mrf.mxu0
    %v3053 = vadd.f32 0.0, %v3052
    %3054 = vmatmul.bf16.gmra.mxu0 %v2977
    %v3055 = vpop.f32.mrf.mxu0
    %v3056 = vadd.f32 0.0, %v3055
    %v3057 = vpop.f32.mrf.mxu0
    %v3058 = vadd.f32 0.0, %v3057
    %3059 = vmatmul.bf16.gmra.mxu0 %v2981
    %v3060 = vpop.f32.mrf.mxu0
    %v3061 = vadd.f32 0.0, %v3060
    %v3062 = vpop.f32.mrf.mxu0
    %v3063 = vadd.f32 0.0, %v3062
    %3064 = vmatmul.bf16.gmra.mxu0 %v2985
    %v3065 = vpop.f32.mrf.mxu0
    %v3066 = vadd.f32 0.0, %v3065
    %v3067 = vpop.f32.mrf.mxu0
    %v3068 = vadd.f32 0.0, %v3067
    %3069 = vdwg.mxu0
    %3070 = vmatpush.bf16.msra.mxu0 %v376
    %3071 = vmatpush.bf16.msra.mxu0 %v375
    %3072 = vmatpush.bf16.msra.mxu0 %v374
    %3073 = vmatpush.bf16.msra.mxu0 %v373
    %3074 = vmatpush.bf16.msra.mxu0 %v372
    %3075 = vmatpush.bf16.msra.mxu0 %v371
    %3076 = vmatpush.bf16.msra.mxu0 %v370
    %3077 = vmatpush.bf16.msra.mxu0 %v369
    %3078 = vmatmul.bf16.gmra.mxu0 %v2958
    %v3079 = vpop.f32.mrf.mxu0
    %v3080 = vadd.f32 %v3031, %v3079
    %v3081 = vpop.f32.mrf.mxu0
    %v3082 = vadd.f32 %v3033, %v3081
    %3083 = vmatmul.bf16.gmra.mxu0 %v2962
    %v3084 = vpop.f32.mrf.mxu0
    %v3085 = vadd.f32 %v3036, %v3084
    %v3086 = vpop.f32.mrf.mxu0
    %v3087 = vadd.f32 %v3038, %v3086
    %3088 = vmatmul.bf16.gmra.mxu0 %v2966
    %v3089 = vpop.f32.mrf.mxu0
    %v3090 = vadd.f32 %v3041, %v3089
    %v3091 = vpop.f32.mrf.mxu0
    %v3092 = vadd.f32 %v3043, %v3091
    %3093 = vmatmul.bf16.gmra.mxu0 %v2970
    %v3094 = vpop.f32.mrf.mxu0
    %v3095 = vadd.f32 %v3046, %v3094
    %v3096 = vpop.f32.mrf.mxu0
    %v3097 = vadd.f32 %v3048, %v3096
    %3098 = vmatmul.bf16.gmra.mxu0 %v2974
    %v3099 = vpop.f32.mrf.mxu0
    %v3100 = vadd.f32 %v3051, %v3099
    %v3101 = vpop.f32.mrf.mxu0
    %v3102 = vadd.f32 %v3053, %v3101
    %3103 = vmatmul.bf16.gmra.mxu0 %v2978
    %v3104 = vpop.f32.mrf.mxu0
    %v3105 = vadd.f32 %v3056, %v3104
    %v3106 = vpop.f32.mrf.mxu0
    %v3107 = vadd.f32 %v3058, %v3106
    %3108 = vmatmul.bf16.gmra.mxu0 %v2982
    %v3109 = vpop.f32.mrf.mxu0
    %v3110 = vadd.f32 %v3061, %v3109
    %v3111 = vpop.f32.mrf.mxu0
    %v3112 = vadd.f32 %v3063, %v3111
    %3113 = vmatmul.bf16.gmra.mxu0 %v2986
    %v3114 = vpop.f32.mrf.mxu0
    %v3115 = vadd.f32 %v3066, %v3114
    %v3116 = vpop.f32.mrf.mxu0
    %v3117 = vadd.f32 %v3068, %v3116
    %3118 = vdwg.mxu0
    %3119 = vmatpush.bf16.msra.mxu0 %v384
    %3120 = vmatpush.bf16.msra.mxu0 %v383
    %3121 = vmatpush.bf16.msra.mxu0 %v382
    %3122 = vmatpush.bf16.msra.mxu0 %v381
    %3123 = vmatpush.bf16.msra.mxu0 %v380
    %3124 = vmatpush.bf16.msra.mxu0 %v379
    %3125 = vmatpush.bf16.msra.mxu0 %v378
    %3126 = vmatpush.bf16.msra.mxu0 %v377
    %3127 = vmatmul.bf16.gmra.mxu0 %v2959
    %v3128 = vpop.f32.mrf.mxu0
    %v3129 = vadd.f32 %v3080, %v3128
    %v3130 = vpop.f32.mrf.mxu0
    %v3131 = vadd.f32 %v3082, %v3130
    %3132 = vmatmul.bf16.gmra.mxu0 %v2963
    %v3133 = vpop.f32.mrf.mxu0
    %v3134 = vadd.f32 %v3085, %v3133
    %v3135 = vpop.f32.mrf.mxu0
    %v3136 = vadd.f32 %v3087, %v3135
    %3137 = vmatmul.bf16.gmra.mxu0 %v2967
    %v3138 = vpop.f32.mrf.mxu0
    %v3139 = vadd.f32 %v3090, %v3138
    %v3140 = vpop.f32.mrf.mxu0
    %v3141 = vadd.f32 %v3092, %v3140
    %3142 = vmatmul.bf16.gmra.mxu0 %v2971
    %v3143 = vpop.f32.mrf.mxu0
    %v3144 = vadd.f32 %v3095, %v3143
    %v3145 = vpop.f32.mrf.mxu0
    %v3146 = vadd.f32 %v3097, %v3145
    %3147 = vmatmul.bf16.gmra.mxu0 %v2975
    %v3148 = vpop.f32.mrf.mxu0
    %v3149 = vadd.f32 %v3100, %v3148
    %v3150 = vpop.f32.mrf.mxu0
    %v3151 = vadd.f32 %v3102, %v3150
    %3152 = vmatmul.bf16.gmra.mxu0 %v2979
    %v3153 = vpop.f32.mrf.mxu0
    %v3154 = vadd.f32 %v3105, %v3153
    %v3155 = vpop.f32.mrf.mxu0
    %v3156 = vadd.f32 %v3107, %v3155
    %3157 = vmatmul.bf16.gmra.mxu0 %v2983
    %v3158 = vpop.f32.mrf.mxu0
    %v3159 = vadd.f32 %v3110, %v3158
    %v3160 = vpop.f32.mrf.mxu0
    %v3161 = vadd.f32 %v3112, %v3160
    %3162 = vmatmul.bf16.gmra.mxu0 %v2987
    %v3163 = vpop.f32.mrf.mxu0
    %v3164 = vadd.f32 %v3115, %v3163
    %v3165 = vpop.f32.mrf.mxu0
    %v3166 = vadd.f32 %v3117, %v3165
    %3167 = vdwg.mxu0
    %3168 = vmatpush.bf16.msra.mxu0 %v392
    %3169 = vmatpush.bf16.msra.mxu0 %v391
    %3170 = vmatpush.bf16.msra.mxu0 %v390
    %3171 = vmatpush.bf16.msra.mxu0 %v389
    %3172 = vmatpush.bf16.msra.mxu0 %v388
    %3173 = vmatpush.bf16.msra.mxu0 %v387
    %3174 = vmatpush.bf16.msra.mxu0 %v386
    %3175 = vmatpush.bf16.msra.mxu0 %v385
    %3176 = vmatmul.bf16.gmra.mxu0 %v2960
    %v3177 = vpop.f32.mrf.mxu0
    %v3178 = vadd.f32 %v3129, %v3177
    %v3179 = vpop.f32.mrf.mxu0
    %v3180 = vadd.f32 %v3131, %v3179
    %3181 = vmatmul.bf16.gmra.mxu0 %v2964
    %v3182 = vpop.f32.mrf.mxu0
    %v3183 = vadd.f32 %v3134, %v3182
    %v3184 = vpop.f32.mrf.mxu0
    %v3185 = vadd.f32 %v3136, %v3184
    %3186 = vmatmul.bf16.gmra.mxu0 %v2968
    %v3187 = vpop.f32.mrf.mxu0
    %v3188 = vadd.f32 %v3139, %v3187
    %v3189 = vpop.f32.mrf.mxu0
    %v3190 = vadd.f32 %v3141, %v3189
    %3191 = vmatmul.bf16.gmra.mxu0 %v2972
    %v3192 = vpop.f32.mrf.mxu0
    %v3193 = vadd.f32 %v3144, %v3192
    %v3194 = vpop.f32.mrf.mxu0
    %v3195 = vadd.f32 %v3146, %v3194
    %3196 = vmatmul.bf16.gmra.mxu0 %v2976
    %v3197 = vpop.f32.mrf.mxu0
    %v3198 = vadd.f32 %v3149, %v3197
    %v3199 = vpop.f32.mrf.mxu0
    %v3200 = vadd.f32 %v3151, %v3199
    %3201 = vmatmul.bf16.gmra.mxu0 %v2980
    %v3202 = vpop.f32.mrf.mxu0
    %v3203 = vadd.f32 %v3154, %v3202
    %v3204 = vpop.f32.mrf.mxu0
    %v3205 = vadd.f32 %v3156, %v3204
    %3206 = vmatmul.bf16.gmra.mxu0 %v2984
    %v3207 = vpop.f32.mrf.mxu0
    %v3208 = vadd.f32 %v3159, %v3207
    %v3209 = vpop.f32.mrf.mxu0
    %v3210 = vadd.f32 %v3161, %v3209
    %3211 = vmatmul.bf16.gmra.mxu0 %v2988
    %v3212 = vpop.f32.mrf.mxu0
    %v3213 = vadd.f32 %v3164, %v3212
    %v3214 = vpop.f32.mrf.mxu0
    %v3215 = vadd.f32 %v3166, %v3214
    %3216 = vdwg.mxu0
    %s3217 = scalar_lea.vmem %s15, 160
    %v3218 = vld [vmem:[%s3217] sm:$0xff]
    %v3219 = vld [vmem:[%s3217 + $0x8] sm:$0xff]
    %v3220 = vld [vmem:[%s3217 + $0x10] sm:$0xff]
    %v3221 = vld [vmem:[%s3217 + $0x18] sm:$0xff]
    %v3222 = vpack.c.bf16 %v3180, %v3178
    %v3223 = vpack.c.bf16 %v3185, %v3183
    %v3224 = vpack.c.bf16 %v3190, %v3188
    %v3225 = vpack.c.bf16 %v3195, %v3193
    %v3226 = vpack.c.bf16 %v3200, %v3198
    %v3227 = vpack.c.bf16 %v3205, %v3203
    %v3228 = vpack.c.bf16 %v3210, %v3208
    %v3229 = vpack.c.bf16 %v3215, %v3213
    %v3230 = vpack.c.bf16 %v3219, %v3218
    %v3231 = vpack.c.bf16 %v3221, %v3220
    %v3233 = vsel %vm763, %v3222, 0
    %v3236 = vsel %vm763, %v3223, 0
    %v3239 = vsel %vm763, %v3224, 0
    %v3242 = vsel %vm763, %v3225, 0
    %v3245 = vsel %vm763, %v3226, 0
    %v3248 = vsel %vm763, %v3227, 0
    %v3251 = vsel %vm763, %v3228, 0
    %v3254 = vsel %vm763, %v3229, 0
    %3256 = vmatpush.bf16.msra.mxu0 0
    %3257 = vmatpush.bf16.msra.mxu0 0
    %3258 = vmatpush.bf16.msra.mxu0 0
    %3259 = vmatpush.bf16.msra.mxu0 0
    %3260 = vmatpush.bf16.msra.mxu0 0
    %3261 = vmatpush.bf16.msra.mxu0 0
    %3262 = vmatpush.bf16.msra.mxu0 %v3231
    %3263 = vmatpush.bf16.msra.mxu0 %v3230
    %3264 = vmatmul.bf16.gmra.mxu0 %v3233
    %v3265 = vpop.f32.mrf.mxu0
    %v3266 = vadd.f32 0.0, %v3265
    %v3267 = vpop.f32.mrf.mxu0
    %v3268 = vadd.f32 0.0, %v3267
    %3269 = vmatmul.bf16.gmra.mxu0 %v3236
    %v3270 = vpop.f32.mrf.mxu0
    %v3271 = vadd.f32 0.0, %v3270
    %v3272 = vpop.f32.mrf.mxu0
    %v3273 = vadd.f32 0.0, %v3272
    %3274 = vmatmul.bf16.gmra.mxu0 %v3239
    %v3275 = vpop.f32.mrf.mxu0
    %v3276 = vadd.f32 0.0, %v3275
    %v3277 = vpop.f32.mrf.mxu0
    %v3278 = vadd.f32 0.0, %v3277
    %3279 = vmatmul.bf16.gmra.mxu0 %v3242
    %v3280 = vpop.f32.mrf.mxu0
    %v3281 = vadd.f32 0.0, %v3280
    %v3282 = vpop.f32.mrf.mxu0
    %v3283 = vadd.f32 0.0, %v3282
    %3284 = vmatmul.bf16.gmra.mxu0 %v3245
    %v3285 = vpop.f32.mrf.mxu0
    %v3286 = vadd.f32 0.0, %v3285
    %v3287 = vpop.f32.mrf.mxu0
    %v3288 = vadd.f32 0.0, %v3287
    %3289 = vmatmul.bf16.gmra.mxu0 %v3248
    %v3290 = vpop.f32.mrf.mxu0
    %v3291 = vadd.f32 0.0, %v3290
    %v3292 = vpop.f32.mrf.mxu0
    %v3293 = vadd.f32 0.0, %v3292
    %3294 = vmatmul.bf16.gmra.mxu0 %v3251
    %v3295 = vpop.f32.mrf.mxu0
    %v3296 = vadd.f32 0.0, %v3295
    %v3297 = vpop.f32.mrf.mxu0
    %v3298 = vadd.f32 0.0, %v3297
    %3299 = vmatmul.bf16.gmra.mxu0 %v3254
    %v3300 = vpop.f32.mrf.mxu0
    %v3301 = vadd.f32 0.0, %v3300
    %v3302 = vpop.f32.mrf.mxu0
    %v3303 = vadd.f32 0.0, %v3302
    %3304 = vdwg.mxu0
    %v3305 = vadd.f32 %v2812, %v3266
    %v3306 = vadd.f32 %v2813, %v3268
    %v3307 = vadd.f32 %v2814, %v3271
    %v3308 = vadd.f32 %v2815, %v3273
    %v3309 = vadd.f32 %v2816, %v3276
    %v3310 = vadd.f32 %v2817, %v3278
    %v3311 = vadd.f32 %v2818, %v3281
    %v3312 = vadd.f32 %v2819, %v3283
    %v3313 = vadd.f32 %v2820, %v3286
    %v3314 = vadd.f32 %v2821, %v3288
    %v3315 = vadd.f32 %v2822, %v3291
    %v3316 = vadd.f32 %v2823, %v3293
    %v3317 = vadd.f32 %v2824, %v3296
    %v3318 = vadd.f32 %v2825, %v3298
    %v3319 = vadd.f32 %v2826, %v3301
    %v3320 = vadd.f32 %v2827, %v3303
    %s3321 = scalar_lea.vmem %s9, 1536
    %v3322 = vld [vmem:[%s3321] sm:$0xff]
    %v3323 = vld [vmem:[%s3321 + $0x8] sm:$0xff]
    %v3324 = vld [vmem:[%s3321 + $0x10] sm:$0xff]
    %v3325 = vld [vmem:[%s3321 + $0x18] sm:$0xff]
    %v3326 = vld [vmem:[%s3321 + $0x20] sm:$0xff]
    %v3327 = vld [vmem:[%s3321 + $0x28] sm:$0xff]
    %v3328 = vld [vmem:[%s3321 + $0x30] sm:$0xff]
    %v3329 = vld [vmem:[%s3321 + $0x38] sm:$0xff]
    %v3330 = vld [vmem:[%s3321 + $0x40] sm:$0xff]
    %v3331 = vld [vmem:[%s3321 + $0x48] sm:$0xff]
    %v3332 = vld [vmem:[%s3321 + $0x50] sm:$0xff]
    %v3333 = vld [vmem:[%s3321 + $0x58] sm:$0xff]
    %v3334 = vld [vmem:[%s3321 + $0x60] sm:$0xff]
    %v3335 = vld [vmem:[%s3321 + $0x68] sm:$0xff]
    %v3336 = vld [vmem:[%s3321 + $0x70] sm:$0xff]
    %v3337 = vld [vmem:[%s3321 + $0x78] sm:$0xff]
    %v3338 = vld [vmem:[%s3321 + $0x80] sm:$0xff]
    %v3339 = vld [vmem:[%s3321 + $0x88] sm:$0xff]
    %v3340 = vld [vmem:[%s3321 + $0x90] sm:$0xff]
    %v3341 = vld [vmem:[%s3321 + $0x98] sm:$0xff]
    %v3342 = vld [vmem:[%s3321 + $0xa0] sm:$0xff]
    %v3343 = vld [vmem:[%s3321 + $0xa8] sm:$0xff]
    %v3344 = vld [vmem:[%s3321 + $0xb0] sm:$0xff]
    %v3345 = vld [vmem:[%s3321 + $0xb8] sm:$0xff]
    %v3346 = vld [vmem:[%s3321 + $0xc0] sm:$0xff]
    %v3347 = vld [vmem:[%s3321 + $0xc8] sm:$0xff]
    %v3348 = vld [vmem:[%s3321 + $0xd0] sm:$0xff]
    %v3349 = vld [vmem:[%s3321 + $0xd8] sm:$0xff]
    %v3350 = vld [vmem:[%s3321 + $0xe0] sm:$0xff]
    %v3351 = vld [vmem:[%s3321 + $0xe8] sm:$0xff]
    %v3352 = vld [vmem:[%s3321 + $0xf0] sm:$0xff]
    %v3353 = vld [vmem:[%s3321 + $0xf8] sm:$0xff]
    %v3386 = vunpack.c.l.b16 %v3322
    %v3387 = vunpack.c.h.b16 %v3322
    %v3388 = vunpack.c.l.b16 %v3323
    %v3389 = vunpack.c.h.b16 %v3323
    %v3390 = vunpack.c.l.b16 %v3324
    %v3391 = vunpack.c.h.b16 %v3324
    %v3392 = vunpack.c.l.b16 %v3325
    %v3393 = vunpack.c.h.b16 %v3325
    %v3394 = vunpack.c.l.b16 %v3326
    %v3395 = vunpack.c.h.b16 %v3326
    %v3396 = vunpack.c.l.b16 %v3327
    %v3397 = vunpack.c.h.b16 %v3327
    %v3398 = vunpack.c.l.b16 %v3328
    %v3399 = vunpack.c.h.b16 %v3328
    %v3400 = vunpack.c.l.b16 %v3329
    %v3401 = vunpack.c.h.b16 %v3329
    %v3402 = vunpack.c.l.b16 %v3330
    %v3403 = vunpack.c.h.b16 %v3330
    %v3404 = vunpack.c.l.b16 %v3331
    %v3405 = vunpack.c.h.b16 %v3331
    %v3406 = vunpack.c.l.b16 %v3332
    %v3407 = vunpack.c.h.b16 %v3332
    %v3408 = vunpack.c.l.b16 %v3333
    %v3409 = vunpack.c.h.b16 %v3333
    %v3410 = vunpack.c.l.b16 %v3334
    %v3411 = vunpack.c.h.b16 %v3334
    %v3412 = vunpack.c.l.b16 %v3335
    %v3413 = vunpack.c.h.b16 %v3335
    %v3414 = vunpack.c.l.b16 %v3336
    %v3415 = vunpack.c.h.b16 %v3336
    %v3416 = vunpack.c.l.b16 %v3337
    %v3417 = vunpack.c.h.b16 %v3337
    %v3418 = vunpack.c.l.b16 %v3338
    %v3419 = vunpack.c.h.b16 %v3338
    %v3420 = vunpack.c.l.b16 %v3339
    %v3421 = vunpack.c.h.b16 %v3339
    %v3422 = vunpack.c.l.b16 %v3340
    %v3423 = vunpack.c.h.b16 %v3340
    %v3424 = vunpack.c.l.b16 %v3341
    %v3425 = vunpack.c.h.b16 %v3341
    %v3426 = vunpack.c.l.b16 %v3342
    %v3427 = vunpack.c.h.b16 %v3342
    %v3428 = vunpack.c.l.b16 %v3343
    %v3429 = vunpack.c.h.b16 %v3343
    %v3430 = vunpack.c.l.b16 %v3344
    %v3431 = vunpack.c.h.b16 %v3344
    %v3432 = vunpack.c.l.b16 %v3345
    %v3433 = vunpack.c.h.b16 %v3345
    %v3434 = vunpack.c.l.b16 %v3346
    %v3435 = vunpack.c.h.b16 %v3346
    %v3436 = vunpack.c.l.b16 %v3347
    %v3437 = vunpack.c.h.b16 %v3347
    %v3438 = vunpack.c.l.b16 %v3348
    %v3439 = vunpack.c.h.b16 %v3348
    %v3440 = vunpack.c.l.b16 %v3349
    %v3441 = vunpack.c.h.b16 %v3349
    %v3442 = vunpack.c.l.b16 %v3350
    %v3443 = vunpack.c.h.b16 %v3350
    %v3444 = vunpack.c.l.b16 %v3351
    %v3445 = vunpack.c.h.b16 %v3351
    %v3446 = vunpack.c.l.b16 %v3352
    %v3447 = vunpack.c.h.b16 %v3352
    %v3448 = vunpack.c.l.b16 %v3353
    %v3449 = vunpack.c.h.b16 %v3353
    %v3450 = vpack.c.b16 %v3390, %v3386
    %v3451 = vpack.c.b16 %v3391, %v3387
    %v3452 = vpack.c.b16 %v3392, %v3388
    %v3453 = vpack.c.b16 %v3393, %v3389
    %v3454 = vpack.c.b16 %v3398, %v3394
    %v3455 = vpack.c.b16 %v3399, %v3395
    %v3456 = vpack.c.b16 %v3400, %v3396
    %v3457 = vpack.c.b16 %v3401, %v3397
    %v3458 = vpack.c.b16 %v3406, %v3402
    %v3459 = vpack.c.b16 %v3407, %v3403
    %v3460 = vpack.c.b16 %v3408, %v3404
    %v3461 = vpack.c.b16 %v3409, %v3405
    %v3462 = vpack.c.b16 %v3414, %v3410
    %v3463 = vpack.c.b16 %v3415, %v3411
    %v3464 = vpack.c.b16 %v3416, %v3412
    %v3465 = vpack.c.b16 %v3417, %v3413
    %v3466 = vpack.c.b16 %v3422, %v3418
    %v3467 = vpack.c.b16 %v3423, %v3419
    %v3468 = vpack.c.b16 %v3424, %v3420
    %v3469 = vpack.c.b16 %v3425, %v3421
    %v3470 = vpack.c.b16 %v3430, %v3426
    %v3471 = vpack.c.b16 %v3431, %v3427
    %v3472 = vpack.c.b16 %v3432, %v3428
    %v3473 = vpack.c.b16 %v3433, %v3429
    %v3474 = vpack.c.b16 %v3438, %v3434
    %v3475 = vpack.c.b16 %v3439, %v3435
    %v3476 = vpack.c.b16 %v3440, %v3436
    %v3477 = vpack.c.b16 %v3441, %v3437
    %v3478 = vpack.c.b16 %v3446, %v3442
    %v3479 = vpack.c.b16 %v3447, %v3443
    %v3480 = vpack.c.b16 %v3448, %v3444
    %v3481 = vpack.c.b16 %v3449, %v3445
    %3514 = vmatpush.bf16.msra.mxu0 %v368
    %3515 = vmatpush.bf16.msra.mxu0 %v367
    %3516 = vmatpush.bf16.msra.mxu0 %v366
    %3517 = vmatpush.bf16.msra.mxu0 %v365
    %3518 = vmatpush.bf16.msra.mxu0 %v364
    %3519 = vmatpush.bf16.msra.mxu0 %v363
    %3520 = vmatpush.bf16.msra.mxu0 %v362
    %3521 = vmatpush.bf16.msra.mxu0 %v361
    %3522 = vmatmul.bf16.gmra.mxu0 %v3450
    %v3523 = vpop.f32.mrf.mxu0
    %v3524 = vadd.f32 0.0, %v3523
    %v3525 = vpop.f32.mrf.mxu0
    %v3526 = vadd.f32 0.0, %v3525
    %3527 = vmatmul.bf16.gmra.mxu0 %v3454
    %v3528 = vpop.f32.mrf.mxu0
    %v3529 = vadd.f32 0.0, %v3528
    %v3530 = vpop.f32.mrf.mxu0
    %v3531 = vadd.f32 0.0, %v3530
    %3532 = vmatmul.bf16.gmra.mxu0 %v3458
    %v3533 = vpop.f32.mrf.mxu0
    %v3534 = vadd.f32 0.0, %v3533
    %v3535 = vpop.f32.mrf.mxu0
    %v3536 = vadd.f32 0.0, %v3535
    %3537 = vmatmul.bf16.gmra.mxu0 %v3462
    %v3538 = vpop.f32.mrf.mxu0
    %v3539 = vadd.f32 0.0, %v3538
    %v3540 = vpop.f32.mrf.mxu0
    %v3541 = vadd.f32 0.0, %v3540
    %3542 = vmatmul.bf16.gmra.mxu0 %v3466
    %v3543 = vpop.f32.mrf.mxu0
    %v3544 = vadd.f32 0.0, %v3543
    %v3545 = vpop.f32.mrf.mxu0
    %v3546 = vadd.f32 0.0, %v3545
    %3547 = vmatmul.bf16.gmra.mxu0 %v3470
    %v3548 = vpop.f32.mrf.mxu0
    %v3549 = vadd.f32 0.0, %v3548
    %v3550 = vpop.f32.mrf.mxu0
    %v3551 = vadd.f32 0.0, %v3550
    %3552 = vmatmul.bf16.gmra.mxu0 %v3474
    %v3553 = vpop.f32.mrf.mxu0
    %v3554 = vadd.f32 0.0, %v3553
    %v3555 = vpop.f32.mrf.mxu0
    %v3556 = vadd.f32 0.0, %v3555
    %3557 = vmatmul.bf16.gmra.mxu0 %v3478
    %v3558 = vpop.f32.mrf.mxu0
    %v3559 = vadd.f32 0.0, %v3558
    %v3560 = vpop.f32.mrf.mxu0
    %v3561 = vadd.f32 0.0, %v3560
    %3562 = vdwg.mxu0
    %3563 = vmatpush.bf16.msra.mxu0 %v376
    %3564 = vmatpush.bf16.msra.mxu0 %v375
    %3565 = vmatpush.bf16.msra.mxu0 %v374
    %3566 = vmatpush.bf16.msra.mxu0 %v373
    %3567 = vmatpush.bf16.msra.mxu0 %v372
    %3568 = vmatpush.bf16.msra.mxu0 %v371
    %3569 = vmatpush.bf16.msra.mxu0 %v370
    %3570 = vmatpush.bf16.msra.mxu0 %v369
    %3571 = vmatmul.bf16.gmra.mxu0 %v3451
    %v3572 = vpop.f32.mrf.mxu0
    %v3573 = vadd.f32 %v3524, %v3572
    %v3574 = vpop.f32.mrf.mxu0
    %v3575 = vadd.f32 %v3526, %v3574
    %3576 = vmatmul.bf16.gmra.mxu0 %v3455
    %v3577 = vpop.f32.mrf.mxu0
    %v3578 = vadd.f32 %v3529, %v3577
    %v3579 = vpop.f32.mrf.mxu0
    %v3580 = vadd.f32 %v3531, %v3579
    %3581 = vmatmul.bf16.gmra.mxu0 %v3459
    %v3582 = vpop.f32.mrf.mxu0
    %v3583 = vadd.f32 %v3534, %v3582
    %v3584 = vpop.f32.mrf.mxu0
    %v3585 = vadd.f32 %v3536, %v3584
    %3586 = vmatmul.bf16.gmra.mxu0 %v3463
    %v3587 = vpop.f32.mrf.mxu0
    %v3588 = vadd.f32 %v3539, %v3587
    %v3589 = vpop.f32.mrf.mxu0
    %v3590 = vadd.f32 %v3541, %v3589
    %3591 = vmatmul.bf16.gmra.mxu0 %v3467
    %v3592 = vpop.f32.mrf.mxu0
    %v3593 = vadd.f32 %v3544, %v3592
    %v3594 = vpop.f32.mrf.mxu0
    %v3595 = vadd.f32 %v3546, %v3594
    %3596 = vmatmul.bf16.gmra.mxu0 %v3471
    %v3597 = vpop.f32.mrf.mxu0
    %v3598 = vadd.f32 %v3549, %v3597
    %v3599 = vpop.f32.mrf.mxu0
    %v3600 = vadd.f32 %v3551, %v3599
    %3601 = vmatmul.bf16.gmra.mxu0 %v3475
    %v3602 = vpop.f32.mrf.mxu0
    %v3603 = vadd.f32 %v3554, %v3602
    %v3604 = vpop.f32.mrf.mxu0
    %v3605 = vadd.f32 %v3556, %v3604
    %3606 = vmatmul.bf16.gmra.mxu0 %v3479
    %v3607 = vpop.f32.mrf.mxu0
    %v3608 = vadd.f32 %v3559, %v3607
    %v3609 = vpop.f32.mrf.mxu0
    %v3610 = vadd.f32 %v3561, %v3609
    %3611 = vdwg.mxu0
    %3612 = vmatpush.bf16.msra.mxu0 %v384
    %3613 = vmatpush.bf16.msra.mxu0 %v383
    %3614 = vmatpush.bf16.msra.mxu0 %v382
    %3615 = vmatpush.bf16.msra.mxu0 %v381
    %3616 = vmatpush.bf16.msra.mxu0 %v380
    %3617 = vmatpush.bf16.msra.mxu0 %v379
    %3618 = vmatpush.bf16.msra.mxu0 %v378
    %3619 = vmatpush.bf16.msra.mxu0 %v377
    %3620 = vmatmul.bf16.gmra.mxu0 %v3452
    %v3621 = vpop.f32.mrf.mxu0
    %v3622 = vadd.f32 %v3573, %v3621
    %v3623 = vpop.f32.mrf.mxu0
    %v3624 = vadd.f32 %v3575, %v3623
    %3625 = vmatmul.bf16.gmra.mxu0 %v3456
    %v3626 = vpop.f32.mrf.mxu0
    %v3627 = vadd.f32 %v3578, %v3626
    %v3628 = vpop.f32.mrf.mxu0
    %v3629 = vadd.f32 %v3580, %v3628
    %3630 = vmatmul.bf16.gmra.mxu0 %v3460
    %v3631 = vpop.f32.mrf.mxu0
    %v3632 = vadd.f32 %v3583, %v3631
    %v3633 = vpop.f32.mrf.mxu0
    %v3634 = vadd.f32 %v3585, %v3633
    %3635 = vmatmul.bf16.gmra.mxu0 %v3464
    %v3636 = vpop.f32.mrf.mxu0
    %v3637 = vadd.f32 %v3588, %v3636
    %v3638 = vpop.f32.mrf.mxu0
    %v3639 = vadd.f32 %v3590, %v3638
    %3640 = vmatmul.bf16.gmra.mxu0 %v3468
    %v3641 = vpop.f32.mrf.mxu0
    %v3642 = vadd.f32 %v3593, %v3641
    %v3643 = vpop.f32.mrf.mxu0
    %v3644 = vadd.f32 %v3595, %v3643
    %3645 = vmatmul.bf16.gmra.mxu0 %v3472
    %v3646 = vpop.f32.mrf.mxu0
    %v3647 = vadd.f32 %v3598, %v3646
    %v3648 = vpop.f32.mrf.mxu0
    %v3649 = vadd.f32 %v3600, %v3648
    %3650 = vmatmul.bf16.gmra.mxu0 %v3476
    %v3651 = vpop.f32.mrf.mxu0
    %v3652 = vadd.f32 %v3603, %v3651
    %v3653 = vpop.f32.mrf.mxu0
    %v3654 = vadd.f32 %v3605, %v3653
    %3655 = vmatmul.bf16.gmra.mxu0 %v3480
    %v3656 = vpop.f32.mrf.mxu0
    %v3657 = vadd.f32 %v3608, %v3656
    %v3658 = vpop.f32.mrf.mxu0
    %v3659 = vadd.f32 %v3610, %v3658
    %3660 = vdwg.mxu0
    %3661 = vmatpush.bf16.msra.mxu0 %v392
    %3662 = vmatpush.bf16.msra.mxu0 %v391
    %3663 = vmatpush.bf16.msra.mxu0 %v390
    %3664 = vmatpush.bf16.msra.mxu0 %v389
    %3665 = vmatpush.bf16.msra.mxu0 %v388
    %3666 = vmatpush.bf16.msra.mxu0 %v387
    %3667 = vmatpush.bf16.msra.mxu0 %v386
    %3668 = vmatpush.bf16.msra.mxu0 %v385
    %3669 = vmatmul.bf16.gmra.mxu0 %v3453
    %v3670 = vpop.f32.mrf.mxu0
    %v3671 = vadd.f32 %v3622, %v3670
    %v3672 = vpop.f32.mrf.mxu0
    %v3673 = vadd.f32 %v3624, %v3672
    %3674 = vmatmul.bf16.gmra.mxu0 %v3457
    %v3675 = vpop.f32.mrf.mxu0
    %v3676 = vadd.f32 %v3627, %v3675
    %v3677 = vpop.f32.mrf.mxu0
    %v3678 = vadd.f32 %v3629, %v3677
    %3679 = vmatmul.bf16.gmra.mxu0 %v3461
    %v3680 = vpop.f32.mrf.mxu0
    %v3681 = vadd.f32 %v3632, %v3680
    %v3682 = vpop.f32.mrf.mxu0
    %v3683 = vadd.f32 %v3634, %v3682
    %3684 = vmatmul.bf16.gmra.mxu0 %v3465
    %v3685 = vpop.f32.mrf.mxu0
    %v3686 = vadd.f32 %v3637, %v3685
    %v3687 = vpop.f32.mrf.mxu0
    %v3688 = vadd.f32 %v3639, %v3687
    %3689 = vmatmul.bf16.gmra.mxu0 %v3469
    %v3690 = vpop.f32.mrf.mxu0
    %v3691 = vadd.f32 %v3642, %v3690
    %v3692 = vpop.f32.mrf.mxu0
    %v3693 = vadd.f32 %v3644, %v3692
    %3694 = vmatmul.bf16.gmra.mxu0 %v3473
    %v3695 = vpop.f32.mrf.mxu0
    %v3696 = vadd.f32 %v3647, %v3695
    %v3697 = vpop.f32.mrf.mxu0
    %v3698 = vadd.f32 %v3649, %v3697
    %3699 = vmatmul.bf16.gmra.mxu0 %v3477
    %v3700 = vpop.f32.mrf.mxu0
    %v3701 = vadd.f32 %v3652, %v3700
    %v3702 = vpop.f32.mrf.mxu0
    %v3703 = vadd.f32 %v3654, %v3702
    %3704 = vmatmul.bf16.gmra.mxu0 %v3481
    %v3705 = vpop.f32.mrf.mxu0
    %v3706 = vadd.f32 %v3657, %v3705
    %v3707 = vpop.f32.mrf.mxu0
    %v3708 = vadd.f32 %v3659, %v3707
    %3709 = vdwg.mxu0
    %s3710 = scalar_lea.vmem %s15, 192
    %v3711 = vld [vmem:[%s3710] sm:$0xff]
    %v3712 = vld [vmem:[%s3710 + $0x8] sm:$0xff]
    %v3713 = vld [vmem:[%s3710 + $0x10] sm:$0xff]
    %v3714 = vld [vmem:[%s3710 + $0x18] sm:$0xff]
    %v3715 = vpack.c.bf16 %v3673, %v3671
    %v3716 = vpack.c.bf16 %v3678, %v3676
    %v3717 = vpack.c.bf16 %v3683, %v3681
    %v3718 = vpack.c.bf16 %v3688, %v3686
    %v3719 = vpack.c.bf16 %v3693, %v3691
    %v3720 = vpack.c.bf16 %v3698, %v3696
    %v3721 = vpack.c.bf16 %v3703, %v3701
    %v3722 = vpack.c.bf16 %v3708, %v3706
    %v3723 = vpack.c.bf16 %v3712, %v3711
    %v3724 = vpack.c.bf16 %v3714, %v3713
    %v3726 = vsel %vm763, %v3715, 0
    %v3729 = vsel %vm763, %v3716, 0
    %v3732 = vsel %vm763, %v3717, 0
    %v3735 = vsel %vm763, %v3718, 0
    %v3738 = vsel %vm763, %v3719, 0
    %v3741 = vsel %vm763, %v3720, 0
    %v3744 = vsel %vm763, %v3721, 0
    %v3747 = vsel %vm763, %v3722, 0
    %3749 = vmatpush.bf16.msra.mxu0 0
    %3750 = vmatpush.bf16.msra.mxu0 0
    %3751 = vmatpush.bf16.msra.mxu0 0
    %3752 = vmatpush.bf16.msra.mxu0 0
    %3753 = vmatpush.bf16.msra.mxu0 0
    %3754 = vmatpush.bf16.msra.mxu0 0
    %3755 = vmatpush.bf16.msra.mxu0 %v3724
    %3756 = vmatpush.bf16.msra.mxu0 %v3723
    %3757 = vmatmul.bf16.gmra.mxu0 %v3726
    %v3758 = vpop.f32.mrf.mxu0
    %v3759 = vadd.f32 0.0, %v3758
    %v3760 = vpop.f32.mrf.mxu0
    %v3761 = vadd.f32 0.0, %v3760
    %3762 = vmatmul.bf16.gmra.mxu0 %v3729
    %v3763 = vpop.f32.mrf.mxu0
    %v3764 = vadd.f32 0.0, %v3763
    %v3765 = vpop.f32.mrf.mxu0
    %v3766 = vadd.f32 0.0, %v3765
    %3767 = vmatmul.bf16.gmra.mxu0 %v3732
    %v3768 = vpop.f32.mrf.mxu0
    %v3769 = vadd.f32 0.0, %v3768
    %v3770 = vpop.f32.mrf.mxu0
    %v3771 = vadd.f32 0.0, %v3770
    %3772 = vmatmul.bf16.gmra.mxu0 %v3735
    %v3773 = vpop.f32.mrf.mxu0
    %v3774 = vadd.f32 0.0, %v3773
    %v3775 = vpop.f32.mrf.mxu0
    %v3776 = vadd.f32 0.0, %v3775
    %3777 = vmatmul.bf16.gmra.mxu0 %v3738
    %v3778 = vpop.f32.mrf.mxu0
    %v3779 = vadd.f32 0.0, %v3778
    %v3780 = vpop.f32.mrf.mxu0
    %v3781 = vadd.f32 0.0, %v3780
    %3782 = vmatmul.bf16.gmra.mxu0 %v3741
    %v3783 = vpop.f32.mrf.mxu0
    %v3784 = vadd.f32 0.0, %v3783
    %v3785 = vpop.f32.mrf.mxu0
    %v3786 = vadd.f32 0.0, %v3785
    %3787 = vmatmul.bf16.gmra.mxu0 %v3744
    %v3788 = vpop.f32.mrf.mxu0
    %v3789 = vadd.f32 0.0, %v3788
    %v3790 = vpop.f32.mrf.mxu0
    %v3791 = vadd.f32 0.0, %v3790
    %3792 = vmatmul.bf16.gmra.mxu0 %v3747
    %v3793 = vpop.f32.mrf.mxu0
    %v3794 = vadd.f32 0.0, %v3793
    %v3795 = vpop.f32.mrf.mxu0
    %v3796 = vadd.f32 0.0, %v3795
    %3797 = vdwg.mxu0
    %v3798 = vadd.f32 %v3305, %v3759
    %v3799 = vadd.f32 %v3306, %v3761
    %v3800 = vadd.f32 %v3307, %v3764
    %v3801 = vadd.f32 %v3308, %v3766
    %v3802 = vadd.f32 %v3309, %v3769
    %v3803 = vadd.f32 %v3310, %v3771
    %v3804 = vadd.f32 %v3311, %v3774
    %v3805 = vadd.f32 %v3312, %v3776
    %v3806 = vadd.f32 %v3313, %v3779
    %v3807 = vadd.f32 %v3314, %v3781
    %v3808 = vadd.f32 %v3315, %v3784
    %v3809 = vadd.f32 %v3316, %v3786
    %v3810 = vadd.f32 %v3317, %v3789
    %v3811 = vadd.f32 %v3318, %v3791
    %v3812 = vadd.f32 %v3319, %v3794
    %v3813 = vadd.f32 %v3320, %v3796
    %s3814 = scalar_lea.vmem %s9, 1792
    %v3815 = vld [vmem:[%s3814] sm:$0xff]
    %v3816 = vld [vmem:[%s3814 + $0x8] sm:$0xff]
    %v3817 = vld [vmem:[%s3814 + $0x10] sm:$0xff]
    %v3818 = vld [vmem:[%s3814 + $0x18] sm:$0xff]
    %v3819 = vld [vmem:[%s3814 + $0x20] sm:$0xff]
    %v3820 = vld [vmem:[%s3814 + $0x28] sm:$0xff]
    %v3821 = vld [vmem:[%s3814 + $0x30] sm:$0xff]
    %v3822 = vld [vmem:[%s3814 + $0x38] sm:$0xff]
    %v3823 = vld [vmem:[%s3814 + $0x40] sm:$0xff]
    %v3824 = vld [vmem:[%s3814 + $0x48] sm:$0xff]
    %v3825 = vld [vmem:[%s3814 + $0x50] sm:$0xff]
    %v3826 = vld [vmem:[%s3814 + $0x58] sm:$0xff]
    %v3827 = vld [vmem:[%s3814 + $0x60] sm:$0xff]
    %v3828 = vld [vmem:[%s3814 + $0x68] sm:$0xff]
    %v3829 = vld [vmem:[%s3814 + $0x70] sm:$0xff]
    %v3830 = vld [vmem:[%s3814 + $0x78] sm:$0xff]
    %v3831 = vld [vmem:[%s3814 + $0x80] sm:$0xff]
    %v3832 = vld [vmem:[%s3814 + $0x88] sm:$0xff]
    %v3833 = vld [vmem:[%s3814 + $0x90] sm:$0xff]
    %v3834 = vld [vmem:[%s3814 + $0x98] sm:$0xff]
    %v3835 = vld [vmem:[%s3814 + $0xa0] sm:$0xff]
    %v3836 = vld [vmem:[%s3814 + $0xa8] sm:$0xff]
    %v3837 = vld [vmem:[%s3814 + $0xb0] sm:$0xff]
    %v3838 = vld [vmem:[%s3814 + $0xb8] sm:$0xff]
    %v3839 = vld [vmem:[%s3814 + $0xc0] sm:$0xff]
    %v3840 = vld [vmem:[%s3814 + $0xc8] sm:$0xff]
    %v3841 = vld [vmem:[%s3814 + $0xd0] sm:$0xff]
    %v3842 = vld [vmem:[%s3814 + $0xd8] sm:$0xff]
    %v3843 = vld [vmem:[%s3814 + $0xe0] sm:$0xff]
    %v3844 = vld [vmem:[%s3814 + $0xe8] sm:$0xff]
    %v3845 = vld [vmem:[%s3814 + $0xf0] sm:$0xff]
    %v3846 = vld [vmem:[%s3814 + $0xf8] sm:$0xff]
    %v3879 = vunpack.c.l.b16 %v3815
    %v3880 = vunpack.c.h.b16 %v3815
    %v3881 = vunpack.c.l.b16 %v3816
    %v3882 = vunpack.c.h.b16 %v3816
    %v3883 = vunpack.c.l.b16 %v3817
    %v3884 = vunpack.c.h.b16 %v3817
    %v3885 = vunpack.c.l.b16 %v3818
    %v3886 = vunpack.c.h.b16 %v3818
    %v3887 = vunpack.c.l.b16 %v3819
    %v3888 = vunpack.c.h.b16 %v3819
    %v3889 = vunpack.c.l.b16 %v3820
    %v3890 = vunpack.c.h.b16 %v3820
    %v3891 = vunpack.c.l.b16 %v3821
    %v3892 = vunpack.c.h.b16 %v3821
    %v3893 = vunpack.c.l.b16 %v3822
    %v3894 = vunpack.c.h.b16 %v3822
    %v3895 = vunpack.c.l.b16 %v3823
    %v3896 = vunpack.c.h.b16 %v3823
    %v3897 = vunpack.c.l.b16 %v3824
    %v3898 = vunpack.c.h.b16 %v3824
    %v3899 = vunpack.c.l.b16 %v3825
    %v3900 = vunpack.c.h.b16 %v3825
    %v3901 = vunpack.c.l.b16 %v3826
    %v3902 = vunpack.c.h.b16 %v3826
    %v3903 = vunpack.c.l.b16 %v3827
    %v3904 = vunpack.c.h.b16 %v3827
    %v3905 = vunpack.c.l.b16 %v3828
    %v3906 = vunpack.c.h.b16 %v3828
    %v3907 = vunpack.c.l.b16 %v3829
    %v3908 = vunpack.c.h.b16 %v3829
    %v3909 = vunpack.c.l.b16 %v3830
    %v3910 = vunpack.c.h.b16 %v3830
    %v3911 = vunpack.c.l.b16 %v3831
    %v3912 = vunpack.c.h.b16 %v3831
    %v3913 = vunpack.c.l.b16 %v3832
    %v3914 = vunpack.c.h.b16 %v3832
    %v3915 = vunpack.c.l.b16 %v3833
    %v3916 = vunpack.c.h.b16 %v3833
    %v3917 = vunpack.c.l.b16 %v3834
    %v3918 = vunpack.c.h.b16 %v3834
    %v3919 = vunpack.c.l.b16 %v3835
    %v3920 = vunpack.c.h.b16 %v3835
    %v3921 = vunpack.c.l.b16 %v3836
    %v3922 = vunpack.c.h.b16 %v3836
    %v3923 = vunpack.c.l.b16 %v3837
    %v3924 = vunpack.c.h.b16 %v3837
    %v3925 = vunpack.c.l.b16 %v3838
    %v3926 = vunpack.c.h.b16 %v3838
    %v3927 = vunpack.c.l.b16 %v3839
    %v3928 = vunpack.c.h.b16 %v3839
    %v3929 = vunpack.c.l.b16 %v3840
    %v3930 = vunpack.c.h.b16 %v3840
    %v3931 = vunpack.c.l.b16 %v3841
    %v3932 = vunpack.c.h.b16 %v3841
    %v3933 = vunpack.c.l.b16 %v3842
    %v3934 = vunpack.c.h.b16 %v3842
    %v3935 = vunpack.c.l.b16 %v3843
    %v3936 = vunpack.c.h.b16 %v3843
    %v3937 = vunpack.c.l.b16 %v3844
    %v3938 = vunpack.c.h.b16 %v3844
    %v3939 = vunpack.c.l.b16 %v3845
    %v3940 = vunpack.c.h.b16 %v3845
    %v3941 = vunpack.c.l.b16 %v3846
    %v3942 = vunpack.c.h.b16 %v3846
    %v3943 = vpack.c.b16 %v3883, %v3879
    %v3944 = vpack.c.b16 %v3884, %v3880
    %v3945 = vpack.c.b16 %v3885, %v3881
    %v3946 = vpack.c.b16 %v3886, %v3882
    %v3947 = vpack.c.b16 %v3891, %v3887
    %v3948 = vpack.c.b16 %v3892, %v3888
    %v3949 = vpack.c.b16 %v3893, %v3889
    %v3950 = vpack.c.b16 %v3894, %v3890
    %v3951 = vpack.c.b16 %v3899, %v3895
    %v3952 = vpack.c.b16 %v3900, %v3896
    %v3953 = vpack.c.b16 %v3901, %v3897
    %v3954 = vpack.c.b16 %v3902, %v3898
    %v3955 = vpack.c.b16 %v3907, %v3903
    %v3956 = vpack.c.b16 %v3908, %v3904
    %v3957 = vpack.c.b16 %v3909, %v3905
    %v3958 = vpack.c.b16 %v3910, %v3906
    %v3959 = vpack.c.b16 %v3915, %v3911
    %v3960 = vpack.c.b16 %v3916, %v3912
    %v3961 = vpack.c.b16 %v3917, %v3913
    %v3962 = vpack.c.b16 %v3918, %v3914
    %v3963 = vpack.c.b16 %v3923, %v3919
    %v3964 = vpack.c.b16 %v3924, %v3920
    %v3965 = vpack.c.b16 %v3925, %v3921
    %v3966 = vpack.c.b16 %v3926, %v3922
    %v3967 = vpack.c.b16 %v3931, %v3927
    %v3968 = vpack.c.b16 %v3932, %v3928
    %v3969 = vpack.c.b16 %v3933, %v3929
    %v3970 = vpack.c.b16 %v3934, %v3930
    %v3971 = vpack.c.b16 %v3939, %v3935
    %v3972 = vpack.c.b16 %v3940, %v3936
    %v3973 = vpack.c.b16 %v3941, %v3937
    %v3974 = vpack.c.b16 %v3942, %v3938
    %4007 = vmatpush.bf16.msra.mxu0 %v368
    %4008 = vmatpush.bf16.msra.mxu0 %v367
    %4009 = vmatpush.bf16.msra.mxu0 %v366
    %4010 = vmatpush.bf16.msra.mxu0 %v365
    %4011 = vmatpush.bf16.msra.mxu0 %v364
    %4012 = vmatpush.bf16.msra.mxu0 %v363
    %4013 = vmatpush.bf16.msra.mxu0 %v362
    %4014 = vmatpush.bf16.msra.mxu0 %v361
    %4015 = vmatmul.bf16.gmra.mxu0 %v3943
    %v4016 = vpop.f32.mrf.mxu0
    %v4017 = vadd.f32 0.0, %v4016
    %v4018 = vpop.f32.mrf.mxu0
    %v4019 = vadd.f32 0.0, %v4018
    %4020 = vmatmul.bf16.gmra.mxu0 %v3947
    %v4021 = vpop.f32.mrf.mxu0
    %v4022 = vadd.f32 0.0, %v4021
    %v4023 = vpop.f32.mrf.mxu0
    %v4024 = vadd.f32 0.0, %v4023
    %4025 = vmatmul.bf16.gmra.mxu0 %v3951
    %v4026 = vpop.f32.mrf.mxu0
    %v4027 = vadd.f32 0.0, %v4026
    %v4028 = vpop.f32.mrf.mxu0
    %v4029 = vadd.f32 0.0, %v4028
    %4030 = vmatmul.bf16.gmra.mxu0 %v3955
    %v4031 = vpop.f32.mrf.mxu0
    %v4032 = vadd.f32 0.0, %v4031
    %v4033 = vpop.f32.mrf.mxu0
    %v4034 = vadd.f32 0.0, %v4033
    %4035 = vmatmul.bf16.gmra.mxu0 %v3959
    %v4036 = vpop.f32.mrf.mxu0
    %v4037 = vadd.f32 0.0, %v4036
    %v4038 = vpop.f32.mrf.mxu0
    %v4039 = vadd.f32 0.0, %v4038
    %4040 = vmatmul.bf16.gmra.mxu0 %v3963
    %v4041 = vpop.f32.mrf.mxu0
    %v4042 = vadd.f32 0.0, %v4041
    %v4043 = vpop.f32.mrf.mxu0
    %v4044 = vadd.f32 0.0, %v4043
    %4045 = vmatmul.bf16.gmra.mxu0 %v3967
    %v4046 = vpop.f32.mrf.mxu0
    %v4047 = vadd.f32 0.0, %v4046
    %v4048 = vpop.f32.mrf.mxu0
    %v4049 = vadd.f32 0.0, %v4048
    %4050 = vmatmul.bf16.gmra.mxu0 %v3971
    %v4051 = vpop.f32.mrf.mxu0
    %v4052 = vadd.f32 0.0, %v4051
    %v4053 = vpop.f32.mrf.mxu0
    %v4054 = vadd.f32 0.0, %v4053
    %4055 = vdwg.mxu0
    %4056 = vmatpush.bf16.msra.mxu0 %v376
    %4057 = vmatpush.bf16.msra.mxu0 %v375
    %4058 = vmatpush.bf16.msra.mxu0 %v374
    %4059 = vmatpush.bf16.msra.mxu0 %v373
    %4060 = vmatpush.bf16.msra.mxu0 %v372
    %4061 = vmatpush.bf16.msra.mxu0 %v371
    %4062 = vmatpush.bf16.msra.mxu0 %v370
    %4063 = vmatpush.bf16.msra.mxu0 %v369
    %4064 = vmatmul.bf16.gmra.mxu0 %v3944
    %v4065 = vpop.f32.mrf.mxu0
    %v4066 = vadd.f32 %v4017, %v4065
    %v4067 = vpop.f32.mrf.mxu0
    %v4068 = vadd.f32 %v4019, %v4067
    %4069 = vmatmul.bf16.gmra.mxu0 %v3948
    %v4070 = vpop.f32.mrf.mxu0
    %v4071 = vadd.f32 %v4022, %v4070
    %v4072 = vpop.f32.mrf.mxu0
    %v4073 = vadd.f32 %v4024, %v4072
    %4074 = vmatmul.bf16.gmra.mxu0 %v3952
    %v4075 = vpop.f32.mrf.mxu0
    %v4076 = vadd.f32 %v4027, %v4075
    %v4077 = vpop.f32.mrf.mxu0
    %v4078 = vadd.f32 %v4029, %v4077
    %4079 = vmatmul.bf16.gmra.mxu0 %v3956
    %v4080 = vpop.f32.mrf.mxu0
    %v4081 = vadd.f32 %v4032, %v4080
    %v4082 = vpop.f32.mrf.mxu0
    %v4083 = vadd.f32 %v4034, %v4082
    %4084 = vmatmul.bf16.gmra.mxu0 %v3960
    %v4085 = vpop.f32.mrf.mxu0
    %v4086 = vadd.f32 %v4037, %v4085
    %v4087 = vpop.f32.mrf.mxu0
    %v4088 = vadd.f32 %v4039, %v4087
    %4089 = vmatmul.bf16.gmra.mxu0 %v3964
    %v4090 = vpop.f32.mrf.mxu0
    %v4091 = vadd.f32 %v4042, %v4090
    %v4092 = vpop.f32.mrf.mxu0
    %v4093 = vadd.f32 %v4044, %v4092
    %4094 = vmatmul.bf16.gmra.mxu0 %v3968
    %v4095 = vpop.f32.mrf.mxu0
    %v4096 = vadd.f32 %v4047, %v4095
    %v4097 = vpop.f32.mrf.mxu0
    %v4098 = vadd.f32 %v4049, %v4097
    %4099 = vmatmul.bf16.gmra.mxu0 %v3972
    %v4100 = vpop.f32.mrf.mxu0
    %v4101 = vadd.f32 %v4052, %v4100
    %v4102 = vpop.f32.mrf.mxu0
    %v4103 = vadd.f32 %v4054, %v4102
    %4104 = vdwg.mxu0
    %4105 = vmatpush.bf16.msra.mxu0 %v384
    %4106 = vmatpush.bf16.msra.mxu0 %v383
    %4107 = vmatpush.bf16.msra.mxu0 %v382
    %4108 = vmatpush.bf16.msra.mxu0 %v381
    %4109 = vmatpush.bf16.msra.mxu0 %v380
    %4110 = vmatpush.bf16.msra.mxu0 %v379
    %4111 = vmatpush.bf16.msra.mxu0 %v378
    %4112 = vmatpush.bf16.msra.mxu0 %v377
    %4113 = vmatmul.bf16.gmra.mxu0 %v3945
    %v4114 = vpop.f32.mrf.mxu0
    %v4115 = vadd.f32 %v4066, %v4114
    %v4116 = vpop.f32.mrf.mxu0
    %v4117 = vadd.f32 %v4068, %v4116
    %4118 = vmatmul.bf16.gmra.mxu0 %v3949
    %v4119 = vpop.f32.mrf.mxu0
    %v4120 = vadd.f32 %v4071, %v4119
    %v4121 = vpop.f32.mrf.mxu0
    %v4122 = vadd.f32 %v4073, %v4121
    %4123 = vmatmul.bf16.gmra.mxu0 %v3953
    %v4124 = vpop.f32.mrf.mxu0
    %v4125 = vadd.f32 %v4076, %v4124
    %v4126 = vpop.f32.mrf.mxu0
    %v4127 = vadd.f32 %v4078, %v4126
    %4128 = vmatmul.bf16.gmra.mxu0 %v3957
    %v4129 = vpop.f32.mrf.mxu0
    %v4130 = vadd.f32 %v4081, %v4129
    %v4131 = vpop.f32.mrf.mxu0
    %v4132 = vadd.f32 %v4083, %v4131
    %4133 = vmatmul.bf16.gmra.mxu0 %v3961
    %v4134 = vpop.f32.mrf.mxu0
    %v4135 = vadd.f32 %v4086, %v4134
    %v4136 = vpop.f32.mrf.mxu0
    %v4137 = vadd.f32 %v4088, %v4136
    %4138 = vmatmul.bf16.gmra.mxu0 %v3965
    %v4139 = vpop.f32.mrf.mxu0
    %v4140 = vadd.f32 %v4091, %v4139
    %v4141 = vpop.f32.mrf.mxu0
    %v4142 = vadd.f32 %v4093, %v4141
    %4143 = vmatmul.bf16.gmra.mxu0 %v3969
    %v4144 = vpop.f32.mrf.mxu0
    %v4145 = vadd.f32 %v4096, %v4144
    %v4146 = vpop.f32.mrf.mxu0
    %v4147 = vadd.f32 %v4098, %v4146
    %4148 = vmatmul.bf16.gmra.mxu0 %v3973
    %v4149 = vpop.f32.mrf.mxu0
    %v4150 = vadd.f32 %v4101, %v4149
    %v4151 = vpop.f32.mrf.mxu0
    %v4152 = vadd.f32 %v4103, %v4151
    %4153 = vdwg.mxu0
    %4154 = vmatpush.bf16.msra.mxu0 %v392
    %4155 = vmatpush.bf16.msra.mxu0 %v391
    %4156 = vmatpush.bf16.msra.mxu0 %v390
    %4157 = vmatpush.bf16.msra.mxu0 %v389
    %4158 = vmatpush.bf16.msra.mxu0 %v388
    %4159 = vmatpush.bf16.msra.mxu0 %v387
    %4160 = vmatpush.bf16.msra.mxu0 %v386
    %4161 = vmatpush.bf16.msra.mxu0 %v385
    %4162 = vmatmul.bf16.gmra.mxu0 %v3946
    %v4163 = vpop.f32.mrf.mxu0
    %v4164 = vadd.f32 %v4115, %v4163
    %v4165 = vpop.f32.mrf.mxu0
    %v4166 = vadd.f32 %v4117, %v4165
    %4167 = vmatmul.bf16.gmra.mxu0 %v3950
    %v4168 = vpop.f32.mrf.mxu0
    %v4169 = vadd.f32 %v4120, %v4168
    %v4170 = vpop.f32.mrf.mxu0
    %v4171 = vadd.f32 %v4122, %v4170
    %4172 = vmatmul.bf16.gmra.mxu0 %v3954
    %v4173 = vpop.f32.mrf.mxu0
    %v4174 = vadd.f32 %v4125, %v4173
    %v4175 = vpop.f32.mrf.mxu0
    %v4176 = vadd.f32 %v4127, %v4175
    %4177 = vmatmul.bf16.gmra.mxu0 %v3958
    %v4178 = vpop.f32.mrf.mxu0
    %v4179 = vadd.f32 %v4130, %v4178
    %v4180 = vpop.f32.mrf.mxu0
    %v4181 = vadd.f32 %v4132, %v4180
    %4182 = vmatmul.bf16.gmra.mxu0 %v3962
    %v4183 = vpop.f32.mrf.mxu0
    %v4184 = vadd.f32 %v4135, %v4183
    %v4185 = vpop.f32.mrf.mxu0
    %v4186 = vadd.f32 %v4137, %v4185
    %4187 = vmatmul.bf16.gmra.mxu0 %v3966
    %v4188 = vpop.f32.mrf.mxu0
    %v4189 = vadd.f32 %v4140, %v4188
    %v4190 = vpop.f32.mrf.mxu0
    %v4191 = vadd.f32 %v4142, %v4190
    %4192 = vmatmul.bf16.gmra.mxu0 %v3970
    %v4193 = vpop.f32.mrf.mxu0
    %v4194 = vadd.f32 %v4145, %v4193
    %v4195 = vpop.f32.mrf.mxu0
    %v4196 = vadd.f32 %v4147, %v4195
    %4197 = vmatmul.bf16.gmra.mxu0 %v3974
    %v4198 = vpop.f32.mrf.mxu0
    %v4199 = vadd.f32 %v4150, %v4198
    %v4200 = vpop.f32.mrf.mxu0
    %v4201 = vadd.f32 %v4152, %v4200
    %4202 = vdwg.mxu0
    %s4203 = scalar_lea.vmem %s15, 224
    %v4204 = vld [vmem:[%s4203] sm:$0xff]
    %v4205 = vld [vmem:[%s4203 + $0x8] sm:$0xff]
    %v4206 = vld [vmem:[%s4203 + $0x10] sm:$0xff]
    %v4207 = vld [vmem:[%s4203 + $0x18] sm:$0xff]
    %v4208 = vpack.c.bf16 %v4166, %v4164
    %v4209 = vpack.c.bf16 %v4171, %v4169
    %v4210 = vpack.c.bf16 %v4176, %v4174
    %v4211 = vpack.c.bf16 %v4181, %v4179
    %v4212 = vpack.c.bf16 %v4186, %v4184
    %v4213 = vpack.c.bf16 %v4191, %v4189
    %v4214 = vpack.c.bf16 %v4196, %v4194
    %v4215 = vpack.c.bf16 %v4201, %v4199
    %v4216 = vpack.c.bf16 %v4205, %v4204
    %v4217 = vpack.c.bf16 %v4207, %v4206
    %v4219 = vsel %vm763, %v4208, 0
    %v4222 = vsel %vm763, %v4209, 0
    %v4225 = vsel %vm763, %v4210, 0
    %v4228 = vsel %vm763, %v4211, 0
    %v4231 = vsel %vm763, %v4212, 0
    %v4234 = vsel %vm763, %v4213, 0
    %v4237 = vsel %vm763, %v4214, 0
    %v4240 = vsel %vm763, %v4215, 0
    %4242 = vmatpush.bf16.msra.mxu0 0
    %4243 = vmatpush.bf16.msra.mxu0 0
    %4244 = vmatpush.bf16.msra.mxu0 0
    %4245 = vmatpush.bf16.msra.mxu0 0
    %4246 = vmatpush.bf16.msra.mxu0 0
    %4247 = vmatpush.bf16.msra.mxu0 0
    %4248 = vmatpush.bf16.msra.mxu0 %v4217
    %4249 = vmatpush.bf16.msra.mxu0 %v4216
    %4250 = vmatmul.bf16.gmra.mxu0 %v4219
    %v4251 = vpop.f32.mrf.mxu0
    %v4252 = vadd.f32 0.0, %v4251
    %v4253 = vpop.f32.mrf.mxu0
    %v4254 = vadd.f32 0.0, %v4253
    %4255 = vmatmul.bf16.gmra.mxu0 %v4222
    %v4256 = vpop.f32.mrf.mxu0
    %v4257 = vadd.f32 0.0, %v4256
    %v4258 = vpop.f32.mrf.mxu0
    %v4259 = vadd.f32 0.0, %v4258
    %4260 = vmatmul.bf16.gmra.mxu0 %v4225
    %v4261 = vpop.f32.mrf.mxu0
    %v4262 = vadd.f32 0.0, %v4261
    %v4263 = vpop.f32.mrf.mxu0
    %v4264 = vadd.f32 0.0, %v4263
    %4265 = vmatmul.bf16.gmra.mxu0 %v4228
    %v4266 = vpop.f32.mrf.mxu0
    %v4267 = vadd.f32 0.0, %v4266
    %v4268 = vpop.f32.mrf.mxu0
    %v4269 = vadd.f32 0.0, %v4268
    %4270 = vmatmul.bf16.gmra.mxu0 %v4231
    %v4271 = vpop.f32.mrf.mxu0
    %v4272 = vadd.f32 0.0, %v4271
    %v4273 = vpop.f32.mrf.mxu0
    %v4274 = vadd.f32 0.0, %v4273
    %4275 = vmatmul.bf16.gmra.mxu0 %v4234
    %v4276 = vpop.f32.mrf.mxu0
    %v4277 = vadd.f32 0.0, %v4276
    %v4278 = vpop.f32.mrf.mxu0
    %v4279 = vadd.f32 0.0, %v4278
    %4280 = vmatmul.bf16.gmra.mxu0 %v4237
    %v4281 = vpop.f32.mrf.mxu0
    %v4282 = vadd.f32 0.0, %v4281
    %v4283 = vpop.f32.mrf.mxu0
    %v4284 = vadd.f32 0.0, %v4283
    %4285 = vmatmul.bf16.gmra.mxu0 %v4240
    %v4286 = vpop.f32.mrf.mxu0
    %v4287 = vadd.f32 0.0, %v4286
    %v4288 = vpop.f32.mrf.mxu0
    %v4289 = vadd.f32 0.0, %v4288
    %4290 = vdwg.mxu0
    %v4291 = vadd.f32 %v3798, %v4252
    %v4292 = vadd.f32 %v3799, %v4254
    %v4293 = vadd.f32 %v3800, %v4257
    %v4294 = vadd.f32 %v3801, %v4259
    %v4295 = vadd.f32 %v3802, %v4262
    %v4296 = vadd.f32 %v3803, %v4264
    %v4297 = vadd.f32 %v3804, %v4267
    %v4298 = vadd.f32 %v3805, %v4269
    %v4299 = vadd.f32 %v3806, %v4272
    %v4300 = vadd.f32 %v3807, %v4274
    %v4301 = vadd.f32 %v3808, %v4277
    %v4302 = vadd.f32 %v3809, %v4279
    %v4303 = vadd.f32 %v3810, %v4282
    %v4304 = vadd.f32 %v3811, %v4284
    %v4305 = vadd.f32 %v3812, %v4287
    %v4306 = vadd.f32 %v3813, %v4289
    %s4307 = scalar_lea.vmem %s9, 2048
    %v4308 = vld [vmem:[%s4307] sm:$0xff]
    %v4309 = vld [vmem:[%s4307 + $0x8] sm:$0xff]
    %v4310 = vld [vmem:[%s4307 + $0x10] sm:$0xff]
    %v4311 = vld [vmem:[%s4307 + $0x18] sm:$0xff]
    %v4312 = vld [vmem:[%s4307 + $0x20] sm:$0xff]
    %v4313 = vld [vmem:[%s4307 + $0x28] sm:$0xff]
    %v4314 = vld [vmem:[%s4307 + $0x30] sm:$0xff]
    %v4315 = vld [vmem:[%s4307 + $0x38] sm:$0xff]
    %v4316 = vld [vmem:[%s4307 + $0x40] sm:$0xff]
    %v4317 = vld [vmem:[%s4307 + $0x48] sm:$0xff]
    %v4318 = vld [vmem:[%s4307 + $0x50] sm:$0xff]
    %v4319 = vld [vmem:[%s4307 + $0x58] sm:$0xff]
    %v4320 = vld [vmem:[%s4307 + $0x60] sm:$0xff]
    %v4321 = vld [vmem:[%s4307 + $0x68] sm:$0xff]
    %v4322 = vld [vmem:[%s4307 + $0x70] sm:$0xff]
    %v4323 = vld [vmem:[%s4307 + $0x78] sm:$0xff]
    %v4324 = vld [vmem:[%s4307 + $0x80] sm:$0xff]
    %v4325 = vld [vmem:[%s4307 + $0x88] sm:$0xff]
    %v4326 = vld [vmem:[%s4307 + $0x90] sm:$0xff]
    %v4327 = vld [vmem:[%s4307 + $0x98] sm:$0xff]
    %v4328 = vld [vmem:[%s4307 + $0xa0] sm:$0xff]
    %v4329 = vld [vmem:[%s4307 + $0xa8] sm:$0xff]
    %v4330 = vld [vmem:[%s4307 + $0xb0] sm:$0xff]
    %v4331 = vld [vmem:[%s4307 + $0xb8] sm:$0xff]
    %v4332 = vld [vmem:[%s4307 + $0xc0] sm:$0xff]
    %v4333 = vld [vmem:[%s4307 + $0xc8] sm:$0xff]
    %v4334 = vld [vmem:[%s4307 + $0xd0] sm:$0xff]
    %v4335 = vld [vmem:[%s4307 + $0xd8] sm:$0xff]
    %v4336 = vld [vmem:[%s4307 + $0xe0] sm:$0xff]
    %v4337 = vld [vmem:[%s4307 + $0xe8] sm:$0xff]
    %v4338 = vld [vmem:[%s4307 + $0xf0] sm:$0xff]
    %v4339 = vld [vmem:[%s4307 + $0xf8] sm:$0xff]
    %v4372 = vunpack.c.l.b16 %v4308
    %v4373 = vunpack.c.h.b16 %v4308
    %v4374 = vunpack.c.l.b16 %v4309
    %v4375 = vunpack.c.h.b16 %v4309
    %v4376 = vunpack.c.l.b16 %v4310
    %v4377 = vunpack.c.h.b16 %v4310
    %v4378 = vunpack.c.l.b16 %v4311
    %v4379 = vunpack.c.h.b16 %v4311
    %v4380 = vunpack.c.l.b16 %v4312
    %v4381 = vunpack.c.h.b16 %v4312
    %v4382 = vunpack.c.l.b16 %v4313
    %v4383 = vunpack.c.h.b16 %v4313
    %v4384 = vunpack.c.l.b16 %v4314
    %v4385 = vunpack.c.h.b16 %v4314
    %v4386 = vunpack.c.l.b16 %v4315
    %v4387 = vunpack.c.h.b16 %v4315
    %v4388 = vunpack.c.l.b16 %v4316
    %v4389 = vunpack.c.h.b16 %v4316
    %v4390 = vunpack.c.l.b16 %v4317
    %v4391 = vunpack.c.h.b16 %v4317
    %v4392 = vunpack.c.l.b16 %v4318
    %v4393 = vunpack.c.h.b16 %v4318
    %v4394 = vunpack.c.l.b16 %v4319
    %v4395 = vunpack.c.h.b16 %v4319
    %v4396 = vunpack.c.l.b16 %v4320
    %v4397 = vunpack.c.h.b16 %v4320
    %v4398 = vunpack.c.l.b16 %v4321
    %v4399 = vunpack.c.h.b16 %v4321
    %v4400 = vunpack.c.l.b16 %v4322
    %v4401 = vunpack.c.h.b16 %v4322
    %v4402 = vunpack.c.l.b16 %v4323
    %v4403 = vunpack.c.h.b16 %v4323
    %v4404 = vunpack.c.l.b16 %v4324
    %v4405 = vunpack.c.h.b16 %v4324
    %v4406 = vunpack.c.l.b16 %v4325
    %v4407 = vunpack.c.h.b16 %v4325
    %v4408 = vunpack.c.l.b16 %v4326
    %v4409 = vunpack.c.h.b16 %v4326
    %v4410 = vunpack.c.l.b16 %v4327
    %v4411 = vunpack.c.h.b16 %v4327
    %v4412 = vunpack.c.l.b16 %v4328
    %v4413 = vunpack.c.h.b16 %v4328
    %v4414 = vunpack.c.l.b16 %v4329
    %v4415 = vunpack.c.h.b16 %v4329
    %v4416 = vunpack.c.l.b16 %v4330
    %v4417 = vunpack.c.h.b16 %v4330
    %v4418 = vunpack.c.l.b16 %v4331
    %v4419 = vunpack.c.h.b16 %v4331
    %v4420 = vunpack.c.l.b16 %v4332
    %v4421 = vunpack.c.h.b16 %v4332
    %v4422 = vunpack.c.l.b16 %v4333
    %v4423 = vunpack.c.h.b16 %v4333
    %v4424 = vunpack.c.l.b16 %v4334
    %v4425 = vunpack.c.h.b16 %v4334
    %v4426 = vunpack.c.l.b16 %v4335
    %v4427 = vunpack.c.h.b16 %v4335
    %v4428 = vunpack.c.l.b16 %v4336
    %v4429 = vunpack.c.h.b16 %v4336
    %v4430 = vunpack.c.l.b16 %v4337
    %v4431 = vunpack.c.h.b16 %v4337
    %v4432 = vunpack.c.l.b16 %v4338
    %v4433 = vunpack.c.h.b16 %v4338
    %v4434 = vunpack.c.l.b16 %v4339
    %v4435 = vunpack.c.h.b16 %v4339
    %v4436 = vpack.c.b16 %v4376, %v4372
    %v4437 = vpack.c.b16 %v4377, %v4373
    %v4438 = vpack.c.b16 %v4378, %v4374
    %v4439 = vpack.c.b16 %v4379, %v4375
    %v4440 = vpack.c.b16 %v4384, %v4380
    %v4441 = vpack.c.b16 %v4385, %v4381
    %v4442 = vpack.c.b16 %v4386, %v4382
    %v4443 = vpack.c.b16 %v4387, %v4383
    %v4444 = vpack.c.b16 %v4392, %v4388
    %v4445 = vpack.c.b16 %v4393, %v4389
    %v4446 = vpack.c.b16 %v4394, %v4390
    %v4447 = vpack.c.b16 %v4395, %v4391
    %v4448 = vpack.c.b16 %v4400, %v4396
    %v4449 = vpack.c.b16 %v4401, %v4397
    %v4450 = vpack.c.b16 %v4402, %v4398
    %v4451 = vpack.c.b16 %v4403, %v4399
    %v4452 = vpack.c.b16 %v4408, %v4404
    %v4453 = vpack.c.b16 %v4409, %v4405
    %v4454 = vpack.c.b16 %v4410, %v4406
    %v4455 = vpack.c.b16 %v4411, %v4407
    %v4456 = vpack.c.b16 %v4416, %v4412
    %v4457 = vpack.c.b16 %v4417, %v4413
    %v4458 = vpack.c.b16 %v4418, %v4414
    %v4459 = vpack.c.b16 %v4419, %v4415
    %v4460 = vpack.c.b16 %v4424, %v4420
    %v4461 = vpack.c.b16 %v4425, %v4421
    %v4462 = vpack.c.b16 %v4426, %v4422
    %v4463 = vpack.c.b16 %v4427, %v4423
    %v4464 = vpack.c.b16 %v4432, %v4428
    %v4465 = vpack.c.b16 %v4433, %v4429
    %v4466 = vpack.c.b16 %v4434, %v4430
    %v4467 = vpack.c.b16 %v4435, %v4431
    %4500 = vmatpush.bf16.msra.mxu0 %v368
    %4501 = vmatpush.bf16.msra.mxu0 %v367
    %4502 = vmatpush.bf16.msra.mxu0 %v366
    %4503 = vmatpush.bf16.msra.mxu0 %v365
    %4504 = vmatpush.bf16.msra.mxu0 %v364
    %4505 = vmatpush.bf16.msra.mxu0 %v363
    %4506 = vmatpush.bf16.msra.mxu0 %v362
    %4507 = vmatpush.bf16.msra.mxu0 %v361
    %4508 = vmatmul.bf16.gmra.mxu0 %v4436
    %v4509 = vpop.f32.mrf.mxu0
    %v4510 = vadd.f32 0.0, %v4509
    %v4511 = vpop.f32.mrf.mxu0
    %v4512 = vadd.f32 0.0, %v4511
    %4513 = vmatmul.bf16.gmra.mxu0 %v4440
    %v4514 = vpop.f32.mrf.mxu0
    %v4515 = vadd.f32 0.0, %v4514
    %v4516 = vpop.f32.mrf.mxu0
    %v4517 = vadd.f32 0.0, %v4516
    %4518 = vmatmul.bf16.gmra.mxu0 %v4444
    %v4519 = vpop.f32.mrf.mxu0
    %v4520 = vadd.f32 0.0, %v4519
    %v4521 = vpop.f32.mrf.mxu0
    %v4522 = vadd.f32 0.0, %v4521
    %4523 = vmatmul.bf16.gmra.mxu0 %v4448
    %v4524 = vpop.f32.mrf.mxu0
    %v4525 = vadd.f32 0.0, %v4524
    %v4526 = vpop.f32.mrf.mxu0
    %v4527 = vadd.f32 0.0, %v4526
    %4528 = vmatmul.bf16.gmra.mxu0 %v4452
    %v4529 = vpop.f32.mrf.mxu0
    %v4530 = vadd.f32 0.0, %v4529
    %v4531 = vpop.f32.mrf.mxu0
    %v4532 = vadd.f32 0.0, %v4531
    %4533 = vmatmul.bf16.gmra.mxu0 %v4456
    %v4534 = vpop.f32.mrf.mxu0
    %v4535 = vadd.f32 0.0, %v4534
    %v4536 = vpop.f32.mrf.mxu0
    %v4537 = vadd.f32 0.0, %v4536
    %4538 = vmatmul.bf16.gmra.mxu0 %v4460
    %v4539 = vpop.f32.mrf.mxu0
    %v4540 = vadd.f32 0.0, %v4539
    %v4541 = vpop.f32.mrf.mxu0
    %v4542 = vadd.f32 0.0, %v4541
    %4543 = vmatmul.bf16.gmra.mxu0 %v4464
    %v4544 = vpop.f32.mrf.mxu0
    %v4545 = vadd.f32 0.0, %v4544
    %v4546 = vpop.f32.mrf.mxu0
    %v4547 = vadd.f32 0.0, %v4546
    %4548 = vdwg.mxu0
    %4549 = vmatpush.bf16.msra.mxu0 %v376
    %4550 = vmatpush.bf16.msra.mxu0 %v375
    %4551 = vmatpush.bf16.msra.mxu0 %v374
    %4552 = vmatpush.bf16.msra.mxu0 %v373
    %4553 = vmatpush.bf16.msra.mxu0 %v372
    %4554 = vmatpush.bf16.msra.mxu0 %v371
    %4555 = vmatpush.bf16.msra.mxu0 %v370
    %4556 = vmatpush.bf16.msra.mxu0 %v369
    %4557 = vmatmul.bf16.gmra.mxu0 %v4437
    %v4558 = vpop.f32.mrf.mxu0
    %v4559 = vadd.f32 %v4510, %v4558
    %v4560 = vpop.f32.mrf.mxu0
    %v4561 = vadd.f32 %v4512, %v4560
    %4562 = vmatmul.bf16.gmra.mxu0 %v4441
    %v4563 = vpop.f32.mrf.mxu0
    %v4564 = vadd.f32 %v4515, %v4563
    %v4565 = vpop.f32.mrf.mxu0
    %v4566 = vadd.f32 %v4517, %v4565
    %4567 = vmatmul.bf16.gmra.mxu0 %v4445
    %v4568 = vpop.f32.mrf.mxu0
    %v4569 = vadd.f32 %v4520, %v4568
    %v4570 = vpop.f32.mrf.mxu0
    %v4571 = vadd.f32 %v4522, %v4570
    %4572 = vmatmul.bf16.gmra.mxu0 %v4449
    %v4573 = vpop.f32.mrf.mxu0
    %v4574 = vadd.f32 %v4525, %v4573
    %v4575 = vpop.f32.mrf.mxu0
    %v4576 = vadd.f32 %v4527, %v4575
    %4577 = vmatmul.bf16.gmra.mxu0 %v4453
    %v4578 = vpop.f32.mrf.mxu0
    %v4579 = vadd.f32 %v4530, %v4578
    %v4580 = vpop.f32.mrf.mxu0
    %v4581 = vadd.f32 %v4532, %v4580
    %4582 = vmatmul.bf16.gmra.mxu0 %v4457
    %v4583 = vpop.f32.mrf.mxu0
    %v4584 = vadd.f32 %v4535, %v4583
    %v4585 = vpop.f32.mrf.mxu0
    %v4586 = vadd.f32 %v4537, %v4585
    %4587 = vmatmul.bf16.gmra.mxu0 %v4461
    %v4588 = vpop.f32.mrf.mxu0
    %v4589 = vadd.f32 %v4540, %v4588
    %v4590 = vpop.f32.mrf.mxu0
    %v4591 = vadd.f32 %v4542, %v4590
    %4592 = vmatmul.bf16.gmra.mxu0 %v4465
    %v4593 = vpop.f32.mrf.mxu0
    %v4594 = vadd.f32 %v4545, %v4593
    %v4595 = vpop.f32.mrf.mxu0
    %v4596 = vadd.f32 %v4547, %v4595
    %4597 = vdwg.mxu0
    %4598 = vmatpush.bf16.msra.mxu0 %v384
    %4599 = vmatpush.bf16.msra.mxu0 %v383
    %4600 = vmatpush.bf16.msra.mxu0 %v382
    %4601 = vmatpush.bf16.msra.mxu0 %v381
    %4602 = vmatpush.bf16.msra.mxu0 %v380
    %4603 = vmatpush.bf16.msra.mxu0 %v379
    %4604 = vmatpush.bf16.msra.mxu0 %v378
    %4605 = vmatpush.bf16.msra.mxu0 %v377
    %4606 = vmatmul.bf16.gmra.mxu0 %v4438
    %v4607 = vpop.f32.mrf.mxu0
    %v4608 = vadd.f32 %v4559, %v4607
    %v4609 = vpop.f32.mrf.mxu0
    %v4610 = vadd.f32 %v4561, %v4609
    %4611 = vmatmul.bf16.gmra.mxu0 %v4442
    %v4612 = vpop.f32.mrf.mxu0
    %v4613 = vadd.f32 %v4564, %v4612
    %v4614 = vpop.f32.mrf.mxu0
    %v4615 = vadd.f32 %v4566, %v4614
    %4616 = vmatmul.bf16.gmra.mxu0 %v4446
    %v4617 = vpop.f32.mrf.mxu0
    %v4618 = vadd.f32 %v4569, %v4617
    %v4619 = vpop.f32.mrf.mxu0
    %v4620 = vadd.f32 %v4571, %v4619
    %4621 = vmatmul.bf16.gmra.mxu0 %v4450
    %v4622 = vpop.f32.mrf.mxu0
    %v4623 = vadd.f32 %v4574, %v4622
    %v4624 = vpop.f32.mrf.mxu0
    %v4625 = vadd.f32 %v4576, %v4624
    %4626 = vmatmul.bf16.gmra.mxu0 %v4454
    %v4627 = vpop.f32.mrf.mxu0
    %v4628 = vadd.f32 %v4579, %v4627
    %v4629 = vpop.f32.mrf.mxu0
    %v4630 = vadd.f32 %v4581, %v4629
    %4631 = vmatmul.bf16.gmra.mxu0 %v4458
    %v4632 = vpop.f32.mrf.mxu0
    %v4633 = vadd.f32 %v4584, %v4632
    %v4634 = vpop.f32.mrf.mxu0
    %v4635 = vadd.f32 %v4586, %v4634
    %4636 = vmatmul.bf16.gmra.mxu0 %v4462
    %v4637 = vpop.f32.mrf.mxu0
    %v4638 = vadd.f32 %v4589, %v4637
    %v4639 = vpop.f32.mrf.mxu0
    %v4640 = vadd.f32 %v4591, %v4639
    %4641 = vmatmul.bf16.gmra.mxu0 %v4466
    %v4642 = vpop.f32.mrf.mxu0
    %v4643 = vadd.f32 %v4594, %v4642
    %v4644 = vpop.f32.mrf.mxu0
    %v4645 = vadd.f32 %v4596, %v4644
    %4646 = vdwg.mxu0
    %4647 = vmatpush.bf16.msra.mxu0 %v392
    %4648 = vmatpush.bf16.msra.mxu0 %v391
    %4649 = vmatpush.bf16.msra.mxu0 %v390
    %4650 = vmatpush.bf16.msra.mxu0 %v389
    %4651 = vmatpush.bf16.msra.mxu0 %v388
    %4652 = vmatpush.bf16.msra.mxu0 %v387
    %4653 = vmatpush.bf16.msra.mxu0 %v386
    %4654 = vmatpush.bf16.msra.mxu0 %v385
    %4655 = vmatmul.bf16.gmra.mxu0 %v4439
    %v4656 = vpop.f32.mrf.mxu0
    %v4657 = vadd.f32 %v4608, %v4656
    %v4658 = vpop.f32.mrf.mxu0
    %v4659 = vadd.f32 %v4610, %v4658
    %4660 = vmatmul.bf16.gmra.mxu0 %v4443
    %v4661 = vpop.f32.mrf.mxu0
    %v4662 = vadd.f32 %v4613, %v4661
    %v4663 = vpop.f32.mrf.mxu0
    %v4664 = vadd.f32 %v4615, %v4663
    %4665 = vmatmul.bf16.gmra.mxu0 %v4447
    %v4666 = vpop.f32.mrf.mxu0
    %v4667 = vadd.f32 %v4618, %v4666
    %v4668 = vpop.f32.mrf.mxu0
    %v4669 = vadd.f32 %v4620, %v4668
    %4670 = vmatmul.bf16.gmra.mxu0 %v4451
    %v4671 = vpop.f32.mrf.mxu0
    %v4672 = vadd.f32 %v4623, %v4671
    %v4673 = vpop.f32.mrf.mxu0
    %v4674 = vadd.f32 %v4625, %v4673
    %4675 = vmatmul.bf16.gmra.mxu0 %v4455
    %v4676 = vpop.f32.mrf.mxu0
    %v4677 = vadd.f32 %v4628, %v4676
    %v4678 = vpop.f32.mrf.mxu0
    %v4679 = vadd.f32 %v4630, %v4678
    %4680 = vmatmul.bf16.gmra.mxu0 %v4459
    %v4681 = vpop.f32.mrf.mxu0
    %v4682 = vadd.f32 %v4633, %v4681
    %v4683 = vpop.f32.mrf.mxu0
    %v4684 = vadd.f32 %v4635, %v4683
    %4685 = vmatmul.bf16.gmra.mxu0 %v4463
    %v4686 = vpop.f32.mrf.mxu0
    %v4687 = vadd.f32 %v4638, %v4686
    %v4688 = vpop.f32.mrf.mxu0
    %v4689 = vadd.f32 %v4640, %v4688
    %4690 = vmatmul.bf16.gmra.mxu0 %v4467
    %v4691 = vpop.f32.mrf.mxu0
    %v4692 = vadd.f32 %v4643, %v4691
    %v4693 = vpop.f32.mrf.mxu0
    %v4694 = vadd.f32 %v4645, %v4693
    %4695 = vdwg.mxu0
    %s4696 = scalar_lea.vmem %s15, 256
    %v4697 = vld [vmem:[%s4696] sm:$0xff]
    %v4698 = vld [vmem:[%s4696 + $0x8] sm:$0xff]
    %v4699 = vld [vmem:[%s4696 + $0x10] sm:$0xff]
    %v4700 = vld [vmem:[%s4696 + $0x18] sm:$0xff]
    %v4701 = vpack.c.bf16 %v4659, %v4657
    %v4702 = vpack.c.bf16 %v4664, %v4662
    %v4703 = vpack.c.bf16 %v4669, %v4667
    %v4704 = vpack.c.bf16 %v4674, %v4672
    %v4705 = vpack.c.bf16 %v4679, %v4677
    %v4706 = vpack.c.bf16 %v4684, %v4682
    %v4707 = vpack.c.bf16 %v4689, %v4687
    %v4708 = vpack.c.bf16 %v4694, %v4692
    %v4709 = vpack.c.bf16 %v4698, %v4697
    %v4710 = vpack.c.bf16 %v4700, %v4699
    %v4712 = vsel %vm763, %v4701, 0
    %v4715 = vsel %vm763, %v4702, 0
    %v4718 = vsel %vm763, %v4703, 0
    %v4721 = vsel %vm763, %v4704, 0
    %v4724 = vsel %vm763, %v4705, 0
    %v4727 = vsel %vm763, %v4706, 0
    %v4730 = vsel %vm763, %v4707, 0
    %v4733 = vsel %vm763, %v4708, 0
    %4735 = vmatpush.bf16.msra.mxu0 0
    %4736 = vmatpush.bf16.msra.mxu0 0
    %4737 = vmatpush.bf16.msra.mxu0 0
    %4738 = vmatpush.bf16.msra.mxu0 0
    %4739 = vmatpush.bf16.msra.mxu0 0
    %4740 = vmatpush.bf16.msra.mxu0 0
    %4741 = vmatpush.bf16.msra.mxu0 %v4710
    %4742 = vmatpush.bf16.msra.mxu0 %v4709
    %4743 = vmatmul.bf16.gmra.mxu0 %v4712
    %v4744 = vpop.f32.mrf.mxu0
    %v4745 = vadd.f32 0.0, %v4744
    %v4746 = vpop.f32.mrf.mxu0
    %v4747 = vadd.f32 0.0, %v4746
    %4748 = vmatmul.bf16.gmra.mxu0 %v4715
    %v4749 = vpop.f32.mrf.mxu0
    %v4750 = vadd.f32 0.0, %v4749
    %v4751 = vpop.f32.mrf.mxu0
    %v4752 = vadd.f32 0.0, %v4751
    %4753 = vmatmul.bf16.gmra.mxu0 %v4718
    %v4754 = vpop.f32.mrf.mxu0
    %v4755 = vadd.f32 0.0, %v4754
    %v4756 = vpop.f32.mrf.mxu0
    %v4757 = vadd.f32 0.0, %v4756
    %4758 = vmatmul.bf16.gmra.mxu0 %v4721
    %v4759 = vpop.f32.mrf.mxu0
    %v4760 = vadd.f32 0.0, %v4759
    %v4761 = vpop.f32.mrf.mxu0
    %v4762 = vadd.f32 0.0, %v4761
    %4763 = vmatmul.bf16.gmra.mxu0 %v4724
    %v4764 = vpop.f32.mrf.mxu0
    %v4765 = vadd.f32 0.0, %v4764
    %v4766 = vpop.f32.mrf.mxu0
    %v4767 = vadd.f32 0.0, %v4766
    %4768 = vmatmul.bf16.gmra.mxu0 %v4727
    %v4769 = vpop.f32.mrf.mxu0
    %v4770 = vadd.f32 0.0, %v4769
    %v4771 = vpop.f32.mrf.mxu0
    %v4772 = vadd.f32 0.0, %v4771
    %4773 = vmatmul.bf16.gmra.mxu0 %v4730
    %v4774 = vpop.f32.mrf.mxu0
    %v4775 = vadd.f32 0.0, %v4774
    %v4776 = vpop.f32.mrf.mxu0
    %v4777 = vadd.f32 0.0, %v4776
    %4778 = vmatmul.bf16.gmra.mxu0 %v4733
    %v4779 = vpop.f32.mrf.mxu0
    %v4780 = vadd.f32 0.0, %v4779
    %v4781 = vpop.f32.mrf.mxu0
    %v4782 = vadd.f32 0.0, %v4781
    %4783 = vdwg.mxu0
    %v4784 = vadd.f32 %v4291, %v4745
    %v4785 = vadd.f32 %v4292, %v4747
    %v4786 = vadd.f32 %v4293, %v4750
    %v4787 = vadd.f32 %v4294, %v4752
    %v4788 = vadd.f32 %v4295, %v4755
    %v4789 = vadd.f32 %v4296, %v4757
    %v4790 = vadd.f32 %v4297, %v4760
    %v4791 = vadd.f32 %v4298, %v4762
    %v4792 = vadd.f32 %v4299, %v4765
    %v4793 = vadd.f32 %v4300, %v4767
    %v4794 = vadd.f32 %v4301, %v4770
    %v4795 = vadd.f32 %v4302, %v4772
    %v4796 = vadd.f32 %v4303, %v4775
    %v4797 = vadd.f32 %v4304, %v4777
    %v4798 = vadd.f32 %v4305, %v4780
    %v4799 = vadd.f32 %v4306, %v4782
    %v4800 = vld [vmem:[#allocation16] sm:$0x3]
    %v4801 = vld [vmem:[%s47] sm:$0xff]
    %v4802 = vld [vmem:[%s47 + $0x8] sm:$0xff]
    %v4803 = vld [vmem:[%s47 + $0x10] sm:$0xff]
    %v4804 = vld [vmem:[%s47 + $0x18] sm:$0xff]
    %v4805 = vld [vmem:[%s47 + $0x20] sm:$0xff]
    %v4806 = vld [vmem:[%s47 + $0x28] sm:$0xff]
    %v4807 = vld [vmem:[%s47 + $0x30] sm:$0xff]
    %v4808 = vld [vmem:[%s47 + $0x38] sm:$0xff]
    %v4809 = vld [vmem:[%s47 + $0x40] sm:$0xff]
    %v4810 = vld [vmem:[%s47 + $0x48] sm:$0xff]
    %v4811 = vld [vmem:[%s47 + $0x50] sm:$0xff]
    %v4812 = vld [vmem:[%s47 + $0x58] sm:$0xff]
    %v4813 = vld [vmem:[%s47 + $0x60] sm:$0xff]
    %v4814 = vld [vmem:[%s47 + $0x68] sm:$0xff]
    %v4815 = vld [vmem:[%s47 + $0x70] sm:$0xff]
    %v4816 = vld [vmem:[%s47 + $0x78] sm:$0xff]
    %v4817 = vld [vmem:[%s53] sm:$0xff]
    %v4818 = vld [vmem:[%s53 + $0x8] sm:$0xff]
    %v4819 = vld [vmem:[%s53 + $0x10] sm:$0xff]
    %v4820 = vld [vmem:[%s53 + $0x18] sm:$0xff]
    %v4821 = vld [vmem:[%s55] sm:$0xff]
    %v4822 = vld [vmem:[%s55 + $0x8] sm:$0xff]
    %4823 = vmatpush.msra.mxu0 %v4799
    %4824 = vmatpush.msra.mxu0 %v4798
    %4825 = vmatpush.msra.mxu0 %v4797
    %4826 = vmatpush.msra.mxu0 %v4796
    %4827 = vmatpush.msra.mxu0 %v4795
    %4828 = vmatpush.msra.mxu0 %v4794
    %4829 = vmatpush.msra.mxu0 %v4793
    %4830 = vmatpush.msra.mxu0 %v4792
    %4831 = vmatpush.msra.mxu0 %v4791
    %4832 = vmatpush.msra.mxu0 %v4790
    %4833 = vmatpush.msra.mxu0 %v4789
    %4834 = vmatpush.msra.mxu0 %v4788
    %4835 = vmatpush.msra.mxu0 %v4787
    %4836 = vmatpush.msra.mxu0 %v4786
    %4837 = vmatpush.msra.mxu0 %v4785
    %4838 = vmatpush.msra.mxu0 %v4784
    %4839 = vmatmul.f32.gmra.mxu0 %v4800
    %v4840 = vpop.f32.mrf.mxu0
    %v4841 = vadd.f32 0.0, %v4840
    %4842 = vdwg.mxu0
    %v4844 = vsel %vm763, %v4841, 0
    %4846 = vmatpush.msra.mxu0 0.0
    %4847 = vmatpush.msra.mxu0 0.0
    %4848 = vmatpush.msra.mxu0 0.0
    %4849 = vmatpush.msra.mxu0 0.0
    %4850 = vmatpush.msra.mxu0 0.0
    %4851 = vmatpush.msra.mxu0 0.0
    %4852 = vmatpush.msra.mxu0 0.0
    %4853 = vmatpush.msra.mxu0 0.0
    %4854 = vmatpush.msra.mxu0 0.0
    %4855 = vmatpush.msra.mxu0 0.0
    %4856 = vmatpush.msra.mxu0 0.0
    %4857 = vmatpush.msra.mxu0 0.0
    %4858 = vmatpush.msra.mxu0 %v4820
    %4859 = vmatpush.msra.mxu0 %v4819
    %4860 = vmatpush.msra.mxu0 %v4818
    %4861 = vmatpush.msra.mxu0 %v4817
    %4862 = vmatmul.f32.gmra.mxu0 %v4844
    %v4863 = vpop.f32.mrf.mxu0
    %v4864 = vadd.f32 0.0, %v4863
    %4865 = vdwg.mxu0
    %v4866 = vmul.f32 %v4864, 0.0078125
    %vm4867 = vcmask 130048
    %v4869 = vsel %vm4867, %v4866, 0
    %4871 = vmatpush.msra.mxu0 0.0
    %4872 = vmatpush.msra.mxu0 0.0
    %4873 = vmatpush.msra.mxu0 0.0
    %4874 = vmatpush.msra.mxu0 0.0
    %4875 = vmatpush.msra.mxu0 0.0
    %4876 = vmatpush.msra.mxu0 0.0
    %4877 = vmatpush.msra.mxu0 0.0
    %4878 = vmatpush.msra.mxu0 0.0
    %4879 = vmatpush.msra.mxu0 0.0
    %4880 = vmatpush.msra.mxu0 0.0
    %4881 = vmatpush.msra.mxu0 0.0
    %4882 = vmatpush.msra.mxu0 0.0
    %4883 = vmatpush.msra.mxu0 0.0
    %4884 = vmatpush.msra.mxu0 0.0
    %4885 = vmatpush.msra.mxu0 %v4822
    %4886 = vmatpush.msra.mxu0 %v4821
    %4887 = vmatmul.f32.gmra.mxu0 %v4869
    %v4888 = vpop.f32.mrf.mxu0
    %v4889 = vadd.f32 0.0, %v4888
    %4890 = vdwg.mxu0
    %vm4891 = vcmask 15360
    %v4893 = vsel %vm4891, %v4801, 0
    %v4896 = vsel %vm4891, %v4802, 0
    %v4899 = vsel %vm4891, %v4803, 0
    %v4902 = vsel %vm4891, %v4804, 0
    %v4905 = vsel %vm4891, %v4805, 0
    %v4908 = vsel %vm4891, %v4806, 0
    %v4911 = vsel %vm4891, %v4807, 0
    %v4914 = vsel %vm4891, %v4808, 0
    %v4917 = vsel %vm4891, %v4809, 0
    %v4920 = vsel %vm4891, %v4810, 0
    %v4923 = vsel %vm4891, %v4811, 0
    %v4926 = vsel %vm4891, %v4812, 0
    %v4929 = vsel %vm4891, %v4813, 0
    %v4932 = vsel %vm4891, %v4814, 0
    %v4935 = vsel %vm4891, %v4815, 0
    %v4938 = vsel %vm4891, %v4816, 0
    %vm4940 = vcmask 1041408
    %v4942 = vsel %vm4940, %v4889, 0
    %4944 = vmatpush.msra.mxu0 0.0
    %4945 = vmatpush.msra.mxu0 0.0
    %4946 = vmatpush.msra.mxu0 0.0
    %4947 = vmatpush.msra.mxu0 0.0
    %4948 = vmatpush.msra.mxu0 0.0
    %4949 = vmatpush.msra.mxu0 0.0
    %4950 = vmatpush.msra.mxu0 0.0
    %4951 = vmatpush.msra.mxu0 0.0
    %4952 = vmatpush.msra.mxu0 0.0
    %4953 = vmatpush.msra.mxu0 0.0
    %4954 = vmatpush.msra.mxu0 0.0
    %4955 = vmatpush.msra.mxu0 0.0
    %4956 = vmatpush.msra.mxu0 0.0
    %4957 = vmatpush.msra.mxu0 0.0
    %4958 = vmatpush.msra.mxu0 0.0
    %4959 = vmatpush.msra.mxu0 %v4942
    %4960 = vmatmul.f32.gmra.mxu0 %v4893
    %v4961 = vpop.f32.mrf.mxu0
    %v4962 = vadd.f32 0.0, %v4961
    %4963 = vmatmul.f32.gmra.mxu0 %v4896
    %v4964 = vpop.f32.mrf.mxu0
    %v4965 = vadd.f32 0.0, %v4964
    %4966 = vmatmul.f32.gmra.mxu0 %v4899
    %v4967 = vpop.f32.mrf.mxu0
    %v4968 = vadd.f32 0.0, %v4967
    %4969 = vmatmul.f32.gmra.mxu0 %v4902
    %v4970 = vpop.f32.mrf.mxu0
    %v4971 = vadd.f32 0.0, %v4970
    %4972 = vmatmul.f32.gmra.mxu0 %v4905
    %v4973 = vpop.f32.mrf.mxu0
    %v4974 = vadd.f32 0.0, %v4973
    %4975 = vmatmul.f32.gmra.mxu0 %v4908
    %v4976 = vpop.f32.mrf.mxu0
    %v4977 = vadd.f32 0.0, %v4976
    %4978 = vmatmul.f32.gmra.mxu0 %v4911
    %v4979 = vpop.f32.mrf.mxu0
    %v4980 = vadd.f32 0.0, %v4979
    %4981 = vmatmul.f32.gmra.mxu0 %v4914
    %v4982 = vpop.f32.mrf.mxu0
    %v4983 = vadd.f32 0.0, %v4982
    %4984 = vmatmul.f32.gmra.mxu0 %v4917
    %v4985 = vpop.f32.mrf.mxu0
    %v4986 = vadd.f32 0.0, %v4985
    %4987 = vmatmul.f32.gmra.mxu0 %v4920
    %v4988 = vpop.f32.mrf.mxu0
    %v4989 = vadd.f32 0.0, %v4988
    %4990 = vmatmul.f32.gmra.mxu0 %v4923
    %v4991 = vpop.f32.mrf.mxu0
    %v4992 = vadd.f32 0.0, %v4991
    %4993 = vmatmul.f32.gmra.mxu0 %v4926
    %v4994 = vpop.f32.mrf.mxu0
    %v4995 = vadd.f32 0.0, %v4994
    %4996 = vmatmul.f32.gmra.mxu0 %v4929
    %v4997 = vpop.f32.mrf.mxu0
    %v4998 = vadd.f32 0.0, %v4997
    %4999 = vmatmul.f32.gmra.mxu0 %v4932
    %v5000 = vpop.f32.mrf.mxu0
    %v5001 = vadd.f32 0.0, %v5000
    %5002 = vmatmul.f32.gmra.mxu0 %v4935
    %v5003 = vpop.f32.mrf.mxu0
    %v5004 = vadd.f32 0.0, %v5003
    %5005 = vmatmul.f32.gmra.mxu0 %v4938
    %v5006 = vpop.f32.mrf.mxu0
    %v5007 = vadd.f32 0.0, %v5006
    %5008 = vdwg.mxu0
    %v5009 = vsub.f32 %v4784, %v4962
    %v5010 = vsub.f32 %v4785, %v4965
    %v5011 = vsub.f32 %v4786, %v4968
    %v5012 = vsub.f32 %v4787, %v4971
    %v5013 = vsub.f32 %v4788, %v4974
    %v5014 = vsub.f32 %v4789, %v4977
    %v5015 = vsub.f32 %v4790, %v4980
    %v5016 = vsub.f32 %v4791, %v4983
    %v5017 = vsub.f32 %v4792, %v4986
    %v5018 = vsub.f32 %v4793, %v4989
    %v5019 = vsub.f32 %v4794, %v4992
    %v5020 = vsub.f32 %v4795, %v4995
    %v5021 = vsub.f32 %v4796, %v4998
    %v5022 = vsub.f32 %v4797, %v5001
    %v5023 = vsub.f32 %v4798, %v5004
    %v5024 = vsub.f32 %v4799, %v5007
    %v5025 = vmul.f32 %v5009, %v5009
    %v5026 = vmul.f32 %v5010, %v5010
    %v5027 = vmul.f32 %v5011, %v5011
    %v5028 = vmul.f32 %v5012, %v5012
    %v5029 = vmul.f32 %v5013, %v5013
    %v5030 = vmul.f32 %v5014, %v5014
    %v5031 = vmul.f32 %v5015, %v5015
    %v5032 = vmul.f32 %v5016, %v5016
    %v5033 = vmul.f32 %v5017, %v5017
    %v5034 = vmul.f32 %v5018, %v5018
    %v5035 = vmul.f32 %v5019, %v5019
    %v5036 = vmul.f32 %v5020, %v5020
    %v5037 = vmul.f32 %v5021, %v5021
    %v5038 = vmul.f32 %v5022, %v5022
    %v5039 = vmul.f32 %v5023, %v5023
    %v5040 = vmul.f32 %v5024, %v5024
    %5041 = vmatpush.msra.mxu0 %v5040
    %5042 = vmatpush.msra.mxu0 %v5039
    %5043 = vmatpush.msra.mxu0 %v5038
    %5044 = vmatpush.msra.mxu0 %v5037
    %5045 = vmatpush.msra.mxu0 %v5036
    %5046 = vmatpush.msra.mxu0 %v5035
    %5047 = vmatpush.msra.mxu0 %v5034
    %5048 = vmatpush.msra.mxu0 %v5033
    %5049 = vmatpush.msra.mxu0 %v5032
    %5050 = vmatpush.msra.mxu0 %v5031
    %5051 = vmatpush.msra.mxu0 %v5030
    %5052 = vmatpush.msra.mxu0 %v5029
    %5053 = vmatpush.msra.mxu0 %v5028
    %5054 = vmatpush.msra.mxu0 %v5027
    %5055 = vmatpush.msra.mxu0 %v5026
    %5056 = vmatpush.msra.mxu0 %v5025
    %5057 = vmatmul.f32.gmra.mxu0 %v4800
    %v5058 = vpop.f32.mrf.mxu0
    %v5059 = vadd.f32 0.0, %v5058
    %5060 = vdwg.mxu0
    %v5062 = vsel %vm763, %v5059, 0
    %5064 = vmatpush.msra.mxu0 0.0
    %5065 = vmatpush.msra.mxu0 0.0
    %5066 = vmatpush.msra.mxu0 0.0
    %5067 = vmatpush.msra.mxu0 0.0
    %5068 = vmatpush.msra.mxu0 0.0
    %5069 = vmatpush.msra.mxu0 0.0
    %5070 = vmatpush.msra.mxu0 0.0
    %5071 = vmatpush.msra.mxu0 0.0
    %5072 = vmatpush.msra.mxu0 0.0
    %5073 = vmatpush.msra.mxu0 0.0
    %5074 = vmatpush.msra.mxu0 0.0
    %5075 = vmatpush.msra.mxu0 0.0
    %5076 = vmatpush.msra.mxu0 %v4820
    %5077 = vmatpush.msra.mxu0 %v4819
    %5078 = vmatpush.msra.mxu0 %v4818
    %5079 = vmatpush.msra.mxu0 %v4817
    %5080 = vmatmul.f32.gmra.mxu0 %v5062
    %v5081 = vpop.f32.mrf.mxu0
    %v5082 = vadd.f32 0.0, %v5081
    %5083 = vdwg.mxu0
    %v5084 = vmul.f32 %v5082, 0.0078125
    %v5086 = vsel %vm4867, %v5084, 0
    %5088 = vmatpush.msra.mxu0 0.0
    %5089 = vmatpush.msra.mxu0 0.0
    %5090 = vmatpush.msra.mxu0 0.0
    %5091 = vmatpush.msra.mxu0 0.0
    %5092 = vmatpush.msra.mxu0 0.0
    %5093 = vmatpush.msra.mxu0 0.0
    %5094 = vmatpush.msra.mxu0 0.0
    %5095 = vmatpush.msra.mxu0 0.0
    %5096 = vmatpush.msra.mxu0 0.0
    %5097 = vmatpush.msra.mxu0 0.0
    %5098 = vmatpush.msra.mxu0 0.0
    %5099 = vmatpush.msra.mxu0 0.0
    %5100 = vmatpush.msra.mxu0 0.0
    %5101 = vmatpush.msra.mxu0 0.0
    %5102 = vmatpush.msra.mxu0 %v4822
    %5103 = vmatpush.msra.mxu0 %v4821
    %5104 = vmatmul.f32.gmra.mxu0 %v5086
    %v5105 = vpop.f32.mrf.mxu0
    %v5106 = vadd.f32 0.0, %v5105
    %5107 = vdwg.mxu0
    %v5109 = vsel %vm4940, %v5106, 0
    %5111 = vmatpush.msra.mxu0 0.0
    %5112 = vmatpush.msra.mxu0 0.0
    %5113 = vmatpush.msra.mxu0 0.0
    %5114 = vmatpush.msra.mxu0 0.0
    %5115 = vmatpush.msra.mxu0 0.0
    %5116 = vmatpush.msra.mxu0 0.0
    %5117 = vmatpush.msra.mxu0 0.0
    %5118 = vmatpush.msra.mxu0 0.0
    %5119 = vmatpush.msra.mxu0 0.0
    %5120 = vmatpush.msra.mxu0 0.0
    %5121 = vmatpush.msra.mxu0 0.0
    %5122 = vmatpush.msra.mxu0 0.0
    %5123 = vmatpush.msra.mxu0 0.0
    %5124 = vmatpush.msra.mxu0 0.0
    %5125 = vmatpush.msra.mxu0 0.0
    %5126 = vmatpush.msra.mxu0 %v5109
    %5127 = vmatmul.f32.gmra.mxu0 %v4893
    %v5128 = vpop.f32.mrf.mxu0
    %v5129 = vadd.f32 1e-05, %v5128
    %5130 = vmatmul.f32.gmra.mxu0 %v4896
    %v5131 = vpop.f32.mrf.mxu0
    %v5132 = vadd.f32 1e-05, %v5131
    %5133 = vmatmul.f32.gmra.mxu0 %v4899
    %v5134 = vpop.f32.mrf.mxu0
    %v5135 = vadd.f32 1e-05, %v5134
    %5136 = vmatmul.f32.gmra.mxu0 %v4902
    %v5137 = vpop.f32.mrf.mxu0
    %v5138 = vadd.f32 1e-05, %v5137
    %5139 = vmatmul.f32.gmra.mxu0 %v4905
    %v5140 = vpop.f32.mrf.mxu0
    %v5141 = vadd.f32 1e-05, %v5140
    %5142 = vmatmul.f32.gmra.mxu0 %v4908
    %v5143 = vpop.f32.mrf.mxu0
    %v5144 = vadd.f32 1e-05, %v5143
    %5145 = vmatmul.f32.gmra.mxu0 %v4911
    %v5146 = vpop.f32.mrf.mxu0
    %v5147 = vadd.f32 1e-05, %v5146
    %5148 = vmatmul.f32.gmra.mxu0 %v4914
    %v5149 = vpop.f32.mrf.mxu0
    %v5150 = vadd.f32 1e-05, %v5149
    %5151 = vmatmul.f32.gmra.mxu0 %v4917
    %v5152 = vpop.f32.mrf.mxu0
    %v5153 = vadd.f32 1e-05, %v5152
    %5154 = vmatmul.f32.gmra.mxu0 %v4920
    %v5155 = vpop.f32.mrf.mxu0
    %v5156 = vadd.f32 1e-05, %v5155
    %5157 = vmatmul.f32.gmra.mxu0 %v4923
    %v5158 = vpop.f32.mrf.mxu0
    %v5159 = vadd.f32 1e-05, %v5158
    %5160 = vmatmul.f32.gmra.mxu0 %v4926
    %v5161 = vpop.f32.mrf.mxu0
    %v5162 = vadd.f32 1e-05, %v5161
    %5163 = vmatmul.f32.gmra.mxu0 %v4929
    %v5164 = vpop.f32.mrf.mxu0
    %v5165 = vadd.f32 1e-05, %v5164
    %5166 = vmatmul.f32.gmra.mxu0 %v4932
    %v5167 = vpop.f32.mrf.mxu0
    %v5168 = vadd.f32 1e-05, %v5167
    %5169 = vmatmul.f32.gmra.mxu0 %v4935
    %v5170 = vpop.f32.mrf.mxu0
    %v5171 = vadd.f32 1e-05, %v5170
    %5172 = vmatmul.f32.gmra.mxu0 %v4938
    %v5173 = vpop.f32.mrf.mxu0
    %v5174 = vadd.f32 1e-05, %v5173
    %5175 = vdwg.mxu0
    %v5176 = vrsqrt.pop %v5129
    %v5177 = vmul.f32 %v5176, %v5129
    %v5178 = vmul.f32 %v5177, %v5176
    %v5179 = vmul.f32 0.5, %v5178
    %v5180 = vsub.f32 1.5, %v5179
    %v5181 = vmul.f32 %v5176, %v5180
    %vm5182 = vweird.f32 %v5129
    %vm5183 = vweird.f32 %v5176
    %vm5184 = vmor %vm5182, %vm5183
    %v5185 = vsel %vm5184, %v5176, %v5181
    %v5186 = vrsqrt.pop %v5132
    %v5187 = vmul.f32 %v5186, %v5132
    %v5188 = vmul.f32 %v5187, %v5186
    %v5189 = vmul.f32 0.5, %v5188
    %v5190 = vsub.f32 1.5, %v5189
    %v5191 = vmul.f32 %v5186, %v5190
    %vm5192 = vweird.f32 %v5132
    %vm5193 = vweird.f32 %v5186
    %vm5194 = vmor %vm5192, %vm5193
    %v5195 = vsel %vm5194, %v5186, %v5191
    %v5196 = vrsqrt.pop %v5135
    %v5197 = vmul.f32 %v5196, %v5135
    %v5198 = vmul.f32 %v5197, %v5196
    %v5199 = vmul.f32 0.5, %v5198
    %v5200 = vsub.f32 1.5, %v5199
    %v5201 = vmul.f32 %v5196, %v5200
    %vm5202 = vweird.f32 %v5135
    %vm5203 = vweird.f32 %v5196
    %vm5204 = vmor %vm5202, %vm5203
    %v5205 = vsel %vm5204, %v5196, %v5201
    %v5206 = vrsqrt.pop %v5138
    %v5207 = vmul.f32 %v5206, %v5138
    %v5208 = vmul.f32 %v5207, %v5206
    %v5209 = vmul.f32 0.5, %v5208
    %v5210 = vsub.f32 1.5, %v5209
    %v5211 = vmul.f32 %v5206, %v5210
    %vm5212 = vweird.f32 %v5138
    %vm5213 = vweird.f32 %v5206
    %vm5214 = vmor %vm5212, %vm5213
    %v5215 = vsel %vm5214, %v5206, %v5211
    %v5216 = vrsqrt.pop %v5141
    %v5217 = vmul.f32 %v5216, %v5141
    %v5218 = vmul.f32 %v5217, %v5216
    %v5219 = vmul.f32 0.5, %v5218
    %v5220 = vsub.f32 1.5, %v5219
    %v5221 = vmul.f32 %v5216, %v5220
    %vm5222 = vweird.f32 %v5141
    %vm5223 = vweird.f32 %v5216
    %vm5224 = vmor %vm5222, %vm5223
    %v5225 = vsel %vm5224, %v5216, %v5221
    %v5226 = vrsqrt.pop %v5144
    %v5227 = vmul.f32 %v5226, %v5144
    %v5228 = vmul.f32 %v5227, %v5226
    %v5229 = vmul.f32 0.5, %v5228
    %v5230 = vsub.f32 1.5, %v5229
    %v5231 = vmul.f32 %v5226, %v5230
    %vm5232 = vweird.f32 %v5144
    %vm5233 = vweird.f32 %v5226
    %vm5234 = vmor %vm5232, %vm5233
    %v5235 = vsel %vm5234, %v5226, %v5231
    %v5236 = vrsqrt.pop %v5147
    %v5237 = vmul.f32 %v5236, %v5147
    %v5238 = vmul.f32 %v5237, %v5236
    %v5239 = vmul.f32 0.5, %v5238
    %v5240 = vsub.f32 1.5, %v5239
    %v5241 = vmul.f32 %v5236, %v5240
    %vm5242 = vweird.f32 %v5147
    %vm5243 = vweird.f32 %v5236
    %vm5244 = vmor %vm5242, %vm5243
    %v5245 = vsel %vm5244, %v5236, %v5241
    %v5246 = vrsqrt.pop %v5150
    %v5247 = vmul.f32 %v5246, %v5150
    %v5248 = vmul.f32 %v5247, %v5246
    %v5249 = vmul.f32 0.5, %v5248
    %v5250 = vsub.f32 1.5, %v5249
    %v5251 = vmul.f32 %v5246, %v5250
    %vm5252 = vweird.f32 %v5150
    %vm5253 = vweird.f32 %v5246
    %vm5254 = vmor %vm5252, %vm5253
    %v5255 = vsel %vm5254, %v5246, %v5251
    %v5256 = vrsqrt.pop %v5153
    %v5257 = vmul.f32 %v5256, %v5153
    %v5258 = vmul.f32 %v5257, %v5256
    %v5259 = vmul.f32 0.5, %v5258
    %v5260 = vsub.f32 1.5, %v5259
    %v5261 = vmul.f32 %v5256, %v5260
    %vm5262 = vweird.f32 %v5153
    %vm5263 = vweird.f32 %v5256
    %vm5264 = vmor %vm5262, %vm5263
    %v5265 = vsel %vm5264, %v5256, %v5261
    %v5266 = vrsqrt.pop %v5156
    %v5267 = vmul.f32 %v5266, %v5156
    %v5268 = vmul.f32 %v5267, %v5266
    %v5269 = vmul.f32 0.5, %v5268
    %v5270 = vsub.f32 1.5, %v5269
    %v5271 = vmul.f32 %v5266, %v5270
    %vm5272 = vweird.f32 %v5156
    %vm5273 = vweird.f32 %v5266
    %vm5274 = vmor %vm5272, %vm5273
    %v5275 = vsel %vm5274, %v5266, %v5271
    %v5276 = vrsqrt.pop %v5159
    %v5277 = vmul.f32 %v5276, %v5159
    %v5278 = vmul.f32 %v5277, %v5276
    %v5279 = vmul.f32 0.5, %v5278
    %v5280 = vsub.f32 1.5, %v5279
    %v5281 = vmul.f32 %v5276, %v5280
    %vm5282 = vweird.f32 %v5159
    %vm5283 = vweird.f32 %v5276
    %vm5284 = vmor %vm5282, %vm5283
    %v5285 = vsel %vm5284, %v5276, %v5281
    %v5286 = vrsqrt.pop %v5162
    %v5287 = vmul.f32 %v5286, %v5162
    %v5288 = vmul.f32 %v5287, %v5286
    %v5289 = vmul.f32 0.5, %v5288
    %v5290 = vsub.f32 1.5, %v5289
    %v5291 = vmul.f32 %v5286, %v5290
    %vm5292 = vweird.f32 %v5162
    %vm5293 = vweird.f32 %v5286
    %vm5294 = vmor %vm5292, %vm5293
    %v5295 = vsel %vm5294, %v5286, %v5291
    %v5296 = vrsqrt.pop %v5165
    %v5297 = vmul.f32 %v5296, %v5165
    %v5298 = vmul.f32 %v5297, %v5296
    %v5299 = vmul.f32 0.5, %v5298
    %v5300 = vsub.f32 1.5, %v5299
    %v5301 = vmul.f32 %v5296, %v5300
    %vm5302 = vweird.f32 %v5165
    %vm5303 = vweird.f32 %v5296
    %vm5304 = vmor %vm5302, %vm5303
    %v5305 = vsel %vm5304, %v5296, %v5301
    %v5306 = vrsqrt.pop %v5168
    %v5307 = vmul.f32 %v5306, %v5168
    %v5308 = vmul.f32 %v5307, %v5306
    %v5309 = vmul.f32 0.5, %v5308
    %v5310 = vsub.f32 1.5, %v5309
    %v5311 = vmul.f32 %v5306, %v5310
    %vm5312 = vweird.f32 %v5168
    %vm5313 = vweird.f32 %v5306
    %vm5314 = vmor %vm5312, %vm5313
    %v5315 = vsel %vm5314, %v5306, %v5311
    %v5316 = vrsqrt.pop %v5171
    %v5317 = vmul.f32 %v5316, %v5171
    %v5318 = vmul.f32 %v5317, %v5316
    %v5319 = vmul.f32 0.5, %v5318
    %v5320 = vsub.f32 1.5, %v5319
    %v5321 = vmul.f32 %v5316, %v5320
    %vm5322 = vweird.f32 %v5171
    %vm5323 = vweird.f32 %v5316
    %vm5324 = vmor %vm5322, %vm5323
    %v5325 = vsel %vm5324, %v5316, %v5321
    %v5326 = vrsqrt.pop %v5174
    %v5327 = vmul.f32 %v5326, %v5174
    %v5328 = vmul.f32 %v5327, %v5326
    %v5329 = vmul.f32 0.5, %v5328
    %v5330 = vsub.f32 1.5, %v5329
    %v5331 = vmul.f32 %v5326, %v5330
    %vm5332 = vweird.f32 %v5174
    %vm5333 = vweird.f32 %v5326
    %vm5334 = vmor %vm5332, %vm5333
    %v5335 = vsel %vm5334, %v5326, %v5331
    %v5336 = vmul.f32 %v5009, %v5185
    %v5337 = vmul.f32 %v5010, %v5195
    %v5338 = vmul.f32 %v5011, %v5205
    %v5339 = vmul.f32 %v5012, %v5215
    %v5340 = vmul.f32 %v5013, %v5225
    %v5341 = vmul.f32 %v5014, %v5235
    %v5342 = vmul.f32 %v5015, %v5245
    %v5343 = vmul.f32 %v5016, %v5255
    %v5344 = vmul.f32 %v5017, %v5265
    %v5345 = vmul.f32 %v5018, %v5275
    %v5346 = vmul.f32 %v5019, %v5285
    %v5347 = vmul.f32 %v5020, %v5295
    %v5348 = vmul.f32 %v5021, %v5305
    %v5349 = vmul.f32 %v5022, %v5315
    %v5350 = vmul.f32 %v5023, %v5325
    %v5351 = vmul.f32 %v5024, %v5335
    %v5352 = vld [vmem:[#allocation5] sm:$0x1]
    %v5354 = vperm.slane %v5352, 0
    %v5356 = vmul.f32 %v5336, %v5354
    %v5357 = vmul.f32 %v5337, %v5354
    %v5358 = vmul.f32 %v5338, %v5354
    %v5359 = vmul.f32 %v5339, %v5354
    %v5360 = vmul.f32 %v5340, %v5354
    %v5361 = vmul.f32 %v5341, %v5354
    %v5362 = vmul.f32 %v5342, %v5354
    %v5363 = vmul.f32 %v5343, %v5354
    %v5364 = vmul.f32 %v5344, %v5354
    %v5365 = vmul.f32 %v5345, %v5354
    %v5366 = vmul.f32 %v5346, %v5354
    %v5367 = vmul.f32 %v5347, %v5354
    %v5368 = vmul.f32 %v5348, %v5354
    %v5369 = vmul.f32 %v5349, %v5354
    %v5370 = vmul.f32 %v5350, %v5354
    %v5371 = vmul.f32 %v5351, %v5354
    %v5372 = vld [vmem:[#allocation7] sm:$0x1]
    %v5374 = vperm.slane %v5372, 0
    %v5376 = vadd.f32 %v5356, %v5374
    %v5377 = vadd.f32 %v5357, %v5374
    %v5378 = vadd.f32 %v5358, %v5374
    %v5379 = vadd.f32 %v5359, %v5374
    %v5380 = vadd.f32 %v5360, %v5374
    %v5381 = vadd.f32 %v5361, %v5374
    %v5382 = vadd.f32 %v5362, %v5374
    %v5383 = vadd.f32 %v5363, %v5374
    %v5384 = vadd.f32 %v5364, %v5374
    %v5385 = vadd.f32 %v5365, %v5374
    %v5386 = vadd.f32 %v5366, %v5374
    %v5387 = vadd.f32 %v5367, %v5374
    %v5388 = vadd.f32 %v5368, %v5374
    %v5389 = vadd.f32 %v5369, %v5374
    %v5390 = vadd.f32 %v5370, %v5374
    %v5391 = vadd.f32 %v5371, %v5374
    %v5392 = vmax.f32 %v5376, 0.0
    %v5393 = vmax.f32 %v5377, 0.0
    %v5394 = vmax.f32 %v5378, 0.0
    %v5395 = vmax.f32 %v5379, 0.0
    %v5396 = vmax.f32 %v5380, 0.0
    %v5397 = vmax.f32 %v5381, 0.0
    %v5398 = vmax.f32 %v5382, 0.0
    %v5399 = vmax.f32 %v5383, 0.0
    %v5400 = vmax.f32 %v5384, 0.0
    %v5401 = vmax.f32 %v5385, 0.0
    %v5402 = vmax.f32 %v5386, 0.0
    %v5403 = vmax.f32 %v5387, 0.0
    %v5404 = vmax.f32 %v5388, 0.0
    %v5405 = vmax.f32 %v5389, 0.0
    %v5406 = vmax.f32 %v5390, 0.0
    %v5407 = vmax.f32 %v5391, 0.0
    %v5408 = vld [vmem:[#allocation8] sm:$0x1]
    %v5409 = vld [vmem:[%s11] sm:$0xf]
    %v5410 = vld [vmem:[%s11 + $0x4] sm:$0xf]
    %v5411 = vld [vmem:[%s11 + $0x8] sm:$0xf]
    %v5412 = vld [vmem:[%s11 + $0xc] sm:$0xf]
    %v5413 = vpack.c.bf16 %v5393, %v5392
    %v5414 = vpack.c.bf16 %v5395, %v5394
    %v5415 = vpack.c.bf16 %v5397, %v5396
    %v5416 = vpack.c.bf16 %v5399, %v5398
    %v5417 = vpack.c.bf16 %v5401, %v5400
    %v5418 = vpack.c.bf16 %v5403, %v5402
    %v5419 = vpack.c.bf16 %v5405, %v5404
    %v5420 = vpack.c.bf16 %v5407, %v5406
    %v5425 = vunpack.c.l.b16 %v5409
    %v5426 = vunpack.c.l.b16 %v5410
    %v5427 = vunpack.c.l.b16 %v5411
    %v5428 = vunpack.c.l.b16 %v5412
    %v5429 = vpack.c.b16 %v5426, %v5425
    %v5430 = vpack.c.b16 %v5428, %v5427
    %5433 = vmatpush.bf16.msra.mxu0 %v5420
    %5434 = vmatpush.bf16.msra.mxu0 %v5419
    %5435 = vmatpush.bf16.msra.mxu0 %v5418
    %5436 = vmatpush.bf16.msra.mxu0 %v5417
    %5437 = vmatpush.bf16.msra.mxu0 %v5416
    %5438 = vmatpush.bf16.msra.mxu0 %v5415
    %5439 = vmatpush.bf16.msra.mxu0 %v5414
    %5440 = vmatpush.bf16.msra.mxu0 %v5413
    %5441 = vmatmul.bf16.gmra.mxu0 %v5429
    %v5442 = vpop.f32.mrf.mxu0
    %v5443 = vadd.f32 0.0, %v5442
    %v5444 = vpop.f32.mrf.mxu0
    %v5445 = vadd.f32 0.0, %v5444
    %5446 = vmatmul.bf16.gmra.mxu0 %v5430
    %v5447 = vpop.f32.mrf.mxu0
    %v5448 = vadd.f32 0.0, %v5447
    %v5449 = vpop.f32.mrf.mxu0
    %v5450 = vadd.f32 0.0, %v5449
    %5451 = vdwg.mxu0
    %v5452 = vld [vmem:[%s23] sm:$0xff]
    %v5453 = vld [vmem:[%s23 + $0x8] sm:$0xff]
    %v5454 = vld [vmem:[%s23 + $0x10] sm:$0xff]
    %v5455 = vld [vmem:[%s23 + $0x18] sm:$0xff]
    %v5456 = vpack.c.bf16 %v5445, %v5443
    %v5457 = vpack.c.bf16 %v5450, %v5448
    %v5458 = vpack.c.bf16 %v5453, %v5452
    %v5459 = vpack.c.bf16 %v5455, %v5454
    %v5461 = vsel %vm763, %v5456, 0
    %v5464 = vsel %vm763, %v5457, 0
    %5466 = vmatpush.bf16.msra.mxu0 0
    %5467 = vmatpush.bf16.msra.mxu0 0
    %5468 = vmatpush.bf16.msra.mxu0 0
    %5469 = vmatpush.bf16.msra.mxu0 0
    %5470 = vmatpush.bf16.msra.mxu0 0
    %5471 = vmatpush.bf16.msra.mxu0 0
    %5472 = vmatpush.bf16.msra.mxu0 %v5459
    %5473 = vmatpush.bf16.msra.mxu0 %v5458
    %5474 = vmatmul.bf16.gmra.mxu0 %v5461
    %v5475 = vpop.f32.mrf.mxu0
    %v5476 = vadd.f32 0.0, %v5475
    %v5477 = vpop.f32.mrf.mxu0
    %v5478 = vadd.f32 0.0, %v5477
    %5479 = vmatmul.bf16.gmra.mxu0 %v5464
    %v5480 = vpop.f32.mrf.mxu0
    %v5481 = vadd.f32 0.0, %v5480
    %v5482 = vpop.f32.mrf.mxu0
    %v5483 = vadd.f32 0.0, %v5482
    %5484 = vdwg.mxu0
    %v5486 = vperm.slane %v5408, 0
    %v5488 = vadd.f32 %v5486, %v5476
    %v5489 = vadd.f32 %v5486, %v5478
    %v5490 = vadd.f32 %v5486, %v5481
    %v5491 = vadd.f32 %v5486, %v5483
    %s5492 = scalar_lea.vmem %s11, 16
    %v5493 = vld [vmem:[%s5492] sm:$0xf]
    %v5494 = vld [vmem:[%s5492 + $0x4] sm:$0xf]
    %v5495 = vld [vmem:[%s5492 + $0x8] sm:$0xf]
    %v5496 = vld [vmem:[%s5492 + $0xc] sm:$0xf]
    %v5501 = vunpack.c.l.b16 %v5493
    %v5502 = vunpack.c.l.b16 %v5494
    %v5503 = vunpack.c.l.b16 %v5495
    %v5504 = vunpack.c.l.b16 %v5496
    %v5505 = vpack.c.b16 %v5502, %v5501
    %v5506 = vpack.c.b16 %v5504, %v5503
    %5509 = vmatpush.bf16.msra.mxu0 %v5420
    %5510 = vmatpush.bf16.msra.mxu0 %v5419
    %5511 = vmatpush.bf16.msra.mxu0 %v5418
    %5512 = vmatpush.bf16.msra.mxu0 %v5417
    %5513 = vmatpush.bf16.msra.mxu0 %v5416
    %5514 = vmatpush.bf16.msra.mxu0 %v5415
    %5515 = vmatpush.bf16.msra.mxu0 %v5414
    %5516 = vmatpush.bf16.msra.mxu0 %v5413
    %5517 = vmatmul.bf16.gmra.mxu0 %v5505
    %v5518 = vpop.f32.mrf.mxu0
    %v5519 = vadd.f32 0.0, %v5518
    %v5520 = vpop.f32.mrf.mxu0
    %v5521 = vadd.f32 0.0, %v5520
    %5522 = vmatmul.bf16.gmra.mxu0 %v5506
    %v5523 = vpop.f32.mrf.mxu0
    %v5524 = vadd.f32 0.0, %v5523
    %v5525 = vpop.f32.mrf.mxu0
    %v5526 = vadd.f32 0.0, %v5525
    %5527 = vdwg.mxu0
    %s5528 = scalar_lea.vmem %s23, 32
    %v5529 = vld [vmem:[%s5528] sm:$0xff]
    %v5530 = vld [vmem:[%s5528 + $0x8] sm:$0xff]
    %v5531 = vld [vmem:[%s5528 + $0x10] sm:$0xff]
    %v5532 = vld [vmem:[%s5528 + $0x18] sm:$0xff]
    %v5533 = vpack.c.bf16 %v5521, %v5519
    %v5534 = vpack.c.bf16 %v5526, %v5524
    %v5535 = vpack.c.bf16 %v5530, %v5529
    %v5536 = vpack.c.bf16 %v5532, %v5531
    %v5538 = vsel %vm763, %v5533, 0
    %v5541 = vsel %vm763, %v5534, 0
    %5543 = vmatpush.bf16.msra.mxu0 0
    %5544 = vmatpush.bf16.msra.mxu0 0
    %5545 = vmatpush.bf16.msra.mxu0 0
    %5546 = vmatpush.bf16.msra.mxu0 0
    %5547 = vmatpush.bf16.msra.mxu0 0
    %5548 = vmatpush.bf16.msra.mxu0 0
    %5549 = vmatpush.bf16.msra.mxu0 %v5536
    %5550 = vmatpush.bf16.msra.mxu0 %v5535
    %5551 = vmatmul.bf16.gmra.mxu0 %v5538
    %v5552 = vpop.f32.mrf.mxu0
    %v5553 = vadd.f32 0.0, %v5552
    %v5554 = vpop.f32.mrf.mxu0
    %v5555 = vadd.f32 0.0, %v5554
    %5556 = vmatmul.bf16.gmra.mxu0 %v5541
    %v5557 = vpop.f32.mrf.mxu0
    %v5558 = vadd.f32 0.0, %v5557
    %v5559 = vpop.f32.mrf.mxu0
    %v5560 = vadd.f32 0.0, %v5559
    %5561 = vdwg.mxu0
    %v5562 = vadd.f32 %v5488, %v5553
    %v5563 = vadd.f32 %v5489, %v5555
    %v5564 = vadd.f32 %v5490, %v5558
    %v5565 = vadd.f32 %v5491, %v5560
    %s5566 = scalar_lea.vmem %s11, 32
    %v5567 = vld [vmem:[%s5566] sm:$0xf]
    %v5568 = vld [vmem:[%s5566 + $0x4] sm:$0xf]
    %v5569 = vld [vmem:[%s5566 + $0x8] sm:$0xf]
    %v5570 = vld [vmem:[%s5566 + $0xc] sm:$0xf]
    %v5575 = vunpack.c.l.b16 %v5567
    %v5576 = vunpack.c.l.b16 %v5568
    %v5577 = vunpack.c.l.b16 %v5569
    %v5578 = vunpack.c.l.b16 %v5570
    %v5579 = vpack.c.b16 %v5576, %v5575
    %v5580 = vpack.c.b16 %v5578, %v5577
    %5583 = vmatpush.bf16.msra.mxu0 %v5420
    %5584 = vmatpush.bf16.msra.mxu0 %v5419
    %5585 = vmatpush.bf16.msra.mxu0 %v5418
    %5586 = vmatpush.bf16.msra.mxu0 %v5417
    %5587 = vmatpush.bf16.msra.mxu0 %v5416
    %5588 = vmatpush.bf16.msra.mxu0 %v5415
    %5589 = vmatpush.bf16.msra.mxu0 %v5414
    %5590 = vmatpush.bf16.msra.mxu0 %v5413
    %5591 = vmatmul.bf16.gmra.mxu0 %v5579
    %v5592 = vpop.f32.mrf.mxu0
    %v5593 = vadd.f32 0.0, %v5592
    %v5594 = vpop.f32.mrf.mxu0
    %v5595 = vadd.f32 0.0, %v5594
    %5596 = vmatmul.bf16.gmra.mxu0 %v5580
    %v5597 = vpop.f32.mrf.mxu0
    %v5598 = vadd.f32 0.0, %v5597
    %v5599 = vpop.f32.mrf.mxu0
    %v5600 = vadd.f32 0.0, %v5599
    %5601 = vdwg.mxu0
    %s5602 = scalar_lea.vmem %s23, 64
    %v5603 = vld [vmem:[%s5602] sm:$0xff]
    %v5604 = vld [vmem:[%s5602 + $0x8] sm:$0xff]
    %v5605 = vld [vmem:[%s5602 + $0x10] sm:$0xff]
    %v5606 = vld [vmem:[%s5602 + $0x18] sm:$0xff]
    %v5607 = vpack.c.bf16 %v5595, %v5593
    %v5608 = vpack.c.bf16 %v5600, %v5598
    %v5609 = vpack.c.bf16 %v5604, %v5603
    %v5610 = vpack.c.bf16 %v5606, %v5605
    %v5612 = vsel %vm763, %v5607, 0
    %v5615 = vsel %vm763, %v5608, 0
    %5617 = vmatpush.bf16.msra.mxu0 0
    %5618 = vmatpush.bf16.msra.mxu0 0
    %5619 = vmatpush.bf16.msra.mxu0 0
    %5620 = vmatpush.bf16.msra.mxu0 0
    %5621 = vmatpush.bf16.msra.mxu0 0
    %5622 = vmatpush.bf16.msra.mxu0 0
    %5623 = vmatpush.bf16.msra.mxu0 %v5610
    %5624 = vmatpush.bf16.msra.mxu0 %v5609
    %5625 = vmatmul.bf16.gmra.mxu0 %v5612
    %v5626 = vpop.f32.mrf.mxu0
    %v5627 = vadd.f32 0.0, %v5626
    %v5628 = vpop.f32.mrf.mxu0
    %v5629 = vadd.f32 0.0, %v5628
    %5630 = vmatmul.bf16.gmra.mxu0 %v5615
    %v5631 = vpop.f32.mrf.mxu0
    %v5632 = vadd.f32 0.0, %v5631
    %v5633 = vpop.f32.mrf.mxu0
    %v5634 = vadd.f32 0.0, %v5633
    %5635 = vdwg.mxu0
    %v5636 = vadd.f32 %v5562, %v5627
    %v5637 = vadd.f32 %v5563, %v5629
    %v5638 = vadd.f32 %v5564, %v5632
    %v5639 = vadd.f32 %v5565, %v5634
    %s5640 = scalar_lea.vmem %s11, 48
    %v5641 = vld [vmem:[%s5640] sm:$0xf]
    %v5642 = vld [vmem:[%s5640 + $0x4] sm:$0xf]
    %v5643 = vld [vmem:[%s5640 + $0x8] sm:$0xf]
    %v5644 = vld [vmem:[%s5640 + $0xc] sm:$0xf]
    %v5649 = vunpack.c.l.b16 %v5641
    %v5650 = vunpack.c.l.b16 %v5642
    %v5651 = vunpack.c.l.b16 %v5643
    %v5652 = vunpack.c.l.b16 %v5644
    %v5653 = vpack.c.b16 %v5650, %v5649
    %v5654 = vpack.c.b16 %v5652, %v5651
    %5657 = vmatpush.bf16.msra.mxu0 %v5420
    %5658 = vmatpush.bf16.msra.mxu0 %v5419
    %5659 = vmatpush.bf16.msra.mxu0 %v5418
    %5660 = vmatpush.bf16.msra.mxu0 %v5417
    %5661 = vmatpush.bf16.msra.mxu0 %v5416
    %5662 = vmatpush.bf16.msra.mxu0 %v5415
    %5663 = vmatpush.bf16.msra.mxu0 %v5414
    %5664 = vmatpush.bf16.msra.mxu0 %v5413
    %5665 = vmatmul.bf16.gmra.mxu0 %v5653
    %v5666 = vpop.f32.mrf.mxu0
    %v5667 = vadd.f32 0.0, %v5666
    %v5668 = vpop.f32.mrf.mxu0
    %v5669 = vadd.f32 0.0, %v5668
    %5670 = vmatmul.bf16.gmra.mxu0 %v5654
    %v5671 = vpop.f32.mrf.mxu0
    %v5672 = vadd.f32 0.0, %v5671
    %v5673 = vpop.f32.mrf.mxu0
    %v5674 = vadd.f32 0.0, %v5673
    %5675 = vdwg.mxu0
    %s5676 = scalar_lea.vmem %s23, 96
    %v5677 = vld [vmem:[%s5676] sm:$0xff]
    %v5678 = vld [vmem:[%s5676 + $0x8] sm:$0xff]
    %v5679 = vld [vmem:[%s5676 + $0x10] sm:$0xff]
    %v5680 = vld [vmem:[%s5676 + $0x18] sm:$0xff]
    %v5681 = vpack.c.bf16 %v5669, %v5667
    %v5682 = vpack.c.bf16 %v5674, %v5672
    %v5683 = vpack.c.bf16 %v5678, %v5677
    %v5684 = vpack.c.bf16 %v5680, %v5679
    %v5686 = vsel %vm763, %v5681, 0
    %v5689 = vsel %vm763, %v5682, 0
    %5691 = vmatpush.bf16.msra.mxu0 0
    %5692 = vmatpush.bf16.msra.mxu0 0
    %5693 = vmatpush.bf16.msra.mxu0 0
    %5694 = vmatpush.bf16.msra.mxu0 0
    %5695 = vmatpush.bf16.msra.mxu0 0
    %5696 = vmatpush.bf16.msra.mxu0 0
    %5697 = vmatpush.bf16.msra.mxu0 %v5684
    %5698 = vmatpush.bf16.msra.mxu0 %v5683
    %5699 = vmatmul.bf16.gmra.mxu0 %v5686
    %v5700 = vpop.f32.mrf.mxu0
    %v5701 = vadd.f32 0.0, %v5700
    %v5702 = vpop.f32.mrf.mxu0
    %v5703 = vadd.f32 0.0, %v5702
    %5704 = vmatmul.bf16.gmra.mxu0 %v5689
    %v5705 = vpop.f32.mrf.mxu0
    %v5706 = vadd.f32 0.0, %v5705
    %v5707 = vpop.f32.mrf.mxu0
    %v5708 = vadd.f32 0.0, %v5707
    %5709 = vdwg.mxu0
    %v5710 = vadd.f32 %v5636, %v5701
    %v5711 = vadd.f32 %v5637, %v5703
    %v5712 = vadd.f32 %v5638, %v5706
    %v5713 = vadd.f32 %v5639, %v5708
    %s5714 = scalar_lea.vmem %s11, 64
    %v5715 = vld [vmem:[%s5714] sm:$0xf]
    %v5716 = vld [vmem:[%s5714 + $0x4] sm:$0xf]
    %v5717 = vld [vmem:[%s5714 + $0x8] sm:$0xf]
    %v5718 = vld [vmem:[%s5714 + $0xc] sm:$0xf]
    %v5723 = vunpack.c.l.b16 %v5715
    %v5724 = vunpack.c.l.b16 %v5716
    %v5725 = vunpack.c.l.b16 %v5717
    %v5726 = vunpack.c.l.b16 %v5718
    %v5727 = vpack.c.b16 %v5724, %v5723
    %v5728 = vpack.c.b16 %v5726, %v5725
    %5731 = vmatpush.bf16.msra.mxu0 %v5420
    %5732 = vmatpush.bf16.msra.mxu0 %v5419
    %5733 = vmatpush.bf16.msra.mxu0 %v5418
    %5734 = vmatpush.bf16.msra.mxu0 %v5417
    %5735 = vmatpush.bf16.msra.mxu0 %v5416
    %5736 = vmatpush.bf16.msra.mxu0 %v5415
    %5737 = vmatpush.bf16.msra.mxu0 %v5414
    %5738 = vmatpush.bf16.msra.mxu0 %v5413
    %5739 = vmatmul.bf16.gmra.mxu0 %v5727
    %v5740 = vpop.f32.mrf.mxu0
    %v5741 = vadd.f32 0.0, %v5740
    %v5742 = vpop.f32.mrf.mxu0
    %v5743 = vadd.f32 0.0, %v5742
    %5744 = vmatmul.bf16.gmra.mxu0 %v5728
    %v5745 = vpop.f32.mrf.mxu0
    %v5746 = vadd.f32 0.0, %v5745
    %v5747 = vpop.f32.mrf.mxu0
    %v5748 = vadd.f32 0.0, %v5747
    %5749 = vdwg.mxu0
    %s5750 = scalar_lea.vmem %s23, 128
    %v5751 = vld [vmem:[%s5750] sm:$0xff]
    %v5752 = vld [vmem:[%s5750 + $0x8] sm:$0xff]
    %v5753 = vld [vmem:[%s5750 + $0x10] sm:$0xff]
    %v5754 = vld [vmem:[%s5750 + $0x18] sm:$0xff]
    %v5755 = vpack.c.bf16 %v5743, %v5741
    %v5756 = vpack.c.bf16 %v5748, %v5746
    %v5757 = vpack.c.bf16 %v5752, %v5751
    %v5758 = vpack.c.bf16 %v5754, %v5753
    %v5760 = vsel %vm763, %v5755, 0
    %v5763 = vsel %vm763, %v5756, 0
    %5765 = vmatpush.bf16.msra.mxu0 0
    %5766 = vmatpush.bf16.msra.mxu0 0
    %5767 = vmatpush.bf16.msra.mxu0 0
    %5768 = vmatpush.bf16.msra.mxu0 0
    %5769 = vmatpush.bf16.msra.mxu0 0
    %5770 = vmatpush.bf16.msra.mxu0 0
    %5771 = vmatpush.bf16.msra.mxu0 %v5758
    %5772 = vmatpush.bf16.msra.mxu0 %v5757
    %5773 = vmatmul.bf16.gmra.mxu0 %v5760
    %v5774 = vpop.f32.mrf.mxu0
    %v5775 = vadd.f32 0.0, %v5774
    %v5776 = vpop.f32.mrf.mxu0
    %v5777 = vadd.f32 0.0, %v5776
    %5778 = vmatmul.bf16.gmra.mxu0 %v5763
    %v5779 = vpop.f32.mrf.mxu0
    %v5780 = vadd.f32 0.0, %v5779
    %v5781 = vpop.f32.mrf.mxu0
    %v5782 = vadd.f32 0.0, %v5781
    %5783 = vdwg.mxu0
    %v5784 = vadd.f32 %v5710, %v5775
    %v5785 = vadd.f32 %v5711, %v5777
    %v5786 = vadd.f32 %v5712, %v5780
    %v5787 = vadd.f32 %v5713, %v5782
    %s5788 = scalar_lea.vmem %s11, 80
    %v5789 = vld [vmem:[%s5788] sm:$0xf]
    %v5790 = vld [vmem:[%s5788 + $0x4] sm:$0xf]
    %v5791 = vld [vmem:[%s5788 + $0x8] sm:$0xf]
    %v5792 = vld [vmem:[%s5788 + $0xc] sm:$0xf]
    %v5797 = vunpack.c.l.b16 %v5789
    %v5798 = vunpack.c.l.b16 %v5790
    %v5799 = vunpack.c.l.b16 %v5791
    %v5800 = vunpack.c.l.b16 %v5792
    %v5801 = vpack.c.b16 %v5798, %v5797
    %v5802 = vpack.c.b16 %v5800, %v5799
    %5805 = vmatpush.bf16.msra.mxu0 %v5420
    %5806 = vmatpush.bf16.msra.mxu0 %v5419
    %5807 = vmatpush.bf16.msra.mxu0 %v5418
    %5808 = vmatpush.bf16.msra.mxu0 %v5417
    %5809 = vmatpush.bf16.msra.mxu0 %v5416
    %5810 = vmatpush.bf16.msra.mxu0 %v5415
    %5811 = vmatpush.bf16.msra.mxu0 %v5414
    %5812 = vmatpush.bf16.msra.mxu0 %v5413
    %5813 = vmatmul.bf16.gmra.mxu0 %v5801
    %v5814 = vpop.f32.mrf.mxu0
    %v5815 = vadd.f32 0.0, %v5814
    %v5816 = vpop.f32.mrf.mxu0
    %v5817 = vadd.f32 0.0, %v5816
    %5818 = vmatmul.bf16.gmra.mxu0 %v5802
    %v5819 = vpop.f32.mrf.mxu0
    %v5820 = vadd.f32 0.0, %v5819
    %v5821 = vpop.f32.mrf.mxu0
    %v5822 = vadd.f32 0.0, %v5821
    %5823 = vdwg.mxu0
    %s5824 = scalar_lea.vmem %s23, 160
    %v5825 = vld [vmem:[%s5824] sm:$0xff]
    %v5826 = vld [vmem:[%s5824 + $0x8] sm:$0xff]
    %v5827 = vld [vmem:[%s5824 + $0x10] sm:$0xff]
    %v5828 = vld [vmem:[%s5824 + $0x18] sm:$0xff]
    %v5829 = vpack.c.bf16 %v5817, %v5815
    %v5830 = vpack.c.bf16 %v5822, %v5820
    %v5831 = vpack.c.bf16 %v5826, %v5825
    %v5832 = vpack.c.bf16 %v5828, %v5827
    %v5834 = vsel %vm763, %v5829, 0
    %v5837 = vsel %vm763, %v5830, 0
    %5839 = vmatpush.bf16.msra.mxu0 0
    %5840 = vmatpush.bf16.msra.mxu0 0
    %5841 = vmatpush.bf16.msra.mxu0 0
    %5842 = vmatpush.bf16.msra.mxu0 0
    %5843 = vmatpush.bf16.msra.mxu0 0
    %5844 = vmatpush.bf16.msra.mxu0 0
    %5845 = vmatpush.bf16.msra.mxu0 %v5832
    %5846 = vmatpush.bf16.msra.mxu0 %v5831
    %5847 = vmatmul.bf16.gmra.mxu0 %v5834
    %v5848 = vpop.f32.mrf.mxu0
    %v5849 = vadd.f32 0.0, %v5848
    %v5850 = vpop.f32.mrf.mxu0
    %v5851 = vadd.f32 0.0, %v5850
    %5852 = vmatmul.bf16.gmra.mxu0 %v5837
    %v5853 = vpop.f32.mrf.mxu0
    %v5854 = vadd.f32 0.0, %v5853
    %v5855 = vpop.f32.mrf.mxu0
    %v5856 = vadd.f32 0.0, %v5855
    %5857 = vdwg.mxu0
    %v5858 = vadd.f32 %v5784, %v5849
    %v5859 = vadd.f32 %v5785, %v5851
    %v5860 = vadd.f32 %v5786, %v5854
    %v5861 = vadd.f32 %v5787, %v5856
    %s5862 = scalar_lea.vmem %s11, 96
    %v5863 = vld [vmem:[%s5862] sm:$0xf]
    %v5864 = vld [vmem:[%s5862 + $0x4] sm:$0xf]
    %v5865 = vld [vmem:[%s5862 + $0x8] sm:$0xf]
    %v5866 = vld [vmem:[%s5862 + $0xc] sm:$0xf]
    %v5871 = vunpack.c.l.b16 %v5863
    %v5872 = vunpack.c.l.b16 %v5864
    %v5873 = vunpack.c.l.b16 %v5865
    %v5874 = vunpack.c.l.b16 %v5866
    %v5875 = vpack.c.b16 %v5872, %v5871
    %v5876 = vpack.c.b16 %v5874, %v5873
    %5879 = vmatpush.bf16.msra.mxu0 %v5420
    %5880 = vmatpush.bf16.msra.mxu0 %v5419
    %5881 = vmatpush.bf16.msra.mxu0 %v5418
    %5882 = vmatpush.bf16.msra.mxu0 %v5417
    %5883 = vmatpush.bf16.msra.mxu0 %v5416
    %5884 = vmatpush.bf16.msra.mxu0 %v5415
    %5885 = vmatpush.bf16.msra.mxu0 %v5414
    %5886 = vmatpush.bf16.msra.mxu0 %v5413
    %5887 = vmatmul.bf16.gmra.mxu0 %v5875
    %v5888 = vpop.f32.mrf.mxu0
    %v5889 = vadd.f32 0.0, %v5888
    %v5890 = vpop.f32.mrf.mxu0
    %v5891 = vadd.f32 0.0, %v5890
    %5892 = vmatmul.bf16.gmra.mxu0 %v5876
    %v5893 = vpop.f32.mrf.mxu0
    %v5894 = vadd.f32 0.0, %v5893
    %v5895 = vpop.f32.mrf.mxu0
    %v5896 = vadd.f32 0.0, %v5895
    %5897 = vdwg.mxu0
    %s5898 = scalar_lea.vmem %s23, 192
    %v5899 = vld [vmem:[%s5898] sm:$0xff]
    %v5900 = vld [vmem:[%s5898 + $0x8] sm:$0xff]
    %v5901 = vld [vmem:[%s5898 + $0x10] sm:$0xff]
    %v5902 = vld [vmem:[%s5898 + $0x18] sm:$0xff]
    %v5903 = vpack.c.bf16 %v5891, %v5889
    %v5904 = vpack.c.bf16 %v5896, %v5894
    %v5905 = vpack.c.bf16 %v5900, %v5899
    %v5906 = vpack.c.bf16 %v5902, %v5901
    %v5908 = vsel %vm763, %v5903, 0
    %v5911 = vsel %vm763, %v5904, 0
    %5913 = vmatpush.bf16.msra.mxu0 0
    %5914 = vmatpush.bf16.msra.mxu0 0
    %5915 = vmatpush.bf16.msra.mxu0 0
    %5916 = vmatpush.bf16.msra.mxu0 0
    %5917 = vmatpush.bf16.msra.mxu0 0
    %5918 = vmatpush.bf16.msra.mxu0 0
    %5919 = vmatpush.bf16.msra.mxu0 %v5906
    %5920 = vmatpush.bf16.msra.mxu0 %v5905
    %5921 = vmatmul.bf16.gmra.mxu0 %v5908
    %v5922 = vpop.f32.mrf.mxu0
    %v5923 = vadd.f32 0.0, %v5922
    %v5924 = vpop.f32.mrf.mxu0
    %v5925 = vadd.f32 0.0, %v5924
    %5926 = vmatmul.bf16.gmra.mxu0 %v5911
    %v5927 = vpop.f32.mrf.mxu0
    %v5928 = vadd.f32 0.0, %v5927
    %v5929 = vpop.f32.mrf.mxu0
    %v5930 = vadd.f32 0.0, %v5929
    %5931 = vdwg.mxu0
    %v5932 = vadd.f32 %v5858, %v5923
    %v5933 = vadd.f32 %v5859, %v5925
    %v5934 = vadd.f32 %v5860, %v5928
    %v5935 = vadd.f32 %v5861, %v5930
    %s5936 = scalar_lea.vmem %s11, 112
    %v5937 = vld [vmem:[%s5936] sm:$0xf]
    %v5938 = vld [vmem:[%s5936 + $0x4] sm:$0xf]
    %v5939 = vld [vmem:[%s5936 + $0x8] sm:$0xf]
    %v5940 = vld [vmem:[%s5936 + $0xc] sm:$0xf]
    %v5945 = vunpack.c.l.b16 %v5937
    %v5946 = vunpack.c.l.b16 %v5938
    %v5947 = vunpack.c.l.b16 %v5939
    %v5948 = vunpack.c.l.b16 %v5940
    %v5949 = vpack.c.b16 %v5946, %v5945
    %v5950 = vpack.c.b16 %v5948, %v5947
    %5953 = vmatpush.bf16.msra.mxu0 %v5420
    %5954 = vmatpush.bf16.msra.mxu0 %v5419
    %5955 = vmatpush.bf16.msra.mxu0 %v5418
    %5956 = vmatpush.bf16.msra.mxu0 %v5417
    %5957 = vmatpush.bf16.msra.mxu0 %v5416
    %5958 = vmatpush.bf16.msra.mxu0 %v5415
    %5959 = vmatpush.bf16.msra.mxu0 %v5414
    %5960 = vmatpush.bf16.msra.mxu0 %v5413
    %5961 = vmatmul.bf16.gmra.mxu0 %v5949
    %v5962 = vpop.f32.mrf.mxu0
    %v5963 = vadd.f32 0.0, %v5962
    %v5964 = vpop.f32.mrf.mxu0
    %v5965 = vadd.f32 0.0, %v5964
    %5966 = vmatmul.bf16.gmra.mxu0 %v5950
    %v5967 = vpop.f32.mrf.mxu0
    %v5968 = vadd.f32 0.0, %v5967
    %v5969 = vpop.f32.mrf.mxu0
    %v5970 = vadd.f32 0.0, %v5969
    %5971 = vdwg.mxu0
    %s5972 = scalar_lea.vmem %s23, 224
    %v5973 = vld [vmem:[%s5972] sm:$0xff]
    %v5974 = vld [vmem:[%s5972 + $0x8] sm:$0xff]
    %v5975 = vld [vmem:[%s5972 + $0x10] sm:$0xff]
    %v5976 = vld [vmem:[%s5972 + $0x18] sm:$0xff]
    %v5977 = vpack.c.bf16 %v5965, %v5963
    %v5978 = vpack.c.bf16 %v5970, %v5968
    %v5979 = vpack.c.bf16 %v5974, %v5973
    %v5980 = vpack.c.bf16 %v5976, %v5975
    %v5982 = vsel %vm763, %v5977, 0
    %v5985 = vsel %vm763, %v5978, 0
    %5987 = vmatpush.bf16.msra.mxu0 0
    %5988 = vmatpush.bf16.msra.mxu0 0
    %5989 = vmatpush.bf16.msra.mxu0 0
    %5990 = vmatpush.bf16.msra.mxu0 0
    %5991 = vmatpush.bf16.msra.mxu0 0
    %5992 = vmatpush.bf16.msra.mxu0 0
    %5993 = vmatpush.bf16.msra.mxu0 %v5980
    %5994 = vmatpush.bf16.msra.mxu0 %v5979
    %5995 = vmatmul.bf16.gmra.mxu0 %v5982
    %v5996 = vpop.f32.mrf.mxu0
    %v5997 = vadd.f32 0.0, %v5996
    %v5998 = vpop.f32.mrf.mxu0
    %v5999 = vadd.f32 0.0, %v5998
    %6000 = vmatmul.bf16.gmra.mxu0 %v5985
    %v6001 = vpop.f32.mrf.mxu0
    %v6002 = vadd.f32 0.0, %v6001
    %v6003 = vpop.f32.mrf.mxu0
    %v6004 = vadd.f32 0.0, %v6003
    %6005 = vdwg.mxu0
    %v6006 = vadd.f32 %v5932, %v5997
    %v6007 = vadd.f32 %v5933, %v5999
    %v6008 = vadd.f32 %v5934, %v6002
    %v6009 = vadd.f32 %v5935, %v6004
    %s6010 = scalar_lea.vmem %s11, 128
    %v6011 = vld [vmem:[%s6010] sm:$0xf]
    %v6012 = vld [vmem:[%s6010 + $0x4] sm:$0xf]
    %v6013 = vld [vmem:[%s6010 + $0x8] sm:$0xf]
    %v6014 = vld [vmem:[%s6010 + $0xc] sm:$0xf]
    %v6019 = vunpack.c.l.b16 %v6011
    %v6020 = vunpack.c.l.b16 %v6012
    %v6021 = vunpack.c.l.b16 %v6013
    %v6022 = vunpack.c.l.b16 %v6014
    %v6023 = vpack.c.b16 %v6020, %v6019
    %v6024 = vpack.c.b16 %v6022, %v6021
    %6027 = vmatpush.bf16.msra.mxu0 %v5420
    %6028 = vmatpush.bf16.msra.mxu0 %v5419
    %6029 = vmatpush.bf16.msra.mxu0 %v5418
    %6030 = vmatpush.bf16.msra.mxu0 %v5417
    %6031 = vmatpush.bf16.msra.mxu0 %v5416
    %6032 = vmatpush.bf16.msra.mxu0 %v5415
    %6033 = vmatpush.bf16.msra.mxu0 %v5414
    %6034 = vmatpush.bf16.msra.mxu0 %v5413
    %6035 = vmatmul.bf16.gmra.mxu0 %v6023
    %v6036 = vpop.f32.mrf.mxu0
    %v6037 = vadd.f32 0.0, %v6036
    %v6038 = vpop.f32.mrf.mxu0
    %v6039 = vadd.f32 0.0, %v6038
    %6040 = vmatmul.bf16.gmra.mxu0 %v6024
    %v6041 = vpop.f32.mrf.mxu0
    %v6042 = vadd.f32 0.0, %v6041
    %v6043 = vpop.f32.mrf.mxu0
    %v6044 = vadd.f32 0.0, %v6043
    %6045 = vdwg.mxu0
    %s6046 = scalar_lea.vmem %s23, 256
    %v6047 = vld [vmem:[%s6046] sm:$0xff]
    %v6048 = vld [vmem:[%s6046 + $0x8] sm:$0xff]
    %v6049 = vld [vmem:[%s6046 + $0x10] sm:$0xff]
    %v6050 = vld [vmem:[%s6046 + $0x18] sm:$0xff]
    %v6051 = vpack.c.bf16 %v6039, %v6037
    %v6052 = vpack.c.bf16 %v6044, %v6042
    %v6053 = vpack.c.bf16 %v6048, %v6047
    %v6054 = vpack.c.bf16 %v6050, %v6049
    %v6056 = vsel %vm763, %v6051, 0
    %v6059 = vsel %vm763, %v6052, 0
    %6061 = vmatpush.bf16.msra.mxu0 0
    %6062 = vmatpush.bf16.msra.mxu0 0
    %6063 = vmatpush.bf16.msra.mxu0 0
    %6064 = vmatpush.bf16.msra.mxu0 0
    %6065 = vmatpush.bf16.msra.mxu0 0
    %6066 = vmatpush.bf16.msra.mxu0 0
    %6067 = vmatpush.bf16.msra.mxu0 %v6054
    %6068 = vmatpush.bf16.msra.mxu0 %v6053
    %6069 = vmatmul.bf16.gmra.mxu0 %v6056
    %v6070 = vpop.f32.mrf.mxu0
    %v6071 = vadd.f32 0.0, %v6070
    %v6072 = vpop.f32.mrf.mxu0
    %v6073 = vadd.f32 0.0, %v6072
    %6074 = vmatmul.bf16.gmra.mxu0 %v6059
    %v6075 = vpop.f32.mrf.mxu0
    %v6076 = vadd.f32 0.0, %v6075
    %v6077 = vpop.f32.mrf.mxu0
    %v6078 = vadd.f32 0.0, %v6077
    %6079 = vdwg.mxu0
    %v6080 = vadd.f32 %v6006, %v6071
    %v6081 = vadd.f32 %v6007, %v6073
    %v6082 = vadd.f32 %v6008, %v6076
    %v6083 = vadd.f32 %v6009, %v6078
    %v6084 = vld [vmem:[%s3] sm:$0xff]
    %v6085 = vld [vmem:[%s3 + $0x8] sm:$0xff]
    %v6086 = vld [vmem:[%s3 + $0x10] sm:$0xff]
    %v6087 = vld [vmem:[%s3 + $0x18] sm:$0xff]
    %v6088 = vld [vmem:[%s3 + $0x20] sm:$0xff]
    %v6089 = vld [vmem:[%s3 + $0x28] sm:$0xff]
    %v6090 = vld [vmem:[%s3 + $0x30] sm:$0xff]
    %v6091 = vld [vmem:[%s3 + $0x38] sm:$0xff]
    %v6092 = vld [vmem:[%s3 + $0x40] sm:$0xff]
    %v6093 = vld [vmem:[%s3 + $0x48] sm:$0xff]
    %v6094 = vld [vmem:[%s3 + $0x50] sm:$0xff]
    %v6095 = vld [vmem:[%s3 + $0x58] sm:$0xff]
    %v6096 = vld [vmem:[%s3 + $0x60] sm:$0xff]
    %v6097 = vld [vmem:[%s3 + $0x68] sm:$0xff]
    %v6098 = vld [vmem:[%s3 + $0x70] sm:$0xff]
    %v6099 = vld [vmem:[%s3 + $0x78] sm:$0xff]
    %v6100 = vld [vmem:[#allocation10] sm:$0x1]
    %v6101 = vpack.c.bf16 %v6085, %v6084
    %v6102 = vpack.c.bf16 %v6087, %v6086
    %v6103 = vpack.c.bf16 %v6089, %v6088
    %v6104 = vpack.c.bf16 %v6091, %v6090
    %v6105 = vpack.c.bf16 %v6093, %v6092
    %v6106 = vpack.c.bf16 %v6095, %v6094
    %v6107 = vpack.c.bf16 %v6097, %v6096
    %v6108 = vpack.c.bf16 %v6099, %v6098
    %6109 = vmatpush.bf16.msra.mxu0 %v6108
    %6110 = vmatpush.bf16.msra.mxu0 %v6107
    %6111 = vmatpush.bf16.msra.mxu0 %v6106
    %6112 = vmatpush.bf16.msra.mxu0 %v6105
    %6113 = vmatpush.bf16.msra.mxu0 %v6104
    %6114 = vmatpush.bf16.msra.mxu0 %v6103
    %6115 = vmatpush.bf16.msra.mxu0 %v6102
    %6116 = vmatpush.bf16.msra.mxu0 %v6101
    %6117 = vmatmul.bf16.gmra.mxu0 %v5429
    %v6118 = vpop.f32.mrf.mxu0
    %v6119 = vadd.f32 0.0, %v6118
    %v6120 = vpop.f32.mrf.mxu0
    %v6121 = vadd.f32 0.0, %v6120
    %6122 = vmatmul.bf16.gmra.mxu0 %v5430
    %v6123 = vpop.f32.mrf.mxu0
    %v6124 = vadd.f32 0.0, %v6123
    %v6125 = vpop.f32.mrf.mxu0
    %v6126 = vadd.f32 0.0, %v6125
    %6127 = vdwg.mxu0
    %v6128 = vld [vmem:[%s27] sm:$0xff]
    %v6129 = vld [vmem:[%s27 + $0x8] sm:$0xff]
    %v6130 = vld [vmem:[%s27 + $0x10] sm:$0xff]
    %v6131 = vld [vmem:[%s27 + $0x18] sm:$0xff]
    %v6132 = vpack.c.bf16 %v6121, %v6119
    %v6133 = vpack.c.bf16 %v6126, %v6124
    %v6134 = vpack.c.bf16 %v6129, %v6128
    %v6135 = vpack.c.bf16 %v6131, %v6130
    %v6137 = vsel %vm763, %v6132, 0
    %v6140 = vsel %vm763, %v6133, 0
    %6142 = vmatpush.bf16.msra.mxu0 0
    %6143 = vmatpush.bf16.msra.mxu0 0
    %6144 = vmatpush.bf16.msra.mxu0 0
    %6145 = vmatpush.bf16.msra.mxu0 0
    %6146 = vmatpush.bf16.msra.mxu0 0
    %6147 = vmatpush.bf16.msra.mxu0 0
    %6148 = vmatpush.bf16.msra.mxu0 %v6135
    %6149 = vmatpush.bf16.msra.mxu0 %v6134
    %6150 = vmatmul.bf16.gmra.mxu0 %v6137
    %v6151 = vpop.f32.mrf.mxu0
    %v6152 = vadd.f32 0.0, %v6151
    %v6153 = vpop.f32.mrf.mxu0
    %v6154 = vadd.f32 0.0, %v6153
    %6155 = vmatmul.bf16.gmra.mxu0 %v6140
    %v6156 = vpop.f32.mrf.mxu0
    %v6157 = vadd.f32 0.0, %v6156
    %v6158 = vpop.f32.mrf.mxu0
    %v6159 = vadd.f32 0.0, %v6158
    %6160 = vdwg.mxu0
    %v6162 = vperm.slane %v6100, 0
    %v6164 = vadd.f32 %v6162, %v6152
    %v6165 = vadd.f32 %v6162, %v6154
    %v6166 = vadd.f32 %v6162, %v6157
    %v6167 = vadd.f32 %v6162, %v6159
    %6168 = vmatpush.bf16.msra.mxu0 %v6108
    %6169 = vmatpush.bf16.msra.mxu0 %v6107
    %6170 = vmatpush.bf16.msra.mxu0 %v6106
    %6171 = vmatpush.bf16.msra.mxu0 %v6105
    %6172 = vmatpush.bf16.msra.mxu0 %v6104
    %6173 = vmatpush.bf16.msra.mxu0 %v6103
    %6174 = vmatpush.bf16.msra.mxu0 %v6102
    %6175 = vmatpush.bf16.msra.mxu0 %v6101
    %6176 = vmatmul.bf16.gmra.mxu0 %v5505
    %v6177 = vpop.f32.mrf.mxu0
    %v6178 = vadd.f32 0.0, %v6177
    %v6179 = vpop.f32.mrf.mxu0
    %v6180 = vadd.f32 0.0, %v6179
    %6181 = vmatmul.bf16.gmra.mxu0 %v5506
    %v6182 = vpop.f32.mrf.mxu0
    %v6183 = vadd.f32 0.0, %v6182
    %v6184 = vpop.f32.mrf.mxu0
    %v6185 = vadd.f32 0.0, %v6184
    %6186 = vdwg.mxu0
    %s6187 = scalar_lea.vmem %s27, 32
    %v6188 = vld [vmem:[%s6187] sm:$0xff]
    %v6189 = vld [vmem:[%s6187 + $0x8] sm:$0xff]
    %v6190 = vld [vmem:[%s6187 + $0x10] sm:$0xff]
    %v6191 = vld [vmem:[%s6187 + $0x18] sm:$0xff]
    %v6192 = vpack.c.bf16 %v6180, %v6178
    %v6193 = vpack.c.bf16 %v6185, %v6183
    %v6194 = vpack.c.bf16 %v6189, %v6188
    %v6195 = vpack.c.bf16 %v6191, %v6190
    %v6197 = vsel %vm763, %v6192, 0
    %v6200 = vsel %vm763, %v6193, 0
    %6202 = vmatpush.bf16.msra.mxu0 0
    %6203 = vmatpush.bf16.msra.mxu0 0
    %6204 = vmatpush.bf16.msra.mxu0 0
    %6205 = vmatpush.bf16.msra.mxu0 0
    %6206 = vmatpush.bf16.msra.mxu0 0
    %6207 = vmatpush.bf16.msra.mxu0 0
    %6208 = vmatpush.bf16.msra.mxu0 %v6195
    %6209 = vmatpush.bf16.msra.mxu0 %v6194
    %6210 = vmatmul.bf16.gmra.mxu0 %v6197
    %v6211 = vpop.f32.mrf.mxu0
    %v6212 = vadd.f32 0.0, %v6211
    %v6213 = vpop.f32.mrf.mxu0
    %v6214 = vadd.f32 0.0, %v6213
    %6215 = vmatmul.bf16.gmra.mxu0 %v6200
    %v6216 = vpop.f32.mrf.mxu0
    %v6217 = vadd.f32 0.0, %v6216
    %v6218 = vpop.f32.mrf.mxu0
    %v6219 = vadd.f32 0.0, %v6218
    %6220 = vdwg.mxu0
    %v6221 = vadd.f32 %v6164, %v6212
    %v6222 = vadd.f32 %v6165, %v6214
    %v6223 = vadd.f32 %v6166, %v6217
    %v6224 = vadd.f32 %v6167, %v6219
    %6225 = vmatpush.bf16.msra.mxu0 %v6108
    %6226 = vmatpush.bf16.msra.mxu0 %v6107
    %6227 = vmatpush.bf16.msra.mxu0 %v6106
    %6228 = vmatpush.bf16.msra.mxu0 %v6105
    %6229 = vmatpush.bf16.msra.mxu0 %v6104
    %6230 = vmatpush.bf16.msra.mxu0 %v6103
    %6231 = vmatpush.bf16.msra.mxu0 %v6102
    %6232 = vmatpush.bf16.msra.mxu0 %v6101
    %6233 = vmatmul.bf16.gmra.mxu0 %v5579
    %v6234 = vpop.f32.mrf.mxu0
    %v6235 = vadd.f32 0.0, %v6234
    %v6236 = vpop.f32.mrf.mxu0
    %v6237 = vadd.f32 0.0, %v6236
    %6238 = vmatmul.bf16.gmra.mxu0 %v5580
    %v6239 = vpop.f32.mrf.mxu0
    %v6240 = vadd.f32 0.0, %v6239
    %v6241 = vpop.f32.mrf.mxu0
    %v6242 = vadd.f32 0.0, %v6241
    %6243 = vdwg.mxu0
    %s6244 = scalar_lea.vmem %s27, 64
    %v6245 = vld [vmem:[%s6244] sm:$0xff]
    %v6246 = vld [vmem:[%s6244 + $0x8] sm:$0xff]
    %v6247 = vld [vmem:[%s6244 + $0x10] sm:$0xff]
    %v6248 = vld [vmem:[%s6244 + $0x18] sm:$0xff]
    %v6249 = vpack.c.bf16 %v6237, %v6235
    %v6250 = vpack.c.bf16 %v6242, %v6240
    %v6251 = vpack.c.bf16 %v6246, %v6245
    %v6252 = vpack.c.bf16 %v6248, %v6247
    %v6254 = vsel %vm763, %v6249, 0
    %v6257 = vsel %vm763, %v6250, 0
    %6259 = vmatpush.bf16.msra.mxu0 0
    %6260 = vmatpush.bf16.msra.mxu0 0
    %6261 = vmatpush.bf16.msra.mxu0 0
    %6262 = vmatpush.bf16.msra.mxu0 0
    %6263 = vmatpush.bf16.msra.mxu0 0
    %6264 = vmatpush.bf16.msra.mxu0 0
    %6265 = vmatpush.bf16.msra.mxu0 %v6252
    %6266 = vmatpush.bf16.msra.mxu0 %v6251
    %6267 = vmatmul.bf16.gmra.mxu0 %v6254
    %v6268 = vpop.f32.mrf.mxu0
    %v6269 = vadd.f32 0.0, %v6268
    %v6270 = vpop.f32.mrf.mxu0
    %v6271 = vadd.f32 0.0, %v6270
    %6272 = vmatmul.bf16.gmra.mxu0 %v6257
    %v6273 = vpop.f32.mrf.mxu0
    %v6274 = vadd.f32 0.0, %v6273
    %v6275 = vpop.f32.mrf.mxu0
    %v6276 = vadd.f32 0.0, %v6275
    %6277 = vdwg.mxu0
    %v6278 = vadd.f32 %v6221, %v6269
    %v6279 = vadd.f32 %v6222, %v6271
    %v6280 = vadd.f32 %v6223, %v6274
    %v6281 = vadd.f32 %v6224, %v6276
    %6282 = vmatpush.bf16.msra.mxu0 %v6108
    %6283 = vmatpush.bf16.msra.mxu0 %v6107
    %6284 = vmatpush.bf16.msra.mxu0 %v6106
    %6285 = vmatpush.bf16.msra.mxu0 %v6105
    %6286 = vmatpush.bf16.msra.mxu0 %v6104
    %6287 = vmatpush.bf16.msra.mxu0 %v6103
    %6288 = vmatpush.bf16.msra.mxu0 %v6102
    %6289 = vmatpush.bf16.msra.mxu0 %v6101
    %6290 = vmatmul.bf16.gmra.mxu0 %v5653
    %v6291 = vpop.f32.mrf.mxu0
    %v6292 = vadd.f32 0.0, %v6291
    %v6293 = vpop.f32.mrf.mxu0
    %v6294 = vadd.f32 0.0, %v6293
    %6295 = vmatmul.bf16.gmra.mxu0 %v5654
    %v6296 = vpop.f32.mrf.mxu0
    %v6297 = vadd.f32 0.0, %v6296
    %v6298 = vpop.f32.mrf.mxu0
    %v6299 = vadd.f32 0.0, %v6298
    %6300 = vdwg.mxu0
    %s6301 = scalar_lea.vmem %s27, 96
    %v6302 = vld [vmem:[%s6301] sm:$0xff]
    %v6303 = vld [vmem:[%s6301 + $0x8] sm:$0xff]
    %v6304 = vld [vmem:[%s6301 + $0x10] sm:$0xff]
    %v6305 = vld [vmem:[%s6301 + $0x18] sm:$0xff]
    %v6306 = vpack.c.bf16 %v6294, %v6292
    %v6307 = vpack.c.bf16 %v6299, %v6297
    %v6308 = vpack.c.bf16 %v6303, %v6302
    %v6309 = vpack.c.bf16 %v6305, %v6304
    %v6311 = vsel %vm763, %v6306, 0
    %v6314 = vsel %vm763, %v6307, 0
    %6316 = vmatpush.bf16.msra.mxu0 0
    %6317 = vmatpush.bf16.msra.mxu0 0
    %6318 = vmatpush.bf16.msra.mxu0 0
    %6319 = vmatpush.bf16.msra.mxu0 0
    %6320 = vmatpush.bf16.msra.mxu0 0
    %6321 = vmatpush.bf16.msra.mxu0 0
    %6322 = vmatpush.bf16.msra.mxu0 %v6309
    %6323 = vmatpush.bf16.msra.mxu0 %v6308
    %6324 = vmatmul.bf16.gmra.mxu0 %v6311
    %v6325 = vpop.f32.mrf.mxu0
    %v6326 = vadd.f32 0.0, %v6325
    %v6327 = vpop.f32.mrf.mxu0
    %v6328 = vadd.f32 0.0, %v6327
    %6329 = vmatmul.bf16.gmra.mxu0 %v6314
    %v6330 = vpop.f32.mrf.mxu0
    %v6331 = vadd.f32 0.0, %v6330
    %v6332 = vpop.f32.mrf.mxu0
    %v6333 = vadd.f32 0.0, %v6332
    %6334 = vdwg.mxu0
    %v6335 = vadd.f32 %v6278, %v6326
    %v6336 = vadd.f32 %v6279, %v6328
    %v6337 = vadd.f32 %v6280, %v6331
    %v6338 = vadd.f32 %v6281, %v6333
    %6339 = vmatpush.bf16.msra.mxu0 %v6108
    %6340 = vmatpush.bf16.msra.mxu0 %v6107
    %6341 = vmatpush.bf16.msra.mxu0 %v6106
    %6342 = vmatpush.bf16.msra.mxu0 %v6105
    %6343 = vmatpush.bf16.msra.mxu0 %v6104
    %6344 = vmatpush.bf16.msra.mxu0 %v6103
    %6345 = vmatpush.bf16.msra.mxu0 %v6102
    %6346 = vmatpush.bf16.msra.mxu0 %v6101
    %6347 = vmatmul.bf16.gmra.mxu0 %v5727
    %v6348 = vpop.f32.mrf.mxu0
    %v6349 = vadd.f32 0.0, %v6348
    %v6350 = vpop.f32.mrf.mxu0
    %v6351 = vadd.f32 0.0, %v6350
    %6352 = vmatmul.bf16.gmra.mxu0 %v5728
    %v6353 = vpop.f32.mrf.mxu0
    %v6354 = vadd.f32 0.0, %v6353
    %v6355 = vpop.f32.mrf.mxu0
    %v6356 = vadd.f32 0.0, %v6355
    %6357 = vdwg.mxu0
    %s6358 = scalar_lea.vmem %s27, 128
    %v6359 = vld [vmem:[%s6358] sm:$0xff]
    %v6360 = vld [vmem:[%s6358 + $0x8] sm:$0xff]
    %v6361 = vld [vmem:[%s6358 + $0x10] sm:$0xff]
    %v6362 = vld [vmem:[%s6358 + $0x18] sm:$0xff]
    %v6363 = vpack.c.bf16 %v6351, %v6349
    %v6364 = vpack.c.bf16 %v6356, %v6354
    %v6365 = vpack.c.bf16 %v6360, %v6359
    %v6366 = vpack.c.bf16 %v6362, %v6361
    %v6368 = vsel %vm763, %v6363, 0
    %v6371 = vsel %vm763, %v6364, 0
    %6373 = vmatpush.bf16.msra.mxu0 0
    %6374 = vmatpush.bf16.msra.mxu0 0
    %6375 = vmatpush.bf16.msra.mxu0 0
    %6376 = vmatpush.bf16.msra.mxu0 0
    %6377 = vmatpush.bf16.msra.mxu0 0
    %6378 = vmatpush.bf16.msra.mxu0 0
    %6379 = vmatpush.bf16.msra.mxu0 %v6366
    %6380 = vmatpush.bf16.msra.mxu0 %v6365
    %6381 = vmatmul.bf16.gmra.mxu0 %v6368
    %v6382 = vpop.f32.mrf.mxu0
    %v6383 = vadd.f32 0.0, %v6382
    %v6384 = vpop.f32.mrf.mxu0
    %v6385 = vadd.f32 0.0, %v6384
    %6386 = vmatmul.bf16.gmra.mxu0 %v6371
    %v6387 = vpop.f32.mrf.mxu0
    %v6388 = vadd.f32 0.0, %v6387
    %v6389 = vpop.f32.mrf.mxu0
    %v6390 = vadd.f32 0.0, %v6389
    %6391 = vdwg.mxu0
    %v6392 = vadd.f32 %v6335, %v6383
    %v6393 = vadd.f32 %v6336, %v6385
    %v6394 = vadd.f32 %v6337, %v6388
    %v6395 = vadd.f32 %v6338, %v6390
    %6396 = vmatpush.bf16.msra.mxu0 %v6108
    %6397 = vmatpush.bf16.msra.mxu0 %v6107
    %6398 = vmatpush.bf16.msra.mxu0 %v6106
    %6399 = vmatpush.bf16.msra.mxu0 %v6105
    %6400 = vmatpush.bf16.msra.mxu0 %v6104
    %6401 = vmatpush.bf16.msra.mxu0 %v6103
    %6402 = vmatpush.bf16.msra.mxu0 %v6102
    %6403 = vmatpush.bf16.msra.mxu0 %v6101
    %6404 = vmatmul.bf16.gmra.mxu0 %v5801
    %v6405 = vpop.f32.mrf.mxu0
    %v6406 = vadd.f32 0.0, %v6405
    %v6407 = vpop.f32.mrf.mxu0
    %v6408 = vadd.f32 0.0, %v6407
    %6409 = vmatmul.bf16.gmra.mxu0 %v5802
    %v6410 = vpop.f32.mrf.mxu0
    %v6411 = vadd.f32 0.0, %v6410
    %v6412 = vpop.f32.mrf.mxu0
    %v6413 = vadd.f32 0.0, %v6412
    %6414 = vdwg.mxu0
    %s6415 = scalar_lea.vmem %s27, 160
    %v6416 = vld [vmem:[%s6415] sm:$0xff]
    %v6417 = vld [vmem:[%s6415 + $0x8] sm:$0xff]
    %v6418 = vld [vmem:[%s6415 + $0x10] sm:$0xff]
    %v6419 = vld [vmem:[%s6415 + $0x18] sm:$0xff]
    %v6420 = vpack.c.bf16 %v6408, %v6406
    %v6421 = vpack.c.bf16 %v6413, %v6411
    %v6422 = vpack.c.bf16 %v6417, %v6416
    %v6423 = vpack.c.bf16 %v6419, %v6418
    %v6425 = vsel %vm763, %v6420, 0
    %v6428 = vsel %vm763, %v6421, 0
    %6430 = vmatpush.bf16.msra.mxu0 0
    %6431 = vmatpush.bf16.msra.mxu0 0
    %6432 = vmatpush.bf16.msra.mxu0 0
    %6433 = vmatpush.bf16.msra.mxu0 0
    %6434 = vmatpush.bf16.msra.mxu0 0
    %6435 = vmatpush.bf16.msra.mxu0 0
    %6436 = vmatpush.bf16.msra.mxu0 %v6423
    %6437 = vmatpush.bf16.msra.mxu0 %v6422
    %6438 = vmatmul.bf16.gmra.mxu0 %v6425
    %v6439 = vpop.f32.mrf.mxu0
    %v6440 = vadd.f32 0.0, %v6439
    %v6441 = vpop.f32.mrf.mxu0
    %v6442 = vadd.f32 0.0, %v6441
    %6443 = vmatmul.bf16.gmra.mxu0 %v6428
    %v6444 = vpop.f32.mrf.mxu0
    %v6445 = vadd.f32 0.0, %v6444
    %v6446 = vpop.f32.mrf.mxu0
    %v6447 = vadd.f32 0.0, %v6446
    %6448 = vdwg.mxu0
    %v6449 = vadd.f32 %v6392, %v6440
    %v6450 = vadd.f32 %v6393, %v6442
    %v6451 = vadd.f32 %v6394, %v6445
    %v6452 = vadd.f32 %v6395, %v6447
    %6453 = vmatpush.bf16.msra.mxu0 %v6108
    %6454 = vmatpush.bf16.msra.mxu0 %v6107
    %6455 = vmatpush.bf16.msra.mxu0 %v6106
    %6456 = vmatpush.bf16.msra.mxu0 %v6105
    %6457 = vmatpush.bf16.msra.mxu0 %v6104
    %6458 = vmatpush.bf16.msra.mxu0 %v6103
    %6459 = vmatpush.bf16.msra.mxu0 %v6102
    %6460 = vmatpush.bf16.msra.mxu0 %v6101
    %6461 = vmatmul.bf16.gmra.mxu0 %v5875
    %v6462 = vpop.f32.mrf.mxu0
    %v6463 = vadd.f32 0.0, %v6462
    %v6464 = vpop.f32.mrf.mxu0
    %v6465 = vadd.f32 0.0, %v6464
    %6466 = vmatmul.bf16.gmra.mxu0 %v5876
    %v6467 = vpop.f32.mrf.mxu0
    %v6468 = vadd.f32 0.0, %v6467
    %v6469 = vpop.f32.mrf.mxu0
    %v6470 = vadd.f32 0.0, %v6469
    %6471 = vdwg.mxu0
    %s6472 = scalar_lea.vmem %s27, 192
    %v6473 = vld [vmem:[%s6472] sm:$0xff]
    %v6474 = vld [vmem:[%s6472 + $0x8] sm:$0xff]
    %v6475 = vld [vmem:[%s6472 + $0x10] sm:$0xff]
    %v6476 = vld [vmem:[%s6472 + $0x18] sm:$0xff]
    %v6477 = vpack.c.bf16 %v6465, %v6463
    %v6478 = vpack.c.bf16 %v6470, %v6468
    %v6479 = vpack.c.bf16 %v6474, %v6473
    %v6480 = vpack.c.bf16 %v6476, %v6475
    %v6482 = vsel %vm763, %v6477, 0
    %v6485 = vsel %vm763, %v6478, 0
    %6487 = vmatpush.bf16.msra.mxu0 0
    %6488 = vmatpush.bf16.msra.mxu0 0
    %6489 = vmatpush.bf16.msra.mxu0 0
    %6490 = vmatpush.bf16.msra.mxu0 0
    %6491 = vmatpush.bf16.msra.mxu0 0
    %6492 = vmatpush.bf16.msra.mxu0 0
    %6493 = vmatpush.bf16.msra.mxu0 %v6480
    %6494 = vmatpush.bf16.msra.mxu0 %v6479
    %6495 = vmatmul.bf16.gmra.mxu0 %v6482
    %v6496 = vpop.f32.mrf.mxu0
    %v6497 = vadd.f32 0.0, %v6496
    %v6498 = vpop.f32.mrf.mxu0
    %v6499 = vadd.f32 0.0, %v6498
    %6500 = vmatmul.bf16.gmra.mxu0 %v6485
    %v6501 = vpop.f32.mrf.mxu0
    %v6502 = vadd.f32 0.0, %v6501
    %v6503 = vpop.f32.mrf.mxu0
    %v6504 = vadd.f32 0.0, %v6503
    %6505 = vdwg.mxu0
    %v6506 = vadd.f32 %v6449, %v6497
    %v6507 = vadd.f32 %v6450, %v6499
    %v6508 = vadd.f32 %v6451, %v6502
    %v6509 = vadd.f32 %v6452, %v6504
    %6510 = vmatpush.bf16.msra.mxu0 %v6108
    %6511 = vmatpush.bf16.msra.mxu0 %v6107
    %6512 = vmatpush.bf16.msra.mxu0 %v6106
    %6513 = vmatpush.bf16.msra.mxu0 %v6105
    %6514 = vmatpush.bf16.msra.mxu0 %v6104
    %6515 = vmatpush.bf16.msra.mxu0 %v6103
    %6516 = vmatpush.bf16.msra.mxu0 %v6102
    %6517 = vmatpush.bf16.msra.mxu0 %v6101
    %6518 = vmatmul.bf16.gmra.mxu0 %v5949
    %v6519 = vpop.f32.mrf.mxu0
    %v6520 = vadd.f32 0.0, %v6519
    %v6521 = vpop.f32.mrf.mxu0
    %v6522 = vadd.f32 0.0, %v6521
    %6523 = vmatmul.bf16.gmra.mxu0 %v5950
    %v6524 = vpop.f32.mrf.mxu0
    %v6525 = vadd.f32 0.0, %v6524
    %v6526 = vpop.f32.mrf.mxu0
    %v6527 = vadd.f32 0.0, %v6526
    %6528 = vdwg.mxu0
    %s6529 = scalar_lea.vmem %s27, 224
    %v6530 = vld [vmem:[%s6529] sm:$0xff]
    %v6531 = vld [vmem:[%s6529 + $0x8] sm:$0xff]
    %v6532 = vld [vmem:[%s6529 + $0x10] sm:$0xff]
    %v6533 = vld [vmem:[%s6529 + $0x18] sm:$0xff]
    %v6534 = vpack.c.bf16 %v6522, %v6520
    %v6535 = vpack.c.bf16 %v6527, %v6525
    %v6536 = vpack.c.bf16 %v6531, %v6530
    %v6537 = vpack.c.bf16 %v6533, %v6532
    %v6539 = vsel %vm763, %v6534, 0
    %v6542 = vsel %vm763, %v6535, 0
    %6544 = vmatpush.bf16.msra.mxu0 0
    %6545 = vmatpush.bf16.msra.mxu0 0
    %6546 = vmatpush.bf16.msra.mxu0 0
    %6547 = vmatpush.bf16.msra.mxu0 0
    %6548 = vmatpush.bf16.msra.mxu0 0
    %6549 = vmatpush.bf16.msra.mxu0 0
    %6550 = vmatpush.bf16.msra.mxu0 %v6537
    %6551 = vmatpush.bf16.msra.mxu0 %v6536
    %6552 = vmatmul.bf16.gmra.mxu0 %v6539
    %v6553 = vpop.f32.mrf.mxu0
    %v6554 = vadd.f32 0.0, %v6553
    %v6555 = vpop.f32.mrf.mxu0
    %v6556 = vadd.f32 0.0, %v6555
    %6557 = vmatmul.bf16.gmra.mxu0 %v6542
    %v6558 = vpop.f32.mrf.mxu0
    %v6559 = vadd.f32 0.0, %v6558
    %v6560 = vpop.f32.mrf.mxu0
    %v6561 = vadd.f32 0.0, %v6560
    %6562 = vdwg.mxu0
    %v6563 = vadd.f32 %v6506, %v6554
    %v6564 = vadd.f32 %v6507, %v6556
    %v6565 = vadd.f32 %v6508, %v6559
    %v6566 = vadd.f32 %v6509, %v6561
    %6567 = vmatpush.bf16.msra.mxu0 %v6108
    %6568 = vmatpush.bf16.msra.mxu0 %v6107
    %6569 = vmatpush.bf16.msra.mxu0 %v6106
    %6570 = vmatpush.bf16.msra.mxu0 %v6105
    %6571 = vmatpush.bf16.msra.mxu0 %v6104
    %6572 = vmatpush.bf16.msra.mxu0 %v6103
    %6573 = vmatpush.bf16.msra.mxu0 %v6102
    %6574 = vmatpush.bf16.msra.mxu0 %v6101
    %6575 = vmatmul.bf16.gmra.mxu0 %v6023
    %v6576 = vpop.f32.mrf.mxu0
    %v6577 = vadd.f32 0.0, %v6576
    %v6578 = vpop.f32.mrf.mxu0
    %v6579 = vadd.f32 0.0, %v6578
    %6580 = vmatmul.bf16.gmra.mxu0 %v6024
    %v6581 = vpop.f32.mrf.mxu0
    %v6582 = vadd.f32 0.0, %v6581
    %v6583 = vpop.f32.mrf.mxu0
    %v6584 = vadd.f32 0.0, %v6583
    %6585 = vdwg.mxu0
    %s6586 = scalar_lea.vmem %s27, 256
    %v6587 = vld [vmem:[%s6586] sm:$0xff]
    %v6588 = vld [vmem:[%s6586 + $0x8] sm:$0xff]
    %v6589 = vld [vmem:[%s6586 + $0x10] sm:$0xff]
    %v6590 = vld [vmem:[%s6586 + $0x18] sm:$0xff]
    %v6591 = vpack.c.bf16 %v6579, %v6577
    %v6592 = vpack.c.bf16 %v6584, %v6582
    %v6593 = vpack.c.bf16 %v6588, %v6587
    %v6594 = vpack.c.bf16 %v6590, %v6589
    %v6596 = vsel %vm763, %v6591, 0
    %v6599 = vsel %vm763, %v6592, 0
    %6601 = vmatpush.bf16.msra.mxu0 0
    %6602 = vmatpush.bf16.msra.mxu0 0
    %6603 = vmatpush.bf16.msra.mxu0 0
    %6604 = vmatpush.bf16.msra.mxu0 0
    %6605 = vmatpush.bf16.msra.mxu0 0
    %6606 = vmatpush.bf16.msra.mxu0 0
    %6607 = vmatpush.bf16.msra.mxu0 %v6594
    %6608 = vmatpush.bf16.msra.mxu0 %v6593
    %6609 = vmatmul.bf16.gmra.mxu0 %v6596
    %v6610 = vpop.f32.mrf.mxu0
    %v6611 = vadd.f32 0.0, %v6610
    %v6612 = vpop.f32.mrf.mxu0
    %v6613 = vadd.f32 0.0, %v6612
    %6614 = vmatmul.bf16.gmra.mxu0 %v6599
    %v6615 = vpop.f32.mrf.mxu0
    %v6616 = vadd.f32 0.0, %v6615
    %v6617 = vpop.f32.mrf.mxu0
    %v6618 = vadd.f32 0.0, %v6617
    %6619 = vdwg.mxu0
    %v6620 = vadd.f32 %v6563, %v6611
    %v6621 = vadd.f32 %v6564, %v6613
    %v6622 = vadd.f32 %v6565, %v6616
    %v6623 = vadd.f32 %v6566, %v6618
    %v6624 = vld [vmem:[%s31] sm:$0xff]
    %v6625 = vld [vmem:[%s31 + $0x8] sm:$0xff]
    %v6626 = vld [vmem:[%s31 + $0x10] sm:$0xff]
    %v6627 = vld [vmem:[%s31 + $0x18] sm:$0xff]
    %v6628 = vpack.c.bf16 %v6081, %v6080
    %v6629 = vpack.c.bf16 %v6083, %v6082
    %v6630 = vpack.c.bf16 %v6625, %v6624
    %v6631 = vpack.c.bf16 %v6627, %v6626
    %v6632 = vld [vmem:[%s33] sm:$0xff]
    %v6633 = vld [vmem:[%s33 + $0x8] sm:$0xff]
    %v6634 = vld [vmem:[%s33 + $0x10] sm:$0xff]
    %v6635 = vld [vmem:[%s33 + $0x18] sm:$0xff]
    %v6636 = vpack.c.bf16 %v6621, %v6620
    %v6637 = vpack.c.bf16 %v6623, %v6622
    %v6638 = vpack.c.bf16 %v6633, %v6632
    %v6639 = vpack.c.bf16 %v6635, %v6634
    %v6641 = vsel %vm763, %v6636, 0
    %v6644 = vsel %vm763, %v6637, 0
    %6646 = vmatpush.bf16.msra.mxu0 0
    %6647 = vmatpush.bf16.msra.mxu0 0
    %6648 = vmatpush.bf16.msra.mxu0 0
    %6649 = vmatpush.bf16.msra.mxu0 0
    %6650 = vmatpush.bf16.msra.mxu0 0
    %6651 = vmatpush.bf16.msra.mxu0 0
    %6652 = vmatpush.bf16.msra.mxu0 %v6639
    %6653 = vmatpush.bf16.msra.mxu0 %v6638
    %6654 = vmatmul.bf16.gmra.mxu0 %v6641
    %v6655 = vpop.f32.mrf.mxu0
    %v6656 = vadd.f32 0.0, %v6655
    %v6657 = vpop.f32.mrf.mxu0
    %v6658 = vadd.f32 0.0, %v6657
    %6659 = vmatmul.bf16.gmra.mxu0 %v6644
    %v6660 = vpop.f32.mrf.mxu0
    %v6661 = vadd.f32 0.0, %v6660
    %v6662 = vpop.f32.mrf.mxu0
    %v6663 = vadd.f32 0.0, %v6662
    %6664 = vdwg.mxu0
    %v6666 = vsel %vm763, %v6628, 0
    %v6669 = vsel %vm763, %v6629, 0
    %6671 = vmatpush.bf16.msra.mxu0 0
    %6672 = vmatpush.bf16.msra.mxu0 0
    %6673 = vmatpush.bf16.msra.mxu0 0
    %6674 = vmatpush.bf16.msra.mxu0 0
    %6675 = vmatpush.bf16.msra.mxu0 0
    %6676 = vmatpush.bf16.msra.mxu0 0
    %6677 = vmatpush.bf16.msra.mxu0 %v6631
    %6678 = vmatpush.bf16.msra.mxu0 %v6630
    %6679 = vmatmul.bf16.gmra.mxu0 %v6666
    %v6680 = vpop.f32.mrf.mxu0
    %v6681 = vadd.f32 %v6656, %v6680
    %v6682 = vpop.f32.mrf.mxu0
    %v6683 = vadd.f32 %v6658, %v6682
    %6684 = vmatmul.bf16.gmra.mxu0 %v6669
    %v6685 = vpop.f32.mrf.mxu0
    %v6686 = vadd.f32 %v6661, %v6685
    %v6687 = vpop.f32.mrf.mxu0
    %v6688 = vadd.f32 %v6663, %v6687
    %6689 = vdwg.mxu0
    %v6690 = vld [vmem:[%s5] sm:$0xff]
    %v6691 = vld [vmem:[%s5 + $0x8] sm:$0xff]
    %v6692 = vld [vmem:[%s5 + $0x10] sm:$0xff]
    %v6693 = vld [vmem:[%s5 + $0x18] sm:$0xff]
    %v6694 = vld [vmem:[%s35] sm:$0xff]
    %v6695 = vld [vmem:[%s35 + $0x8] sm:$0xff]
    %v6696 = vld [vmem:[%s35 + $0x10] sm:$0xff]
    %v6697 = vld [vmem:[%s35 + $0x18] sm:$0xff]
    %v6698 = vpack.c.bf16 %v6691, %v6690
    %v6699 = vpack.c.bf16 %v6693, %v6692
    %v6700 = vpack.c.bf16 %v6695, %v6694
    %v6701 = vpack.c.bf16 %v6697, %v6696
    %v6703 = vsel %vm763, %v6698, 0
    %v6706 = vsel %vm763, %v6699, 0
    %6708 = vmatpush.bf16.msra.mxu0 0
    %6709 = vmatpush.bf16.msra.mxu0 0
    %6710 = vmatpush.bf16.msra.mxu0 0
    %6711 = vmatpush.bf16.msra.mxu0 0
    %6712 = vmatpush.bf16.msra.mxu0 0
    %6713 = vmatpush.bf16.msra.mxu0 0
    %6714 = vmatpush.bf16.msra.mxu0 %v6701
    %6715 = vmatpush.bf16.msra.mxu0 %v6700
    %6716 = vmatmul.bf16.gmra.mxu0 %v6703
    %v6717 = vpop.f32.mrf.mxu0
    %v6718 = vadd.f32 0.0, %v6717
    %v6719 = vpop.f32.mrf.mxu0
    %v6720 = vadd.f32 0.0, %v6719
    %6721 = vmatmul.bf16.gmra.mxu0 %v6706
    %v6722 = vpop.f32.mrf.mxu0
    %v6723 = vadd.f32 0.0, %v6722
    %v6724 = vpop.f32.mrf.mxu0
    %v6725 = vadd.f32 0.0, %v6724
    %6726 = vdwg.mxu0
    %v6727 = vadd.f32 %v6681, %v6718
    %v6728 = vadd.f32 %v6683, %v6720
    %v6729 = vadd.f32 %v6686, %v6723
    %v6730 = vadd.f32 %v6688, %v6725
    %v6731 = vld [vmem:[%s13] sm:$0xf]
    %v6732 = vld [vmem:[%s13 + $0x4] sm:$0xf]
    %v6733 = vld [vmem:[%s13 + $0x8] sm:$0xf]
    %v6734 = vld [vmem:[%s13 + $0xc] sm:$0xf]
    %v6735 = vld [vmem:[%s7] sm:$0xff]
    %v6736 = vld [vmem:[%s37] sm:$0xff]
    %v6737 = vld [vmem:[%s37 + $0x8] sm:$0xff]
    %v6738 = vld [vmem:[%s37 + $0x10] sm:$0xff]
    %v6739 = vld [vmem:[%s37 + $0x18] sm:$0xff]
    %v6740 = vpack.c.bf16 %v6735, %v6735
    %v6741 = vpack.c.bf16 %v6737, %v6736
    %v6742 = vpack.c.bf16 %v6739, %v6738
    %v6744 = vsel %vm763, %v6740, 0
    %6746 = vmatpush.bf16.msra.mxu0 0
    %6747 = vmatpush.bf16.msra.mxu0 0
    %6748 = vmatpush.bf16.msra.mxu0 0
    %6749 = vmatpush.bf16.msra.mxu0 0
    %6750 = vmatpush.bf16.msra.mxu0 0
    %6751 = vmatpush.bf16.msra.mxu0 0
    %6752 = vmatpush.bf16.msra.mxu0 %v6742
    %6753 = vmatpush.bf16.msra.mxu0 %v6741
    %6754 = vmatmul.bf16.gmra.mxu0 %v6744
    %v6755 = vpop.f32.mrf.mxu0
    %v6756 = vadd.f32 0.0, %v6755
    %v6757 = vpop.f32.mrf.mxu0
    %6758 = vdwg.mxu0
    %v6759 = vpack.c.bf16 %v6756, %v6756
    %v6764 = vunpack.c.l.b16 %v6731
    %v6765 = vunpack.c.l.b16 %v6732
    %v6766 = vunpack.c.l.b16 %v6733
    %v6767 = vunpack.c.l.b16 %v6734
    %v6768 = vpack.c.b16 %v6765, %v6764
    %v6769 = vpack.c.b16 %v6767, %v6766
    %vm6770 = vcmask 64512
    %v6772 = vsel %vm6770, %v6768, 0
    %v6775 = vsel %vm6770, %v6769, 0
    %vm6777 = vcmask 1043456
    %v6779 = vsel %vm6777, %v6759, 0
    %6781 = vmatpush.bf16.msra.mxu0 0
    %6782 = vmatpush.bf16.msra.mxu0 0
    %6783 = vmatpush.bf16.msra.mxu0 0
    %6784 = vmatpush.bf16.msra.mxu0 0
    %6785 = vmatpush.bf16.msra.mxu0 0
    %6786 = vmatpush.bf16.msra.mxu0 0
    %6787 = vmatpush.bf16.msra.mxu0 0
    %6788 = vmatpush.bf16.msra.mxu0 %v6779
    %6789 = vmatmul.bf16.gmra.mxu0 %v6772
    %v6790 = vpop.f32.mrf.mxu0
    %v6791 = vadd.f32 0.0, %v6790
    %v6792 = vpop.f32.mrf.mxu0
    %v6793 = vadd.f32 0.0, %v6792
    %6794 = vmatmul.bf16.gmra.mxu0 %v6775
    %v6795 = vpop.f32.mrf.mxu0
    %v6796 = vadd.f32 0.0, %v6795
    %v6797 = vpop.f32.mrf.mxu0
    %v6798 = vadd.f32 0.0, %v6797
    %6799 = vdwg.mxu0
    %v6800 = vadd.f32 %v6727, %v6791
    %v6801 = vadd.f32 %v6728, %v6793
    %v6802 = vadd.f32 %v6729, %v6796
    %v6803 = vadd.f32 %v6730, %v6798
    %v6804 = vld [vmem:[#allocation11] sm:$0x1]
    %v6806 = vperm.slane %v6804, 0
    %v6808 = vadd.f32 %v6800, %v6806
    %v6809 = vadd.f32 %v6801, %v6806
    %v6810 = vadd.f32 %v6802, %v6806
    %v6811 = vadd.f32 %v6803, %v6806
    %v6812 = vld [vmem:[#allocation17] sm:$0x3]
    %v6813 = vld [vmem:[%s51] sm:$0xff]
    %v6814 = vld [vmem:[%s51 + $0x8] sm:$0xff]
    %v6815 = vld [vmem:[%s51 + $0x10] sm:$0xff]
    %v6816 = vld [vmem:[%s51 + $0x18] sm:$0xff]
    %v6817 = vld [vmem:[%s57] sm:$0xff]
    %v6818 = vld [vmem:[%s57 + $0x8] sm:$0xff]
    %v6819 = vld [vmem:[%s57 + $0x10] sm:$0xff]
    %v6820 = vld [vmem:[%s57 + $0x18] sm:$0xff]
    %v6821 = vld [vmem:[%s57 + $0x20] sm:$0xff]
    %v6822 = vld [vmem:[%s57 + $0x28] sm:$0xff]
    %v6823 = vld [vmem:[%s57 + $0x30] sm:$0xff]
    %v6824 = vld [vmem:[%s57 + $0x38] sm:$0xff]
    %v6825 = vld [vmem:[%s59] sm:$0xff]
    %v6826 = vld [vmem:[%s59 + $0x8] sm:$0xff]
    %v6828 = vsel %vm763, %v6812, 0
    %6830 = vmatpush.msra.mxu0 0.0
    %6831 = vmatpush.msra.mxu0 0.0
    %6832 = vmatpush.msra.mxu0 0.0
    %6833 = vmatpush.msra.mxu0 0.0
    %6834 = vmatpush.msra.mxu0 0.0
    %6835 = vmatpush.msra.mxu0 0.0
    %6836 = vmatpush.msra.mxu0 0.0
    %6837 = vmatpush.msra.mxu0 0.0
    %6838 = vmatpush.msra.mxu0 0.0
    %6839 = vmatpush.msra.mxu0 0.0
    %6840 = vmatpush.msra.mxu0 0.0
    %6841 = vmatpush.msra.mxu0 0.0
    %6842 = vmatpush.msra.mxu0 %v6811
    %6843 = vmatpush.msra.mxu0 %v6810
    %6844 = vmatpush.msra.mxu0 %v6809
    %6845 = vmatpush.msra.mxu0 %v6808
    %6846 = vmatmul.f32.gmra.mxu0 %v6828
    %v6847 = vpop.f32.mrf.mxu0
    %v6848 = vadd.f32 0.0, %v6847
    %6849 = vdwg.mxu0
    %vm6850 = vcmask 523264
    %v6852 = vsel %vm6850, %v6848, 0
    %6854 = vmatpush.msra.mxu0 0.0
    %6855 = vmatpush.msra.mxu0 0.0
    %6856 = vmatpush.msra.mxu0 0.0
    %6857 = vmatpush.msra.mxu0 0.0
    %6858 = vmatpush.msra.mxu0 0.0
    %6859 = vmatpush.msra.mxu0 0.0
    %6860 = vmatpush.msra.mxu0 0.0
    %6861 = vmatpush.msra.mxu0 0.0
    %6862 = vmatpush.msra.mxu0 %v6824
    %6863 = vmatpush.msra.mxu0 %v6823
    %6864 = vmatpush.msra.mxu0 %v6822
    %6865 = vmatpush.msra.mxu0 %v6821
    %6866 = vmatpush.msra.mxu0 %v6820
    %6867 = vmatpush.msra.mxu0 %v6819
    %6868 = vmatpush.msra.mxu0 %v6818
    %6869 = vmatpush.msra.mxu0 %v6817
    %6870 = vmatmul.f32.gmra.mxu0 %v6852
    %v6871 = vpop.f32.mrf.mxu0
    %v6872 = vadd.f32 0.0, %v6871
    %6873 = vdwg.mxu0
    %v6874 = vmul.f32 %v6872, 0.015625
    %v6876 = vsel %vm4867, %v6874, 0
    %6878 = vmatpush.msra.mxu0 0.0
    %6879 = vmatpush.msra.mxu0 0.0
    %6880 = vmatpush.msra.mxu0 0.0
    %6881 = vmatpush.msra.mxu0 0.0
    %6882 = vmatpush.msra.mxu0 0.0
    %6883 = vmatpush.msra.mxu0 0.0
    %6884 = vmatpush.msra.mxu0 0.0
    %6885 = vmatpush.msra.mxu0 0.0
    %6886 = vmatpush.msra.mxu0 0.0
    %6887 = vmatpush.msra.mxu0 0.0
    %6888 = vmatpush.msra.mxu0 0.0
    %6889 = vmatpush.msra.mxu0 0.0
    %6890 = vmatpush.msra.mxu0 0.0
    %6891 = vmatpush.msra.mxu0 0.0
    %6892 = vmatpush.msra.mxu0 %v6826
    %6893 = vmatpush.msra.mxu0 %v6825
    %6894 = vmatmul.f32.gmra.mxu0 %v6876
    %v6895 = vpop.f32.mrf.mxu0
    %v6896 = vadd.f32 0.0, %v6895
    %6897 = vdwg.mxu0
    %v6899 = vsel %vm4891, %v6813, 0
    %v6902 = vsel %vm4891, %v6814, 0
    %v6905 = vsel %vm4891, %v6815, 0
    %v6908 = vsel %vm4891, %v6816, 0
    %v6911 = vsel %vm4940, %v6896, 0
    %6913 = vmatpush.msra.mxu0 0.0
    %6914 = vmatpush.msra.mxu0 0.0
    %6915 = vmatpush.msra.mxu0 0.0
    %6916 = vmatpush.msra.mxu0 0.0
    %6917 = vmatpush.msra.mxu0 0.0
    %6918 = vmatpush.msra.mxu0 0.0
    %6919 = vmatpush.msra.mxu0 0.0
    %6920 = vmatpush.msra.mxu0 0.0
    %6921 = vmatpush.msra.mxu0 0.0
    %6922 = vmatpush.msra.mxu0 0.0
    %6923 = vmatpush.msra.mxu0 0.0
    %6924 = vmatpush.msra.mxu0 0.0
    %6925 = vmatpush.msra.mxu0 0.0
    %6926 = vmatpush.msra.mxu0 0.0
    %6927 = vmatpush.msra.mxu0 0.0
    %6928 = vmatpush.msra.mxu0 %v6911
    %6929 = vmatmul.f32.gmra.mxu0 %v6899
    %v6930 = vpop.f32.mrf.mxu0
    %v6931 = vadd.f32 0.0, %v6930
    %6932 = vmatmul.f32.gmra.mxu0 %v6902
    %v6933 = vpop.f32.mrf.mxu0
    %v6934 = vadd.f32 0.0, %v6933
    %6935 = vmatmul.f32.gmra.mxu0 %v6905
    %v6936 = vpop.f32.mrf.mxu0
    %v6937 = vadd.f32 0.0, %v6936
    %6938 = vmatmul.f32.gmra.mxu0 %v6908
    %v6939 = vpop.f32.mrf.mxu0
    %v6940 = vadd.f32 0.0, %v6939
    %6941 = vdwg.mxu0
    %v6942 = vsub.f32 %v6808, %v6931
    %v6943 = vsub.f32 %v6809, %v6934
    %v6944 = vsub.f32 %v6810, %v6937
    %v6945 = vsub.f32 %v6811, %v6940
    %v6946 = vmul.f32 %v6942, %v6942
    %v6947 = vmul.f32 %v6943, %v6943
    %v6948 = vmul.f32 %v6944, %v6944
    %v6949 = vmul.f32 %v6945, %v6945
    %6950 = vmatpush.msra.mxu0 0.0
    %6951 = vmatpush.msra.mxu0 0.0
    %6952 = vmatpush.msra.mxu0 0.0
    %6953 = vmatpush.msra.mxu0 0.0
    %6954 = vmatpush.msra.mxu0 0.0
    %6955 = vmatpush.msra.mxu0 0.0
    %6956 = vmatpush.msra.mxu0 0.0
    %6957 = vmatpush.msra.mxu0 0.0
    %6958 = vmatpush.msra.mxu0 0.0
    %6959 = vmatpush.msra.mxu0 0.0
    %6960 = vmatpush.msra.mxu0 0.0
    %6961 = vmatpush.msra.mxu0 0.0
    %6962 = vmatpush.msra.mxu0 %v6949
    %6963 = vmatpush.msra.mxu0 %v6948
    %6964 = vmatpush.msra.mxu0 %v6947
    %6965 = vmatpush.msra.mxu0 %v6946
    %6966 = vmatmul.f32.gmra.mxu0 %v6828
    %v6967 = vpop.f32.mrf.mxu0
    %v6968 = vadd.f32 0.0, %v6967
    %6969 = vdwg.mxu0
    %v6971 = vsel %vm6850, %v6968, 0
    %6973 = vmatpush.msra.mxu0 0.0
    %6974 = vmatpush.msra.mxu0 0.0
    %6975 = vmatpush.msra.mxu0 0.0
    %6976 = vmatpush.msra.mxu0 0.0
    %6977 = vmatpush.msra.mxu0 0.0
    %6978 = vmatpush.msra.mxu0 0.0
    %6979 = vmatpush.msra.mxu0 0.0
    %6980 = vmatpush.msra.mxu0 0.0
    %6981 = vmatpush.msra.mxu0 %v6824
    %6982 = vmatpush.msra.mxu0 %v6823
    %6983 = vmatpush.msra.mxu0 %v6822
    %6984 = vmatpush.msra.mxu0 %v6821
    %6985 = vmatpush.msra.mxu0 %v6820
    %6986 = vmatpush.msra.mxu0 %v6819
    %6987 = vmatpush.msra.mxu0 %v6818
    %6988 = vmatpush.msra.mxu0 %v6817
    %6989 = vmatmul.f32.gmra.mxu0 %v6971
    %v6990 = vpop.f32.mrf.mxu0
    %v6991 = vadd.f32 0.0, %v6990
    %6992 = vdwg.mxu0
    %v6993 = vmul.f32 %v6991, 0.015625
    %v6995 = vsel %vm4867, %v6993, 0
    %6997 = vmatpush.msra.mxu0 0.0
    %6998 = vmatpush.msra.mxu0 0.0
    %6999 = vmatpush.msra.mxu0 0.0
    %7000 = vmatpush.msra.mxu0 0.0
    %7001 = vmatpush.msra.mxu0 0.0
    %7002 = vmatpush.msra.mxu0 0.0
    %7003 = vmatpush.msra.mxu0 0.0
    %7004 = vmatpush.msra.mxu0 0.0
    %7005 = vmatpush.msra.mxu0 0.0
    %7006 = vmatpush.msra.mxu0 0.0
    %7007 = vmatpush.msra.mxu0 0.0
    %7008 = vmatpush.msra.mxu0 0.0
    %7009 = vmatpush.msra.mxu0 0.0
    %7010 = vmatpush.msra.mxu0 0.0
    %7011 = vmatpush.msra.mxu0 %v6826
    %7012 = vmatpush.msra.mxu0 %v6825
    %7013 = vmatmul.f32.gmra.mxu0 %v6995
    %v7014 = vpop.f32.mrf.mxu0
    %v7015 = vadd.f32 0.0, %v7014
    %7016 = vdwg.mxu0
    %v7018 = vsel %vm4940, %v7015, 0
    %7020 = vmatpush.msra.mxu0 0.0
    %7021 = vmatpush.msra.mxu0 0.0
    %7022 = vmatpush.msra.mxu0 0.0
    %7023 = vmatpush.msra.mxu0 0.0
    %7024 = vmatpush.msra.mxu0 0.0
    %7025 = vmatpush.msra.mxu0 0.0
    %7026 = vmatpush.msra.mxu0 0.0
    %7027 = vmatpush.msra.mxu0 0.0
    %7028 = vmatpush.msra.mxu0 0.0
    %7029 = vmatpush.msra.mxu0 0.0
    %7030 = vmatpush.msra.mxu0 0.0
    %7031 = vmatpush.msra.mxu0 0.0
    %7032 = vmatpush.msra.mxu0 0.0
    %7033 = vmatpush.msra.mxu0 0.0
    %7034 = vmatpush.msra.mxu0 0.0
    %7035 = vmatpush.msra.mxu0 %v7018
    %7036 = vmatmul.f32.gmra.mxu0 %v6899
    %v7037 = vpop.f32.mrf.mxu0
    %v7038 = vadd.f32 1e-05, %v7037
    %7039 = vmatmul.f32.gmra.mxu0 %v6902
    %v7040 = vpop.f32.mrf.mxu0
    %v7041 = vadd.f32 1e-05, %v7040
    %7042 = vmatmul.f32.gmra.mxu0 %v6905
    %v7043 = vpop.f32.mrf.mxu0
    %v7044 = vadd.f32 1e-05, %v7043
    %7045 = vmatmul.f32.gmra.mxu0 %v6908
    %v7046 = vpop.f32.mrf.mxu0
    %v7047 = vadd.f32 1e-05, %v7046
    %7048 = vdwg.mxu0
    %v7049 = vrsqrt.pop %v7038
    %v7050 = vmul.f32 %v7049, %v7038
    %v7051 = vmul.f32 %v7050, %v7049
    %v7052 = vmul.f32 0.5, %v7051
    %v7053 = vsub.f32 1.5, %v7052
    %v7054 = vmul.f32 %v7049, %v7053
    %vm7055 = vweird.f32 %v7038
    %vm7056 = vweird.f32 %v7049
    %vm7057 = vmor %vm7055, %vm7056
    %v7058 = vsel %vm7057, %v7049, %v7054
    %v7059 = vrsqrt.pop %v7041
    %v7060 = vmul.f32 %v7059, %v7041
    %v7061 = vmul.f32 %v7060, %v7059
    %v7062 = vmul.f32 0.5, %v7061
    %v7063 = vsub.f32 1.5, %v7062
    %v7064 = vmul.f32 %v7059, %v7063
    %vm7065 = vweird.f32 %v7041
    %vm7066 = vweird.f32 %v7059
    %vm7067 = vmor %vm7065, %vm7066
    %v7068 = vsel %vm7067, %v7059, %v7064
    %v7069 = vrsqrt.pop %v7044
    %v7070 = vmul.f32 %v7069, %v7044
    %v7071 = vmul.f32 %v7070, %v7069
    %v7072 = vmul.f32 0.5, %v7071
    %v7073 = vsub.f32 1.5, %v7072
    %v7074 = vmul.f32 %v7069, %v7073
    %vm7075 = vweird.f32 %v7044
    %vm7076 = vweird.f32 %v7069
    %vm7077 = vmor %vm7075, %vm7076
    %v7078 = vsel %vm7077, %v7069, %v7074
    %v7079 = vrsqrt.pop %v7047
    %v7080 = vmul.f32 %v7079, %v7047
    %v7081 = vmul.f32 %v7080, %v7079
    %v7082 = vmul.f32 0.5, %v7081
    %v7083 = vsub.f32 1.5, %v7082
    %v7084 = vmul.f32 %v7079, %v7083
    %vm7085 = vweird.f32 %v7047
    %vm7086 = vweird.f32 %v7079
    %vm7087 = vmor %vm7085, %vm7086
    %v7088 = vsel %vm7087, %v7079, %v7084
    %v7089 = vmul.f32 %v6942, %v7058
    %v7090 = vmul.f32 %v6943, %v7068
    %v7091 = vmul.f32 %v6944, %v7078
    %v7092 = vmul.f32 %v6945, %v7088
    %v7093 = vld [vmem:[#allocation13] sm:$0x1]
    %v7095 = vperm.slane %v7093, 0
    %v7097 = vmul.f32 %v7089, %v7095
    %v7098 = vmul.f32 %v7090, %v7095
    %v7099 = vmul.f32 %v7091, %v7095
    %v7100 = vmul.f32 %v7092, %v7095
    %v7101 = vld [vmem:[#allocation14] sm:$0x1]
    %v7103 = vperm.slane %v7101, 0
    %v7105 = vadd.f32 %v7097, %v7103
    %v7106 = vadd.f32 %v7098, %v7103
    %v7107 = vadd.f32 %v7099, %v7103
    %v7108 = vadd.f32 %v7100, %v7103
    %v7109 = vmax.f32 %v7105, 0.0
    %v7110 = vmax.f32 %v7106, 0.0
    %v7111 = vmax.f32 %v7107, 0.0
    %v7112 = vmax.f32 %v7108, 0.0
    %7113 = vst.msk [vmem:[#allocation19] sm:$0xff] %vm6850, %v7109
    %7114 = vst.msk [vmem:[#allocation19 + $0x8] sm:$0xff] %vm6850, %v7110
    %7115 = vst.msk [vmem:[#allocation19 + $0x10] sm:$0xff] %vm6850, %v7111
    %7116 = vst.msk [vmem:[#allocation19 + $0x18] sm:$0xff] %vm6850, %v7112
    // Predicated region
    $region162: #{ecodepth_dar_a_forward.4} parent=1 // pred_check
      _
    $region163: #{ecodepth_dar_a_forward.4} parent=1 // pred_check_branch
      %7118 = sbr.rel (0) target = $region165
    $region164: #{ecodepth_dar_a_forward.4} parent=1 // pred_region
      %7120 = vsyncadd [#allocation4], 0
      %s7121 = sshll.u32 [#allocation19], 4
      %s7122 = int_to_ptr.vmem [resolvable:$true] %s7121
      %s7123 = sshll.u32 %s61, 4
      %s7124 = int_to_ptr.hbm [resolvable:$true] %s7123
      %7129 = dma.vmem_to_hbm [thread:$0]  %s7122, 512, %s7124, [#allocation4], 128, 128, 8
    $region165: #{ecodepth_dar_a_forward.4} parent=1 // pred_fallthru
      _
    // Predicated region
    $region166: #{ecodepth_dar_a_forward.4} parent=1 // pred_check
      _
    $region167: #{ecodepth_dar_a_forward.4} parent=1 // pred_check_branch
      %7131 = sbr.rel (0) target = $region169
    $region168: #{ecodepth_dar_a_forward.4} parent=1 // pred_region
      %7133 = dma.done [#allocation4], 512
    $region169: #{ecodepth_dar_a_forward.4} parent=1 // pred_fallthru
      _
    %7134 = vsyncpa [#allocation3], 1
    %7135 = vsyncpa [#allocation6], 1
    %7136 = vsyncpa [#allocation9], 1
    %7137 = vsyncpa [#allocation12], 1
    %7138 = vsyncpa [#allocation15], 1
    %7139 = vsyncpa [#allocation18], 1
    %7140 = vsyncpa [#allocation4], 1

</llo_original>
